<compile_context>
chip_gen: v7x
topology: tpu7x:2x2x1
jax: 0.10.0
libtpu: 0.0.40
codegen_flags: <defaults>
</compile_context>

<pallas_src>
import jax
import jax.numpy as jnp
from jax.experimental import pallas as pl
from jax.experimental.pallas import tpu as pltpu

INPUT_NUM = 28   # features per timestep (one image row)
SEQ_LEN = 28     # timesteps (image rows)
HIDDEN_NUM = 32
OUTPUT_NUM = 10
BATCH = 64       # multiple of 8 -> every per-step slice is one sublane tile block


def _rnn_kernel(x_ref, whx_ref, whh_ref, bh_ref, wox_ref, woh_ref, bo_ref,
                out_ref, pre_ref):
    B, O = out_ref.shape
    TB, I = x_ref.shape
    T = TB // B
    H = whh_ref.shape[0]
    nrec = (T - 1) * B   # rows of `pre` actually consumed by the recurrence

    # ---- Prologue: all non-serial MXU work -----------------------------------
    # Input-side contribution of every recurrence step in ONE MXU matmul,
    # streamed straight into VMEM scratch (not held live across the loop).
    pre_ref[...] = (
        jnp.dot(x_ref[0:nrec, :], whx_ref[...], preferred_element_type=jnp.float32)
        + bh_ref[...]
    )
    # x-part of the output projection (depends only on the last image row),
    # written to out_ref now so only h @ Woh remains on the serial tail.
    out_ref[...] = (
        jnp.dot(x_ref[nrec:TB, :], wox_ref[...], preferred_element_type=jnp.float32)
        + bo_ref[...]
    )

    # ---- Recurrence: h_{t+1} = relu(pre_t + h_t @ Whh) ------------------------
    # Only the hidden state ENTERING the last timestep feeds the output (the
    # final PyTorch hidden update is dead), so run T-1 steps.  Fully unrolled;
    # the carry stays in vregs; each step touches one static B-row (8-aligned)
    # VMEM slice of `pre` plus the resident (H,H) weight.
    whh = whh_ref[...]
    h = jnp.zeros((B, H), jnp.float32)
    for t in range(T - 1):
        h = jnp.maximum(
            pre_ref[t * B:(t + 1) * B, :]
            + jnp.dot(h, whh, preferred_element_type=jnp.float32),
            0.0,
        )

    # ---- Epilogue: only h @ Woh left on the critical path ---------------------
    out_ref[...] = out_ref[...] + jnp.dot(
        h, woh_ref[...], preferred_element_type=jnp.float32)


@jax.jit
def rnn_forward(x, w_hidden, b_hidden, w_output, b_output):
    """x: (B, T, I) float32; weights in PyTorch nn.Linear convention:
       w_hidden (H, I+H), b_hidden (H,), w_output (O, I+H), b_output (O,)."""
    B, T, I = x.shape
    H = w_hidden.shape[0]
    O = w_output.shape[0]

    # Split each Linear weight into input-half and hidden-half and transpose to
    # (in_features, out_features) for row-major matmul on the MXU.
    whx = w_hidden[:, :I].T          # (I, H)
    whh = w_hidden[:, I:].T          # (H, H)
    wox = w_output[:, :I].T          # (I, O)
    woh = w_output[:, I:].T          # (H, O)
    bh = b_hidden.reshape(1, H)
    bo = b_output.reshape(1, O)

    # Time-major, flattened: row t*B + b holds x[b, t, :]. Every per-timestep
    # slice inside the kernel is then a static, sublane-aligned slice (B % 8 == 0).
    x_flat = jnp.transpose(x, (1, 0, 2)).reshape(T * B, I)

    vmem_spec = pl.BlockSpec(memory_space=pltpu.MemorySpace.VMEM)
    out = pl.pallas_call(
        _rnn_kernel,
        out_shape=jax.ShapeDtypeStruct((B, O), jnp.float32),
        in_specs=[vmem_spec] * 7,
        out_specs=vmem_spec,
        scratch_shapes=[pltpu.VMEM(((T - 1) * B, H), jnp.float32)],
    )(x_flat, whx, whh, bh, wox, woh, bo)
    return out


def rnn_reference(x, w_hidden, b_hidden, w_output, b_output):
    """Pure-JAX reference mirroring the PyTorch loop exactly."""
    B, T, I = x.shape
    H = w_hidden.shape[0]
    hidden = jnp.zeros((B, H), jnp.float32)
    outputs = None
    for t in range(T):
        combined = jnp.concatenate([x[:, t, :], hidden], axis=1)
        outputs = combined @ w_output.T + b_output
        hidden = jax.nn.relu(combined @ w_hidden.T + b_hidden)
    return outputs


if __name__ == "__main__":
    key = jax.random.PRNGKey(0)
    k_x, k_wh, k_bh, k_wo, k_bo = jax.random.split(key, 5)

    # Input consistent with the module's view(-1, 28, 28).
    x = jax.random.normal(k_x, (BATCH, SEQ_LEN, INPUT_NUM), dtype=jnp.float32)

    fan_in = INPUT_NUM + HIDDEN_NUM
    bound = 1.0 / (fan_in ** 0.5)
    w_hidden = jax.random.uniform(k_wh, (HIDDEN_NUM, fan_in), jnp.float32, -bound, bound)
    b_hidden = jax.random.uniform(k_bh, (HIDDEN_NUM,), jnp.float32, -bound, bound)
    w_output = jax.random.uniform(k_wo, (OUTPUT_NUM, fan_in), jnp.float32, -bound, bound)
    b_output = jax.random.uniform(k_bo, (OUTPUT_NUM,), jnp.float32, -bound, bound)

    out = rnn_forward(x, w_hidden, b_hidden, w_output, b_output)
    out = jax.block_until_ready(out)

    ref = rnn_reference(x, w_hidden, b_hidden, w_output, b_output)
    assert out.shape == (BATCH, OUTPUT_NUM)
    assert jnp.allclose(out, ref, atol=1e-4, rtol=1e-4), "mismatch vs reference"

    print("KERNEL_OK")
</pallas_src>

<mosaic_0001>
module attributes {stable_mosaic.version = 11 : i64} {
  func.func @_rnn_kernel(%arg0: memref<1792x28xf32, #tpu.memory_space<vmem>>, %arg1: memref<28x32xf32, #tpu.memory_space<vmem>>, %arg2: memref<32x32xf32, #tpu.memory_space<vmem>>, %arg3: memref<1x32xf32, #tpu.memory_space<vmem>>, %arg4: memref<28x10xf32, #tpu.memory_space<vmem>>, %arg5: memref<32x10xf32, #tpu.memory_space<vmem>>, %arg6: memref<1x10xf32, #tpu.memory_space<vmem>>, %arg7: memref<64x10xf32, #tpu.memory_space<vmem>>, %arg8: memref<1728x32xf32, #tpu.memory_space<vmem>>) attributes {dimension_semantics = [], scalar_prefetch = 0 : i64, scratch_operands = 1 : i64, tpu.core_type = #tpu.core_type<tc>} {
    %c0 = arith.constant 0 : index
    %c0_0 = arith.constant 0 : index
    %0 = vector.load %arg0[%c0, %c0_0] : memref<1792x28xf32, #tpu.memory_space<vmem>>, vector<1728x28xf32>
    %c0_1 = arith.constant 0 : index
    %c0_2 = arith.constant 0 : index
    %1 = vector.load %arg1[%c0_1, %c0_2] : memref<28x32xf32, #tpu.memory_space<vmem>>, vector<28x32xf32>
    %cst = arith.constant dense<0.000000e+00> : vector<1728x32xf32>
    %2 = tpu.matmul %0, %1, %cst {dimension_numbers = #tpu.dot_dimension_numbers<[1], [0], [0], [1], [0, 0, 1, 1], [], []>} : vector<1728x28xf32>, vector<28x32xf32>, vector<1728x32xf32> -> vector<1728x32xf32>
    %c0_3 = arith.constant 0 : index
    %c0_4 = arith.constant 0 : index
    %3 = vector.load %arg3[%c0_3, %c0_4] : memref<1x32xf32, #tpu.memory_space<vmem>>, vector<1x32xf32>
    %4 = vector.broadcast %3 : vector<1x32xf32> to vector<1728x32xf32>
    %5 = arith.addf %2, %4 : vector<1728x32xf32>
    %c0_5 = arith.constant 0 : index
    %c0_6 = arith.constant 0 : index
    %6 = vector.load %arg8[%c0_5, %c0_6] : memref<1728x32xf32, #tpu.memory_space<vmem>>, vector<1728x32xf32>
    tpu.vector_store %arg8[%c0_5, %c0_6], %5 {strides = array<i32>} : memref<1728x32xf32, #tpu.memory_space<vmem>>, vector<1728x32xf32>,
    %c1728 = arith.constant 1728 : index
    %c0_7 = arith.constant 0 : index
    %7 = vector.load %arg0[%c1728, %c0_7] : memref<1792x28xf32, #tpu.memory_space<vmem>>, vector<64x28xf32>
    %c0_8 = arith.constant 0 : index
    %c0_9 = arith.constant 0 : index
    %8 = vector.load %arg4[%c0_8, %c0_9] : memref<28x10xf32, #tpu.memory_space<vmem>>, vector<28x10xf32>
    %cst_10 = arith.constant dense<0.000000e+00> : vector<64x10xf32>
    %9 = tpu.matmul %7, %8, %cst_10 {dimension_numbers = #tpu.dot_dimension_numbers<[1], [0], [0], [1], [0, 0, 1, 1], [], []>} : vector<64x28xf32>, vector<28x10xf32>, vector<64x10xf32> -> vector<64x10xf32>
    %c0_11 = arith.constant 0 : index
    %c0_12 = arith.constant 0 : index
    %10 = vector.load %arg6[%c0_11, %c0_12] : memref<1x10xf32, #tpu.memory_space<vmem>>, vector<1x10xf32>
    %11 = vector.broadcast %10 : vector<1x10xf32> to vector<64x10xf32>
    %12 = arith.addf %9, %11 : vector<64x10xf32>
    %c0_13 = arith.constant 0 : index
    %c0_14 = arith.constant 0 : index
    %13 = vector.load %arg7[%c0_13, %c0_14] : memref<64x10xf32, #tpu.memory_space<vmem>>, vector<64x10xf32>
    tpu.vector_store %arg7[%c0_13, %c0_14], %12 {strides = array<i32>} : memref<64x10xf32, #tpu.memory_space<vmem>>, vector<64x10xf32>,
    %c0_15 = arith.constant 0 : index
    %c0_16 = arith.constant 0 : index
    %14 = vector.load %arg2[%c0_15, %c0_16] : memref<32x32xf32, #tpu.memory_space<vmem>>, vector<32x32xf32>
    %cst_17 = arith.constant 0.000000e+00 : f32
    %15 = vector.broadcast %cst_17 : f32 to vector<64x32xf32>
    %c0_18 = arith.constant 0 : index
    %c0_19 = arith.constant 0 : index
    %16 = vector.load %arg8[%c0_18, %c0_19] : memref<1728x32xf32, #tpu.memory_space<vmem>>, vector<64x32xf32>
    %cst_20 = arith.constant dense<0.000000e+00> : vector<64x32xf32>
    %17 = tpu.matmul %15, %14, %cst_20 {dimension_numbers = #tpu.dot_dimension_numbers<[1], [0], [0], [1], [0, 0, 1, 1], [], []>} : vector<64x32xf32>, vector<32x32xf32>, vector<64x32xf32> -> vector<64x32xf32>
    %18 = arith.addf %16, %17 : vector<64x32xf32>
    %cst_21 = arith.constant 0.000000e+00 : f32
    %19 = vector.broadcast %cst_21 : f32 to vector<64x32xf32>
    %20 = arith.maximumf %18, %19 : vector<64x32xf32>
    %c64 = arith.constant 64 : index
    %c0_22 = arith.constant 0 : index
    %21 = vector.load %arg8[%c64, %c0_22] : memref<1728x32xf32, #tpu.memory_space<vmem>>, vector<64x32xf32>
    %cst_23 = arith.constant dense<0.000000e+00> : vector<64x32xf32>
    %22 = tpu.matmul %20, %14, %cst_23 {dimension_numbers = #tpu.dot_dimension_numbers<[1], [0], [0], [1], [0, 0, 1, 1], [], []>} : vector<64x32xf32>, vector<32x32xf32>, vector<64x32xf32> -> vector<64x32xf32>
    %23 = arith.addf %21, %22 : vector<64x32xf32>
    %cst_24 = arith.constant 0.000000e+00 : f32
    %24 = vector.broadcast %cst_24 : f32 to vector<64x32xf32>
    %25 = arith.maximumf %23, %24 : vector<64x32xf32>
    %c128 = arith.constant 128 : index
    %c0_25 = arith.constant 0 : index
    %26 = vector.load %arg8[%c128, %c0_25] : memref<1728x32xf32, #tpu.memory_space<vmem>>, vector<64x32xf32>
    %cst_26 = arith.constant dense<0.000000e+00> : vector<64x32xf32>
    %27 = tpu.matmul %25, %14, %cst_26 {dimension_numbers = #tpu.dot_dimension_numbers<[1], [0], [0], [1], [0, 0, 1, 1], [], []>} : vector<64x32xf32>, vector<32x32xf32>, vector<64x32xf32> -> vector<64x32xf32>
    %28 = arith.addf %26, %27 : vector<64x32xf32>
    %cst_27 = arith.constant 0.000000e+00 : f32
    %29 = vector.broadcast %cst_27 : f32 to vector<64x32xf32>
    %30 = arith.maximumf %28, %29 : vector<64x32xf32>
    %c192 = arith.constant 192 : index
    %c0_28 = arith.constant 0 : index
    %31 = vector.load %arg8[%c192, %c0_28] : memref<1728x32xf32, #tpu.memory_space<vmem>>, vector<64x32xf32>
    %cst_29 = arith.constant dense<0.000000e+00> : vector<64x32xf32>
    %32 = tpu.matmul %30, %14, %cst_29 {dimension_numbers = #tpu.dot_dimension_numbers<[1], [0], [0], [1], [0, 0, 1, 1], [], []>} : vector<64x32xf32>, vector<32x32xf32>, vector<64x32xf32> -> vector<64x32xf32>
    %33 = arith.addf %31, %32 : vector<64x32xf32>
    %cst_30 = arith.constant 0.000000e+00 : f32
    %34 = vector.broadcast %cst_30 : f32 to vector<64x32xf32>
    %35 = arith.maximumf %33, %34 : vector<64x32xf32>
    %c256 = arith.constant 256 : index
    %c0_31 = arith.constant 0 : index
    %36 = vector.load %arg8[%c256, %c0_31] : memref<1728x32xf32, #tpu.memory_space<vmem>>, vector<64x32xf32>
    %cst_32 = arith.constant dense<0.000000e+00> : vector<64x32xf32>
    %37 = tpu.matmul %35, %14, %cst_32 {dimension_numbers = #tpu.dot_dimension_numbers<[1], [0], [0], [1], [0, 0, 1, 1], [], []>} : vector<64x32xf32>, vector<32x32xf32>, vector<64x32xf32> -> vector<64x32xf32>
    %38 = arith.addf %36, %37 : vector<64x32xf32>
    %cst_33 = arith.constant 0.000000e+00 : f32
    %39 = vector.broadcast %cst_33 : f32 to vector<64x32xf32>
    %40 = arith.maximumf %38, %39 : vector<64x32xf32>
    %c320 = arith.constant 320 : index
    %c0_34 = arith.constant 0 : index
    %41 = vector.load %arg8[%c320, %c0_34] : memref<1728x32xf32, #tpu.memory_space<vmem>>, vector<64x32xf32>
    %cst_35 = arith.constant dense<0.000000e+00> : vector<64x32xf32>
    %42 = tpu.matmul %40, %14, %cst_35 {dimension_numbers = #tpu.dot_dimension_numbers<[1], [0], [0], [1], [0, 0, 1, 1], [], []>} : vector<64x32xf32>, vector<32x32xf32>, vector<64x32xf32> -> vector<64x32xf32>
    %43 = arith.addf %41, %42 : vector<64x32xf32>
    %cst_36 = arith.constant 0.000000e+00 : f32
    %44 = vector.broadcast %cst_36 : f32 to vector<64x32xf32>
    %45 = arith.maximumf %43, %44 : vector<64x32xf32>
    %c384 = arith.constant 384 : index
    %c0_37 = arith.constant 0 : index
    %46 = vector.load %arg8[%c384, %c0_37] : memref<1728x32xf32, #tpu.memory_space<vmem>>, vector<64x32xf32>
    %cst_38 = arith.constant dense<0.000000e+00> : vector<64x32xf32>
    %47 = tpu.matmul %45, %14, %cst_38 {dimension_numbers = #tpu.dot_dimension_numbers<[1], [0], [0], [1], [0, 0, 1, 1], [], []>} : vector<64x32xf32>, vector<32x32xf32>, vector<64x32xf32> -> vector<64x32xf32>
    %48 = arith.addf %46, %47 : vector<64x32xf32>
    %cst_39 = arith.constant 0.000000e+00 : f32
    %49 = vector.broadcast %cst_39 : f32 to vector<64x32xf32>
    %50 = arith.maximumf %48, %49 : vector<64x32xf32>
    %c448 = arith.constant 448 : index
    %c0_40 = arith.constant 0 : index
    %51 = vector.load %arg8[%c448, %c0_40] : memref<1728x32xf32, #tpu.memory_space<vmem>>, vector<64x32xf32>
    %cst_41 = arith.constant dense<0.000000e+00> : vector<64x32xf32>
    %52 = tpu.matmul %50, %14, %cst_41 {dimension_numbers = #tpu.dot_dimension_numbers<[1], [0], [0], [1], [0, 0, 1, 1], [], []>} : vector<64x32xf32>, vector<32x32xf32>, vector<64x32xf32> -> vector<64x32xf32>
    %53 = arith.addf %51, %52 : vector<64x32xf32>
    %cst_42 = arith.constant 0.000000e+00 : f32
    %54 = vector.broadcast %cst_42 : f32 to vector<64x32xf32>
    %55 = arith.maximumf %53, %54 : vector<64x32xf32>
    %c512 = arith.constant 512 : index
    %c0_43 = arith.constant 0 : index
    %56 = vector.load %arg8[%c512, %c0_43] : memref<1728x32xf32, #tpu.memory_space<vmem>>, vector<64x32xf32>
    %cst_44 = arith.constant dense<0.000000e+00> : vector<64x32xf32>
    %57 = tpu.matmul %55, %14, %cst_44 {dimension_numbers = #tpu.dot_dimension_numbers<[1], [0], [0], [1], [0, 0, 1, 1], [], []>} : vector<64x32xf32>, vector<32x32xf32>, vector<64x32xf32> -> vector<64x32xf32>
    %58 = arith.addf %56, %57 : vector<64x32xf32>
    %cst_45 = arith.constant 0.000000e+00 : f32
    %59 = vector.broadcast %cst_45 : f32 to vector<64x32xf32>
    %60 = arith.maximumf %58, %59 : vector<64x32xf32>
    %c576 = arith.constant 576 : index
    %c0_46 = arith.constant 0 : index
    %61 = vector.load %arg8[%c576, %c0_46] : memref<1728x32xf32, #tpu.memory_space<vmem>>, vector<64x32xf32>
    %cst_47 = arith.constant dense<0.000000e+00> : vector<64x32xf32>
    %62 = tpu.matmul %60, %14, %cst_47 {dimension_numbers = #tpu.dot_dimension_numbers<[1], [0], [0], [1], [0, 0, 1, 1], [], []>} : vector<64x32xf32>, vector<32x32xf32>, vector<64x32xf32> -> vector<64x32xf32>
    %63 = arith.addf %61, %62 : vector<64x32xf32>
    %cst_48 = arith.constant 0.000000e+00 : f32
    %64 = vector.broadcast %cst_48 : f32 to vector<64x32xf32>
    %65 = arith.maximumf %63, %64 : vector<64x32xf32>
    %c640 = arith.constant 640 : index
    %c0_49 = arith.constant 0 : index
    %66 = vector.load %arg8[%c640, %c0_49] : memref<1728x32xf32, #tpu.memory_space<vmem>>, vector<64x32xf32>
    %cst_50 = arith.constant dense<0.000000e+00> : vector<64x32xf32>
    %67 = tpu.matmul %65, %14, %cst_50 {dimension_numbers = #tpu.dot_dimension_numbers<[1], [0], [0], [1], [0, 0, 1, 1], [], []>} : vector<64x32xf32>, vector<32x32xf32>, vector<64x32xf32> -> vector<64x32xf32>
    %68 = arith.addf %66, %67 : vector<64x32xf32>
    %cst_51 = arith.constant 0.000000e+00 : f32
    %69 = vector.broadcast %cst_51 : f32 to vector<64x32xf32>
    %70 = arith.maximumf %68, %69 : vector<64x32xf32>
    %c704 = arith.constant 704 : index
    %c0_52 = arith.constant 0 : index
    %71 = vector.load %arg8[%c704, %c0_52] : memref<1728x32xf32, #tpu.memory_space<vmem>>, vector<64x32xf32>
    %cst_53 = arith.constant dense<0.000000e+00> : vector<64x32xf32>
    %72 = tpu.matmul %70, %14, %cst_53 {dimension_numbers = #tpu.dot_dimension_numbers<[1], [0], [0], [1], [0, 0, 1, 1], [], []>} : vector<64x32xf32>, vector<32x32xf32>, vector<64x32xf32> -> vector<64x32xf32>
    %73 = arith.addf %71, %72 : vector<64x32xf32>
    %cst_54 = arith.constant 0.000000e+00 : f32
    %74 = vector.broadcast %cst_54 : f32 to vector<64x32xf32>
    %75 = arith.maximumf %73, %74 : vector<64x32xf32>
    %c768 = arith.constant 768 : index
    %c0_55 = arith.constant 0 : index
    %76 = vector.load %arg8[%c768, %c0_55] : memref<1728x32xf32, #tpu.memory_space<vmem>>, vector<64x32xf32>
    %cst_56 = arith.constant dense<0.000000e+00> : vector<64x32xf32>
    %77 = tpu.matmul %75, %14, %cst_56 {dimension_numbers = #tpu.dot_dimension_numbers<[1], [0], [0], [1], [0, 0, 1, 1], [], []>} : vector<64x32xf32>, vector<32x32xf32>, vector<64x32xf32> -> vector<64x32xf32>
    %78 = arith.addf %76, %77 : vector<64x32xf32>
    %cst_57 = arith.constant 0.000000e+00 : f32
    %79 = vector.broadcast %cst_57 : f32 to vector<64x32xf32>
    %80 = arith.maximumf %78, %79 : vector<64x32xf32>
    %c832 = arith.constant 832 : index
    %c0_58 = arith.constant 0 : index
    %81 = vector.load %arg8[%c832, %c0_58] : memref<1728x32xf32, #tpu.memory_space<vmem>>, vector<64x32xf32>
    %cst_59 = arith.constant dense<0.000000e+00> : vector<64x32xf32>
    %82 = tpu.matmul %80, %14, %cst_59 {dimension_numbers = #tpu.dot_dimension_numbers<[1], [0], [0], [1], [0, 0, 1, 1], [], []>} : vector<64x32xf32>, vector<32x32xf32>, vector<64x32xf32> -> vector<64x32xf32>
    %83 = arith.addf %81, %82 : vector<64x32xf32>
    %cst_60 = arith.constant 0.000000e+00 : f32
    %84 = vector.broadcast %cst_60 : f32 to vector<64x32xf32>
    %85 = arith.maximumf %83, %84 : vector<64x32xf32>
    %c896 = arith.constant 896 : index
    %c0_61 = arith.constant 0 : index
    %86 = vector.load %arg8[%c896, %c0_61] : memref<1728x32xf32, #tpu.memory_space<vmem>>, vector<64x32xf32>
    %cst_62 = arith.constant dense<0.000000e+00> : vector<64x32xf32>
    %87 = tpu.matmul %85, %14, %cst_62 {dimension_numbers = #tpu.dot_dimension_numbers<[1], [0], [0], [1], [0, 0, 1, 1], [], []>} : vector<64x32xf32>, vector<32x32xf32>, vector<64x32xf32> -> vector<64x32xf32>
    %88 = arith.addf %86, %87 : vector<64x32xf32>
    %cst_63 = arith.constant 0.000000e+00 : f32
    %89 = vector.broadcast %cst_63 : f32 to vector<64x32xf32>
    %90 = arith.maximumf %88, %89 : vector<64x32xf32>
    %c960 = arith.constant 960 : index
    %c0_64 = arith.constant 0 : index
    %91 = vector.load %arg8[%c960, %c0_64] : memref<1728x32xf32, #tpu.memory_space<vmem>>, vector<64x32xf32>
    %cst_65 = arith.constant dense<0.000000e+00> : vector<64x32xf32>
    %92 = tpu.matmul %90, %14, %cst_65 {dimension_numbers = #tpu.dot_dimension_numbers<[1], [0], [0], [1], [0, 0, 1, 1], [], []>} : vector<64x32xf32>, vector<32x32xf32>, vector<64x32xf32> -> vector<64x32xf32>
    %93 = arith.addf %91, %92 : vector<64x32xf32>
    %cst_66 = arith.constant 0.000000e+00 : f32
    %94 = vector.broadcast %cst_66 : f32 to vector<64x32xf32>
    %95 = arith.maximumf %93, %94 : vector<64x32xf32>
    %c1024 = arith.constant 1024 : index
    %c0_67 = arith.constant 0 : index
    %96 = vector.load %arg8[%c1024, %c0_67] : memref<1728x32xf32, #tpu.memory_space<vmem>>, vector<64x32xf32>
    %cst_68 = arith.constant dense<0.000000e+00> : vector<64x32xf32>
    %97 = tpu.matmul %95, %14, %cst_68 {dimension_numbers = #tpu.dot_dimension_numbers<[1], [0], [0], [1], [0, 0, 1, 1], [], []>} : vector<64x32xf32>, vector<32x32xf32>, vector<64x32xf32> -> vector<64x32xf32>
    %98 = arith.addf %96, %97 : vector<64x32xf32>
    %cst_69 = arith.constant 0.000000e+00 : f32
    %99 = vector.broadcast %cst_69 : f32 to vector<64x32xf32>
    %100 = arith.maximumf %98, %99 : vector<64x32xf32>
    %c1088 = arith.constant 1088 : index
    %c0_70 = arith.constant 0 : index
    %101 = vector.load %arg8[%c1088, %c0_70] : memref<1728x32xf32, #tpu.memory_space<vmem>>, vector<64x32xf32>
    %cst_71 = arith.constant dense<0.000000e+00> : vector<64x32xf32>
    %102 = tpu.matmul %100, %14, %cst_71 {dimension_numbers = #tpu.dot_dimension_numbers<[1], [0], [0], [1], [0, 0, 1, 1], [], []>} : vector<64x32xf32>, vector<32x32xf32>, vector<64x32xf32> -> vector<64x32xf32>
    %103 = arith.addf %101, %102 : vector<64x32xf32>
    %cst_72 = arith.constant 0.000000e+00 : f32
    %104 = vector.broadcast %cst_72 : f32 to vector<64x32xf32>
    %105 = arith.maximumf %103, %104 : vector<64x32xf32>
    %c1152 = arith.constant 1152 : index
    %c0_73 = arith.constant 0 : index
    %106 = vector.load %arg8[%c1152, %c0_73] : memref<1728x32xf32, #tpu.memory_space<vmem>>, vector<64x32xf32>
    %cst_74 = arith.constant dense<0.000000e+00> : vector<64x32xf32>
    %107 = tpu.matmul %105, %14, %cst_74 {dimension_numbers = #tpu.dot_dimension_numbers<[1], [0], [0], [1], [0, 0, 1, 1], [], []>} : vector<64x32xf32>, vector<32x32xf32>, vector<64x32xf32> -> vector<64x32xf32>
    %108 = arith.addf %106, %107 : vector<64x32xf32>
    %cst_75 = arith.constant 0.000000e+00 : f32
    %109 = vector.broadcast %cst_75 : f32 to vector<64x32xf32>
    %110 = arith.maximumf %108, %109 : vector<64x32xf32>
    %c1216 = arith.constant 1216 : index
    %c0_76 = arith.constant 0 : index
    %111 = vector.load %arg8[%c1216, %c0_76] : memref<1728x32xf32, #tpu.memory_space<vmem>>, vector<64x32xf32>
    %cst_77 = arith.constant dense<0.000000e+00> : vector<64x32xf32>
    %112 = tpu.matmul %110, %14, %cst_77 {dimension_numbers = #tpu.dot_dimension_numbers<[1], [0], [0], [1], [0, 0, 1, 1], [], []>} : vector<64x32xf32>, vector<32x32xf32>, vector<64x32xf32> -> vector<64x32xf32>
    %113 = arith.addf %111, %112 : vector<64x32xf32>
    %cst_78 = arith.constant 0.000000e+00 : f32
    %114 = vector.broadcast %cst_78 : f32 to vector<64x32xf32>
    %115 = arith.maximumf %113, %114 : vector<64x32xf32>
    %c1280 = arith.constant 1280 : index
    %c0_79 = arith.constant 0 : index
    %116 = vector.load %arg8[%c1280, %c0_79] : memref<1728x32xf32, #tpu.memory_space<vmem>>, vector<64x32xf32>
    %cst_80 = arith.constant dense<0.000000e+00> : vector<64x32xf32>
    %117 = tpu.matmul %115, %14, %cst_80 {dimension_numbers = #tpu.dot_dimension_numbers<[1], [0], [0], [1], [0, 0, 1, 1], [], []>} : vector<64x32xf32>, vector<32x32xf32>, vector<64x32xf32> -> vector<64x32xf32>
    %118 = arith.addf %116, %117 : vector<64x32xf32>
    %cst_81 = arith.constant 0.000000e+00 : f32
    %119 = vector.broadcast %cst_81 : f32 to vector<64x32xf32>
    %120 = arith.maximumf %118, %119 : vector<64x32xf32>
    %c1344 = arith.constant 1344 : index
    %c0_82 = arith.constant 0 : index
    %121 = vector.load %arg8[%c1344, %c0_82] : memref<1728x32xf32, #tpu.memory_space<vmem>>, vector<64x32xf32>
    %cst_83 = arith.constant dense<0.000000e+00> : vector<64x32xf32>
    %122 = tpu.matmul %120, %14, %cst_83 {dimension_numbers = #tpu.dot_dimension_numbers<[1], [0], [0], [1], [0, 0, 1, 1], [], []>} : vector<64x32xf32>, vector<32x32xf32>, vector<64x32xf32> -> vector<64x32xf32>
    %123 = arith.addf %121, %122 : vector<64x32xf32>
    %cst_84 = arith.constant 0.000000e+00 : f32
    %124 = vector.broadcast %cst_84 : f32 to vector<64x32xf32>
    %125 = arith.maximumf %123, %124 : vector<64x32xf32>
    %c1408 = arith.constant 1408 : index
    %c0_85 = arith.constant 0 : index
    %126 = vector.load %arg8[%c1408, %c0_85] : memref<1728x32xf32, #tpu.memory_space<vmem>>, vector<64x32xf32>
    %cst_86 = arith.constant dense<0.000000e+00> : vector<64x32xf32>
    %127 = tpu.matmul %125, %14, %cst_86 {dimension_numbers = #tpu.dot_dimension_numbers<[1], [0], [0], [1], [0, 0, 1, 1], [], []>} : vector<64x32xf32>, vector<32x32xf32>, vector<64x32xf32> -> vector<64x32xf32>
    %128 = arith.addf %126, %127 : vector<64x32xf32>
    %cst_87 = arith.constant 0.000000e+00 : f32
    %129 = vector.broadcast %cst_87 : f32 to vector<64x32xf32>
    %130 = arith.maximumf %128, %129 : vector<64x32xf32>
    %c1472 = arith.constant 1472 : index
    %c0_88 = arith.constant 0 : index
    %131 = vector.load %arg8[%c1472, %c0_88] : memref<1728x32xf32, #tpu.memory_space<vmem>>, vector<64x32xf32>
    %cst_89 = arith.constant dense<0.000000e+00> : vector<64x32xf32>
    %132 = tpu.matmul %130, %14, %cst_89 {dimension_numbers = #tpu.dot_dimension_numbers<[1], [0], [0], [1], [0, 0, 1, 1], [], []>} : vector<64x32xf32>, vector<32x32xf32>, vector<64x32xf32> -> vector<64x32xf32>
    %133 = arith.addf %131, %132 : vector<64x32xf32>
    %cst_90 = arith.constant 0.000000e+00 : f32
    %134 = vector.broadcast %cst_90 : f32 to vector<64x32xf32>
    %135 = arith.maximumf %133, %134 : vector<64x32xf32>
    %c1536 = arith.constant 1536 : index
    %c0_91 = arith.constant 0 : index
    %136 = vector.load %arg8[%c1536, %c0_91] : memref<1728x32xf32, #tpu.memory_space<vmem>>, vector<64x32xf32>
    %cst_92 = arith.constant dense<0.000000e+00> : vector<64x32xf32>
    %137 = tpu.matmul %135, %14, %cst_92 {dimension_numbers = #tpu.dot_dimension_numbers<[1], [0], [0], [1], [0, 0, 1, 1], [], []>} : vector<64x32xf32>, vector<32x32xf32>, vector<64x32xf32> -> vector<64x32xf32>
    %138 = arith.addf %136, %137 : vector<64x32xf32>
    %cst_93 = arith.constant 0.000000e+00 : f32
    %139 = vector.broadcast %cst_93 : f32 to vector<64x32xf32>
    %140 = arith.maximumf %138, %139 : vector<64x32xf32>
    %c1600 = arith.constant 1600 : index
    %c0_94 = arith.constant 0 : index
    %141 = vector.load %arg8[%c1600, %c0_94] : memref<1728x32xf32, #tpu.memory_space<vmem>>, vector<64x32xf32>
    %cst_95 = arith.constant dense<0.000000e+00> : vector<64x32xf32>
    %142 = tpu.matmul %140, %14, %cst_95 {dimension_numbers = #tpu.dot_dimension_numbers<[1], [0], [0], [1], [0, 0, 1, 1], [], []>} : vector<64x32xf32>, vector<32x32xf32>, vector<64x32xf32> -> vector<64x32xf32>
    %143 = arith.addf %141, %142 : vector<64x32xf32>
    %cst_96 = arith.constant 0.000000e+00 : f32
    %144 = vector.broadcast %cst_96 : f32 to vector<64x32xf32>
    %145 = arith.maximumf %143, %144 : vector<64x32xf32>
    %c1664 = arith.constant 1664 : index
    %c0_97 = arith.constant 0 : index
    %146 = vector.load %arg8[%c1664, %c0_97] : memref<1728x32xf32, #tpu.memory_space<vmem>>, vector<64x32xf32>
    %cst_98 = arith.constant dense<0.000000e+00> : vector<64x32xf32>
    %147 = tpu.matmul %145, %14, %cst_98 {dimension_numbers = #tpu.dot_dimension_numbers<[1], [0], [0], [1], [0, 0, 1, 1], [], []>} : vector<64x32xf32>, vector<32x32xf32>, vector<64x32xf32> -> vector<64x32xf32>
    %148 = arith.addf %146, %147 : vector<64x32xf32>
    %cst_99 = arith.constant 0.000000e+00 : f32
    %149 = vector.broadcast %cst_99 : f32 to vector<64x32xf32>
    %150 = arith.maximumf %148, %149 : vector<64x32xf32>
    %c0_100 = arith.constant 0 : index
    %c0_101 = arith.constant 0 : index
    %151 = vector.load %arg7[%c0_100, %c0_101] : memref<64x10xf32, #tpu.memory_space<vmem>>, vector<64x10xf32>
    %c0_102 = arith.constant 0 : index
    %c0_103 = arith.constant 0 : index
    %152 = vector.load %arg5[%c0_102, %c0_103] : memref<32x10xf32, #tpu.memory_space<vmem>>, vector<32x10xf32>
    %cst_104 = arith.constant dense<0.000000e+00> : vector<64x10xf32>
    %153 = tpu.matmul %150, %152, %cst_104 {dimension_numbers = #tpu.dot_dimension_numbers<[1], [0], [0], [1], [0, 0, 1, 1], [], []>} : vector<64x32xf32>, vector<32x10xf32>, vector<64x10xf32> -> vector<64x10xf32>
    %154 = arith.addf %151, %153 : vector<64x10xf32>
    %c0_105 = arith.constant 0 : index
    %c0_106 = arith.constant 0 : index
    %155 = vector.load %arg7[%c0_105, %c0_106] : memref<64x10xf32, #tpu.memory_space<vmem>>, vector<64x10xf32>
    tpu.vector_store %arg7[%c0_105, %c0_106], %154 {strides = array<i32>} : memref<64x10xf32, #tpu.memory_space<vmem>>, vector<64x10xf32>,
    return
  }
}

</mosaic_0001>

<llo_original>
// kernel: rnn_forward.1
$region0: #{rnn_forward.1}
  #allocation0 [shape = 'u32[]', space=smem, size = 0x4, offset = 0x4, fixed_abs, tag = 'smem constant byte address 0x4 - core index']
  #allocation1 [shape = 'u32[144,128]{1,0:T(1,128)}', space=vmem, size = 0x12000, scoped, tag = 'internal scratch']
  #allocation2 [shape = 'f32[1728,32]{1,0:T(8,128)}', space=vmem, size = 0xd8000, scoped, tag = 'scratch operand']
  %s0 = inlined_call_operand.vmem [shape: f32[1792,28], index: 0, kind: input, shape index: {}]
  %s1 = inlined_call_operand.vmem [shape: f32[28,32], index: 1, kind: input, shape index: {}]
  %s2 = inlined_call_operand.vmem [shape: f32[32,32], index: 2, kind: input, shape index: {}]
  %s3 = inlined_call_operand.vmem [shape: f32[1,32], index: 3, kind: input, shape index: {}]
  %s4 = inlined_call_operand.vmem [shape: f32[28,10], index: 4, kind: input, shape index: {}]
  %s5 = inlined_call_operand.vmem [shape: f32[32,10], index: 5, kind: input, shape index: {}]
  %s6 = inlined_call_operand.vmem [shape: f32[1,10], index: 6, kind: input, shape index: {}]
  %s7 = inlined_call_operand.vmem [shape: f32[64,10], index: 7, kind: output, shape index: {}]
  %s8 = sld [smem:[#allocation0]]
  $region38: #{rnn_forward.1} parent=0
    _
  %s10 = ssub.s32 1, %s8
  %s11 = scalar_select 0, %s10, %s8
  // Predicated region
  $region2: #{rnn_forward.1} parent=0 // pred_check
    _
  $region3: #{rnn_forward.1} parent=0 // pred_check_branch
    %13 = sbr.rel (0) target = $region5
  $region4: #{rnn_forward.1} parent=0 // pred_region
    _
  $region5: #{rnn_forward.1} parent=0 // pred_fallthru
    _
  // Predicated region
  $region6: #{rnn_forward.1} parent=0 // pred_check
    _
  $region7: #{rnn_forward.1} parent=0 // pred_check_branch
    %15 = sbr.rel (0) target = $region9
  $region8: #{rnn_forward.1} parent=0 // pred_region
    _
  $region9: #{rnn_forward.1} parent=0 // pred_fallthru
    _
  // Predicated region
  $region10: #{rnn_forward.1} parent=0 // pred_check
    _
  $region11: #{rnn_forward.1} parent=0 // pred_check_branch
    %17 = sbr.rel (0) target = $region13
  $region12: #{rnn_forward.1} parent=0 // pred_region
    _
  $region13: #{rnn_forward.1} parent=0 // pred_fallthru
    _
  // Predicated region
  $region14: #{rnn_forward.1} parent=0 // pred_check
    _
  $region15: #{rnn_forward.1} parent=0 // pred_check_branch
    %19 = sbr.rel (0) target = $region17
  $region16: #{rnn_forward.1} parent=0 // pred_region
    _
  $region17: #{rnn_forward.1} parent=0 // pred_fallthru
    _
  // Predicated region
  $region18: #{rnn_forward.1} parent=0 // pred_check
    _
  $region19: #{rnn_forward.1} parent=0 // pred_check_branch
    %21 = sbr.rel (0) target = $region21
  $region20: #{rnn_forward.1} parent=0 // pred_region
    _
  $region21: #{rnn_forward.1} parent=0 // pred_fallthru
    _
  // Predicated region
  $region22: #{rnn_forward.1} parent=0 // pred_check
    _
  $region23: #{rnn_forward.1} parent=0 // pred_check_branch
    %23 = sbr.rel (0) target = $region25
  $region24: #{rnn_forward.1} parent=0 // pred_region
    _
  $region25: #{rnn_forward.1} parent=0 // pred_fallthru
    _
  // Predicated region
  $region26: #{rnn_forward.1} parent=0 // pred_check
    _
  $region27: #{rnn_forward.1} parent=0 // pred_check_branch
    %25 = sbr.rel (0) target = $region29
  $region28: #{rnn_forward.1} parent=0 // pred_region
    _
  $region29: #{rnn_forward.1} parent=0 // pred_fallthru
    _
  %v26 = vld [vmem:[%s0] sm:$0xff]
  %v27 = vld [vmem:[%s0 + $0x8] sm:$0xff]
  %v28 = vld [vmem:[%s0 + $0x10] sm:$0xff]
  %v29 = vld [vmem:[%s0 + $0x18] sm:$0xff]
  %v30 = vld [vmem:[%s0 + $0x20] sm:$0xff]
  %v31 = vld [vmem:[%s0 + $0x28] sm:$0xff]
  %v32 = vld [vmem:[%s0 + $0x30] sm:$0xff]
  %v33 = vld [vmem:[%s0 + $0x38] sm:$0xff]
  %v34 = vld [vmem:[%s0 + $0x40] sm:$0xff]
  %v35 = vld [vmem:[%s0 + $0x48] sm:$0xff]
  %v36 = vld [vmem:[%s0 + $0x50] sm:$0xff]
  %v37 = vld [vmem:[%s0 + $0x58] sm:$0xff]
  %v38 = vld [vmem:[%s0 + $0x60] sm:$0xff]
  %v39 = vld [vmem:[%s0 + $0x68] sm:$0xff]
  %v40 = vld [vmem:[%s0 + $0x70] sm:$0xff]
  %v41 = vld [vmem:[%s0 + $0x78] sm:$0xff]
  %v42 = vld [vmem:[%s0 + $0x80] sm:$0xff]
  %v43 = vld [vmem:[%s0 + $0x88] sm:$0xff]
  %v44 = vld [vmem:[%s0 + $0x90] sm:$0xff]
  %v45 = vld [vmem:[%s0 + $0x98] sm:$0xff]
  %v46 = vld [vmem:[%s0 + $0xa0] sm:$0xff]
  %v47 = vld [vmem:[%s0 + $0xa8] sm:$0xff]
  %v48 = vld [vmem:[%s0 + $0xb0] sm:$0xff]
  %v49 = vld [vmem:[%s0 + $0xb8] sm:$0xff]
  %v50 = vld [vmem:[%s0 + $0xc0] sm:$0xff]
  %v51 = vld [vmem:[%s0 + $0xc8] sm:$0xff]
  %v52 = vld [vmem:[%s0 + $0xd0] sm:$0xff]
  %v53 = vld [vmem:[%s0 + $0xd8] sm:$0xff]
  %v54 = vld [vmem:[%s0 + $0xe0] sm:$0xff]
  %v55 = vld [vmem:[%s0 + $0xe8] sm:$0xff]
  %v56 = vld [vmem:[%s0 + $0xf0] sm:$0xff]
  %v57 = vld [vmem:[%s0 + $0xf8] sm:$0xff]
  %v58 = vld [vmem:[%s0 + $0x100] sm:$0xff]
  %v59 = vld [vmem:[%s0 + $0x108] sm:$0xff]
  %v60 = vld [vmem:[%s0 + $0x110] sm:$0xff]
  %v61 = vld [vmem:[%s0 + $0x118] sm:$0xff]
  %v62 = vld [vmem:[%s0 + $0x120] sm:$0xff]
  %v63 = vld [vmem:[%s0 + $0x128] sm:$0xff]
  %v64 = vld [vmem:[%s0 + $0x130] sm:$0xff]
  %v65 = vld [vmem:[%s0 + $0x138] sm:$0xff]
  %v66 = vld [vmem:[%s0 + $0x140] sm:$0xff]
  %v67 = vld [vmem:[%s0 + $0x148] sm:$0xff]
  %v68 = vld [vmem:[%s0 + $0x150] sm:$0xff]
  %v69 = vld [vmem:[%s0 + $0x158] sm:$0xff]
  %v70 = vld [vmem:[%s0 + $0x160] sm:$0xff]
  %v71 = vld [vmem:[%s0 + $0x168] sm:$0xff]
  %v72 = vld [vmem:[%s0 + $0x170] sm:$0xff]
  %v73 = vld [vmem:[%s0 + $0x178] sm:$0xff]
  %v74 = vld [vmem:[%s0 + $0x180] sm:$0xff]
  %v75 = vld [vmem:[%s0 + $0x188] sm:$0xff]
  %v76 = vld [vmem:[%s0 + $0x190] sm:$0xff]
  %v77 = vld [vmem:[%s0 + $0x198] sm:$0xff]
  %v78 = vld [vmem:[%s0 + $0x1a0] sm:$0xff]
  %v79 = vld [vmem:[%s0 + $0x1a8] sm:$0xff]
  %v80 = vld [vmem:[%s0 + $0x1b0] sm:$0xff]
  %v81 = vld [vmem:[%s0 + $0x1b8] sm:$0xff]
  %v82 = vld [vmem:[%s0 + $0x1c0] sm:$0xff]
  %v83 = vld [vmem:[%s0 + $0x1c8] sm:$0xff]
  %v84 = vld [vmem:[%s0 + $0x1d0] sm:$0xff]
  %v85 = vld [vmem:[%s0 + $0x1d8] sm:$0xff]
  %v86 = vld [vmem:[%s0 + $0x1e0] sm:$0xff]
  %v87 = vld [vmem:[%s0 + $0x1e8] sm:$0xff]
  %v88 = vld [vmem:[%s0 + $0x1f0] sm:$0xff]
  %v89 = vld [vmem:[%s0 + $0x1f8] sm:$0xff]
  %v90 = vld [vmem:[%s0 + $0x200] sm:$0xff]
  %v91 = vld [vmem:[%s0 + $0x208] sm:$0xff]
  %v92 = vld [vmem:[%s0 + $0x210] sm:$0xff]
  %v93 = vld [vmem:[%s0 + $0x218] sm:$0xff]
  %v94 = vld [vmem:[%s0 + $0x220] sm:$0xff]
  %v95 = vld [vmem:[%s0 + $0x228] sm:$0xff]
  %v96 = vld [vmem:[%s0 + $0x230] sm:$0xff]
  %v97 = vld [vmem:[%s0 + $0x238] sm:$0xff]
  %v98 = vld [vmem:[%s0 + $0x240] sm:$0xff]
  %v99 = vld [vmem:[%s0 + $0x248] sm:$0xff]
  %v100 = vld [vmem:[%s0 + $0x250] sm:$0xff]
  %v101 = vld [vmem:[%s0 + $0x258] sm:$0xff]
  %v102 = vld [vmem:[%s0 + $0x260] sm:$0xff]
  %v103 = vld [vmem:[%s0 + $0x268] sm:$0xff]
  %v104 = vld [vmem:[%s0 + $0x270] sm:$0xff]
  %v105 = vld [vmem:[%s0 + $0x278] sm:$0xff]
  %v106 = vld [vmem:[%s0 + $0x280] sm:$0xff]
  %v107 = vld [vmem:[%s0 + $0x288] sm:$0xff]
  %v108 = vld [vmem:[%s0 + $0x290] sm:$0xff]
  %v109 = vld [vmem:[%s0 + $0x298] sm:$0xff]
  %v110 = vld [vmem:[%s0 + $0x2a0] sm:$0xff]
  %v111 = vld [vmem:[%s0 + $0x2a8] sm:$0xff]
  %v112 = vld [vmem:[%s0 + $0x2b0] sm:$0xff]
  %v113 = vld [vmem:[%s0 + $0x2b8] sm:$0xff]
  %v114 = vld [vmem:[%s0 + $0x2c0] sm:$0xff]
  %v115 = vld [vmem:[%s0 + $0x2c8] sm:$0xff]
  %v116 = vld [vmem:[%s0 + $0x2d0] sm:$0xff]
  %v117 = vld [vmem:[%s0 + $0x2d8] sm:$0xff]
  %v118 = vld [vmem:[%s0 + $0x2e0] sm:$0xff]
  %v119 = vld [vmem:[%s0 + $0x2e8] sm:$0xff]
  %v120 = vld [vmem:[%s0 + $0x2f0] sm:$0xff]
  %v121 = vld [vmem:[%s0 + $0x2f8] sm:$0xff]
  %v122 = vld [vmem:[%s0 + $0x300] sm:$0xff]
  %v123 = vld [vmem:[%s0 + $0x308] sm:$0xff]
  %v124 = vld [vmem:[%s0 + $0x310] sm:$0xff]
  %v125 = vld [vmem:[%s0 + $0x318] sm:$0xff]
  %v126 = vld [vmem:[%s0 + $0x320] sm:$0xff]
  %v127 = vld [vmem:[%s0 + $0x328] sm:$0xff]
  %v128 = vld [vmem:[%s0 + $0x330] sm:$0xff]
  %v129 = vld [vmem:[%s0 + $0x338] sm:$0xff]
  %v130 = vld [vmem:[%s0 + $0x340] sm:$0xff]
  %v131 = vld [vmem:[%s0 + $0x348] sm:$0xff]
  %v132 = vld [vmem:[%s0 + $0x350] sm:$0xff]
  %v133 = vld [vmem:[%s0 + $0x358] sm:$0xff]
  %v134 = vld [vmem:[%s0 + $0x360] sm:$0xff]
  %v135 = vld [vmem:[%s0 + $0x368] sm:$0xff]
  %v136 = vld [vmem:[%s0 + $0x370] sm:$0xff]
  %v137 = vld [vmem:[%s0 + $0x378] sm:$0xff]
  %v138 = vld [vmem:[%s0 + $0x380] sm:$0xff]
  %v139 = vld [vmem:[%s0 + $0x388] sm:$0xff]
  %v140 = vld [vmem:[%s0 + $0x390] sm:$0xff]
  %v141 = vld [vmem:[%s0 + $0x398] sm:$0xff]
  %v142 = vld [vmem:[%s0 + $0x3a0] sm:$0xff]
  %v143 = vld [vmem:[%s0 + $0x3a8] sm:$0xff]
  %v144 = vld [vmem:[%s0 + $0x3b0] sm:$0xff]
  %v145 = vld [vmem:[%s0 + $0x3b8] sm:$0xff]
  %v146 = vld [vmem:[%s0 + $0x3c0] sm:$0xff]
  %v147 = vld [vmem:[%s0 + $0x3c8] sm:$0xff]
  %v148 = vld [vmem:[%s0 + $0x3d0] sm:$0xff]
  %v149 = vld [vmem:[%s0 + $0x3d8] sm:$0xff]
  %v150 = vld [vmem:[%s0 + $0x3e0] sm:$0xff]
  %v151 = vld [vmem:[%s0 + $0x3e8] sm:$0xff]
  %v152 = vld [vmem:[%s0 + $0x3f0] sm:$0xff]
  %v153 = vld [vmem:[%s0 + $0x3f8] sm:$0xff]
  %v154 = vld [vmem:[%s0 + $0x400] sm:$0xff]
  %v155 = vld [vmem:[%s0 + $0x408] sm:$0xff]
  %v156 = vld [vmem:[%s0 + $0x410] sm:$0xff]
  %v157 = vld [vmem:[%s0 + $0x418] sm:$0xff]
  %v158 = vld [vmem:[%s0 + $0x420] sm:$0xff]
  %v159 = vld [vmem:[%s0 + $0x428] sm:$0xff]
  %v160 = vld [vmem:[%s0 + $0x430] sm:$0xff]
  %v161 = vld [vmem:[%s0 + $0x438] sm:$0xff]
  %v162 = vld [vmem:[%s0 + $0x440] sm:$0xff]
  %v163 = vld [vmem:[%s0 + $0x448] sm:$0xff]
  %v164 = vld [vmem:[%s0 + $0x450] sm:$0xff]
  %v165 = vld [vmem:[%s0 + $0x458] sm:$0xff]
  %v166 = vld [vmem:[%s0 + $0x460] sm:$0xff]
  %v167 = vld [vmem:[%s0 + $0x468] sm:$0xff]
  %v168 = vld [vmem:[%s0 + $0x470] sm:$0xff]
  %v169 = vld [vmem:[%s0 + $0x478] sm:$0xff]
  %v170 = vld [vmem:[%s0 + $0x480] sm:$0xff]
  %v171 = vld [vmem:[%s0 + $0x488] sm:$0xff]
  %v172 = vld [vmem:[%s0 + $0x490] sm:$0xff]
  %v173 = vld [vmem:[%s0 + $0x498] sm:$0xff]
  %v174 = vld [vmem:[%s0 + $0x4a0] sm:$0xff]
  %v175 = vld [vmem:[%s0 + $0x4a8] sm:$0xff]
  %v176 = vld [vmem:[%s0 + $0x4b0] sm:$0xff]
  %v177 = vld [vmem:[%s0 + $0x4b8] sm:$0xff]
  %v178 = vld [vmem:[%s0 + $0x4c0] sm:$0xff]
  %v179 = vld [vmem:[%s0 + $0x4c8] sm:$0xff]
  %v180 = vld [vmem:[%s0 + $0x4d0] sm:$0xff]
  %v181 = vld [vmem:[%s0 + $0x4d8] sm:$0xff]
  %v182 = vld [vmem:[%s0 + $0x4e0] sm:$0xff]
  %v183 = vld [vmem:[%s0 + $0x4e8] sm:$0xff]
  %v184 = vld [vmem:[%s0 + $0x4f0] sm:$0xff]
  %v185 = vld [vmem:[%s0 + $0x4f8] sm:$0xff]
  %v186 = vld [vmem:[%s0 + $0x500] sm:$0xff]
  %v187 = vld [vmem:[%s0 + $0x508] sm:$0xff]
  %v188 = vld [vmem:[%s0 + $0x510] sm:$0xff]
  %v189 = vld [vmem:[%s0 + $0x518] sm:$0xff]
  %v190 = vld [vmem:[%s0 + $0x520] sm:$0xff]
  %v191 = vld [vmem:[%s0 + $0x528] sm:$0xff]
  %v192 = vld [vmem:[%s0 + $0x530] sm:$0xff]
  %v193 = vld [vmem:[%s0 + $0x538] sm:$0xff]
  %v194 = vld [vmem:[%s0 + $0x540] sm:$0xff]
  %v195 = vld [vmem:[%s0 + $0x548] sm:$0xff]
  %v196 = vld [vmem:[%s0 + $0x550] sm:$0xff]
  %v197 = vld [vmem:[%s0 + $0x558] sm:$0xff]
  %v198 = vld [vmem:[%s0 + $0x560] sm:$0xff]
  %v199 = vld [vmem:[%s0 + $0x568] sm:$0xff]
  %v200 = vld [vmem:[%s0 + $0x570] sm:$0xff]
  %v201 = vld [vmem:[%s0 + $0x578] sm:$0xff]
  %v202 = vld [vmem:[%s0 + $0x580] sm:$0xff]
  %v203 = vld [vmem:[%s0 + $0x588] sm:$0xff]
  %v204 = vld [vmem:[%s0 + $0x590] sm:$0xff]
  %v205 = vld [vmem:[%s0 + $0x598] sm:$0xff]
  %v206 = vld [vmem:[%s0 + $0x5a0] sm:$0xff]
  %v207 = vld [vmem:[%s0 + $0x5a8] sm:$0xff]
  %v208 = vld [vmem:[%s0 + $0x5b0] sm:$0xff]
  %v209 = vld [vmem:[%s0 + $0x5b8] sm:$0xff]
  %v210 = vld [vmem:[%s0 + $0x5c0] sm:$0xff]
  %v211 = vld [vmem:[%s0 + $0x5c8] sm:$0xff]
  %v212 = vld [vmem:[%s0 + $0x5d0] sm:$0xff]
  %v213 = vld [vmem:[%s0 + $0x5d8] sm:$0xff]
  %v214 = vld [vmem:[%s0 + $0x5e0] sm:$0xff]
  %v215 = vld [vmem:[%s0 + $0x5e8] sm:$0xff]
  %v216 = vld [vmem:[%s0 + $0x5f0] sm:$0xff]
  %v217 = vld [vmem:[%s0 + $0x5f8] sm:$0xff]
  %v218 = vld [vmem:[%s0 + $0x600] sm:$0xff]
  %v219 = vld [vmem:[%s0 + $0x608] sm:$0xff]
  %v220 = vld [vmem:[%s0 + $0x610] sm:$0xff]
  %v221 = vld [vmem:[%s0 + $0x618] sm:$0xff]
  %v222 = vld [vmem:[%s0 + $0x620] sm:$0xff]
  %v223 = vld [vmem:[%s0 + $0x628] sm:$0xff]
  %v224 = vld [vmem:[%s0 + $0x630] sm:$0xff]
  %v225 = vld [vmem:[%s0 + $0x638] sm:$0xff]
  %v226 = vld [vmem:[%s0 + $0x640] sm:$0xff]
  %v227 = vld [vmem:[%s0 + $0x648] sm:$0xff]
  %v228 = vld [vmem:[%s0 + $0x650] sm:$0xff]
  %v229 = vld [vmem:[%s0 + $0x658] sm:$0xff]
  %v230 = vld [vmem:[%s0 + $0x660] sm:$0xff]
  %v231 = vld [vmem:[%s0 + $0x668] sm:$0xff]
  %v232 = vld [vmem:[%s0 + $0x670] sm:$0xff]
  %v233 = vld [vmem:[%s0 + $0x678] sm:$0xff]
  %v234 = vld [vmem:[%s0 + $0x680] sm:$0xff]
  %v235 = vld [vmem:[%s0 + $0x688] sm:$0xff]
  %v236 = vld [vmem:[%s0 + $0x690] sm:$0xff]
  %v237 = vld [vmem:[%s0 + $0x698] sm:$0xff]
  %v238 = vld [vmem:[%s0 + $0x6a0] sm:$0xff]
  %v239 = vld [vmem:[%s0 + $0x6a8] sm:$0xff]
  %v240 = vld [vmem:[%s0 + $0x6b0] sm:$0xff]
  %v241 = vld [vmem:[%s0 + $0x6b8] sm:$0xff]
  %v242 = vld [vmem:[%s1] sm:$0xff]
  %v243 = vld [vmem:[%s1 + $0x8] sm:$0xff]
  %v244 = vld [vmem:[%s1 + $0x10] sm:$0xff]
  %v245 = vld [vmem:[%s1 + $0x18] sm:$0xf]
  %v246 = vld [vmem:[%s3] sm:$0x1]
  %v248 = vlaneseq
  %v249 = vshrl.u32 %v248, 7
  %v250 = vsub.s32 0, %v249
  %v251 = vrot.slane %v246, %v250
  %vm253 = vcmask 228352
  %v255 = vsel %vm253, %v26, 0
  %v258 = vsel %vm253, %v27, 0
  %v261 = vsel %vm253, %v28, 0
  %v264 = vsel %vm253, %v29, 0
  %v267 = vsel %vm253, %v30, 0
  %v270 = vsel %vm253, %v31, 0
  %v273 = vsel %vm253, %v32, 0
  %v276 = vsel %vm253, %v33, 0
  %v279 = vsel %vm253, %v34, 0
  %v282 = vsel %vm253, %v35, 0
  %v285 = vsel %vm253, %v36, 0
  %v288 = vsel %vm253, %v37, 0
  %v291 = vsel %vm253, %v38, 0
  %v294 = vsel %vm253, %v39, 0
  %v297 = vsel %vm253, %v40, 0
  %v300 = vsel %vm253, %v41, 0
  %v303 = vsel %vm253, %v42, 0
  %v306 = vsel %vm253, %v43, 0
  %v309 = vsel %vm253, %v44, 0
  %v312 = vsel %vm253, %v45, 0
  %v315 = vsel %vm253, %v46, 0
  %v318 = vsel %vm253, %v47, 0
  %v321 = vsel %vm253, %v48, 0
  %v324 = vsel %vm253, %v49, 0
  %v327 = vsel %vm253, %v50, 0
  %v330 = vsel %vm253, %v51, 0
  %v333 = vsel %vm253, %v52, 0
  %v336 = vsel %vm253, %v53, 0
  %v339 = vsel %vm253, %v54, 0
  %v342 = vsel %vm253, %v55, 0
  %v345 = vsel %vm253, %v56, 0
  %v348 = vsel %vm253, %v57, 0
  %v351 = vsel %vm253, %v58, 0
  %v354 = vsel %vm253, %v59, 0
  %v357 = vsel %vm253, %v60, 0
  %v360 = vsel %vm253, %v61, 0
  %v363 = vsel %vm253, %v62, 0
  %v366 = vsel %vm253, %v63, 0
  %v369 = vsel %vm253, %v64, 0
  %v372 = vsel %vm253, %v65, 0
  %v375 = vsel %vm253, %v66, 0
  %v378 = vsel %vm253, %v67, 0
  %v381 = vsel %vm253, %v68, 0
  %v384 = vsel %vm253, %v69, 0
  %v387 = vsel %vm253, %v70, 0
  %v390 = vsel %vm253, %v71, 0
  %v393 = vsel %vm253, %v72, 0
  %v396 = vsel %vm253, %v73, 0
  %v399 = vsel %vm253, %v74, 0
  %v402 = vsel %vm253, %v75, 0
  %v405 = vsel %vm253, %v76, 0
  %v408 = vsel %vm253, %v77, 0
  %v411 = vsel %vm253, %v78, 0
  %v414 = vsel %vm253, %v79, 0
  %v417 = vsel %vm253, %v80, 0
  %v420 = vsel %vm253, %v81, 0
  %v423 = vsel %vm253, %v82, 0
  %v426 = vsel %vm253, %v83, 0
  %v429 = vsel %vm253, %v84, 0
  %v432 = vsel %vm253, %v85, 0
  %v435 = vsel %vm253, %v86, 0
  %v438 = vsel %vm253, %v87, 0
  %v441 = vsel %vm253, %v88, 0
  %v444 = vsel %vm253, %v89, 0
  %v447 = vsel %vm253, %v90, 0
  %v450 = vsel %vm253, %v91, 0
  %v453 = vsel %vm253, %v92, 0
  %v456 = vsel %vm253, %v93, 0
  %v459 = vsel %vm253, %v94, 0
  %v462 = vsel %vm253, %v95, 0
  %v465 = vsel %vm253, %v96, 0
  %v468 = vsel %vm253, %v97, 0
  %v471 = vsel %vm253, %v98, 0
  %v474 = vsel %vm253, %v99, 0
  %v477 = vsel %vm253, %v100, 0
  %v480 = vsel %vm253, %v101, 0
  %v483 = vsel %vm253, %v102, 0
  %v486 = vsel %vm253, %v103, 0
  %v489 = vsel %vm253, %v104, 0
  %v492 = vsel %vm253, %v105, 0
  %v495 = vsel %vm253, %v106, 0
  %v498 = vsel %vm253, %v107, 0
  %v501 = vsel %vm253, %v108, 0
  %v504 = vsel %vm253, %v109, 0
  %v507 = vsel %vm253, %v110, 0
  %v510 = vsel %vm253, %v111, 0
  %v513 = vsel %vm253, %v112, 0
  %v516 = vsel %vm253, %v113, 0
  %v519 = vsel %vm253, %v114, 0
  %v522 = vsel %vm253, %v115, 0
  %v525 = vsel %vm253, %v116, 0
  %v528 = vsel %vm253, %v117, 0
  %v531 = vsel %vm253, %v118, 0
  %v534 = vsel %vm253, %v119, 0
  %v537 = vsel %vm253, %v120, 0
  %v540 = vsel %vm253, %v121, 0
  %v543 = vsel %vm253, %v122, 0
  %v546 = vsel %vm253, %v123, 0
  %v549 = vsel %vm253, %v124, 0
  %v552 = vsel %vm253, %v125, 0
  %v555 = vsel %vm253, %v126, 0
  %v558 = vsel %vm253, %v127, 0
  %v561 = vsel %vm253, %v128, 0
  %v564 = vsel %vm253, %v129, 0
  %v567 = vsel %vm253, %v130, 0
  %v570 = vsel %vm253, %v131, 0
  %v573 = vsel %vm253, %v132, 0
  %v576 = vsel %vm253, %v133, 0
  %v579 = vsel %vm253, %v134, 0
  %v582 = vsel %vm253, %v135, 0
  %v585 = vsel %vm253, %v136, 0
  %v588 = vsel %vm253, %v137, 0
  %v591 = vsel %vm253, %v138, 0
  %v594 = vsel %vm253, %v139, 0
  %v597 = vsel %vm253, %v140, 0
  %v600 = vsel %vm253, %v141, 0
  %v603 = vsel %vm253, %v142, 0
  %v606 = vsel %vm253, %v143, 0
  %v609 = vsel %vm253, %v144, 0
  %v612 = vsel %vm253, %v145, 0
  %v615 = vsel %vm253, %v146, 0
  %v618 = vsel %vm253, %v147, 0
  %v621 = vsel %vm253, %v148, 0
  %v624 = vsel %vm253, %v149, 0
  %v627 = vsel %vm253, %v150, 0
  %v630 = vsel %vm253, %v151, 0
  %v633 = vsel %vm253, %v152, 0
  %v636 = vsel %vm253, %v153, 0
  %v639 = vsel %vm253, %v154, 0
  %v642 = vsel %vm253, %v155, 0
  %v645 = vsel %vm253, %v156, 0
  %v648 = vsel %vm253, %v157, 0
  %v651 = vsel %vm253, %v158, 0
  %v654 = vsel %vm253, %v159, 0
  %v657 = vsel %vm253, %v160, 0
  %v660 = vsel %vm253, %v161, 0
  %v663 = vsel %vm253, %v162, 0
  %v666 = vsel %vm253, %v163, 0
  %v669 = vsel %vm253, %v164, 0
  %v672 = vsel %vm253, %v165, 0
  %v675 = vsel %vm253, %v166, 0
  %v678 = vsel %vm253, %v167, 0
  %v681 = vsel %vm253, %v168, 0
  %v684 = vsel %vm253, %v169, 0
  %v687 = vsel %vm253, %v170, 0
  %v690 = vsel %vm253, %v171, 0
  %v693 = vsel %vm253, %v172, 0
  %v696 = vsel %vm253, %v173, 0
  %v699 = vsel %vm253, %v174, 0
  %v702 = vsel %vm253, %v175, 0
  %v705 = vsel %vm253, %v176, 0
  %v708 = vsel %vm253, %v177, 0
  %v711 = vsel %vm253, %v178, 0
  %v714 = vsel %vm253, %v179, 0
  %v717 = vsel %vm253, %v180, 0
  %v720 = vsel %vm253, %v181, 0
  %v723 = vsel %vm253, %v182, 0
  %v726 = vsel %vm253, %v183, 0
  %v729 = vsel %vm253, %v184, 0
  %v732 = vsel %vm253, %v185, 0
  %v735 = vsel %vm253, %v186, 0
  %v738 = vsel %vm253, %v187, 0
  %v741 = vsel %vm253, %v188, 0
  %v744 = vsel %vm253, %v189, 0
  %v747 = vsel %vm253, %v190, 0
  %v750 = vsel %vm253, %v191, 0
  %v753 = vsel %vm253, %v192, 0
  %v756 = vsel %vm253, %v193, 0
  %v759 = vsel %vm253, %v194, 0
  %v762 = vsel %vm253, %v195, 0
  %v765 = vsel %vm253, %v196, 0
  %v768 = vsel %vm253, %v197, 0
  %v771 = vsel %vm253, %v198, 0
  %v774 = vsel %vm253, %v199, 0
  %v777 = vsel %vm253, %v200, 0
  %v780 = vsel %vm253, %v201, 0
  %v783 = vsel %vm253, %v202, 0
  %v786 = vsel %vm253, %v203, 0
  %v789 = vsel %vm253, %v204, 0
  %v792 = vsel %vm253, %v205, 0
  %v795 = vsel %vm253, %v206, 0
  %v798 = vsel %vm253, %v207, 0
  %v801 = vsel %vm253, %v208, 0
  %v804 = vsel %vm253, %v209, 0
  %v807 = vsel %vm253, %v210, 0
  %v810 = vsel %vm253, %v211, 0
  %v813 = vsel %vm253, %v212, 0
  %v816 = vsel %vm253, %v213, 0
  %v819 = vsel %vm253, %v214, 0
  %v822 = vsel %vm253, %v215, 0
  %v825 = vsel %vm253, %v216, 0
  %v828 = vsel %vm253, %v217, 0
  %v831 = vsel %vm253, %v218, 0
  %v834 = vsel %vm253, %v219, 0
  %v837 = vsel %vm253, %v220, 0
  %v840 = vsel %vm253, %v221, 0
  %v843 = vsel %vm253, %v222, 0
  %v846 = vsel %vm253, %v223, 0
  %v849 = vsel %vm253, %v224, 0
  %v852 = vsel %vm253, %v225, 0
  %v855 = vsel %vm253, %v226, 0
  %v858 = vsel %vm253, %v227, 0
  %v861 = vsel %vm253, %v228, 0
  %v864 = vsel %vm253, %v229, 0
  %v867 = vsel %vm253, %v230, 0
  %v870 = vsel %vm253, %v231, 0
  %v873 = vsel %vm253, %v232, 0
  %v876 = vsel %vm253, %v233, 0
  %v879 = vsel %vm253, %v234, 0
  %v882 = vsel %vm253, %v235, 0
  %v885 = vsel %vm253, %v236, 0
  %v888 = vsel %vm253, %v237, 0
  %v891 = vsel %vm253, %v238, 0
  %v894 = vsel %vm253, %v239, 0
  %v897 = vsel %vm253, %v240, 0
  %v900 = vsel %vm253, %v241, 0
  %vm902 = vcmask 1043456
  %v904 = vsel %vm902, %v245, 0
  %906 = vmatprep.subr.mxu0 0.0
  %907 = vmatpush1.msra.mxu0 %v242
  %908 = vmatprep.subr.mxu0 0.0
  %909 = vmatpush1.msra.mxu0 %v243
  %910 = vmatprep.subr.mxu0 0.0
  %911 = vmatpush1.msra.mxu0 %v244
  %912 = vmatprep.subr.mxu0 0.0
  %913 = vmatpush1.msra.mxu0 %v904
  %914 = vmatprep.subr.mxu0 0.0
  %915 = vmatpush1.msra.mxu0 0.0
  %916 = vmatprep.subr.mxu0 0.0
  %917 = vmatpush1.msra.mxu0 0.0
  %918 = vmatprep.subr.mxu0 0.0
  %919 = vmatpush1.msra.mxu0 0.0
  %920 = vmatprep.subr.mxu0 0.0
  %921 = vmatpush1.msra.mxu0 0.0
  %922 = vmatprep.subr.mxu0 0.0
  %923 = vmatpush1.msra.mxu0 0.0
  %924 = vmatprep.subr.mxu0 0.0
  %925 = vmatpush1.msra.mxu0 0.0
  %926 = vmatprep.subr.mxu0 0.0
  %927 = vmatpush1.msra.mxu0 0.0
  %928 = vmatprep.subr.mxu0 0.0
  %929 = vmatpush1.msra.mxu0 0.0
  %930 = vmatprep.subr.mxu0 0.0
  %931 = vmatpush1.msra.mxu0 0.0
  %932 = vmatprep.subr.mxu0 0.0
  %933 = vmatpush1.msra.mxu0 0.0
  %934 = vmatprep.subr.mxu0 0.0
  %935 = vmatpush1.msra.mxu0 0.0
  %936 = vmatprep.subr.mxu0 0.0
  %937 = vmatpush1.msra.mxu0 0.0
  %938 = vmatprep.subr.mxu0 0.0
  %939 = vmatpush1.msra.mxu0 0.0
  %940 = vmatprep.subr.mxu0 0.0
  %941 = vmatpush1.msra.mxu0 0.0
  %942 = vmatprep.subr.mxu0 0.0
  %943 = vmatpush1.msra.mxu0 0.0
  %944 = vmatprep.subr.mxu0 0.0
  %945 = vmatpush1.msra.mxu0 0.0
  %946 = vmatprep.subr.mxu0 0.0
  %947 = vmatpush1.msra.mxu0 0.0
  %948 = vmatprep.subr.mxu0 0.0
  %949 = vmatpush1.msra.mxu0 0.0
  %950 = vmatprep.subr.mxu0 0.0
  %951 = vmatpush1.msra.mxu0 0.0
  %952 = vmatprep.subr.mxu0 0.0
  %953 = vmatpush1.msra.mxu0 0.0
  %954 = vmatprep.subr.mxu0 0.0
  %955 = vmatpush1.msra.mxu0 0.0
  %956 = vmatprep.subr.mxu0 0.0
  %957 = vmatpush1.msra.mxu0 0.0
  %958 = vmatprep.subr.mxu0 0.0
  %959 = vmatpush1.msra.mxu0 0.0
  %960 = vmatprep.subr.mxu0 0.0
  %961 = vmatpush1.msra.mxu0 0.0
  %962 = vmatprep.subr.mxu0 0.0
  %963 = vmatpush1.msra.mxu0 0.0
  %964 = vmatprep.subr.mxu0 0.0
  %965 = vmatpush1.msra.mxu0 0.0
  %966 = vmatprep.subr.mxu0 0.0
  %967 = vmatpush1.msra.mxu0 0.0
  %968 = vmatprep.subr.mxu0 0.0
  %969 = vmatpush1.msra.mxu0 0.0
  %970 = vmatprep.mubr.f32.mxu0 0.0
  %971 = vmatmul.mubr.f32.gmra.mrb[0].mxu0 %v255
  %v972 = vpop.f32.mrb[0].mxu0
  %v973 = vadd.f32 %v251, %v972
  %v974 = vpop.f32.mrb[0].mxu0
  %975 = vmatprep.mubr.f32.mxu0 0.0
  %976 = vmatmul.mubr.f32.gmra.mrb[0].mxu0 %v258
  %v977 = vpop.f32.mrb[0].mxu0
  %v978 = vadd.f32 %v251, %v977
  %v979 = vpop.f32.mrb[0].mxu0
  %980 = vmatprep.mubr.f32.mxu0 0.0
  %981 = vmatmul.mubr.f32.gmra.mrb[0].mxu0 %v261
  %v982 = vpop.f32.mrb[0].mxu0
  %v983 = vadd.f32 %v251, %v982
  %v984 = vpop.f32.mrb[0].mxu0
  %985 = vmatprep.mubr.f32.mxu0 0.0
  %986 = vmatmul.mubr.f32.gmra.mrb[0].mxu0 %v264
  %v987 = vpop.f32.mrb[0].mxu0
  %v988 = vadd.f32 %v251, %v987
  %v989 = vpop.f32.mrb[0].mxu0
  %990 = vmatprep.mubr.f32.mxu0 0.0
  %991 = vmatmul.mubr.f32.gmra.mrb[0].mxu0 %v267
  %v992 = vpop.f32.mrb[0].mxu0
  %v993 = vadd.f32 %v251, %v992
  %v994 = vpop.f32.mrb[0].mxu0
  %995 = vmatprep.mubr.f32.mxu0 0.0
  %996 = vmatmul.mubr.f32.gmra.mrb[0].mxu0 %v270
  %v997 = vpop.f32.mrb[0].mxu0
  %v998 = vadd.f32 %v251, %v997
  %v999 = vpop.f32.mrb[0].mxu0
  %1000 = vmatprep.mubr.f32.mxu0 0.0
  %1001 = vmatmul.mubr.f32.gmra.mrb[0].mxu0 %v273
  %v1002 = vpop.f32.mrb[0].mxu0
  %v1003 = vadd.f32 %v251, %v1002
  %v1004 = vpop.f32.mrb[0].mxu0
  %1005 = vmatprep.mubr.f32.mxu0 0.0
  %1006 = vmatmul.mubr.f32.gmra.mrb[0].mxu0 %v276
  %v1007 = vpop.f32.mrb[0].mxu0
  %v1008 = vadd.f32 %v251, %v1007
  %v1009 = vpop.f32.mrb[0].mxu0
  %1010 = vmatprep.mubr.f32.mxu0 0.0
  %1011 = vmatmul.mubr.f32.gmra.mrb[0].mxu0 %v279
  %v1012 = vpop.f32.mrb[0].mxu0
  %v1013 = vadd.f32 %v251, %v1012
  %v1014 = vpop.f32.mrb[0].mxu0
  %1015 = vmatprep.mubr.f32.mxu0 0.0
  %1016 = vmatmul.mubr.f32.gmra.mrb[0].mxu0 %v282
  %v1017 = vpop.f32.mrb[0].mxu0
  %v1018 = vadd.f32 %v251, %v1017
  %v1019 = vpop.f32.mrb[0].mxu0
  %1020 = vmatprep.mubr.f32.mxu0 0.0
  %1021 = vmatmul.mubr.f32.gmra.mrb[0].mxu0 %v285
  %v1022 = vpop.f32.mrb[0].mxu0
  %v1023 = vadd.f32 %v251, %v1022
  %v1024 = vpop.f32.mrb[0].mxu0
  %1025 = vmatprep.mubr.f32.mxu0 0.0
  %1026 = vmatmul.mubr.f32.gmra.mrb[0].mxu0 %v288
  %v1027 = vpop.f32.mrb[0].mxu0
  %v1028 = vadd.f32 %v251, %v1027
  %v1029 = vpop.f32.mrb[0].mxu0
  %1030 = vmatprep.mubr.f32.mxu0 0.0
  %1031 = vmatmul.mubr.f32.gmra.mrb[0].mxu0 %v291
  %v1032 = vpop.f32.mrb[0].mxu0
  %v1033 = vadd.f32 %v251, %v1032
  %v1034 = vpop.f32.mrb[0].mxu0
  %1035 = vmatprep.mubr.f32.mxu0 0.0
  %1036 = vmatmul.mubr.f32.gmra.mrb[0].mxu0 %v294
  %v1037 = vpop.f32.mrb[0].mxu0
  %v1038 = vadd.f32 %v251, %v1037
  %v1039 = vpop.f32.mrb[0].mxu0
  %1040 = vmatprep.mubr.f32.mxu0 0.0
  %1041 = vmatmul.mubr.f32.gmra.mrb[0].mxu0 %v297
  %v1042 = vpop.f32.mrb[0].mxu0
  %v1043 = vadd.f32 %v251, %v1042
  %v1044 = vpop.f32.mrb[0].mxu0
  %1045 = vmatprep.mubr.f32.mxu0 0.0
  %1046 = vmatmul.mubr.f32.gmra.mrb[0].mxu0 %v300
  %v1047 = vpop.f32.mrb[0].mxu0
  %v1048 = vadd.f32 %v251, %v1047
  %v1049 = vpop.f32.mrb[0].mxu0
  %1050 = vmatprep.mubr.f32.mxu0 0.0
  %1051 = vmatmul.mubr.f32.gmra.mrb[0].mxu0 %v303
  %v1052 = vpop.f32.mrb[0].mxu0
  %v1053 = vadd.f32 %v251, %v1052
  %v1054 = vpop.f32.mrb[0].mxu0
  %1055 = vmatprep.mubr.f32.mxu0 0.0
  %1056 = vmatmul.mubr.f32.gmra.mrb[0].mxu0 %v306
  %v1057 = vpop.f32.mrb[0].mxu0
  %v1058 = vadd.f32 %v251, %v1057
  %v1059 = vpop.f32.mrb[0].mxu0
  %1060 = vmatprep.mubr.f32.mxu0 0.0
  %1061 = vmatmul.mubr.f32.gmra.mrb[0].mxu0 %v309
  %v1062 = vpop.f32.mrb[0].mxu0
  %v1063 = vadd.f32 %v251, %v1062
  %v1064 = vpop.f32.mrb[0].mxu0
  %1065 = vmatprep.mubr.f32.mxu0 0.0
  %1066 = vmatmul.mubr.f32.gmra.mrb[0].mxu0 %v312
  %v1067 = vpop.f32.mrb[0].mxu0
  %v1068 = vadd.f32 %v251, %v1067
  %v1069 = vpop.f32.mrb[0].mxu0
  %1070 = vmatprep.mubr.f32.mxu0 0.0
  %1071 = vmatmul.mubr.f32.gmra.mrb[0].mxu0 %v315
  %v1072 = vpop.f32.mrb[0].mxu0
  %v1073 = vadd.f32 %v251, %v1072
  %v1074 = vpop.f32.mrb[0].mxu0
  %1075 = vmatprep.mubr.f32.mxu0 0.0
  %1076 = vmatmul.mubr.f32.gmra.mrb[0].mxu0 %v318
  %v1077 = vpop.f32.mrb[0].mxu0
  %v1078 = vadd.f32 %v251, %v1077
  %v1079 = vpop.f32.mrb[0].mxu0
  %1080 = vmatprep.mubr.f32.mxu0 0.0
  %1081 = vmatmul.mubr.f32.gmra.mrb[0].mxu0 %v321
  %v1082 = vpop.f32.mrb[0].mxu0
  %v1083 = vadd.f32 %v251, %v1082
  %v1084 = vpop.f32.mrb[0].mxu0
  %1085 = vmatprep.mubr.f32.mxu0 0.0
  %1086 = vmatmul.mubr.f32.gmra.mrb[0].mxu0 %v324
  %v1087 = vpop.f32.mrb[0].mxu0
  %v1088 = vadd.f32 %v251, %v1087
  %v1089 = vpop.f32.mrb[0].mxu0
  %1090 = vmatprep.mubr.f32.mxu0 0.0
  %1091 = vmatmul.mubr.f32.gmra.mrb[0].mxu0 %v327
  %v1092 = vpop.f32.mrb[0].mxu0
  %v1093 = vadd.f32 %v251, %v1092
  %v1094 = vpop.f32.mrb[0].mxu0
  %1095 = vmatprep.mubr.f32.mxu0 0.0
  %1096 = vmatmul.mubr.f32.gmra.mrb[0].mxu0 %v330
  %v1097 = vpop.f32.mrb[0].mxu0
  %v1098 = vadd.f32 %v251, %v1097
  %v1099 = vpop.f32.mrb[0].mxu0
  %1100 = vmatprep.mubr.f32.mxu0 0.0
  %1101 = vmatmul.mubr.f32.gmra.mrb[0].mxu0 %v333
  %v1102 = vpop.f32.mrb[0].mxu0
  %v1103 = vadd.f32 %v251, %v1102
  %v1104 = vpop.f32.mrb[0].mxu0
  %1105 = vmatprep.mubr.f32.mxu0 0.0
  %1106 = vmatmul.mubr.f32.gmra.mrb[0].mxu0 %v336
  %v1107 = vpop.f32.mrb[0].mxu0
  %v1108 = vadd.f32 %v251, %v1107
  %v1109 = vpop.f32.mrb[0].mxu0
  %1110 = vmatprep.mubr.f32.mxu0 0.0
  %1111 = vmatmul.mubr.f32.gmra.mrb[0].mxu0 %v339
  %v1112 = vpop.f32.mrb[0].mxu0
  %v1113 = vadd.f32 %v251, %v1112
  %v1114 = vpop.f32.mrb[0].mxu0
  %1115 = vmatprep.mubr.f32.mxu0 0.0
  %1116 = vmatmul.mubr.f32.gmra.mrb[0].mxu0 %v342
  %v1117 = vpop.f32.mrb[0].mxu0
  %v1118 = vadd.f32 %v251, %v1117
  %v1119 = vpop.f32.mrb[0].mxu0
  %1120 = vmatprep.mubr.f32.mxu0 0.0
  %1121 = vmatmul.mubr.f32.gmra.mrb[0].mxu0 %v345
  %v1122 = vpop.f32.mrb[0].mxu0
  %v1123 = vadd.f32 %v251, %v1122
  %v1124 = vpop.f32.mrb[0].mxu0
  %1125 = vmatprep.mubr.f32.mxu0 0.0
  %1126 = vmatmul.mubr.f32.gmra.mrb[0].mxu0 %v348
  %v1127 = vpop.f32.mrb[0].mxu0
  %v1128 = vadd.f32 %v251, %v1127
  %v1129 = vpop.f32.mrb[0].mxu0
  %1130 = vmatprep.mubr.f32.mxu0 0.0
  %1131 = vmatmul.mubr.f32.gmra.mrb[0].mxu0 %v351
  %v1132 = vpop.f32.mrb[0].mxu0
  %v1133 = vadd.f32 %v251, %v1132
  %v1134 = vpop.f32.mrb[0].mxu0
  %1135 = vmatprep.mubr.f32.mxu0 0.0
  %1136 = vmatmul.mubr.f32.gmra.mrb[0].mxu0 %v354
  %v1137 = vpop.f32.mrb[0].mxu0
  %v1138 = vadd.f32 %v251, %v1137
  %v1139 = vpop.f32.mrb[0].mxu0
  %1140 = vmatprep.mubr.f32.mxu0 0.0
  %1141 = vmatmul.mubr.f32.gmra.mrb[0].mxu0 %v357
  %v1142 = vpop.f32.mrb[0].mxu0
  %v1143 = vadd.f32 %v251, %v1142
  %v1144 = vpop.f32.mrb[0].mxu0
  %1145 = vmatprep.mubr.f32.mxu0 0.0
  %1146 = vmatmul.mubr.f32.gmra.mrb[0].mxu0 %v360
  %v1147 = vpop.f32.mrb[0].mxu0
  %v1148 = vadd.f32 %v251, %v1147
  %v1149 = vpop.f32.mrb[0].mxu0
  %1150 = vmatprep.mubr.f32.mxu0 0.0
  %1151 = vmatmul.mubr.f32.gmra.mrb[0].mxu0 %v363
  %v1152 = vpop.f32.mrb[0].mxu0
  %v1153 = vadd.f32 %v251, %v1152
  %v1154 = vpop.f32.mrb[0].mxu0
  %1155 = vmatprep.mubr.f32.mxu0 0.0
  %1156 = vmatmul.mubr.f32.gmra.mrb[0].mxu0 %v366
  %v1157 = vpop.f32.mrb[0].mxu0
  %v1158 = vadd.f32 %v251, %v1157
  %v1159 = vpop.f32.mrb[0].mxu0
  %1160 = vmatprep.mubr.f32.mxu0 0.0
  %1161 = vmatmul.mubr.f32.gmra.mrb[0].mxu0 %v369
  %v1162 = vpop.f32.mrb[0].mxu0
  %v1163 = vadd.f32 %v251, %v1162
  %v1164 = vpop.f32.mrb[0].mxu0
  %1165 = vmatprep.mubr.f32.mxu0 0.0
  %1166 = vmatmul.mubr.f32.gmra.mrb[0].mxu0 %v372
  %v1167 = vpop.f32.mrb[0].mxu0
  %v1168 = vadd.f32 %v251, %v1167
  %v1169 = vpop.f32.mrb[0].mxu0
  %1170 = vmatprep.mubr.f32.mxu0 0.0
  %1171 = vmatmul.mubr.f32.gmra.mrb[0].mxu0 %v375
  %v1172 = vpop.f32.mrb[0].mxu0
  %v1173 = vadd.f32 %v251, %v1172
  %v1174 = vpop.f32.mrb[0].mxu0
  %1175 = vmatprep.mubr.f32.mxu0 0.0
  %1176 = vmatmul.mubr.f32.gmra.mrb[0].mxu0 %v378
  %v1177 = vpop.f32.mrb[0].mxu0
  %v1178 = vadd.f32 %v251, %v1177
  %v1179 = vpop.f32.mrb[0].mxu0
  %1180 = vmatprep.mubr.f32.mxu0 0.0
  %1181 = vmatmul.mubr.f32.gmra.mrb[0].mxu0 %v381
  %v1182 = vpop.f32.mrb[0].mxu0
  %v1183 = vadd.f32 %v251, %v1182
  %v1184 = vpop.f32.mrb[0].mxu0
  %1185 = vmatprep.mubr.f32.mxu0 0.0
  %1186 = vmatmul.mubr.f32.gmra.mrb[0].mxu0 %v384
  %v1187 = vpop.f32.mrb[0].mxu0
  %v1188 = vadd.f32 %v251, %v1187
  %v1189 = vpop.f32.mrb[0].mxu0
  %1190 = vmatprep.mubr.f32.mxu0 0.0
  %1191 = vmatmul.mubr.f32.gmra.mrb[0].mxu0 %v387
  %v1192 = vpop.f32.mrb[0].mxu0
  %v1193 = vadd.f32 %v251, %v1192
  %v1194 = vpop.f32.mrb[0].mxu0
  %1195 = vmatprep.mubr.f32.mxu0 0.0
  %1196 = vmatmul.mubr.f32.gmra.mrb[0].mxu0 %v390
  %v1197 = vpop.f32.mrb[0].mxu0
  %v1198 = vadd.f32 %v251, %v1197
  %v1199 = vpop.f32.mrb[0].mxu0
  %1200 = vmatprep.mubr.f32.mxu0 0.0
  %1201 = vmatmul.mubr.f32.gmra.mrb[0].mxu0 %v393
  %v1202 = vpop.f32.mrb[0].mxu0
  %v1203 = vadd.f32 %v251, %v1202
  %v1204 = vpop.f32.mrb[0].mxu0
  %1205 = vmatprep.mubr.f32.mxu0 0.0
  %1206 = vmatmul.mubr.f32.gmra.mrb[0].mxu0 %v396
  %v1207 = vpop.f32.mrb[0].mxu0
  %v1208 = vadd.f32 %v251, %v1207
  %v1209 = vpop.f32.mrb[0].mxu0
  %1210 = vmatprep.mubr.f32.mxu0 0.0
  %1211 = vmatmul.mubr.f32.gmra.mrb[0].mxu0 %v399
  %v1212 = vpop.f32.mrb[0].mxu0
  %v1213 = vadd.f32 %v251, %v1212
  %v1214 = vpop.f32.mrb[0].mxu0
  %1215 = vmatprep.mubr.f32.mxu0 0.0
  %1216 = vmatmul.mubr.f32.gmra.mrb[0].mxu0 %v402
  %v1217 = vpop.f32.mrb[0].mxu0
  %v1218 = vadd.f32 %v251, %v1217
  %v1219 = vpop.f32.mrb[0].mxu0
  %1220 = vmatprep.mubr.f32.mxu0 0.0
  %1221 = vmatmul.mubr.f32.gmra.mrb[0].mxu0 %v405
  %v1222 = vpop.f32.mrb[0].mxu0
  %v1223 = vadd.f32 %v251, %v1222
  %v1224 = vpop.f32.mrb[0].mxu0
  %1225 = vmatprep.mubr.f32.mxu0 0.0
  %1226 = vmatmul.mubr.f32.gmra.mrb[0].mxu0 %v408
  %v1227 = vpop.f32.mrb[0].mxu0
  %v1228 = vadd.f32 %v251, %v1227
  %v1229 = vpop.f32.mrb[0].mxu0
  %1230 = vmatprep.mubr.f32.mxu0 0.0
  %1231 = vmatmul.mubr.f32.gmra.mrb[0].mxu0 %v411
  %v1232 = vpop.f32.mrb[0].mxu0
  %v1233 = vadd.f32 %v251, %v1232
  %v1234 = vpop.f32.mrb[0].mxu0
  %1235 = vmatprep.mubr.f32.mxu0 0.0
  %1236 = vmatmul.mubr.f32.gmra.mrb[0].mxu0 %v414
  %v1237 = vpop.f32.mrb[0].mxu0
  %v1238 = vadd.f32 %v251, %v1237
  %v1239 = vpop.f32.mrb[0].mxu0
  %1240 = vmatprep.mubr.f32.mxu0 0.0
  %1241 = vmatmul.mubr.f32.gmra.mrb[0].mxu0 %v417
  %v1242 = vpop.f32.mrb[0].mxu0
  %v1243 = vadd.f32 %v251, %v1242
  %v1244 = vpop.f32.mrb[0].mxu0
  %1245 = vmatprep.mubr.f32.mxu0 0.0
  %1246 = vmatmul.mubr.f32.gmra.mrb[0].mxu0 %v420
  %v1247 = vpop.f32.mrb[0].mxu0
  %v1248 = vadd.f32 %v251, %v1247
  %v1249 = vpop.f32.mrb[0].mxu0
  %1250 = vmatprep.mubr.f32.mxu0 0.0
  %1251 = vmatmul.mubr.f32.gmra.mrb[0].mxu0 %v423
  %v1252 = vpop.f32.mrb[0].mxu0
  %v1253 = vadd.f32 %v251, %v1252
  %v1254 = vpop.f32.mrb[0].mxu0
  %1255 = vmatprep.mubr.f32.mxu0 0.0
  %1256 = vmatmul.mubr.f32.gmra.mrb[0].mxu0 %v426
  %v1257 = vpop.f32.mrb[0].mxu0
  %v1258 = vadd.f32 %v251, %v1257
  %v1259 = vpop.f32.mrb[0].mxu0
  %1260 = vmatprep.mubr.f32.mxu0 0.0
  %1261 = vmatmul.mubr.f32.gmra.mrb[0].mxu0 %v429
  %v1262 = vpop.f32.mrb[0].mxu0
  %v1263 = vadd.f32 %v251, %v1262
  %v1264 = vpop.f32.mrb[0].mxu0
  %1265 = vmatprep.mubr.f32.mxu0 0.0
  %1266 = vmatmul.mubr.f32.gmra.mrb[0].mxu0 %v432
  %v1267 = vpop.f32.mrb[0].mxu0
  %v1268 = vadd.f32 %v251, %v1267
  %v1269 = vpop.f32.mrb[0].mxu0
  %1270 = vmatprep.mubr.f32.mxu0 0.0
  %1271 = vmatmul.mubr.f32.gmra.mrb[0].mxu0 %v435
  %v1272 = vpop.f32.mrb[0].mxu0
  %v1273 = vadd.f32 %v251, %v1272
  %v1274 = vpop.f32.mrb[0].mxu0
  %1275 = vmatprep.mubr.f32.mxu0 0.0
  %1276 = vmatmul.mubr.f32.gmra.mrb[0].mxu0 %v438
  %v1277 = vpop.f32.mrb[0].mxu0
  %v1278 = vadd.f32 %v251, %v1277
  %v1279 = vpop.f32.mrb[0].mxu0
  %1280 = vmatprep.mubr.f32.mxu0 0.0
  %1281 = vmatmul.mubr.f32.gmra.mrb[0].mxu0 %v441
  %v1282 = vpop.f32.mrb[0].mxu0
  %v1283 = vadd.f32 %v251, %v1282
  %v1284 = vpop.f32.mrb[0].mxu0
  %1285 = vmatprep.mubr.f32.mxu0 0.0
  %1286 = vmatmul.mubr.f32.gmra.mrb[0].mxu0 %v444
  %v1287 = vpop.f32.mrb[0].mxu0
  %v1288 = vadd.f32 %v251, %v1287
  %v1289 = vpop.f32.mrb[0].mxu0
  %1290 = vmatprep.mubr.f32.mxu0 0.0
  %1291 = vmatmul.mubr.f32.gmra.mrb[0].mxu0 %v447
  %v1292 = vpop.f32.mrb[0].mxu0
  %v1293 = vadd.f32 %v251, %v1292
  %v1294 = vpop.f32.mrb[0].mxu0
  %1295 = vmatprep.mubr.f32.mxu0 0.0
  %1296 = vmatmul.mubr.f32.gmra.mrb[0].mxu0 %v450
  %v1297 = vpop.f32.mrb[0].mxu0
  %v1298 = vadd.f32 %v251, %v1297
  %v1299 = vpop.f32.mrb[0].mxu0
  %1300 = vmatprep.mubr.f32.mxu0 0.0
  %1301 = vmatmul.mubr.f32.gmra.mrb[0].mxu0 %v453
  %v1302 = vpop.f32.mrb[0].mxu0
  %v1303 = vadd.f32 %v251, %v1302
  %v1304 = vpop.f32.mrb[0].mxu0
  %1305 = vmatprep.mubr.f32.mxu0 0.0
  %1306 = vmatmul.mubr.f32.gmra.mrb[0].mxu0 %v456
  %v1307 = vpop.f32.mrb[0].mxu0
  %v1308 = vadd.f32 %v251, %v1307
  %v1309 = vpop.f32.mrb[0].mxu0
  %1310 = vmatprep.mubr.f32.mxu0 0.0
  %1311 = vmatmul.mubr.f32.gmra.mrb[0].mxu0 %v459
  %v1312 = vpop.f32.mrb[0].mxu0
  %v1313 = vadd.f32 %v251, %v1312
  %v1314 = vpop.f32.mrb[0].mxu0
  %1315 = vmatprep.mubr.f32.mxu0 0.0
  %1316 = vmatmul.mubr.f32.gmra.mrb[0].mxu0 %v462
  %v1317 = vpop.f32.mrb[0].mxu0
  %v1318 = vadd.f32 %v251, %v1317
  %v1319 = vpop.f32.mrb[0].mxu0
  %1320 = vmatprep.mubr.f32.mxu0 0.0
  %1321 = vmatmul.mubr.f32.gmra.mrb[0].mxu0 %v465
  %v1322 = vpop.f32.mrb[0].mxu0
  %v1323 = vadd.f32 %v251, %v1322
  %v1324 = vpop.f32.mrb[0].mxu0
  %1325 = vmatprep.mubr.f32.mxu0 0.0
  %1326 = vmatmul.mubr.f32.gmra.mrb[0].mxu0 %v468
  %v1327 = vpop.f32.mrb[0].mxu0
  %v1328 = vadd.f32 %v251, %v1327
  %v1329 = vpop.f32.mrb[0].mxu0
  %1330 = vmatprep.mubr.f32.mxu0 0.0
  %1331 = vmatmul.mubr.f32.gmra.mrb[0].mxu0 %v471
  %v1332 = vpop.f32.mrb[0].mxu0
  %v1333 = vadd.f32 %v251, %v1332
  %v1334 = vpop.f32.mrb[0].mxu0
  %1335 = vmatprep.mubr.f32.mxu0 0.0
  %1336 = vmatmul.mubr.f32.gmra.mrb[0].mxu0 %v474
  %v1337 = vpop.f32.mrb[0].mxu0
  %v1338 = vadd.f32 %v251, %v1337
  %v1339 = vpop.f32.mrb[0].mxu0
  %1340 = vmatprep.mubr.f32.mxu0 0.0
  %1341 = vmatmul.mubr.f32.gmra.mrb[0].mxu0 %v477
  %v1342 = vpop.f32.mrb[0].mxu0
  %v1343 = vadd.f32 %v251, %v1342
  %v1344 = vpop.f32.mrb[0].mxu0
  %1345 = vmatprep.mubr.f32.mxu0 0.0
  %1346 = vmatmul.mubr.f32.gmra.mrb[0].mxu0 %v480
  %v1347 = vpop.f32.mrb[0].mxu0
  %v1348 = vadd.f32 %v251, %v1347
  %v1349 = vpop.f32.mrb[0].mxu0
  %1350 = vmatprep.mubr.f32.mxu0 0.0
  %1351 = vmatmul.mubr.f32.gmra.mrb[0].mxu0 %v483
  %v1352 = vpop.f32.mrb[0].mxu0
  %v1353 = vadd.f32 %v251, %v1352
  %v1354 = vpop.f32.mrb[0].mxu0
  %1355 = vmatprep.mubr.f32.mxu0 0.0
  %1356 = vmatmul.mubr.f32.gmra.mrb[0].mxu0 %v486
  %v1357 = vpop.f32.mrb[0].mxu0
  %v1358 = vadd.f32 %v251, %v1357
  %v1359 = vpop.f32.mrb[0].mxu0
  %1360 = vmatprep.mubr.f32.mxu0 0.0
  %1361 = vmatmul.mubr.f32.gmra.mrb[0].mxu0 %v489
  %v1362 = vpop.f32.mrb[0].mxu0
  %v1363 = vadd.f32 %v251, %v1362
  %v1364 = vpop.f32.mrb[0].mxu0
  %1365 = vmatprep.mubr.f32.mxu0 0.0
  %1366 = vmatmul.mubr.f32.gmra.mrb[0].mxu0 %v492
  %v1367 = vpop.f32.mrb[0].mxu0
  %v1368 = vadd.f32 %v251, %v1367
  %v1369 = vpop.f32.mrb[0].mxu0
  %1370 = vmatprep.mubr.f32.mxu0 0.0
  %1371 = vmatmul.mubr.f32.gmra.mrb[0].mxu0 %v495
  %v1372 = vpop.f32.mrb[0].mxu0
  %v1373 = vadd.f32 %v251, %v1372
  %v1374 = vpop.f32.mrb[0].mxu0
  %1375 = vmatprep.mubr.f32.mxu0 0.0
  %1376 = vmatmul.mubr.f32.gmra.mrb[0].mxu0 %v498
  %v1377 = vpop.f32.mrb[0].mxu0
  %v1378 = vadd.f32 %v251, %v1377
  %v1379 = vpop.f32.mrb[0].mxu0
  %1380 = vmatprep.mubr.f32.mxu0 0.0
  %1381 = vmatmul.mubr.f32.gmra.mrb[0].mxu0 %v501
  %v1382 = vpop.f32.mrb[0].mxu0
  %v1383 = vadd.f32 %v251, %v1382
  %v1384 = vpop.f32.mrb[0].mxu0
  %1385 = vmatprep.mubr.f32.mxu0 0.0
  %1386 = vmatmul.mubr.f32.gmra.mrb[0].mxu0 %v504
  %v1387 = vpop.f32.mrb[0].mxu0
  %v1388 = vadd.f32 %v251, %v1387
  %v1389 = vpop.f32.mrb[0].mxu0
  %1390 = vmatprep.mubr.f32.mxu0 0.0
  %1391 = vmatmul.mubr.f32.gmra.mrb[0].mxu0 %v507
  %v1392 = vpop.f32.mrb[0].mxu0
  %v1393 = vadd.f32 %v251, %v1392
  %v1394 = vpop.f32.mrb[0].mxu0
  %1395 = vmatprep.mubr.f32.mxu0 0.0
  %1396 = vmatmul.mubr.f32.gmra.mrb[0].mxu0 %v510
  %v1397 = vpop.f32.mrb[0].mxu0
  %v1398 = vadd.f32 %v251, %v1397
  %v1399 = vpop.f32.mrb[0].mxu0
  %1400 = vmatprep.mubr.f32.mxu0 0.0
  %1401 = vmatmul.mubr.f32.gmra.mrb[0].mxu0 %v513
  %v1402 = vpop.f32.mrb[0].mxu0
  %v1403 = vadd.f32 %v251, %v1402
  %v1404 = vpop.f32.mrb[0].mxu0
  %1405 = vmatprep.mubr.f32.mxu0 0.0
  %1406 = vmatmul.mubr.f32.gmra.mrb[0].mxu0 %v516
  %v1407 = vpop.f32.mrb[0].mxu0
  %v1408 = vadd.f32 %v251, %v1407
  %v1409 = vpop.f32.mrb[0].mxu0
  %1410 = vmatprep.mubr.f32.mxu0 0.0
  %1411 = vmatmul.mubr.f32.gmra.mrb[0].mxu0 %v519
  %v1412 = vpop.f32.mrb[0].mxu0
  %v1413 = vadd.f32 %v251, %v1412
  %v1414 = vpop.f32.mrb[0].mxu0
  %1415 = vmatprep.mubr.f32.mxu0 0.0
  %1416 = vmatmul.mubr.f32.gmra.mrb[0].mxu0 %v522
  %v1417 = vpop.f32.mrb[0].mxu0
  %v1418 = vadd.f32 %v251, %v1417
  %v1419 = vpop.f32.mrb[0].mxu0
  %1420 = vmatprep.mubr.f32.mxu0 0.0
  %1421 = vmatmul.mubr.f32.gmra.mrb[0].mxu0 %v525
  %v1422 = vpop.f32.mrb[0].mxu0
  %v1423 = vadd.f32 %v251, %v1422
  %v1424 = vpop.f32.mrb[0].mxu0
  %1425 = vmatprep.mubr.f32.mxu0 0.0
  %1426 = vmatmul.mubr.f32.gmra.mrb[0].mxu0 %v528
  %v1427 = vpop.f32.mrb[0].mxu0
  %v1428 = vadd.f32 %v251, %v1427
  %v1429 = vpop.f32.mrb[0].mxu0
  %1430 = vmatprep.mubr.f32.mxu0 0.0
  %1431 = vmatmul.mubr.f32.gmra.mrb[0].mxu0 %v531
  %v1432 = vpop.f32.mrb[0].mxu0
  %v1433 = vadd.f32 %v251, %v1432
  %v1434 = vpop.f32.mrb[0].mxu0
  %1435 = vmatprep.mubr.f32.mxu0 0.0
  %1436 = vmatmul.mubr.f32.gmra.mrb[0].mxu0 %v534
  %v1437 = vpop.f32.mrb[0].mxu0
  %v1438 = vadd.f32 %v251, %v1437
  %v1439 = vpop.f32.mrb[0].mxu0
  %1440 = vmatprep.mubr.f32.mxu0 0.0
  %1441 = vmatmul.mubr.f32.gmra.mrb[0].mxu0 %v537
  %v1442 = vpop.f32.mrb[0].mxu0
  %v1443 = vadd.f32 %v251, %v1442
  %v1444 = vpop.f32.mrb[0].mxu0
  %1445 = vmatprep.mubr.f32.mxu0 0.0
  %1446 = vmatmul.mubr.f32.gmra.mrb[0].mxu0 %v540
  %v1447 = vpop.f32.mrb[0].mxu0
  %v1448 = vadd.f32 %v251, %v1447
  %v1449 = vpop.f32.mrb[0].mxu0
  %1450 = vmatprep.mubr.f32.mxu0 0.0
  %1451 = vmatmul.mubr.f32.gmra.mrb[0].mxu0 %v543
  %v1452 = vpop.f32.mrb[0].mxu0
  %v1453 = vadd.f32 %v251, %v1452
  %v1454 = vpop.f32.mrb[0].mxu0
  %1455 = vmatprep.mubr.f32.mxu0 0.0
  %1456 = vmatmul.mubr.f32.gmra.mrb[0].mxu0 %v546
  %v1457 = vpop.f32.mrb[0].mxu0
  %v1458 = vadd.f32 %v251, %v1457
  %v1459 = vpop.f32.mrb[0].mxu0
  %1460 = vmatprep.mubr.f32.mxu0 0.0
  %1461 = vmatmul.mubr.f32.gmra.mrb[0].mxu0 %v549
  %v1462 = vpop.f32.mrb[0].mxu0
  %v1463 = vadd.f32 %v251, %v1462
  %v1464 = vpop.f32.mrb[0].mxu0
  %1465 = vmatprep.mubr.f32.mxu0 0.0
  %1466 = vmatmul.mubr.f32.gmra.mrb[0].mxu0 %v552
  %v1467 = vpop.f32.mrb[0].mxu0
  %v1468 = vadd.f32 %v251, %v1467
  %v1469 = vpop.f32.mrb[0].mxu0
  %1470 = vmatprep.mubr.f32.mxu0 0.0
  %1471 = vmatmul.mubr.f32.gmra.mrb[0].mxu0 %v555
  %v1472 = vpop.f32.mrb[0].mxu0
  %v1473 = vadd.f32 %v251, %v1472
  %v1474 = vpop.f32.mrb[0].mxu0
  %1475 = vmatprep.mubr.f32.mxu0 0.0
  %1476 = vmatmul.mubr.f32.gmra.mrb[0].mxu0 %v558
  %v1477 = vpop.f32.mrb[0].mxu0
  %v1478 = vadd.f32 %v251, %v1477
  %v1479 = vpop.f32.mrb[0].mxu0
  %1480 = vmatprep.mubr.f32.mxu0 0.0
  %1481 = vmatmul.mubr.f32.gmra.mrb[0].mxu0 %v561
  %v1482 = vpop.f32.mrb[0].mxu0
  %v1483 = vadd.f32 %v251, %v1482
  %v1484 = vpop.f32.mrb[0].mxu0
  %1485 = vmatprep.mubr.f32.mxu0 0.0
  %1486 = vmatmul.mubr.f32.gmra.mrb[0].mxu0 %v564
  %v1487 = vpop.f32.mrb[0].mxu0
  %v1488 = vadd.f32 %v251, %v1487
  %v1489 = vpop.f32.mrb[0].mxu0
  %1490 = vmatprep.mubr.f32.mxu0 0.0
  %1491 = vmatmul.mubr.f32.gmra.mrb[0].mxu0 %v567
  %v1492 = vpop.f32.mrb[0].mxu0
  %v1493 = vadd.f32 %v251, %v1492
  %v1494 = vpop.f32.mrb[0].mxu0
  %1495 = vmatprep.mubr.f32.mxu0 0.0
  %1496 = vmatmul.mubr.f32.gmra.mrb[0].mxu0 %v570
  %v1497 = vpop.f32.mrb[0].mxu0
  %v1498 = vadd.f32 %v251, %v1497
  %v1499 = vpop.f32.mrb[0].mxu0
  %1500 = vmatprep.mubr.f32.mxu0 0.0
  %1501 = vmatmul.mubr.f32.gmra.mrb[0].mxu0 %v573
  %v1502 = vpop.f32.mrb[0].mxu0
  %v1503 = vadd.f32 %v251, %v1502
  %v1504 = vpop.f32.mrb[0].mxu0
  %1505 = vmatprep.mubr.f32.mxu0 0.0
  %1506 = vmatmul.mubr.f32.gmra.mrb[0].mxu0 %v576
  %v1507 = vpop.f32.mrb[0].mxu0
  %v1508 = vadd.f32 %v251, %v1507
  %v1509 = vpop.f32.mrb[0].mxu0
  %1510 = vmatprep.mubr.f32.mxu0 0.0
  %1511 = vmatmul.mubr.f32.gmra.mrb[0].mxu0 %v579
  %v1512 = vpop.f32.mrb[0].mxu0
  %v1513 = vadd.f32 %v251, %v1512
  %v1514 = vpop.f32.mrb[0].mxu0
  %1515 = vmatprep.mubr.f32.mxu0 0.0
  %1516 = vmatmul.mubr.f32.gmra.mrb[0].mxu0 %v582
  %v1517 = vpop.f32.mrb[0].mxu0
  %v1518 = vadd.f32 %v251, %v1517
  %v1519 = vpop.f32.mrb[0].mxu0
  %1520 = vmatprep.mubr.f32.mxu0 0.0
  %1521 = vmatmul.mubr.f32.gmra.mrb[0].mxu0 %v585
  %v1522 = vpop.f32.mrb[0].mxu0
  %v1523 = vadd.f32 %v251, %v1522
  %v1524 = vpop.f32.mrb[0].mxu0
  %1525 = vmatprep.mubr.f32.mxu0 0.0
  %1526 = vmatmul.mubr.f32.gmra.mrb[0].mxu0 %v588
  %v1527 = vpop.f32.mrb[0].mxu0
  %v1528 = vadd.f32 %v251, %v1527
  %v1529 = vpop.f32.mrb[0].mxu0
  %1530 = vmatprep.mubr.f32.mxu0 0.0
  %1531 = vmatmul.mubr.f32.gmra.mrb[0].mxu0 %v591
  %v1532 = vpop.f32.mrb[0].mxu0
  %v1533 = vadd.f32 %v251, %v1532
  %v1534 = vpop.f32.mrb[0].mxu0
  %1535 = vmatprep.mubr.f32.mxu0 0.0
  %1536 = vmatmul.mubr.f32.gmra.mrb[0].mxu0 %v594
  %v1537 = vpop.f32.mrb[0].mxu0
  %v1538 = vadd.f32 %v251, %v1537
  %v1539 = vpop.f32.mrb[0].mxu0
  %1540 = vmatprep.mubr.f32.mxu0 0.0
  %1541 = vmatmul.mubr.f32.gmra.mrb[0].mxu0 %v597
  %v1542 = vpop.f32.mrb[0].mxu0
  %v1543 = vadd.f32 %v251, %v1542
  %v1544 = vpop.f32.mrb[0].mxu0
  %1545 = vmatprep.mubr.f32.mxu0 0.0
  %1546 = vmatmul.mubr.f32.gmra.mrb[0].mxu0 %v600
  %v1547 = vpop.f32.mrb[0].mxu0
  %v1548 = vadd.f32 %v251, %v1547
  %v1549 = vpop.f32.mrb[0].mxu0
  %1550 = vmatprep.mubr.f32.mxu0 0.0
  %1551 = vmatmul.mubr.f32.gmra.mrb[0].mxu0 %v603
  %v1552 = vpop.f32.mrb[0].mxu0
  %v1553 = vadd.f32 %v251, %v1552
  %v1554 = vpop.f32.mrb[0].mxu0
  %1555 = vmatprep.mubr.f32.mxu0 0.0
  %1556 = vmatmul.mubr.f32.gmra.mrb[0].mxu0 %v606
  %v1557 = vpop.f32.mrb[0].mxu0
  %v1558 = vadd.f32 %v251, %v1557
  %v1559 = vpop.f32.mrb[0].mxu0
  %1560 = vmatprep.mubr.f32.mxu0 0.0
  %1561 = vmatmul.mubr.f32.gmra.mrb[0].mxu0 %v609
  %v1562 = vpop.f32.mrb[0].mxu0
  %v1563 = vadd.f32 %v251, %v1562
  %v1564 = vpop.f32.mrb[0].mxu0
  %1565 = vmatprep.mubr.f32.mxu0 0.0
  %1566 = vmatmul.mubr.f32.gmra.mrb[0].mxu0 %v612
  %v1567 = vpop.f32.mrb[0].mxu0
  %v1568 = vadd.f32 %v251, %v1567
  %v1569 = vpop.f32.mrb[0].mxu0
  %1570 = vmatprep.mubr.f32.mxu0 0.0
  %1571 = vmatmul.mubr.f32.gmra.mrb[0].mxu0 %v615
  %v1572 = vpop.f32.mrb[0].mxu0
  %v1573 = vadd.f32 %v251, %v1572
  %v1574 = vpop.f32.mrb[0].mxu0
  %1575 = vmatprep.mubr.f32.mxu0 0.0
  %1576 = vmatmul.mubr.f32.gmra.mrb[0].mxu0 %v618
  %v1577 = vpop.f32.mrb[0].mxu0
  %v1578 = vadd.f32 %v251, %v1577
  %v1579 = vpop.f32.mrb[0].mxu0
  %1580 = vmatprep.mubr.f32.mxu0 0.0
  %1581 = vmatmul.mubr.f32.gmra.mrb[0].mxu0 %v621
  %v1582 = vpop.f32.mrb[0].mxu0
  %v1583 = vadd.f32 %v251, %v1582
  %v1584 = vpop.f32.mrb[0].mxu0
  %1585 = vmatprep.mubr.f32.mxu0 0.0
  %1586 = vmatmul.mubr.f32.gmra.mrb[0].mxu0 %v624
  %v1587 = vpop.f32.mrb[0].mxu0
  %v1588 = vadd.f32 %v251, %v1587
  %v1589 = vpop.f32.mrb[0].mxu0
  %1590 = vmatprep.mubr.f32.mxu0 0.0
  %1591 = vmatmul.mubr.f32.gmra.mrb[0].mxu0 %v627
  %v1592 = vpop.f32.mrb[0].mxu0
  %v1593 = vadd.f32 %v251, %v1592
  %v1594 = vpop.f32.mrb[0].mxu0
  %1595 = vmatprep.mubr.f32.mxu0 0.0
  %1596 = vmatmul.mubr.f32.gmra.mrb[0].mxu0 %v630
  %v1597 = vpop.f32.mrb[0].mxu0
  %v1598 = vadd.f32 %v251, %v1597
  %v1599 = vpop.f32.mrb[0].mxu0
  %1600 = vmatprep.mubr.f32.mxu0 0.0
  %1601 = vmatmul.mubr.f32.gmra.mrb[0].mxu0 %v633
  %v1602 = vpop.f32.mrb[0].mxu0
  %v1603 = vadd.f32 %v251, %v1602
  %v1604 = vpop.f32.mrb[0].mxu0
  %1605 = vmatprep.mubr.f32.mxu0 0.0
  %1606 = vmatmul.mubr.f32.gmra.mrb[0].mxu0 %v636
  %v1607 = vpop.f32.mrb[0].mxu0
  %v1608 = vadd.f32 %v251, %v1607
  %v1609 = vpop.f32.mrb[0].mxu0
  %1610 = vmatprep.mubr.f32.mxu0 0.0
  %1611 = vmatmul.mubr.f32.gmra.mrb[0].mxu0 %v639
  %v1612 = vpop.f32.mrb[0].mxu0
  %v1613 = vadd.f32 %v251, %v1612
  %v1614 = vpop.f32.mrb[0].mxu0
  %1615 = vmatprep.mubr.f32.mxu0 0.0
  %1616 = vmatmul.mubr.f32.gmra.mrb[0].mxu0 %v642
  %v1617 = vpop.f32.mrb[0].mxu0
  %v1618 = vadd.f32 %v251, %v1617
  %v1619 = vpop.f32.mrb[0].mxu0
  %1620 = vmatprep.mubr.f32.mxu0 0.0
  %1621 = vmatmul.mubr.f32.gmra.mrb[0].mxu0 %v645
  %v1622 = vpop.f32.mrb[0].mxu0
  %v1623 = vadd.f32 %v251, %v1622
  %v1624 = vpop.f32.mrb[0].mxu0
  %1625 = vmatprep.mubr.f32.mxu0 0.0
  %1626 = vmatmul.mubr.f32.gmra.mrb[0].mxu0 %v648
  %v1627 = vpop.f32.mrb[0].mxu0
  %v1628 = vadd.f32 %v251, %v1627
  %v1629 = vpop.f32.mrb[0].mxu0
  %1630 = vmatprep.mubr.f32.mxu0 0.0
  %1631 = vmatmul.mubr.f32.gmra.mrb[0].mxu0 %v651
  %v1632 = vpop.f32.mrb[0].mxu0
  %v1633 = vadd.f32 %v251, %v1632
  %v1634 = vpop.f32.mrb[0].mxu0
  %1635 = vmatprep.mubr.f32.mxu0 0.0
  %1636 = vmatmul.mubr.f32.gmra.mrb[0].mxu0 %v654
  %v1637 = vpop.f32.mrb[0].mxu0
  %v1638 = vadd.f32 %v251, %v1637
  %v1639 = vpop.f32.mrb[0].mxu0
  %1640 = vmatprep.mubr.f32.mxu0 0.0
  %1641 = vmatmul.mubr.f32.gmra.mrb[0].mxu0 %v657
  %v1642 = vpop.f32.mrb[0].mxu0
  %v1643 = vadd.f32 %v251, %v1642
  %v1644 = vpop.f32.mrb[0].mxu0
  %1645 = vmatprep.mubr.f32.mxu0 0.0
  %1646 = vmatmul.mubr.f32.gmra.mrb[0].mxu0 %v660
  %v1647 = vpop.f32.mrb[0].mxu0
  %v1648 = vadd.f32 %v251, %v1647
  %v1649 = vpop.f32.mrb[0].mxu0
  %1650 = vmatprep.mubr.f32.mxu0 0.0
  %1651 = vmatmul.mubr.f32.gmra.mrb[0].mxu0 %v663
  %v1652 = vpop.f32.mrb[0].mxu0
  %v1653 = vadd.f32 %v251, %v1652
  %v1654 = vpop.f32.mrb[0].mxu0
  %1655 = vmatprep.mubr.f32.mxu0 0.0
  %1656 = vmatmul.mubr.f32.gmra.mrb[0].mxu0 %v666
  %v1657 = vpop.f32.mrb[0].mxu0
  %v1658 = vadd.f32 %v251, %v1657
  %v1659 = vpop.f32.mrb[0].mxu0
  %1660 = vmatprep.mubr.f32.mxu0 0.0
  %1661 = vmatmul.mubr.f32.gmra.mrb[0].mxu0 %v669
  %v1662 = vpop.f32.mrb[0].mxu0
  %v1663 = vadd.f32 %v251, %v1662
  %v1664 = vpop.f32.mrb[0].mxu0
  %1665 = vmatprep.mubr.f32.mxu0 0.0
  %1666 = vmatmul.mubr.f32.gmra.mrb[0].mxu0 %v672
  %v1667 = vpop.f32.mrb[0].mxu0
  %v1668 = vadd.f32 %v251, %v1667
  %v1669 = vpop.f32.mrb[0].mxu0
  %1670 = vmatprep.mubr.f32.mxu0 0.0
  %1671 = vmatmul.mubr.f32.gmra.mrb[0].mxu0 %v675
  %v1672 = vpop.f32.mrb[0].mxu0
  %v1673 = vadd.f32 %v251, %v1672
  %v1674 = vpop.f32.mrb[0].mxu0
  %1675 = vmatprep.mubr.f32.mxu0 0.0
  %1676 = vmatmul.mubr.f32.gmra.mrb[0].mxu0 %v678
  %v1677 = vpop.f32.mrb[0].mxu0
  %v1678 = vadd.f32 %v251, %v1677
  %v1679 = vpop.f32.mrb[0].mxu0
  %1680 = vmatprep.mubr.f32.mxu0 0.0
  %1681 = vmatmul.mubr.f32.gmra.mrb[0].mxu0 %v681
  %v1682 = vpop.f32.mrb[0].mxu0
  %v1683 = vadd.f32 %v251, %v1682
  %v1684 = vpop.f32.mrb[0].mxu0
  %1685 = vmatprep.mubr.f32.mxu0 0.0
  %1686 = vmatmul.mubr.f32.gmra.mrb[0].mxu0 %v684
  %v1687 = vpop.f32.mrb[0].mxu0
  %v1688 = vadd.f32 %v251, %v1687
  %v1689 = vpop.f32.mrb[0].mxu0
  %1690 = vmatprep.mubr.f32.mxu0 0.0
  %1691 = vmatmul.mubr.f32.gmra.mrb[0].mxu0 %v687
  %v1692 = vpop.f32.mrb[0].mxu0
  %v1693 = vadd.f32 %v251, %v1692
  %v1694 = vpop.f32.mrb[0].mxu0
  %1695 = vmatprep.mubr.f32.mxu0 0.0
  %1696 = vmatmul.mubr.f32.gmra.mrb[0].mxu0 %v690
  %v1697 = vpop.f32.mrb[0].mxu0
  %v1698 = vadd.f32 %v251, %v1697
  %v1699 = vpop.f32.mrb[0].mxu0
  %1700 = vmatprep.mubr.f32.mxu0 0.0
  %1701 = vmatmul.mubr.f32.gmra.mrb[0].mxu0 %v693
  %v1702 = vpop.f32.mrb[0].mxu0
  %v1703 = vadd.f32 %v251, %v1702
  %v1704 = vpop.f32.mrb[0].mxu0
  %1705 = vmatprep.mubr.f32.mxu0 0.0
  %1706 = vmatmul.mubr.f32.gmra.mrb[0].mxu0 %v696
  %v1707 = vpop.f32.mrb[0].mxu0
  %v1708 = vadd.f32 %v251, %v1707
  %v1709 = vpop.f32.mrb[0].mxu0
  %1710 = vmatprep.mubr.f32.mxu0 0.0
  %1711 = vmatmul.mubr.f32.gmra.mrb[0].mxu0 %v699
  %v1712 = vpop.f32.mrb[0].mxu0
  %v1713 = vadd.f32 %v251, %v1712
  %v1714 = vpop.f32.mrb[0].mxu0
  %1715 = vmatprep.mubr.f32.mxu0 0.0
  %1716 = vmatmul.mubr.f32.gmra.mrb[0].mxu0 %v702
  %v1717 = vpop.f32.mrb[0].mxu0
  %v1718 = vadd.f32 %v251, %v1717
  %v1719 = vpop.f32.mrb[0].mxu0
  %1720 = vmatprep.mubr.f32.mxu0 0.0
  %1721 = vmatmul.mubr.f32.gmra.mrb[0].mxu0 %v705
  %v1722 = vpop.f32.mrb[0].mxu0
  %v1723 = vadd.f32 %v251, %v1722
  %v1724 = vpop.f32.mrb[0].mxu0
  %1725 = vmatprep.mubr.f32.mxu0 0.0
  %1726 = vmatmul.mubr.f32.gmra.mrb[0].mxu0 %v708
  %v1727 = vpop.f32.mrb[0].mxu0
  %v1728 = vadd.f32 %v251, %v1727
  %v1729 = vpop.f32.mrb[0].mxu0
  %1730 = vmatprep.mubr.f32.mxu0 0.0
  %1731 = vmatmul.mubr.f32.gmra.mrb[0].mxu0 %v711
  %v1732 = vpop.f32.mrb[0].mxu0
  %v1733 = vadd.f32 %v251, %v1732
  %v1734 = vpop.f32.mrb[0].mxu0
  %1735 = vmatprep.mubr.f32.mxu0 0.0
  %1736 = vmatmul.mubr.f32.gmra.mrb[0].mxu0 %v714
  %v1737 = vpop.f32.mrb[0].mxu0
  %v1738 = vadd.f32 %v251, %v1737
  %v1739 = vpop.f32.mrb[0].mxu0
  %1740 = vmatprep.mubr.f32.mxu0 0.0
  %1741 = vmatmul.mubr.f32.gmra.mrb[0].mxu0 %v717
  %v1742 = vpop.f32.mrb[0].mxu0
  %v1743 = vadd.f32 %v251, %v1742
  %v1744 = vpop.f32.mrb[0].mxu0
  %1745 = vmatprep.mubr.f32.mxu0 0.0
  %1746 = vmatmul.mubr.f32.gmra.mrb[0].mxu0 %v720
  %v1747 = vpop.f32.mrb[0].mxu0
  %v1748 = vadd.f32 %v251, %v1747
  %v1749 = vpop.f32.mrb[0].mxu0
  %1750 = vmatprep.mubr.f32.mxu0 0.0
  %1751 = vmatmul.mubr.f32.gmra.mrb[0].mxu0 %v723
  %v1752 = vpop.f32.mrb[0].mxu0
  %v1753 = vadd.f32 %v251, %v1752
  %v1754 = vpop.f32.mrb[0].mxu0
  %1755 = vmatprep.mubr.f32.mxu0 0.0
  %1756 = vmatmul.mubr.f32.gmra.mrb[0].mxu0 %v726
  %v1757 = vpop.f32.mrb[0].mxu0
  %v1758 = vadd.f32 %v251, %v1757
  %v1759 = vpop.f32.mrb[0].mxu0
  %1760 = vmatprep.mubr.f32.mxu0 0.0
  %1761 = vmatmul.mubr.f32.gmra.mrb[0].mxu0 %v729
  %v1762 = vpop.f32.mrb[0].mxu0
  %v1763 = vadd.f32 %v251, %v1762
  %v1764 = vpop.f32.mrb[0].mxu0
  %1765 = vmatprep.mubr.f32.mxu0 0.0
  %1766 = vmatmul.mubr.f32.gmra.mrb[0].mxu0 %v732
  %v1767 = vpop.f32.mrb[0].mxu0
  %v1768 = vadd.f32 %v251, %v1767
  %v1769 = vpop.f32.mrb[0].mxu0
  %1770 = vmatprep.mubr.f32.mxu0 0.0
  %1771 = vmatmul.mubr.f32.gmra.mrb[0].mxu0 %v735
  %v1772 = vpop.f32.mrb[0].mxu0
  %v1773 = vadd.f32 %v251, %v1772
  %v1774 = vpop.f32.mrb[0].mxu0
  %1775 = vmatprep.mubr.f32.mxu0 0.0
  %1776 = vmatmul.mubr.f32.gmra.mrb[0].mxu0 %v738
  %v1777 = vpop.f32.mrb[0].mxu0
  %v1778 = vadd.f32 %v251, %v1777
  %v1779 = vpop.f32.mrb[0].mxu0
  %1780 = vmatprep.mubr.f32.mxu0 0.0
  %1781 = vmatmul.mubr.f32.gmra.mrb[0].mxu0 %v741
  %v1782 = vpop.f32.mrb[0].mxu0
  %v1783 = vadd.f32 %v251, %v1782
  %v1784 = vpop.f32.mrb[0].mxu0
  %1785 = vmatprep.mubr.f32.mxu0 0.0
  %1786 = vmatmul.mubr.f32.gmra.mrb[0].mxu0 %v744
  %v1787 = vpop.f32.mrb[0].mxu0
  %v1788 = vadd.f32 %v251, %v1787
  %v1789 = vpop.f32.mrb[0].mxu0
  %1790 = vmatprep.mubr.f32.mxu0 0.0
  %1791 = vmatmul.mubr.f32.gmra.mrb[0].mxu0 %v747
  %v1792 = vpop.f32.mrb[0].mxu0
  %v1793 = vadd.f32 %v251, %v1792
  %v1794 = vpop.f32.mrb[0].mxu0
  %1795 = vmatprep.mubr.f32.mxu0 0.0
  %1796 = vmatmul.mubr.f32.gmra.mrb[0].mxu0 %v750
  %v1797 = vpop.f32.mrb[0].mxu0
  %v1798 = vadd.f32 %v251, %v1797
  %v1799 = vpop.f32.mrb[0].mxu0
  %1800 = vmatprep.mubr.f32.mxu0 0.0
  %1801 = vmatmul.mubr.f32.gmra.mrb[0].mxu0 %v753
  %v1802 = vpop.f32.mrb[0].mxu0
  %v1803 = vadd.f32 %v251, %v1802
  %v1804 = vpop.f32.mrb[0].mxu0
  %1805 = vmatprep.mubr.f32.mxu0 0.0
  %1806 = vmatmul.mubr.f32.gmra.mrb[0].mxu0 %v756
  %v1807 = vpop.f32.mrb[0].mxu0
  %v1808 = vadd.f32 %v251, %v1807
  %v1809 = vpop.f32.mrb[0].mxu0
  %1810 = vmatprep.mubr.f32.mxu0 0.0
  %1811 = vmatmul.mubr.f32.gmra.mrb[0].mxu0 %v759
  %v1812 = vpop.f32.mrb[0].mxu0
  %v1813 = vadd.f32 %v251, %v1812
  %v1814 = vpop.f32.mrb[0].mxu0
  %1815 = vmatprep.mubr.f32.mxu0 0.0
  %1816 = vmatmul.mubr.f32.gmra.mrb[0].mxu0 %v762
  %v1817 = vpop.f32.mrb[0].mxu0
  %v1818 = vadd.f32 %v251, %v1817
  %v1819 = vpop.f32.mrb[0].mxu0
  %1820 = vmatprep.mubr.f32.mxu0 0.0
  %1821 = vmatmul.mubr.f32.gmra.mrb[0].mxu0 %v765
  %v1822 = vpop.f32.mrb[0].mxu0
  %v1823 = vadd.f32 %v251, %v1822
  %v1824 = vpop.f32.mrb[0].mxu0
  %1825 = vmatprep.mubr.f32.mxu0 0.0
  %1826 = vmatmul.mubr.f32.gmra.mrb[0].mxu0 %v768
  %v1827 = vpop.f32.mrb[0].mxu0
  %v1828 = vadd.f32 %v251, %v1827
  %v1829 = vpop.f32.mrb[0].mxu0
  %1830 = vmatprep.mubr.f32.mxu0 0.0
  %1831 = vmatmul.mubr.f32.gmra.mrb[0].mxu0 %v771
  %v1832 = vpop.f32.mrb[0].mxu0
  %v1833 = vadd.f32 %v251, %v1832
  %v1834 = vpop.f32.mrb[0].mxu0
  %1835 = vmatprep.mubr.f32.mxu0 0.0
  %1836 = vmatmul.mubr.f32.gmra.mrb[0].mxu0 %v774
  %v1837 = vpop.f32.mrb[0].mxu0
  %v1838 = vadd.f32 %v251, %v1837
  %v1839 = vpop.f32.mrb[0].mxu0
  %1840 = vmatprep.mubr.f32.mxu0 0.0
  %1841 = vmatmul.mubr.f32.gmra.mrb[0].mxu0 %v777
  %v1842 = vpop.f32.mrb[0].mxu0
  %v1843 = vadd.f32 %v251, %v1842
  %v1844 = vpop.f32.mrb[0].mxu0
  %1845 = vmatprep.mubr.f32.mxu0 0.0
  %1846 = vmatmul.mubr.f32.gmra.mrb[0].mxu0 %v780
  %v1847 = vpop.f32.mrb[0].mxu0
  %v1848 = vadd.f32 %v251, %v1847
  %v1849 = vpop.f32.mrb[0].mxu0
  %1850 = vmatprep.mubr.f32.mxu0 0.0
  %1851 = vmatmul.mubr.f32.gmra.mrb[0].mxu0 %v783
  %v1852 = vpop.f32.mrb[0].mxu0
  %v1853 = vadd.f32 %v251, %v1852
  %v1854 = vpop.f32.mrb[0].mxu0
  %1855 = vmatprep.mubr.f32.mxu0 0.0
  %1856 = vmatmul.mubr.f32.gmra.mrb[0].mxu0 %v786
  %v1857 = vpop.f32.mrb[0].mxu0
  %v1858 = vadd.f32 %v251, %v1857
  %v1859 = vpop.f32.mrb[0].mxu0
  %1860 = vmatprep.mubr.f32.mxu0 0.0
  %1861 = vmatmul.mubr.f32.gmra.mrb[0].mxu0 %v789
  %v1862 = vpop.f32.mrb[0].mxu0
  %v1863 = vadd.f32 %v251, %v1862
  %v1864 = vpop.f32.mrb[0].mxu0
  %1865 = vmatprep.mubr.f32.mxu0 0.0
  %1866 = vmatmul.mubr.f32.gmra.mrb[0].mxu0 %v792
  %v1867 = vpop.f32.mrb[0].mxu0
  %v1868 = vadd.f32 %v251, %v1867
  %v1869 = vpop.f32.mrb[0].mxu0
  %1870 = vmatprep.mubr.f32.mxu0 0.0
  %1871 = vmatmul.mubr.f32.gmra.mrb[0].mxu0 %v795
  %v1872 = vpop.f32.mrb[0].mxu0
  %v1873 = vadd.f32 %v251, %v1872
  %v1874 = vpop.f32.mrb[0].mxu0
  %1875 = vmatprep.mubr.f32.mxu0 0.0
  %1876 = vmatmul.mubr.f32.gmra.mrb[0].mxu0 %v798
  %v1877 = vpop.f32.mrb[0].mxu0
  %v1878 = vadd.f32 %v251, %v1877
  %v1879 = vpop.f32.mrb[0].mxu0
  %1880 = vmatprep.mubr.f32.mxu0 0.0
  %1881 = vmatmul.mubr.f32.gmra.mrb[0].mxu0 %v801
  %v1882 = vpop.f32.mrb[0].mxu0
  %v1883 = vadd.f32 %v251, %v1882
  %v1884 = vpop.f32.mrb[0].mxu0
  %1885 = vmatprep.mubr.f32.mxu0 0.0
  %1886 = vmatmul.mubr.f32.gmra.mrb[0].mxu0 %v804
  %v1887 = vpop.f32.mrb[0].mxu0
  %v1888 = vadd.f32 %v251, %v1887
  %v1889 = vpop.f32.mrb[0].mxu0
  %1890 = vmatprep.mubr.f32.mxu0 0.0
  %1891 = vmatmul.mubr.f32.gmra.mrb[0].mxu0 %v807
  %v1892 = vpop.f32.mrb[0].mxu0
  %v1893 = vadd.f32 %v251, %v1892
  %v1894 = vpop.f32.mrb[0].mxu0
  %1895 = vmatprep.mubr.f32.mxu0 0.0
  %1896 = vmatmul.mubr.f32.gmra.mrb[0].mxu0 %v810
  %v1897 = vpop.f32.mrb[0].mxu0
  %v1898 = vadd.f32 %v251, %v1897
  %v1899 = vpop.f32.mrb[0].mxu0
  %1900 = vmatprep.mubr.f32.mxu0 0.0
  %1901 = vmatmul.mubr.f32.gmra.mrb[0].mxu0 %v813
  %v1902 = vpop.f32.mrb[0].mxu0
  %v1903 = vadd.f32 %v251, %v1902
  %v1904 = vpop.f32.mrb[0].mxu0
  %1905 = vmatprep.mubr.f32.mxu0 0.0
  %1906 = vmatmul.mubr.f32.gmra.mrb[0].mxu0 %v816
  %v1907 = vpop.f32.mrb[0].mxu0
  %v1908 = vadd.f32 %v251, %v1907
  %v1909 = vpop.f32.mrb[0].mxu0
  %1910 = vmatprep.mubr.f32.mxu0 0.0
  %1911 = vmatmul.mubr.f32.gmra.mrb[0].mxu0 %v819
  %v1912 = vpop.f32.mrb[0].mxu0
  %v1913 = vadd.f32 %v251, %v1912
  %v1914 = vpop.f32.mrb[0].mxu0
  %1915 = vmatprep.mubr.f32.mxu0 0.0
  %1916 = vmatmul.mubr.f32.gmra.mrb[0].mxu0 %v822
  %v1917 = vpop.f32.mrb[0].mxu0
  %v1918 = vadd.f32 %v251, %v1917
  %v1919 = vpop.f32.mrb[0].mxu0
  %1920 = vmatprep.mubr.f32.mxu0 0.0
  %1921 = vmatmul.mubr.f32.gmra.mrb[0].mxu0 %v825
  %v1922 = vpop.f32.mrb[0].mxu0
  %v1923 = vadd.f32 %v251, %v1922
  %v1924 = vpop.f32.mrb[0].mxu0
  %1925 = vmatprep.mubr.f32.mxu0 0.0
  %1926 = vmatmul.mubr.f32.gmra.mrb[0].mxu0 %v828
  %v1927 = vpop.f32.mrb[0].mxu0
  %v1928 = vadd.f32 %v251, %v1927
  %v1929 = vpop.f32.mrb[0].mxu0
  %1930 = vmatprep.mubr.f32.mxu0 0.0
  %1931 = vmatmul.mubr.f32.gmra.mrb[0].mxu0 %v831
  %v1932 = vpop.f32.mrb[0].mxu0
  %v1933 = vadd.f32 %v251, %v1932
  %v1934 = vpop.f32.mrb[0].mxu0
  %1935 = vmatprep.mubr.f32.mxu0 0.0
  %1936 = vmatmul.mubr.f32.gmra.mrb[0].mxu0 %v834
  %v1937 = vpop.f32.mrb[0].mxu0
  %v1938 = vadd.f32 %v251, %v1937
  %v1939 = vpop.f32.mrb[0].mxu0
  %1940 = vmatprep.mubr.f32.mxu0 0.0
  %1941 = vmatmul.mubr.f32.gmra.mrb[0].mxu0 %v837
  %v1942 = vpop.f32.mrb[0].mxu0
  %v1943 = vadd.f32 %v251, %v1942
  %v1944 = vpop.f32.mrb[0].mxu0
  %1945 = vmatprep.mubr.f32.mxu0 0.0
  %1946 = vmatmul.mubr.f32.gmra.mrb[0].mxu0 %v840
  %v1947 = vpop.f32.mrb[0].mxu0
  %v1948 = vadd.f32 %v251, %v1947
  %v1949 = vpop.f32.mrb[0].mxu0
  %1950 = vmatprep.mubr.f32.mxu0 0.0
  %1951 = vmatmul.mubr.f32.gmra.mrb[0].mxu0 %v843
  %v1952 = vpop.f32.mrb[0].mxu0
  %v1953 = vadd.f32 %v251, %v1952
  %v1954 = vpop.f32.mrb[0].mxu0
  %1955 = vmatprep.mubr.f32.mxu0 0.0
  %1956 = vmatmul.mubr.f32.gmra.mrb[0].mxu0 %v846
  %v1957 = vpop.f32.mrb[0].mxu0
  %v1958 = vadd.f32 %v251, %v1957
  %v1959 = vpop.f32.mrb[0].mxu0
  %1960 = vmatprep.mubr.f32.mxu0 0.0
  %1961 = vmatmul.mubr.f32.gmra.mrb[0].mxu0 %v849
  %v1962 = vpop.f32.mrb[0].mxu0
  %v1963 = vadd.f32 %v251, %v1962
  %v1964 = vpop.f32.mrb[0].mxu0
  %1965 = vmatprep.mubr.f32.mxu0 0.0
  %1966 = vmatmul.mubr.f32.gmra.mrb[0].mxu0 %v852
  %v1967 = vpop.f32.mrb[0].mxu0
  %v1968 = vadd.f32 %v251, %v1967
  %v1969 = vpop.f32.mrb[0].mxu0
  %1970 = vmatprep.mubr.f32.mxu0 0.0
  %1971 = vmatmul.mubr.f32.gmra.mrb[0].mxu0 %v855
  %v1972 = vpop.f32.mrb[0].mxu0
  %v1973 = vadd.f32 %v251, %v1972
  %v1974 = vpop.f32.mrb[0].mxu0
  %1975 = vmatprep.mubr.f32.mxu0 0.0
  %1976 = vmatmul.mubr.f32.gmra.mrb[0].mxu0 %v858
  %v1977 = vpop.f32.mrb[0].mxu0
  %v1978 = vadd.f32 %v251, %v1977
  %v1979 = vpop.f32.mrb[0].mxu0
  %1980 = vmatprep.mubr.f32.mxu0 0.0
  %1981 = vmatmul.mubr.f32.gmra.mrb[0].mxu0 %v861
  %v1982 = vpop.f32.mrb[0].mxu0
  %v1983 = vadd.f32 %v251, %v1982
  %v1984 = vpop.f32.mrb[0].mxu0
  %1985 = vmatprep.mubr.f32.mxu0 0.0
  %1986 = vmatmul.mubr.f32.gmra.mrb[0].mxu0 %v864
  %v1987 = vpop.f32.mrb[0].mxu0
  %v1988 = vadd.f32 %v251, %v1987
  %v1989 = vpop.f32.mrb[0].mxu0
  %1990 = vmatprep.mubr.f32.mxu0 0.0
  %1991 = vmatmul.mubr.f32.gmra.mrb[0].mxu0 %v867
  %v1992 = vpop.f32.mrb[0].mxu0
  %v1993 = vadd.f32 %v251, %v1992
  %v1994 = vpop.f32.mrb[0].mxu0
  %1995 = vmatprep.mubr.f32.mxu0 0.0
  %1996 = vmatmul.mubr.f32.gmra.mrb[0].mxu0 %v870
  %v1997 = vpop.f32.mrb[0].mxu0
  %v1998 = vadd.f32 %v251, %v1997
  %v1999 = vpop.f32.mrb[0].mxu0
  %2000 = vmatprep.mubr.f32.mxu0 0.0
  %2001 = vmatmul.mubr.f32.gmra.mrb[0].mxu0 %v873
  %v2002 = vpop.f32.mrb[0].mxu0
  %v2003 = vadd.f32 %v251, %v2002
  %v2004 = vpop.f32.mrb[0].mxu0
  %2005 = vmatprep.mubr.f32.mxu0 0.0
  %2006 = vmatmul.mubr.f32.gmra.mrb[0].mxu0 %v876
  %v2007 = vpop.f32.mrb[0].mxu0
  %v2008 = vadd.f32 %v251, %v2007
  %v2009 = vpop.f32.mrb[0].mxu0
  %2010 = vmatprep.mubr.f32.mxu0 0.0
  %2011 = vmatmul.mubr.f32.gmra.mrb[0].mxu0 %v879
  %v2012 = vpop.f32.mrb[0].mxu0
  %v2013 = vadd.f32 %v251, %v2012
  %v2014 = vpop.f32.mrb[0].mxu0
  %2015 = vmatprep.mubr.f32.mxu0 0.0
  %2016 = vmatmul.mubr.f32.gmra.mrb[0].mxu0 %v882
  %v2017 = vpop.f32.mrb[0].mxu0
  %v2018 = vadd.f32 %v251, %v2017
  %v2019 = vpop.f32.mrb[0].mxu0
  %2020 = vmatprep.mubr.f32.mxu0 0.0
  %2021 = vmatmul.mubr.f32.gmra.mrb[0].mxu0 %v885
  %v2022 = vpop.f32.mrb[0].mxu0
  %v2023 = vadd.f32 %v251, %v2022
  %v2024 = vpop.f32.mrb[0].mxu0
  %2025 = vmatprep.mubr.f32.mxu0 0.0
  %2026 = vmatmul.mubr.f32.gmra.mrb[0].mxu0 %v888
  %v2027 = vpop.f32.mrb[0].mxu0
  %v2028 = vadd.f32 %v251, %v2027
  %v2029 = vpop.f32.mrb[0].mxu0
  %2030 = vmatprep.mubr.f32.mxu0 0.0
  %2031 = vmatmul.mubr.f32.gmra.mrb[0].mxu0 %v891
  %v2032 = vpop.f32.mrb[0].mxu0
  %v2033 = vadd.f32 %v251, %v2032
  %v2034 = vpop.f32.mrb[0].mxu0
  %2035 = vmatprep.mubr.f32.mxu0 0.0
  %2036 = vmatmul.mubr.f32.gmra.mrb[0].mxu0 %v894
  %v2037 = vpop.f32.mrb[0].mxu0
  %v2038 = vadd.f32 %v251, %v2037
  %v2039 = vpop.f32.mrb[0].mxu0
  %2040 = vmatprep.mubr.f32.mxu0 0.0
  %2041 = vmatmul.mubr.f32.gmra.mrb[0].mxu0 %v897
  %v2042 = vpop.f32.mrb[0].mxu0
  %v2043 = vadd.f32 %v251, %v2042
  %v2044 = vpop.f32.mrb[0].mxu0
  %2045 = vmatprep.mubr.f32.mxu0 0.0
  %2046 = vmatmul.mubr.f32.gmra.mrb[0].mxu0 %v900
  %v2047 = vpop.f32.mrb[0].mxu0
  %v2048 = vadd.f32 %v251, %v2047
  %v2049 = vpop.f32.mrb[0].mxu0
  %2050 = vdwg.mxu0
  %vm2051 = vcmask 261120
  %2052 = vst.msk [vmem:[#allocation2] sm:$0xff] %vm2051, %v973
  %2053 = vst.msk [vmem:[#allocation2 + $0x8] sm:$0xff] %vm2051, %v978
  %2054 = vst.msk [vmem:[#allocation2 + $0x10] sm:$0xff] %vm2051, %v983
  %2055 = vst.msk [vmem:[#allocation2 + $0x18] sm:$0xff] %vm2051, %v988
  %2056 = vst.msk [vmem:[#allocation2 + $0x20] sm:$0xff] %vm2051, %v993
  %2057 = vst.msk [vmem:[#allocation2 + $0x28] sm:$0xff] %vm2051, %v998
  %2058 = vst.msk [vmem:[#allocation2 + $0x30] sm:$0xff] %vm2051, %v1003
  %2059 = vst.msk [vmem:[#allocation2 + $0x38] sm:$0xff] %vm2051, %v1008
  %2060 = vst.msk [vmem:[#allocation2 + $0x40] sm:$0xff] %vm2051, %v1013
  %2061 = vst.msk [vmem:[#allocation2 + $0x48] sm:$0xff] %vm2051, %v1018
  %2062 = vst.msk [vmem:[#allocation2 + $0x50] sm:$0xff] %vm2051, %v1023
  %2063 = vst.msk [vmem:[#allocation2 + $0x58] sm:$0xff] %vm2051, %v1028
  %2064 = vst.msk [vmem:[#allocation2 + $0x60] sm:$0xff] %vm2051, %v1033
  %2065 = vst.msk [vmem:[#allocation2 + $0x68] sm:$0xff] %vm2051, %v1038
  %2066 = vst.msk [vmem:[#allocation2 + $0x70] sm:$0xff] %vm2051, %v1043
  %2067 = vst.msk [vmem:[#allocation2 + $0x78] sm:$0xff] %vm2051, %v1048
  %2068 = vst.msk [vmem:[#allocation2 + $0x80] sm:$0xff] %vm2051, %v1053
  %2069 = vst.msk [vmem:[#allocation2 + $0x88] sm:$0xff] %vm2051, %v1058
  %2070 = vst.msk [vmem:[#allocation2 + $0x90] sm:$0xff] %vm2051, %v1063
  %2071 = vst.msk [vmem:[#allocation2 + $0x98] sm:$0xff] %vm2051, %v1068
  %2072 = vst.msk [vmem:[#allocation2 + $0xa0] sm:$0xff] %vm2051, %v1073
  %2073 = vst.msk [vmem:[#allocation2 + $0xa8] sm:$0xff] %vm2051, %v1078
  %2074 = vst.msk [vmem:[#allocation2 + $0xb0] sm:$0xff] %vm2051, %v1083
  %2075 = vst.msk [vmem:[#allocation2 + $0xb8] sm:$0xff] %vm2051, %v1088
  %2076 = vst.msk [vmem:[#allocation2 + $0xc0] sm:$0xff] %vm2051, %v1093
  %2077 = vst.msk [vmem:[#allocation2 + $0xc8] sm:$0xff] %vm2051, %v1098
  %2078 = vst.msk [vmem:[#allocation2 + $0xd0] sm:$0xff] %vm2051, %v1103
  %2079 = vst.msk [vmem:[#allocation2 + $0xd8] sm:$0xff] %vm2051, %v1108
  %2080 = vst.msk [vmem:[#allocation2 + $0xe0] sm:$0xff] %vm2051, %v1113
  %2081 = vst.msk [vmem:[#allocation2 + $0xe8] sm:$0xff] %vm2051, %v1118
  %2082 = vst.msk [vmem:[#allocation2 + $0xf0] sm:$0xff] %vm2051, %v1123
  %2083 = vst.msk [vmem:[#allocation2 + $0xf8] sm:$0xff] %vm2051, %v1128
  %2084 = vst.msk [vmem:[#allocation2 + $0x100] sm:$0xff] %vm2051, %v1133
  %2085 = vst.msk [vmem:[#allocation2 + $0x108] sm:$0xff] %vm2051, %v1138
  %2086 = vst.msk [vmem:[#allocation2 + $0x110] sm:$0xff] %vm2051, %v1143
  %2087 = vst.msk [vmem:[#allocation2 + $0x118] sm:$0xff] %vm2051, %v1148
  %2088 = vst.msk [vmem:[#allocation2 + $0x120] sm:$0xff] %vm2051, %v1153
  %2089 = vst.msk [vmem:[#allocation2 + $0x128] sm:$0xff] %vm2051, %v1158
  %2090 = vst.msk [vmem:[#allocation2 + $0x130] sm:$0xff] %vm2051, %v1163
  %2091 = vst.msk [vmem:[#allocation2 + $0x138] sm:$0xff] %vm2051, %v1168
  %2092 = vst.msk [vmem:[#allocation2 + $0x140] sm:$0xff] %vm2051, %v1173
  %2093 = vst.msk [vmem:[#allocation2 + $0x148] sm:$0xff] %vm2051, %v1178
  %2094 = vst.msk [vmem:[#allocation2 + $0x150] sm:$0xff] %vm2051, %v1183
  %2095 = vst.msk [vmem:[#allocation2 + $0x158] sm:$0xff] %vm2051, %v1188
  %2096 = vst.msk [vmem:[#allocation2 + $0x160] sm:$0xff] %vm2051, %v1193
  %2097 = vst.msk [vmem:[#allocation2 + $0x168] sm:$0xff] %vm2051, %v1198
  %2098 = vst.msk [vmem:[#allocation2 + $0x170] sm:$0xff] %vm2051, %v1203
  %2099 = vst.msk [vmem:[#allocation2 + $0x178] sm:$0xff] %vm2051, %v1208
  %2100 = vst.msk [vmem:[#allocation2 + $0x180] sm:$0xff] %vm2051, %v1213
  %2101 = vst.msk [vmem:[#allocation2 + $0x188] sm:$0xff] %vm2051, %v1218
  %2102 = vst.msk [vmem:[#allocation2 + $0x190] sm:$0xff] %vm2051, %v1223
  %2103 = vst.msk [vmem:[#allocation2 + $0x198] sm:$0xff] %vm2051, %v1228
  %2104 = vst.msk [vmem:[#allocation2 + $0x1a0] sm:$0xff] %vm2051, %v1233
  %2105 = vst.msk [vmem:[#allocation2 + $0x1a8] sm:$0xff] %vm2051, %v1238
  %2106 = vst.msk [vmem:[#allocation2 + $0x1b0] sm:$0xff] %vm2051, %v1243
  %2107 = vst.msk [vmem:[#allocation2 + $0x1b8] sm:$0xff] %vm2051, %v1248
  %2108 = vst.msk [vmem:[#allocation2 + $0x1c0] sm:$0xff] %vm2051, %v1253
  %2109 = vst.msk [vmem:[#allocation2 + $0x1c8] sm:$0xff] %vm2051, %v1258
  %2110 = vst.msk [vmem:[#allocation2 + $0x1d0] sm:$0xff] %vm2051, %v1263
  %2111 = vst.msk [vmem:[#allocation2 + $0x1d8] sm:$0xff] %vm2051, %v1268
  %2112 = vst.msk [vmem:[#allocation2 + $0x1e0] sm:$0xff] %vm2051, %v1273
  %2113 = vst.msk [vmem:[#allocation2 + $0x1e8] sm:$0xff] %vm2051, %v1278
  %2114 = vst.msk [vmem:[#allocation2 + $0x1f0] sm:$0xff] %vm2051, %v1283
  %2115 = vst.msk [vmem:[#allocation2 + $0x1f8] sm:$0xff] %vm2051, %v1288
  %2116 = vst.msk [vmem:[#allocation2 + $0x200] sm:$0xff] %vm2051, %v1293
  %2117 = vst.msk [vmem:[#allocation2 + $0x208] sm:$0xff] %vm2051, %v1298
  %2118 = vst.msk [vmem:[#allocation2 + $0x210] sm:$0xff] %vm2051, %v1303
  %2119 = vst.msk [vmem:[#allocation2 + $0x218] sm:$0xff] %vm2051, %v1308
  %2120 = vst.msk [vmem:[#allocation2 + $0x220] sm:$0xff] %vm2051, %v1313
  %2121 = vst.msk [vmem:[#allocation2 + $0x228] sm:$0xff] %vm2051, %v1318
  %2122 = vst.msk [vmem:[#allocation2 + $0x230] sm:$0xff] %vm2051, %v1323
  %2123 = vst.msk [vmem:[#allocation2 + $0x238] sm:$0xff] %vm2051, %v1328
  %2124 = vst.msk [vmem:[#allocation2 + $0x240] sm:$0xff] %vm2051, %v1333
  %2125 = vst.msk [vmem:[#allocation2 + $0x248] sm:$0xff] %vm2051, %v1338
  %2126 = vst.msk [vmem:[#allocation2 + $0x250] sm:$0xff] %vm2051, %v1343
  %2127 = vst.msk [vmem:[#allocation2 + $0x258] sm:$0xff] %vm2051, %v1348
  %2128 = vst.msk [vmem:[#allocation2 + $0x260] sm:$0xff] %vm2051, %v1353
  %2129 = vst.msk [vmem:[#allocation2 + $0x268] sm:$0xff] %vm2051, %v1358
  %2130 = vst.msk [vmem:[#allocation2 + $0x270] sm:$0xff] %vm2051, %v1363
  %2131 = vst.msk [vmem:[#allocation2 + $0x278] sm:$0xff] %vm2051, %v1368
  %2132 = vst.msk [vmem:[#allocation2 + $0x280] sm:$0xff] %vm2051, %v1373
  %2133 = vst.msk [vmem:[#allocation2 + $0x288] sm:$0xff] %vm2051, %v1378
  %2134 = vst.msk [vmem:[#allocation2 + $0x290] sm:$0xff] %vm2051, %v1383
  %2135 = vst.msk [vmem:[#allocation2 + $0x298] sm:$0xff] %vm2051, %v1388
  %2136 = vst.msk [vmem:[#allocation2 + $0x2a0] sm:$0xff] %vm2051, %v1393
  %2137 = vst.msk [vmem:[#allocation2 + $0x2a8] sm:$0xff] %vm2051, %v1398
  %2138 = vst.msk [vmem:[#allocation2 + $0x2b0] sm:$0xff] %vm2051, %v1403
  %2139 = vst.msk [vmem:[#allocation2 + $0x2b8] sm:$0xff] %vm2051, %v1408
  %2140 = vst.msk [vmem:[#allocation2 + $0x2c0] sm:$0xff] %vm2051, %v1413
  %2141 = vst.msk [vmem:[#allocation2 + $0x2c8] sm:$0xff] %vm2051, %v1418
  %2142 = vst.msk [vmem:[#allocation2 + $0x2d0] sm:$0xff] %vm2051, %v1423
  %2143 = vst.msk [vmem:[#allocation2 + $0x2d8] sm:$0xff] %vm2051, %v1428
  %2144 = vst.msk [vmem:[#allocation2 + $0x2e0] sm:$0xff] %vm2051, %v1433
  %2145 = vst.msk [vmem:[#allocation2 + $0x2e8] sm:$0xff] %vm2051, %v1438
  %2146 = vst.msk [vmem:[#allocation2 + $0x2f0] sm:$0xff] %vm2051, %v1443
  %2147 = vst.msk [vmem:[#allocation2 + $0x2f8] sm:$0xff] %vm2051, %v1448
  %2148 = vst.msk [vmem:[#allocation2 + $0x300] sm:$0xff] %vm2051, %v1453
  %2149 = vst.msk [vmem:[#allocation2 + $0x308] sm:$0xff] %vm2051, %v1458
  %2150 = vst.msk [vmem:[#allocation2 + $0x310] sm:$0xff] %vm2051, %v1463
  %2151 = vst.msk [vmem:[#allocation2 + $0x318] sm:$0xff] %vm2051, %v1468
  %2152 = vst.msk [vmem:[#allocation2 + $0x320] sm:$0xff] %vm2051, %v1473
  %2153 = vst.msk [vmem:[#allocation2 + $0x328] sm:$0xff] %vm2051, %v1478
  %2154 = vst.msk [vmem:[#allocation2 + $0x330] sm:$0xff] %vm2051, %v1483
  %2155 = vst.msk [vmem:[#allocation2 + $0x338] sm:$0xff] %vm2051, %v1488
  %2156 = vst.msk [vmem:[#allocation2 + $0x340] sm:$0xff] %vm2051, %v1493
  %2157 = vst.msk [vmem:[#allocation2 + $0x348] sm:$0xff] %vm2051, %v1498
  %2158 = vst.msk [vmem:[#allocation2 + $0x350] sm:$0xff] %vm2051, %v1503
  %2159 = vst.msk [vmem:[#allocation2 + $0x358] sm:$0xff] %vm2051, %v1508
  %2160 = vst.msk [vmem:[#allocation2 + $0x360] sm:$0xff] %vm2051, %v1513
  %2161 = vst.msk [vmem:[#allocation2 + $0x368] sm:$0xff] %vm2051, %v1518
  %2162 = vst.msk [vmem:[#allocation2 + $0x370] sm:$0xff] %vm2051, %v1523
  %2163 = vst.msk [vmem:[#allocation2 + $0x378] sm:$0xff] %vm2051, %v1528
  %2164 = vst.msk [vmem:[#allocation2 + $0x380] sm:$0xff] %vm2051, %v1533
  %2165 = vst.msk [vmem:[#allocation2 + $0x388] sm:$0xff] %vm2051, %v1538
  %2166 = vst.msk [vmem:[#allocation2 + $0x390] sm:$0xff] %vm2051, %v1543
  %2167 = vst.msk [vmem:[#allocation2 + $0x398] sm:$0xff] %vm2051, %v1548
  %2168 = vst.msk [vmem:[#allocation2 + $0x3a0] sm:$0xff] %vm2051, %v1553
  %2169 = vst.msk [vmem:[#allocation2 + $0x3a8] sm:$0xff] %vm2051, %v1558
  %2170 = vst.msk [vmem:[#allocation2 + $0x3b0] sm:$0xff] %vm2051, %v1563
  %2171 = vst.msk [vmem:[#allocation2 + $0x3b8] sm:$0xff] %vm2051, %v1568
  %2172 = vst.msk [vmem:[#allocation2 + $0x3c0] sm:$0xff] %vm2051, %v1573
  %2173 = vst.msk [vmem:[#allocation2 + $0x3c8] sm:$0xff] %vm2051, %v1578
  %2174 = vst.msk [vmem:[#allocation2 + $0x3d0] sm:$0xff] %vm2051, %v1583
  %2175 = vst.msk [vmem:[#allocation2 + $0x3d8] sm:$0xff] %vm2051, %v1588
  %2176 = vst.msk [vmem:[#allocation2 + $0x3e0] sm:$0xff] %vm2051, %v1593
  %2177 = vst.msk [vmem:[#allocation2 + $0x3e8] sm:$0xff] %vm2051, %v1598
  %2178 = vst.msk [vmem:[#allocation2 + $0x3f0] sm:$0xff] %vm2051, %v1603
  %2179 = vst.msk [vmem:[#allocation2 + $0x3f8] sm:$0xff] %vm2051, %v1608
  %2180 = vst.msk [vmem:[#allocation2 + $0x400] sm:$0xff] %vm2051, %v1613
  %2181 = vst.msk [vmem:[#allocation2 + $0x408] sm:$0xff] %vm2051, %v1618
  %2182 = vst.msk [vmem:[#allocation2 + $0x410] sm:$0xff] %vm2051, %v1623
  %2183 = vst.msk [vmem:[#allocation2 + $0x418] sm:$0xff] %vm2051, %v1628
  %2184 = vst.msk [vmem:[#allocation2 + $0x420] sm:$0xff] %vm2051, %v1633
  %2185 = vst.msk [vmem:[#allocation2 + $0x428] sm:$0xff] %vm2051, %v1638
  %2186 = vst.msk [vmem:[#allocation2 + $0x430] sm:$0xff] %vm2051, %v1643
  %2187 = vst.msk [vmem:[#allocation2 + $0x438] sm:$0xff] %vm2051, %v1648
  %2188 = vst.msk [vmem:[#allocation2 + $0x440] sm:$0xff] %vm2051, %v1653
  %2189 = vst.msk [vmem:[#allocation2 + $0x448] sm:$0xff] %vm2051, %v1658
  %2190 = vst.msk [vmem:[#allocation2 + $0x450] sm:$0xff] %vm2051, %v1663
  %2191 = vst.msk [vmem:[#allocation2 + $0x458] sm:$0xff] %vm2051, %v1668
  %2192 = vst.msk [vmem:[#allocation2 + $0x460] sm:$0xff] %vm2051, %v1673
  %2193 = vst.msk [vmem:[#allocation2 + $0x468] sm:$0xff] %vm2051, %v1678
  %2194 = vst.msk [vmem:[#allocation2 + $0x470] sm:$0xff] %vm2051, %v1683
  %2195 = vst.msk [vmem:[#allocation2 + $0x478] sm:$0xff] %vm2051, %v1688
  %2196 = vst.msk [vmem:[#allocation2 + $0x480] sm:$0xff] %vm2051, %v1693
  %2197 = vst.msk [vmem:[#allocation2 + $0x488] sm:$0xff] %vm2051, %v1698
  %2198 = vst.msk [vmem:[#allocation2 + $0x490] sm:$0xff] %vm2051, %v1703
  %2199 = vst.msk [vmem:[#allocation2 + $0x498] sm:$0xff] %vm2051, %v1708
  %2200 = vst.msk [vmem:[#allocation2 + $0x4a0] sm:$0xff] %vm2051, %v1713
  %2201 = vst.msk [vmem:[#allocation2 + $0x4a8] sm:$0xff] %vm2051, %v1718
  %2202 = vst.msk [vmem:[#allocation2 + $0x4b0] sm:$0xff] %vm2051, %v1723
  %2203 = vst.msk [vmem:[#allocation2 + $0x4b8] sm:$0xff] %vm2051, %v1728
  %2204 = vst.msk [vmem:[#allocation2 + $0x4c0] sm:$0xff] %vm2051, %v1733
  %2205 = vst.msk [vmem:[#allocation2 + $0x4c8] sm:$0xff] %vm2051, %v1738
  %2206 = vst.msk [vmem:[#allocation2 + $0x4d0] sm:$0xff] %vm2051, %v1743
  %2207 = vst.msk [vmem:[#allocation2 + $0x4d8] sm:$0xff] %vm2051, %v1748
  %2208 = vst.msk [vmem:[#allocation2 + $0x4e0] sm:$0xff] %vm2051, %v1753
  %2209 = vst.msk [vmem:[#allocation2 + $0x4e8] sm:$0xff] %vm2051, %v1758
  %2210 = vst.msk [vmem:[#allocation2 + $0x4f0] sm:$0xff] %vm2051, %v1763
  %2211 = vst.msk [vmem:[#allocation2 + $0x4f8] sm:$0xff] %vm2051, %v1768
  %2212 = vst.msk [vmem:[#allocation2 + $0x500] sm:$0xff] %vm2051, %v1773
  %2213 = vst.msk [vmem:[#allocation2 + $0x508] sm:$0xff] %vm2051, %v1778
  %2214 = vst.msk [vmem:[#allocation2 + $0x510] sm:$0xff] %vm2051, %v1783
  %2215 = vst.msk [vmem:[#allocation2 + $0x518] sm:$0xff] %vm2051, %v1788
  %2216 = vst.msk [vmem:[#allocation2 + $0x520] sm:$0xff] %vm2051, %v1793
  %2217 = vst.msk [vmem:[#allocation2 + $0x528] sm:$0xff] %vm2051, %v1798
  %2218 = vst.msk [vmem:[#allocation2 + $0x530] sm:$0xff] %vm2051, %v1803
  %2219 = vst.msk [vmem:[#allocation2 + $0x538] sm:$0xff] %vm2051, %v1808
  %2220 = vst.msk [vmem:[#allocation2 + $0x540] sm:$0xff] %vm2051, %v1813
  %2221 = vst.msk [vmem:[#allocation2 + $0x548] sm:$0xff] %vm2051, %v1818
  %2222 = vst.msk [vmem:[#allocation2 + $0x550] sm:$0xff] %vm2051, %v1823
  %2223 = vst.msk [vmem:[#allocation2 + $0x558] sm:$0xff] %vm2051, %v1828
  %2224 = vst.msk [vmem:[#allocation2 + $0x560] sm:$0xff] %vm2051, %v1833
  %2225 = vst.msk [vmem:[#allocation2 + $0x568] sm:$0xff] %vm2051, %v1838
  %2226 = vst.msk [vmem:[#allocation2 + $0x570] sm:$0xff] %vm2051, %v1843
  %2227 = vst.msk [vmem:[#allocation2 + $0x578] sm:$0xff] %vm2051, %v1848
  %2228 = vst.msk [vmem:[#allocation2 + $0x580] sm:$0xff] %vm2051, %v1853
  %2229 = vst.msk [vmem:[#allocation2 + $0x588] sm:$0xff] %vm2051, %v1858
  %2230 = vst.msk [vmem:[#allocation2 + $0x590] sm:$0xff] %vm2051, %v1863
  %2231 = vst.msk [vmem:[#allocation2 + $0x598] sm:$0xff] %vm2051, %v1868
  %2232 = vst.msk [vmem:[#allocation2 + $0x5a0] sm:$0xff] %vm2051, %v1873
  %2233 = vst.msk [vmem:[#allocation2 + $0x5a8] sm:$0xff] %vm2051, %v1878
  %2234 = vst.msk [vmem:[#allocation2 + $0x5b0] sm:$0xff] %vm2051, %v1883
  %2235 = vst.msk [vmem:[#allocation2 + $0x5b8] sm:$0xff] %vm2051, %v1888
  %2236 = vst.msk [vmem:[#allocation2 + $0x5c0] sm:$0xff] %vm2051, %v1893
  %2237 = vst.msk [vmem:[#allocation2 + $0x5c8] sm:$0xff] %vm2051, %v1898
  %2238 = vst.msk [vmem:[#allocation2 + $0x5d0] sm:$0xff] %vm2051, %v1903
  %2239 = vst.msk [vmem:[#allocation2 + $0x5d8] sm:$0xff] %vm2051, %v1908
  %2240 = vst.msk [vmem:[#allocation2 + $0x5e0] sm:$0xff] %vm2051, %v1913
  %2241 = vst.msk [vmem:[#allocation2 + $0x5e8] sm:$0xff] %vm2051, %v1918
  %2242 = vst.msk [vmem:[#allocation2 + $0x5f0] sm:$0xff] %vm2051, %v1923
  %2243 = vst.msk [vmem:[#allocation2 + $0x5f8] sm:$0xff] %vm2051, %v1928
  %2244 = vst.msk [vmem:[#allocation2 + $0x600] sm:$0xff] %vm2051, %v1933
  %2245 = vst.msk [vmem:[#allocation2 + $0x608] sm:$0xff] %vm2051, %v1938
  %2246 = vst.msk [vmem:[#allocation2 + $0x610] sm:$0xff] %vm2051, %v1943
  %2247 = vst.msk [vmem:[#allocation2 + $0x618] sm:$0xff] %vm2051, %v1948
  %2248 = vst.msk [vmem:[#allocation2 + $0x620] sm:$0xff] %vm2051, %v1953
  %2249 = vst.msk [vmem:[#allocation2 + $0x628] sm:$0xff] %vm2051, %v1958
  %2250 = vst.msk [vmem:[#allocation2 + $0x630] sm:$0xff] %vm2051, %v1963
  %2251 = vst.msk [vmem:[#allocation2 + $0x638] sm:$0xff] %vm2051, %v1968
  %2252 = vst.msk [vmem:[#allocation2 + $0x640] sm:$0xff] %vm2051, %v1973
  %2253 = vst.msk [vmem:[#allocation2 + $0x648] sm:$0xff] %vm2051, %v1978
  %2254 = vst.msk [vmem:[#allocation2 + $0x650] sm:$0xff] %vm2051, %v1983
  %2255 = vst.msk [vmem:[#allocation2 + $0x658] sm:$0xff] %vm2051, %v1988
  %2256 = vst.msk [vmem:[#allocation2 + $0x660] sm:$0xff] %vm2051, %v1993
  %2257 = vst.msk [vmem:[#allocation2 + $0x668] sm:$0xff] %vm2051, %v1998
  %2258 = vst.msk [vmem:[#allocation2 + $0x670] sm:$0xff] %vm2051, %v2003
  %2259 = vst.msk [vmem:[#allocation2 + $0x678] sm:$0xff] %vm2051, %v2008
  %2260 = vst.msk [vmem:[#allocation2 + $0x680] sm:$0xff] %vm2051, %v2013
  %2261 = vst.msk [vmem:[#allocation2 + $0x688] sm:$0xff] %vm2051, %v2018
  %2262 = vst.msk [vmem:[#allocation2 + $0x690] sm:$0xff] %vm2051, %v2023
  %2263 = vst.msk [vmem:[#allocation2 + $0x698] sm:$0xff] %vm2051, %v2028
  %2264 = vst.msk [vmem:[#allocation2 + $0x6a0] sm:$0xff] %vm2051, %v2033
  %2265 = vst.msk [vmem:[#allocation2 + $0x6a8] sm:$0xff] %vm2051, %v2038
  %2266 = vst.msk [vmem:[#allocation2 + $0x6b0] sm:$0xff] %vm2051, %v2043
  %2267 = vst.msk [vmem:[#allocation2 + $0x6b8] sm:$0xff] %vm2051, %v2048
  %v2268 = vld [vmem:[%s0 + $0x6c0] sm:$0xff]
  %v2269 = vld [vmem:[%s0 + $0x6c8] sm:$0xff]
  %v2270 = vld [vmem:[%s0 + $0x6d0] sm:$0xff]
  %v2271 = vld [vmem:[%s0 + $0x6d8] sm:$0xff]
  %v2272 = vld [vmem:[%s0 + $0x6e0] sm:$0xff]
  %v2273 = vld [vmem:[%s0 + $0x6e8] sm:$0xff]
  %v2274 = vld [vmem:[%s0 + $0x6f0] sm:$0xff]
  %v2275 = vld [vmem:[%s0 + $0x6f8] sm:$0xff]
  %v2276 = vld [vmem:[%s4] sm:$0xff]
  %v2277 = vld [vmem:[%s4 + $0x8] sm:$0xff]
  %v2278 = vld [vmem:[%s4 + $0x10] sm:$0xff]
  %v2279 = vld [vmem:[%s4 + $0x18] sm:$0xf]
  %v2280 = vld [vmem:[%s6] sm:$0x1]
  %v2282 = vlaneseq
  %v2283 = vshrl.u32 %v2282, 7
  %v2284 = vsub.s32 0, %v2283
  %v2285 = vrot.slane %v2280, %v2284
  %v2288 = vsel %vm253, %v2268, 0
  %v2291 = vsel %vm253, %v2269, 0
  %v2294 = vsel %vm253, %v2270, 0
  %v2297 = vsel %vm253, %v2271, 0
  %v2300 = vsel %vm253, %v2272, 0
  %v2303 = vsel %vm253, %v2273, 0
  %v2306 = vsel %vm253, %v2274, 0
  %v2309 = vsel %vm253, %v2275, 0
  %v2312 = vsel %vm902, %v2279, 0
  %2314 = vmatprep.subr.mxu0 0.0
  %2315 = vmatpush1.msra.mxu0 %v2276
  %2316 = vmatprep.subr.mxu0 0.0
  %2317 = vmatpush1.msra.mxu0 %v2277
  %2318 = vmatprep.subr.mxu0 0.0
  %2319 = vmatpush1.msra.mxu0 %v2278
  %2320 = vmatprep.subr.mxu0 0.0
  %2321 = vmatpush1.msra.mxu0 %v2312
  %2322 = vmatprep.subr.mxu0 0.0
  %2323 = vmatpush1.msra.mxu0 0.0
  %2324 = vmatprep.subr.mxu0 0.0
  %2325 = vmatpush1.msra.mxu0 0.0
  %2326 = vmatprep.subr.mxu0 0.0
  %2327 = vmatpush1.msra.mxu0 0.0
  %2328 = vmatprep.subr.mxu0 0.0
  %2329 = vmatpush1.msra.mxu0 0.0
  %2330 = vmatprep.subr.mxu0 0.0
  %2331 = vmatpush1.msra.mxu0 0.0
  %2332 = vmatprep.subr.mxu0 0.0
  %2333 = vmatpush1.msra.mxu0 0.0
  %2334 = vmatprep.subr.mxu0 0.0
  %2335 = vmatpush1.msra.mxu0 0.0
  %2336 = vmatprep.subr.mxu0 0.0
  %2337 = vmatpush1.msra.mxu0 0.0
  %2338 = vmatprep.subr.mxu0 0.0
  %2339 = vmatpush1.msra.mxu0 0.0
  %2340 = vmatprep.subr.mxu0 0.0
  %2341 = vmatpush1.msra.mxu0 0.0
  %2342 = vmatprep.subr.mxu0 0.0
  %2343 = vmatpush1.msra.mxu0 0.0
  %2344 = vmatprep.subr.mxu0 0.0
  %2345 = vmatpush1.msra.mxu0 0.0
  %2346 = vmatprep.subr.mxu0 0.0
  %2347 = vmatpush1.msra.mxu0 0.0
  %2348 = vmatprep.subr.mxu0 0.0
  %2349 = vmatpush1.msra.mxu0 0.0
  %2350 = vmatprep.subr.mxu0 0.0
  %2351 = vmatpush1.msra.mxu0 0.0
  %2352 = vmatprep.subr.mxu0 0.0
  %2353 = vmatpush1.msra.mxu0 0.0
  %2354 = vmatprep.subr.mxu0 0.0
  %2355 = vmatpush1.msra.mxu0 0.0
  %2356 = vmatprep.subr.mxu0 0.0
  %2357 = vmatpush1.msra.mxu0 0.0
  %2358 = vmatprep.subr.mxu0 0.0
  %2359 = vmatpush1.msra.mxu0 0.0
  %2360 = vmatprep.subr.mxu0 0.0
  %2361 = vmatpush1.msra.mxu0 0.0
  %2362 = vmatprep.subr.mxu0 0.0
  %2363 = vmatpush1.msra.mxu0 0.0
  %2364 = vmatprep.subr.mxu0 0.0
  %2365 = vmatpush1.msra.mxu0 0.0
  %2366 = vmatprep.subr.mxu0 0.0
  %2367 = vmatpush1.msra.mxu0 0.0
  %2368 = vmatprep.subr.mxu0 0.0
  %2369 = vmatpush1.msra.mxu0 0.0
  %2370 = vmatprep.subr.mxu0 0.0
  %2371 = vmatpush1.msra.mxu0 0.0
  %2372 = vmatprep.subr.mxu0 0.0
  %2373 = vmatpush1.msra.mxu0 0.0
  %2374 = vmatprep.subr.mxu0 0.0
  %2375 = vmatpush1.msra.mxu0 0.0
  %2376 = vmatprep.subr.mxu0 0.0
  %2377 = vmatpush1.msra.mxu0 0.0
  %2378 = vmatprep.mubr.f32.mxu0 0.0
  %2379 = vmatmul.mubr.f32.gmra.mrb[0].mxu0 %v2288
  %v2380 = vpop.f32.mrb[0].mxu0
  %v2381 = vadd.f32 %v2285, %v2380
  %v2382 = vpop.f32.mrb[0].mxu0
  %2383 = vmatprep.mubr.f32.mxu0 0.0
  %2384 = vmatmul.mubr.f32.gmra.mrb[0].mxu0 %v2291
  %v2385 = vpop.f32.mrb[0].mxu0
  %v2386 = vadd.f32 %v2285, %v2385
  %v2387 = vpop.f32.mrb[0].mxu0
  %2388 = vmatprep.mubr.f32.mxu0 0.0
  %2389 = vmatmul.mubr.f32.gmra.mrb[0].mxu0 %v2294
  %v2390 = vpop.f32.mrb[0].mxu0
  %v2391 = vadd.f32 %v2285, %v2390
  %v2392 = vpop.f32.mrb[0].mxu0
  %2393 = vmatprep.mubr.f32.mxu0 0.0
  %2394 = vmatmul.mubr.f32.gmra.mrb[0].mxu0 %v2297
  %v2395 = vpop.f32.mrb[0].mxu0
  %v2396 = vadd.f32 %v2285, %v2395
  %v2397 = vpop.f32.mrb[0].mxu0
  %2398 = vmatprep.mubr.f32.mxu0 0.0
  %2399 = vmatmul.mubr.f32.gmra.mrb[0].mxu0 %v2300
  %v2400 = vpop.f32.mrb[0].mxu0
  %v2401 = vadd.f32 %v2285, %v2400
  %v2402 = vpop.f32.mrb[0].mxu0
  %2403 = vmatprep.mubr.f32.mxu0 0.0
  %2404 = vmatmul.mubr.f32.gmra.mrb[0].mxu0 %v2303
  %v2405 = vpop.f32.mrb[0].mxu0
  %v2406 = vadd.f32 %v2285, %v2405
  %v2407 = vpop.f32.mrb[0].mxu0
  %2408 = vmatprep.mubr.f32.mxu0 0.0
  %2409 = vmatmul.mubr.f32.gmra.mrb[0].mxu0 %v2306
  %v2410 = vpop.f32.mrb[0].mxu0
  %v2411 = vadd.f32 %v2285, %v2410
  %v2412 = vpop.f32.mrb[0].mxu0
  %2413 = vmatprep.mubr.f32.mxu0 0.0
  %2414 = vmatmul.mubr.f32.gmra.mrb[0].mxu0 %v2309
  %v2415 = vpop.f32.mrb[0].mxu0
  %v2416 = vadd.f32 %v2285, %v2415
  %v2417 = vpop.f32.mrb[0].mxu0
  %2418 = vdwg.mxu0
  %vm2419 = vcmask 80896
  %2420 = vst.msk [vmem:[%s7] sm:$0xff] %vm2419, %v2381
  %2421 = vst.msk [vmem:[%s7 + $0x8] sm:$0xff] %vm2419, %v2386
  %2422 = vst.msk [vmem:[%s7 + $0x10] sm:$0xff] %vm2419, %v2391
  %2423 = vst.msk [vmem:[%s7 + $0x18] sm:$0xff] %vm2419, %v2396
  %2424 = vst.msk [vmem:[%s7 + $0x20] sm:$0xff] %vm2419, %v2401
  %2425 = vst.msk [vmem:[%s7 + $0x28] sm:$0xff] %vm2419, %v2406
  %2426 = vst.msk [vmem:[%s7 + $0x30] sm:$0xff] %vm2419, %v2411
  %2427 = vst.msk [vmem:[%s7 + $0x38] sm:$0xff] %vm2419, %v2416
  %v2428 = vld [vmem:[%s2] sm:$0xff]
  %v2429 = vld [vmem:[%s2 + $0x8] sm:$0xff]
  %v2430 = vld [vmem:[%s2 + $0x10] sm:$0xff]
  %v2431 = vld [vmem:[%s2 + $0x18] sm:$0xff]
  %v2432 = vld [vmem:[#allocation2] sm:$0xff]
  %v2433 = vld [vmem:[#allocation2 + $0x8] sm:$0xff]
  %v2434 = vld [vmem:[#allocation2 + $0x10] sm:$0xff]
  %v2435 = vld [vmem:[#allocation2 + $0x18] sm:$0xff]
  %v2436 = vld [vmem:[#allocation2 + $0x20] sm:$0xff]
  %v2437 = vld [vmem:[#allocation2 + $0x28] sm:$0xff]
  %v2438 = vld [vmem:[#allocation2 + $0x30] sm:$0xff]
  %v2439 = vld [vmem:[#allocation2 + $0x38] sm:$0xff]
  %v2441 = vsel %vm2051, 0.0, 0
  %2443 = vmatprep.subr.mxu0 0.0
  %2444 = vmatpush1.msra.mxu0 %v2428
  %2445 = vmatprep.subr.mxu0 0.0
  %2446 = vmatpush1.msra.mxu0 %v2429
  %2447 = vmatprep.subr.mxu0 0.0
  %2448 = vmatpush1.msra.mxu0 %v2430
  %2449 = vmatprep.subr.mxu0 0.0
  %2450 = vmatpush1.msra.mxu0 %v2431
  %2451 = vmatprep.subr.mxu0 0.0
  %2452 = vmatpush1.msra.mxu0 0.0
  %2453 = vmatprep.subr.mxu0 0.0
  %2454 = vmatpush1.msra.mxu0 0.0
  %2455 = vmatprep.subr.mxu0 0.0
  %2456 = vmatpush1.msra.mxu0 0.0
  %2457 = vmatprep.subr.mxu0 0.0
  %2458 = vmatpush1.msra.mxu0 0.0
  %2459 = vmatprep.subr.mxu0 0.0
  %2460 = vmatpush1.msra.mxu0 0.0
  %2461 = vmatprep.subr.mxu0 0.0
  %2462 = vmatpush1.msra.mxu0 0.0
  %2463 = vmatprep.subr.mxu0 0.0
  %2464 = vmatpush1.msra.mxu0 0.0
  %2465 = vmatprep.subr.mxu0 0.0
  %2466 = vmatpush1.msra.mxu0 0.0
  %2467 = vmatprep.subr.mxu0 0.0
  %2468 = vmatpush1.msra.mxu0 0.0
  %2469 = vmatprep.subr.mxu0 0.0
  %2470 = vmatpush1.msra.mxu0 0.0
  %2471 = vmatprep.subr.mxu0 0.0
  %2472 = vmatpush1.msra.mxu0 0.0
  %2473 = vmatprep.subr.mxu0 0.0
  %2474 = vmatpush1.msra.mxu0 0.0
  %2475 = vmatprep.subr.mxu0 0.0
  %2476 = vmatpush1.msra.mxu0 0.0
  %2477 = vmatprep.subr.mxu0 0.0
  %2478 = vmatpush1.msra.mxu0 0.0
  %2479 = vmatprep.subr.mxu0 0.0
  %2480 = vmatpush1.msra.mxu0 0.0
  %2481 = vmatprep.subr.mxu0 0.0
  %2482 = vmatpush1.msra.mxu0 0.0
  %2483 = vmatprep.subr.mxu0 0.0
  %2484 = vmatpush1.msra.mxu0 0.0
  %2485 = vmatprep.subr.mxu0 0.0
  %2486 = vmatpush1.msra.mxu0 0.0
  %2487 = vmatprep.subr.mxu0 0.0
  %2488 = vmatpush1.msra.mxu0 0.0
  %2489 = vmatprep.subr.mxu0 0.0
  %2490 = vmatpush1.msra.mxu0 0.0
  %2491 = vmatprep.subr.mxu0 0.0
  %2492 = vmatpush1.msra.mxu0 0.0
  %2493 = vmatprep.subr.mxu0 0.0
  %2494 = vmatpush1.msra.mxu0 0.0
  %2495 = vmatprep.subr.mxu0 0.0
  %2496 = vmatpush1.msra.mxu0 0.0
  %2497 = vmatprep.subr.mxu0 0.0
  %2498 = vmatpush1.msra.mxu0 0.0
  %2499 = vmatprep.subr.mxu0 0.0
  %2500 = vmatpush1.msra.mxu0 0.0
  %2501 = vmatprep.subr.mxu0 0.0
  %2502 = vmatpush1.msra.mxu0 0.0
  %2503 = vmatprep.subr.mxu0 0.0
  %2504 = vmatpush1.msra.mxu0 0.0
  %2505 = vmatprep.subr.mxu0 0.0
  %2506 = vmatpush1.msra.mxu0 0.0
  %2507 = vmatprep.mubr.f32.mxu0 0.0
  %2508 = vmatmul.mubr.f32.gmra.mrb[0].mxu0 %v2441
  %v2509 = vpop.f32.mrb[0].mxu0
  %v2510 = vadd.f32 0.0, %v2509
  %v2511 = vpop.f32.mrb[0].mxu0
  %2512 = vmatprep.mubr.f32.mxu0 0.0
  %2513 = vmatmul.mubr.f32.gmra.mrb[0].mxu0 %v2441
  %v2514 = vpop.f32.mrb[0].mxu0
  %v2515 = vadd.f32 0.0, %v2514
  %v2516 = vpop.f32.mrb[0].mxu0
  %2517 = vmatprep.mubr.f32.mxu0 0.0
  %2518 = vmatmul.mubr.f32.gmra.mrb[0].mxu0 %v2441
  %v2519 = vpop.f32.mrb[0].mxu0
  %v2520 = vadd.f32 0.0, %v2519
  %v2521 = vpop.f32.mrb[0].mxu0
  %2522 = vmatprep.mubr.f32.mxu0 0.0
  %2523 = vmatmul.mubr.f32.gmra.mrb[0].mxu0 %v2441
  %v2524 = vpop.f32.mrb[0].mxu0
  %v2525 = vadd.f32 0.0, %v2524
  %v2526 = vpop.f32.mrb[0].mxu0
  %2527 = vmatprep.mubr.f32.mxu0 0.0
  %2528 = vmatmul.mubr.f32.gmra.mrb[0].mxu0 %v2441
  %v2529 = vpop.f32.mrb[0].mxu0
  %v2530 = vadd.f32 0.0, %v2529
  %v2531 = vpop.f32.mrb[0].mxu0
  %2532 = vmatprep.mubr.f32.mxu0 0.0
  %2533 = vmatmul.mubr.f32.gmra.mrb[0].mxu0 %v2441
  %v2534 = vpop.f32.mrb[0].mxu0
  %v2535 = vadd.f32 0.0, %v2534
  %v2536 = vpop.f32.mrb[0].mxu0
  %2537 = vmatprep.mubr.f32.mxu0 0.0
  %2538 = vmatmul.mubr.f32.gmra.mrb[0].mxu0 %v2441
  %v2539 = vpop.f32.mrb[0].mxu0
  %v2540 = vadd.f32 0.0, %v2539
  %v2541 = vpop.f32.mrb[0].mxu0
  %2542 = vmatprep.mubr.f32.mxu0 0.0
  %2543 = vmatmul.mubr.f32.gmra.mrb[0].mxu0 %v2441
  %v2544 = vpop.f32.mrb[0].mxu0
  %v2545 = vadd.f32 0.0, %v2544
  %v2546 = vpop.f32.mrb[0].mxu0
  %2547 = vdwg.mxu0
  %v2548 = vadd.f32 %v2432, %v2510
  %v2549 = vadd.f32 %v2433, %v2515
  %v2550 = vadd.f32 %v2434, %v2520
  %v2551 = vadd.f32 %v2435, %v2525
  %v2552 = vadd.f32 %v2436, %v2530
  %v2553 = vadd.f32 %v2437, %v2535
  %v2554 = vadd.f32 %v2438, %v2540
  %v2555 = vadd.f32 %v2439, %v2545
  %v2556 = vmax.f32 %v2548, 0.0
  %v2557 = vmax.f32 %v2549, 0.0
  %v2558 = vmax.f32 %v2550, 0.0
  %v2559 = vmax.f32 %v2551, 0.0
  %v2560 = vmax.f32 %v2552, 0.0
  %v2561 = vmax.f32 %v2553, 0.0
  %v2562 = vmax.f32 %v2554, 0.0
  %v2563 = vmax.f32 %v2555, 0.0
  %v2564 = vld [vmem:[#allocation2 + $0x40] sm:$0xff]
  %v2565 = vld [vmem:[#allocation2 + $0x48] sm:$0xff]
  %v2566 = vld [vmem:[#allocation2 + $0x50] sm:$0xff]
  %v2567 = vld [vmem:[#allocation2 + $0x58] sm:$0xff]
  %v2568 = vld [vmem:[#allocation2 + $0x60] sm:$0xff]
  %v2569 = vld [vmem:[#allocation2 + $0x68] sm:$0xff]
  %v2570 = vld [vmem:[#allocation2 + $0x70] sm:$0xff]
  %v2571 = vld [vmem:[#allocation2 + $0x78] sm:$0xff]
  %v2573 = vsel %vm2051, %v2556, 0
  %v2576 = vsel %vm2051, %v2557, 0
  %v2579 = vsel %vm2051, %v2558, 0
  %v2582 = vsel %vm2051, %v2559, 0
  %v2585 = vsel %vm2051, %v2560, 0
  %v2588 = vsel %vm2051, %v2561, 0
  %v2591 = vsel %vm2051, %v2562, 0
  %v2594 = vsel %vm2051, %v2563, 0
  %2596 = vmatprep.subr.mxu0 0.0
  %2597 = vmatpush1.msra.mxu0 %v2428
  %2598 = vmatprep.subr.mxu0 0.0
  %2599 = vmatpush1.msra.mxu0 %v2429
  %2600 = vmatprep.subr.mxu0 0.0
  %2601 = vmatpush1.msra.mxu0 %v2430
  %2602 = vmatprep.subr.mxu0 0.0
  %2603 = vmatpush1.msra.mxu0 %v2431
  %2604 = vmatprep.subr.mxu0 0.0
  %2605 = vmatpush1.msra.mxu0 0.0
  %2606 = vmatprep.subr.mxu0 0.0
  %2607 = vmatpush1.msra.mxu0 0.0
  %2608 = vmatprep.subr.mxu0 0.0
  %2609 = vmatpush1.msra.mxu0 0.0
  %2610 = vmatprep.subr.mxu0 0.0
  %2611 = vmatpush1.msra.mxu0 0.0
  %2612 = vmatprep.subr.mxu0 0.0
  %2613 = vmatpush1.msra.mxu0 0.0
  %2614 = vmatprep.subr.mxu0 0.0
  %2615 = vmatpush1.msra.mxu0 0.0
  %2616 = vmatprep.subr.mxu0 0.0
  %2617 = vmatpush1.msra.mxu0 0.0
  %2618 = vmatprep.subr.mxu0 0.0
  %2619 = vmatpush1.msra.mxu0 0.0
  %2620 = vmatprep.subr.mxu0 0.0
  %2621 = vmatpush1.msra.mxu0 0.0
  %2622 = vmatprep.subr.mxu0 0.0
  %2623 = vmatpush1.msra.mxu0 0.0
  %2624 = vmatprep.subr.mxu0 0.0
  %2625 = vmatpush1.msra.mxu0 0.0
  %2626 = vmatprep.subr.mxu0 0.0
  %2627 = vmatpush1.msra.mxu0 0.0
  %2628 = vmatprep.subr.mxu0 0.0
  %2629 = vmatpush1.msra.mxu0 0.0
  %2630 = vmatprep.subr.mxu0 0.0
  %2631 = vmatpush1.msra.mxu0 0.0
  %2632 = vmatprep.subr.mxu0 0.0
  %2633 = vmatpush1.msra.mxu0 0.0
  %2634 = vmatprep.subr.mxu0 0.0
  %2635 = vmatpush1.msra.mxu0 0.0
  %2636 = vmatprep.subr.mxu0 0.0
  %2637 = vmatpush1.msra.mxu0 0.0
  %2638 = vmatprep.subr.mxu0 0.0
  %2639 = vmatpush1.msra.mxu0 0.0
  %2640 = vmatprep.subr.mxu0 0.0
  %2641 = vmatpush1.msra.mxu0 0.0
  %2642 = vmatprep.subr.mxu0 0.0
  %2643 = vmatpush1.msra.mxu0 0.0
  %2644 = vmatprep.subr.mxu0 0.0
  %2645 = vmatpush1.msra.mxu0 0.0
  %2646 = vmatprep.subr.mxu0 0.0
  %2647 = vmatpush1.msra.mxu0 0.0
  %2648 = vmatprep.subr.mxu0 0.0
  %2649 = vmatpush1.msra.mxu0 0.0
  %2650 = vmatprep.subr.mxu0 0.0
  %2651 = vmatpush1.msra.mxu0 0.0
  %2652 = vmatprep.subr.mxu0 0.0
  %2653 = vmatpush1.msra.mxu0 0.0
  %2654 = vmatprep.subr.mxu0 0.0
  %2655 = vmatpush1.msra.mxu0 0.0
  %2656 = vmatprep.subr.mxu0 0.0
  %2657 = vmatpush1.msra.mxu0 0.0
  %2658 = vmatprep.subr.mxu0 0.0
  %2659 = vmatpush1.msra.mxu0 0.0
  %2660 = vmatprep.mubr.f32.mxu0 0.0
  %2661 = vmatmul.mubr.f32.gmra.mrb[0].mxu0 %v2573
  %v2662 = vpop.f32.mrb[0].mxu0
  %v2663 = vadd.f32 0.0, %v2662
  %v2664 = vpop.f32.mrb[0].mxu0
  %2665 = vmatprep.mubr.f32.mxu0 0.0
  %2666 = vmatmul.mubr.f32.gmra.mrb[0].mxu0 %v2576
  %v2667 = vpop.f32.mrb[0].mxu0
  %v2668 = vadd.f32 0.0, %v2667
  %v2669 = vpop.f32.mrb[0].mxu0
  %2670 = vmatprep.mubr.f32.mxu0 0.0
  %2671 = vmatmul.mubr.f32.gmra.mrb[0].mxu0 %v2579
  %v2672 = vpop.f32.mrb[0].mxu0
  %v2673 = vadd.f32 0.0, %v2672
  %v2674 = vpop.f32.mrb[0].mxu0
  %2675 = vmatprep.mubr.f32.mxu0 0.0
  %2676 = vmatmul.mubr.f32.gmra.mrb[0].mxu0 %v2582
  %v2677 = vpop.f32.mrb[0].mxu0
  %v2678 = vadd.f32 0.0, %v2677
  %v2679 = vpop.f32.mrb[0].mxu0
  %2680 = vmatprep.mubr.f32.mxu0 0.0
  %2681 = vmatmul.mubr.f32.gmra.mrb[0].mxu0 %v2585
  %v2682 = vpop.f32.mrb[0].mxu0
  %v2683 = vadd.f32 0.0, %v2682
  %v2684 = vpop.f32.mrb[0].mxu0
  %2685 = vmatprep.mubr.f32.mxu0 0.0
  %2686 = vmatmul.mubr.f32.gmra.mrb[0].mxu0 %v2588
  %v2687 = vpop.f32.mrb[0].mxu0
  %v2688 = vadd.f32 0.0, %v2687
  %v2689 = vpop.f32.mrb[0].mxu0
  %2690 = vmatprep.mubr.f32.mxu0 0.0
  %2691 = vmatmul.mubr.f32.gmra.mrb[0].mxu0 %v2591
  %v2692 = vpop.f32.mrb[0].mxu0
  %v2693 = vadd.f32 0.0, %v2692
  %v2694 = vpop.f32.mrb[0].mxu0
  %2695 = vmatprep.mubr.f32.mxu0 0.0
  %2696 = vmatmul.mubr.f32.gmra.mrb[0].mxu0 %v2594
  %v2697 = vpop.f32.mrb[0].mxu0
  %v2698 = vadd.f32 0.0, %v2697
  %v2699 = vpop.f32.mrb[0].mxu0
  %2700 = vdwg.mxu0
  %v2701 = vadd.f32 %v2564, %v2663
  %v2702 = vadd.f32 %v2565, %v2668
  %v2703 = vadd.f32 %v2566, %v2673
  %v2704 = vadd.f32 %v2567, %v2678
  %v2705 = vadd.f32 %v2568, %v2683
  %v2706 = vadd.f32 %v2569, %v2688
  %v2707 = vadd.f32 %v2570, %v2693
  %v2708 = vadd.f32 %v2571, %v2698
  %v2709 = vmax.f32 %v2701, 0.0
  %v2710 = vmax.f32 %v2702, 0.0
  %v2711 = vmax.f32 %v2703, 0.0
  %v2712 = vmax.f32 %v2704, 0.0
  %v2713 = vmax.f32 %v2705, 0.0
  %v2714 = vmax.f32 %v2706, 0.0
  %v2715 = vmax.f32 %v2707, 0.0
  %v2716 = vmax.f32 %v2708, 0.0
  %v2717 = vld [vmem:[#allocation2 + $0x80] sm:$0xff]
  %v2718 = vld [vmem:[#allocation2 + $0x88] sm:$0xff]
  %v2719 = vld [vmem:[#allocation2 + $0x90] sm:$0xff]
  %v2720 = vld [vmem:[#allocation2 + $0x98] sm:$0xff]
  %v2721 = vld [vmem:[#allocation2 + $0xa0] sm:$0xff]
  %v2722 = vld [vmem:[#allocation2 + $0xa8] sm:$0xff]
  %v2723 = vld [vmem:[#allocation2 + $0xb0] sm:$0xff]
  %v2724 = vld [vmem:[#allocation2 + $0xb8] sm:$0xff]
  %v2726 = vsel %vm2051, %v2709, 0
  %v2729 = vsel %vm2051, %v2710, 0
  %v2732 = vsel %vm2051, %v2711, 0
  %v2735 = vsel %vm2051, %v2712, 0
  %v2738 = vsel %vm2051, %v2713, 0
  %v2741 = vsel %vm2051, %v2714, 0
  %v2744 = vsel %vm2051, %v2715, 0
  %v2747 = vsel %vm2051, %v2716, 0
  %2749 = vmatprep.subr.mxu0 0.0
  %2750 = vmatpush1.msra.mxu0 %v2428
  %2751 = vmatprep.subr.mxu0 0.0
  %2752 = vmatpush1.msra.mxu0 %v2429
  %2753 = vmatprep.subr.mxu0 0.0
  %2754 = vmatpush1.msra.mxu0 %v2430
  %2755 = vmatprep.subr.mxu0 0.0
  %2756 = vmatpush1.msra.mxu0 %v2431
  %2757 = vmatprep.subr.mxu0 0.0
  %2758 = vmatpush1.msra.mxu0 0.0
  %2759 = vmatprep.subr.mxu0 0.0
  %2760 = vmatpush1.msra.mxu0 0.0
  %2761 = vmatprep.subr.mxu0 0.0
  %2762 = vmatpush1.msra.mxu0 0.0
  %2763 = vmatprep.subr.mxu0 0.0
  %2764 = vmatpush1.msra.mxu0 0.0
  %2765 = vmatprep.subr.mxu0 0.0
  %2766 = vmatpush1.msra.mxu0 0.0
  %2767 = vmatprep.subr.mxu0 0.0
  %2768 = vmatpush1.msra.mxu0 0.0
  %2769 = vmatprep.subr.mxu0 0.0
  %2770 = vmatpush1.msra.mxu0 0.0
  %2771 = vmatprep.subr.mxu0 0.0
  %2772 = vmatpush1.msra.mxu0 0.0
  %2773 = vmatprep.subr.mxu0 0.0
  %2774 = vmatpush1.msra.mxu0 0.0
  %2775 = vmatprep.subr.mxu0 0.0
  %2776 = vmatpush1.msra.mxu0 0.0
  %2777 = vmatprep.subr.mxu0 0.0
  %2778 = vmatpush1.msra.mxu0 0.0
  %2779 = vmatprep.subr.mxu0 0.0
  %2780 = vmatpush1.msra.mxu0 0.0
  %2781 = vmatprep.subr.mxu0 0.0
  %2782 = vmatpush1.msra.mxu0 0.0
  %2783 = vmatprep.subr.mxu0 0.0
  %2784 = vmatpush1.msra.mxu0 0.0
  %2785 = vmatprep.subr.mxu0 0.0
  %2786 = vmatpush1.msra.mxu0 0.0
  %2787 = vmatprep.subr.mxu0 0.0
  %2788 = vmatpush1.msra.mxu0 0.0
  %2789 = vmatprep.subr.mxu0 0.0
  %2790 = vmatpush1.msra.mxu0 0.0
  %2791 = vmatprep.subr.mxu0 0.0
  %2792 = vmatpush1.msra.mxu0 0.0
  %2793 = vmatprep.subr.mxu0 0.0
  %2794 = vmatpush1.msra.mxu0 0.0
  %2795 = vmatprep.subr.mxu0 0.0
  %2796 = vmatpush1.msra.mxu0 0.0
  %2797 = vmatprep.subr.mxu0 0.0
  %2798 = vmatpush1.msra.mxu0 0.0
  %2799 = vmatprep.subr.mxu0 0.0
  %2800 = vmatpush1.msra.mxu0 0.0
  %2801 = vmatprep.subr.mxu0 0.0
  %2802 = vmatpush1.msra.mxu0 0.0
  %2803 = vmatprep.subr.mxu0 0.0
  %2804 = vmatpush1.msra.mxu0 0.0
  %2805 = vmatprep.subr.mxu0 0.0
  %2806 = vmatpush1.msra.mxu0 0.0
  %2807 = vmatprep.subr.mxu0 0.0
  %2808 = vmatpush1.msra.mxu0 0.0
  %2809 = vmatprep.subr.mxu0 0.0
  %2810 = vmatpush1.msra.mxu0 0.0
  %2811 = vmatprep.subr.mxu0 0.0
  %2812 = vmatpush1.msra.mxu0 0.0
  %2813 = vmatprep.mubr.f32.mxu0 0.0
  %2814 = vmatmul.mubr.f32.gmra.mrb[0].mxu0 %v2726
  %v2815 = vpop.f32.mrb[0].mxu0
  %v2816 = vadd.f32 0.0, %v2815
  %v2817 = vpop.f32.mrb[0].mxu0
  %2818 = vmatprep.mubr.f32.mxu0 0.0
  %2819 = vmatmul.mubr.f32.gmra.mrb[0].mxu0 %v2729
  %v2820 = vpop.f32.mrb[0].mxu0
  %v2821 = vadd.f32 0.0, %v2820
  %v2822 = vpop.f32.mrb[0].mxu0
  %2823 = vmatprep.mubr.f32.mxu0 0.0
  %2824 = vmatmul.mubr.f32.gmra.mrb[0].mxu0 %v2732
  %v2825 = vpop.f32.mrb[0].mxu0
  %v2826 = vadd.f32 0.0, %v2825
  %v2827 = vpop.f32.mrb[0].mxu0
  %2828 = vmatprep.mubr.f32.mxu0 0.0
  %2829 = vmatmul.mubr.f32.gmra.mrb[0].mxu0 %v2735
  %v2830 = vpop.f32.mrb[0].mxu0
  %v2831 = vadd.f32 0.0, %v2830
  %v2832 = vpop.f32.mrb[0].mxu0
  %2833 = vmatprep.mubr.f32.mxu0 0.0
  %2834 = vmatmul.mubr.f32.gmra.mrb[0].mxu0 %v2738
  %v2835 = vpop.f32.mrb[0].mxu0
  %v2836 = vadd.f32 0.0, %v2835
  %v2837 = vpop.f32.mrb[0].mxu0
  %2838 = vmatprep.mubr.f32.mxu0 0.0
  %2839 = vmatmul.mubr.f32.gmra.mrb[0].mxu0 %v2741
  %v2840 = vpop.f32.mrb[0].mxu0
  %v2841 = vadd.f32 0.0, %v2840
  %v2842 = vpop.f32.mrb[0].mxu0
  %2843 = vmatprep.mubr.f32.mxu0 0.0
  %2844 = vmatmul.mubr.f32.gmra.mrb[0].mxu0 %v2744
  %v2845 = vpop.f32.mrb[0].mxu0
  %v2846 = vadd.f32 0.0, %v2845
  %v2847 = vpop.f32.mrb[0].mxu0
  %2848 = vmatprep.mubr.f32.mxu0 0.0
  %2849 = vmatmul.mubr.f32.gmra.mrb[0].mxu0 %v2747
  %v2850 = vpop.f32.mrb[0].mxu0
  %v2851 = vadd.f32 0.0, %v2850
  %v2852 = vpop.f32.mrb[0].mxu0
  %2853 = vdwg.mxu0
  %v2854 = vadd.f32 %v2717, %v2816
  %v2855 = vadd.f32 %v2718, %v2821
  %v2856 = vadd.f32 %v2719, %v2826
  %v2857 = vadd.f32 %v2720, %v2831
  %v2858 = vadd.f32 %v2721, %v2836
  %v2859 = vadd.f32 %v2722, %v2841
  %v2860 = vadd.f32 %v2723, %v2846
  %v2861 = vadd.f32 %v2724, %v2851
  %v2862 = vmax.f32 %v2854, 0.0
  %v2863 = vmax.f32 %v2855, 0.0
  %v2864 = vmax.f32 %v2856, 0.0
  %v2865 = vmax.f32 %v2857, 0.0
  %v2866 = vmax.f32 %v2858, 0.0
  %v2867 = vmax.f32 %v2859, 0.0
  %v2868 = vmax.f32 %v2860, 0.0
  %v2869 = vmax.f32 %v2861, 0.0
  %v2870 = vld [vmem:[#allocation2 + $0xc0] sm:$0xff]
  %v2871 = vld [vmem:[#allocation2 + $0xc8] sm:$0xff]
  %v2872 = vld [vmem:[#allocation2 + $0xd0] sm:$0xff]
  %v2873 = vld [vmem:[#allocation2 + $0xd8] sm:$0xff]
  %v2874 = vld [vmem:[#allocation2 + $0xe0] sm:$0xff]
  %v2875 = vld [vmem:[#allocation2 + $0xe8] sm:$0xff]
  %v2876 = vld [vmem:[#allocation2 + $0xf0] sm:$0xff]
  %v2877 = vld [vmem:[#allocation2 + $0xf8] sm:$0xff]
  %v2879 = vsel %vm2051, %v2862, 0
  %v2882 = vsel %vm2051, %v2863, 0
  %v2885 = vsel %vm2051, %v2864, 0
  %v2888 = vsel %vm2051, %v2865, 0
  %v2891 = vsel %vm2051, %v2866, 0
  %v2894 = vsel %vm2051, %v2867, 0
  %v2897 = vsel %vm2051, %v2868, 0
  %v2900 = vsel %vm2051, %v2869, 0
  %2902 = vmatprep.subr.mxu0 0.0
  %2903 = vmatpush1.msra.mxu0 %v2428
  %2904 = vmatprep.subr.mxu0 0.0
  %2905 = vmatpush1.msra.mxu0 %v2429
  %2906 = vmatprep.subr.mxu0 0.0
  %2907 = vmatpush1.msra.mxu0 %v2430
  %2908 = vmatprep.subr.mxu0 0.0
  %2909 = vmatpush1.msra.mxu0 %v2431
  %2910 = vmatprep.subr.mxu0 0.0
  %2911 = vmatpush1.msra.mxu0 0.0
  %2912 = vmatprep.subr.mxu0 0.0
  %2913 = vmatpush1.msra.mxu0 0.0
  %2914 = vmatprep.subr.mxu0 0.0
  %2915 = vmatpush1.msra.mxu0 0.0
  %2916 = vmatprep.subr.mxu0 0.0
  %2917 = vmatpush1.msra.mxu0 0.0
  %2918 = vmatprep.subr.mxu0 0.0
  %2919 = vmatpush1.msra.mxu0 0.0
  %2920 = vmatprep.subr.mxu0 0.0
  %2921 = vmatpush1.msra.mxu0 0.0
  %2922 = vmatprep.subr.mxu0 0.0
  %2923 = vmatpush1.msra.mxu0 0.0
  %2924 = vmatprep.subr.mxu0 0.0
  %2925 = vmatpush1.msra.mxu0 0.0
  %2926 = vmatprep.subr.mxu0 0.0
  %2927 = vmatpush1.msra.mxu0 0.0
  %2928 = vmatprep.subr.mxu0 0.0
  %2929 = vmatpush1.msra.mxu0 0.0
  %2930 = vmatprep.subr.mxu0 0.0
  %2931 = vmatpush1.msra.mxu0 0.0
  %2932 = vmatprep.subr.mxu0 0.0
  %2933 = vmatpush1.msra.mxu0 0.0
  %2934 = vmatprep.subr.mxu0 0.0
  %2935 = vmatpush1.msra.mxu0 0.0
  %2936 = vmatprep.subr.mxu0 0.0
  %2937 = vmatpush1.msra.mxu0 0.0
  %2938 = vmatprep.subr.mxu0 0.0
  %2939 = vmatpush1.msra.mxu0 0.0
  %2940 = vmatprep.subr.mxu0 0.0
  %2941 = vmatpush1.msra.mxu0 0.0
  %2942 = vmatprep.subr.mxu0 0.0
  %2943 = vmatpush1.msra.mxu0 0.0
  %2944 = vmatprep.subr.mxu0 0.0
  %2945 = vmatpush1.msra.mxu0 0.0
  %2946 = vmatprep.subr.mxu0 0.0
  %2947 = vmatpush1.msra.mxu0 0.0
  %2948 = vmatprep.subr.mxu0 0.0
  %2949 = vmatpush1.msra.mxu0 0.0
  %2950 = vmatprep.subr.mxu0 0.0
  %2951 = vmatpush1.msra.mxu0 0.0
  %2952 = vmatprep.subr.mxu0 0.0
  %2953 = vmatpush1.msra.mxu0 0.0
  %2954 = vmatprep.subr.mxu0 0.0
  %2955 = vmatpush1.msra.mxu0 0.0
  %2956 = vmatprep.subr.mxu0 0.0
  %2957 = vmatpush1.msra.mxu0 0.0
  %2958 = vmatprep.subr.mxu0 0.0
  %2959 = vmatpush1.msra.mxu0 0.0
  %2960 = vmatprep.subr.mxu0 0.0
  %2961 = vmatpush1.msra.mxu0 0.0
  %2962 = vmatprep.subr.mxu0 0.0
  %2963 = vmatpush1.msra.mxu0 0.0
  %2964 = vmatprep.subr.mxu0 0.0
  %2965 = vmatpush1.msra.mxu0 0.0
  %2966 = vmatprep.mubr.f32.mxu0 0.0
  %2967 = vmatmul.mubr.f32.gmra.mrb[0].mxu0 %v2879
  %v2968 = vpop.f32.mrb[0].mxu0
  %v2969 = vadd.f32 0.0, %v2968
  %v2970 = vpop.f32.mrb[0].mxu0
  %2971 = vmatprep.mubr.f32.mxu0 0.0
  %2972 = vmatmul.mubr.f32.gmra.mrb[0].mxu0 %v2882
  %v2973 = vpop.f32.mrb[0].mxu0
  %v2974 = vadd.f32 0.0, %v2973
  %v2975 = vpop.f32.mrb[0].mxu0
  %2976 = vmatprep.mubr.f32.mxu0 0.0
  %2977 = vmatmul.mubr.f32.gmra.mrb[0].mxu0 %v2885
  %v2978 = vpop.f32.mrb[0].mxu0
  %v2979 = vadd.f32 0.0, %v2978
  %v2980 = vpop.f32.mrb[0].mxu0
  %2981 = vmatprep.mubr.f32.mxu0 0.0
  %2982 = vmatmul.mubr.f32.gmra.mrb[0].mxu0 %v2888
  %v2983 = vpop.f32.mrb[0].mxu0
  %v2984 = vadd.f32 0.0, %v2983
  %v2985 = vpop.f32.mrb[0].mxu0
  %2986 = vmatprep.mubr.f32.mxu0 0.0
  %2987 = vmatmul.mubr.f32.gmra.mrb[0].mxu0 %v2891
  %v2988 = vpop.f32.mrb[0].mxu0
  %v2989 = vadd.f32 0.0, %v2988
  %v2990 = vpop.f32.mrb[0].mxu0
  %2991 = vmatprep.mubr.f32.mxu0 0.0
  %2992 = vmatmul.mubr.f32.gmra.mrb[0].mxu0 %v2894
  %v2993 = vpop.f32.mrb[0].mxu0
  %v2994 = vadd.f32 0.0, %v2993
  %v2995 = vpop.f32.mrb[0].mxu0
  %2996 = vmatprep.mubr.f32.mxu0 0.0
  %2997 = vmatmul.mubr.f32.gmra.mrb[0].mxu0 %v2897
  %v2998 = vpop.f32.mrb[0].mxu0
  %v2999 = vadd.f32 0.0, %v2998
  %v3000 = vpop.f32.mrb[0].mxu0
  %3001 = vmatprep.mubr.f32.mxu0 0.0
  %3002 = vmatmul.mubr.f32.gmra.mrb[0].mxu0 %v2900
  %v3003 = vpop.f32.mrb[0].mxu0
  %v3004 = vadd.f32 0.0, %v3003
  %v3005 = vpop.f32.mrb[0].mxu0
  %3006 = vdwg.mxu0
  %v3007 = vadd.f32 %v2870, %v2969
  %v3008 = vadd.f32 %v2871, %v2974
  %v3009 = vadd.f32 %v2872, %v2979
  %v3010 = vadd.f32 %v2873, %v2984
  %v3011 = vadd.f32 %v2874, %v2989
  %v3012 = vadd.f32 %v2875, %v2994
  %v3013 = vadd.f32 %v2876, %v2999
  %v3014 = vadd.f32 %v2877, %v3004
  %v3015 = vmax.f32 %v3007, 0.0
  %v3016 = vmax.f32 %v3008, 0.0
  %v3017 = vmax.f32 %v3009, 0.0
  %v3018 = vmax.f32 %v3010, 0.0
  %v3019 = vmax.f32 %v3011, 0.0
  %v3020 = vmax.f32 %v3012, 0.0
  %v3021 = vmax.f32 %v3013, 0.0
  %v3022 = vmax.f32 %v3014, 0.0
  %v3023 = vld [vmem:[#allocation2 + $0x100] sm:$0xff]
  %v3024 = vld [vmem:[#allocation2 + $0x108] sm:$0xff]
  %v3025 = vld [vmem:[#allocation2 + $0x110] sm:$0xff]
  %v3026 = vld [vmem:[#allocation2 + $0x118] sm:$0xff]
  %v3027 = vld [vmem:[#allocation2 + $0x120] sm:$0xff]
  %v3028 = vld [vmem:[#allocation2 + $0x128] sm:$0xff]
  %v3029 = vld [vmem:[#allocation2 + $0x130] sm:$0xff]
  %v3030 = vld [vmem:[#allocation2 + $0x138] sm:$0xff]
  %v3032 = vsel %vm2051, %v3015, 0
  %v3035 = vsel %vm2051, %v3016, 0
  %v3038 = vsel %vm2051, %v3017, 0
  %v3041 = vsel %vm2051, %v3018, 0
  %v3044 = vsel %vm2051, %v3019, 0
  %v3047 = vsel %vm2051, %v3020, 0
  %v3050 = vsel %vm2051, %v3021, 0
  %v3053 = vsel %vm2051, %v3022, 0
  %3055 = vmatprep.subr.mxu0 0.0
  %3056 = vmatpush1.msra.mxu0 %v2428
  %3057 = vmatprep.subr.mxu0 0.0
  %3058 = vmatpush1.msra.mxu0 %v2429
  %3059 = vmatprep.subr.mxu0 0.0
  %3060 = vmatpush1.msra.mxu0 %v2430
  %3061 = vmatprep.subr.mxu0 0.0
  %3062 = vmatpush1.msra.mxu0 %v2431
  %3063 = vmatprep.subr.mxu0 0.0
  %3064 = vmatpush1.msra.mxu0 0.0
  %3065 = vmatprep.subr.mxu0 0.0
  %3066 = vmatpush1.msra.mxu0 0.0
  %3067 = vmatprep.subr.mxu0 0.0
  %3068 = vmatpush1.msra.mxu0 0.0
  %3069 = vmatprep.subr.mxu0 0.0
  %3070 = vmatpush1.msra.mxu0 0.0
  %3071 = vmatprep.subr.mxu0 0.0
  %3072 = vmatpush1.msra.mxu0 0.0
  %3073 = vmatprep.subr.mxu0 0.0
  %3074 = vmatpush1.msra.mxu0 0.0
  %3075 = vmatprep.subr.mxu0 0.0
  %3076 = vmatpush1.msra.mxu0 0.0
  %3077 = vmatprep.subr.mxu0 0.0
  %3078 = vmatpush1.msra.mxu0 0.0
  %3079 = vmatprep.subr.mxu0 0.0
  %3080 = vmatpush1.msra.mxu0 0.0
  %3081 = vmatprep.subr.mxu0 0.0
  %3082 = vmatpush1.msra.mxu0 0.0
  %3083 = vmatprep.subr.mxu0 0.0
  %3084 = vmatpush1.msra.mxu0 0.0
  %3085 = vmatprep.subr.mxu0 0.0
  %3086 = vmatpush1.msra.mxu0 0.0
  %3087 = vmatprep.subr.mxu0 0.0
  %3088 = vmatpush1.msra.mxu0 0.0
  %3089 = vmatprep.subr.mxu0 0.0
  %3090 = vmatpush1.msra.mxu0 0.0
  %3091 = vmatprep.subr.mxu0 0.0
  %3092 = vmatpush1.msra.mxu0 0.0
  %3093 = vmatprep.subr.mxu0 0.0
  %3094 = vmatpush1.msra.mxu0 0.0
  %3095 = vmatprep.subr.mxu0 0.0
  %3096 = vmatpush1.msra.mxu0 0.0
  %3097 = vmatprep.subr.mxu0 0.0
  %3098 = vmatpush1.msra.mxu0 0.0
  %3099 = vmatprep.subr.mxu0 0.0
  %3100 = vmatpush1.msra.mxu0 0.0
  %3101 = vmatprep.subr.mxu0 0.0
  %3102 = vmatpush1.msra.mxu0 0.0
  %3103 = vmatprep.subr.mxu0 0.0
  %3104 = vmatpush1.msra.mxu0 0.0
  %3105 = vmatprep.subr.mxu0 0.0
  %3106 = vmatpush1.msra.mxu0 0.0
  %3107 = vmatprep.subr.mxu0 0.0
  %3108 = vmatpush1.msra.mxu0 0.0
  %3109 = vmatprep.subr.mxu0 0.0
  %3110 = vmatpush1.msra.mxu0 0.0
  %3111 = vmatprep.subr.mxu0 0.0
  %3112 = vmatpush1.msra.mxu0 0.0
  %3113 = vmatprep.subr.mxu0 0.0
  %3114 = vmatpush1.msra.mxu0 0.0
  %3115 = vmatprep.subr.mxu0 0.0
  %3116 = vmatpush1.msra.mxu0 0.0
  %3117 = vmatprep.subr.mxu0 0.0
  %3118 = vmatpush1.msra.mxu0 0.0
  %3119 = vmatprep.mubr.f32.mxu0 0.0
  %3120 = vmatmul.mubr.f32.gmra.mrb[0].mxu0 %v3032
  %v3121 = vpop.f32.mrb[0].mxu0
  %v3122 = vadd.f32 0.0, %v3121
  %v3123 = vpop.f32.mrb[0].mxu0
  %3124 = vmatprep.mubr.f32.mxu0 0.0
  %3125 = vmatmul.mubr.f32.gmra.mrb[0].mxu0 %v3035
  %v3126 = vpop.f32.mrb[0].mxu0
  %v3127 = vadd.f32 0.0, %v3126
  %v3128 = vpop.f32.mrb[0].mxu0
  %3129 = vmatprep.mubr.f32.mxu0 0.0
  %3130 = vmatmul.mubr.f32.gmra.mrb[0].mxu0 %v3038
  %v3131 = vpop.f32.mrb[0].mxu0
  %v3132 = vadd.f32 0.0, %v3131
  %v3133 = vpop.f32.mrb[0].mxu0
  %3134 = vmatprep.mubr.f32.mxu0 0.0
  %3135 = vmatmul.mubr.f32.gmra.mrb[0].mxu0 %v3041
  %v3136 = vpop.f32.mrb[0].mxu0
  %v3137 = vadd.f32 0.0, %v3136
  %v3138 = vpop.f32.mrb[0].mxu0
  %3139 = vmatprep.mubr.f32.mxu0 0.0
  %3140 = vmatmul.mubr.f32.gmra.mrb[0].mxu0 %v3044
  %v3141 = vpop.f32.mrb[0].mxu0
  %v3142 = vadd.f32 0.0, %v3141
  %v3143 = vpop.f32.mrb[0].mxu0
  %3144 = vmatprep.mubr.f32.mxu0 0.0
  %3145 = vmatmul.mubr.f32.gmra.mrb[0].mxu0 %v3047
  %v3146 = vpop.f32.mrb[0].mxu0
  %v3147 = vadd.f32 0.0, %v3146
  %v3148 = vpop.f32.mrb[0].mxu0
  %3149 = vmatprep.mubr.f32.mxu0 0.0
  %3150 = vmatmul.mubr.f32.gmra.mrb[0].mxu0 %v3050
  %v3151 = vpop.f32.mrb[0].mxu0
  %v3152 = vadd.f32 0.0, %v3151
  %v3153 = vpop.f32.mrb[0].mxu0
  %3154 = vmatprep.mubr.f32.mxu0 0.0
  %3155 = vmatmul.mubr.f32.gmra.mrb[0].mxu0 %v3053
  %v3156 = vpop.f32.mrb[0].mxu0
  %v3157 = vadd.f32 0.0, %v3156
  %v3158 = vpop.f32.mrb[0].mxu0
  %3159 = vdwg.mxu0
  %v3160 = vadd.f32 %v3023, %v3122
  %v3161 = vadd.f32 %v3024, %v3127
  %v3162 = vadd.f32 %v3025, %v3132
  %v3163 = vadd.f32 %v3026, %v3137
  %v3164 = vadd.f32 %v3027, %v3142
  %v3165 = vadd.f32 %v3028, %v3147
  %v3166 = vadd.f32 %v3029, %v3152
  %v3167 = vadd.f32 %v3030, %v3157
  %v3168 = vmax.f32 %v3160, 0.0
  %v3169 = vmax.f32 %v3161, 0.0
  %v3170 = vmax.f32 %v3162, 0.0
  %v3171 = vmax.f32 %v3163, 0.0
  %v3172 = vmax.f32 %v3164, 0.0
  %v3173 = vmax.f32 %v3165, 0.0
  %v3174 = vmax.f32 %v3166, 0.0
  %v3175 = vmax.f32 %v3167, 0.0
  %v3176 = vld [vmem:[#allocation2 + $0x140] sm:$0xff]
  %v3177 = vld [vmem:[#allocation2 + $0x148] sm:$0xff]
  %v3178 = vld [vmem:[#allocation2 + $0x150] sm:$0xff]
  %v3179 = vld [vmem:[#allocation2 + $0x158] sm:$0xff]
  %v3180 = vld [vmem:[#allocation2 + $0x160] sm:$0xff]
  %v3181 = vld [vmem:[#allocation2 + $0x168] sm:$0xff]
  %v3182 = vld [vmem:[#allocation2 + $0x170] sm:$0xff]
  %v3183 = vld [vmem:[#allocation2 + $0x178] sm:$0xff]
  %v3185 = vsel %vm2051, %v3168, 0
  %v3188 = vsel %vm2051, %v3169, 0
  %v3191 = vsel %vm2051, %v3170, 0
  %v3194 = vsel %vm2051, %v3171, 0
  %v3197 = vsel %vm2051, %v3172, 0
  %v3200 = vsel %vm2051, %v3173, 0
  %v3203 = vsel %vm2051, %v3174, 0
  %v3206 = vsel %vm2051, %v3175, 0
  %3208 = vmatprep.subr.mxu0 0.0
  %3209 = vmatpush1.msra.mxu0 %v2428
  %3210 = vmatprep.subr.mxu0 0.0
  %3211 = vmatpush1.msra.mxu0 %v2429
  %3212 = vmatprep.subr.mxu0 0.0
  %3213 = vmatpush1.msra.mxu0 %v2430
  %3214 = vmatprep.subr.mxu0 0.0
  %3215 = vmatpush1.msra.mxu0 %v2431
  %3216 = vmatprep.subr.mxu0 0.0
  %3217 = vmatpush1.msra.mxu0 0.0
  %3218 = vmatprep.subr.mxu0 0.0
  %3219 = vmatpush1.msra.mxu0 0.0
  %3220 = vmatprep.subr.mxu0 0.0
  %3221 = vmatpush1.msra.mxu0 0.0
  %3222 = vmatprep.subr.mxu0 0.0
  %3223 = vmatpush1.msra.mxu0 0.0
  %3224 = vmatprep.subr.mxu0 0.0
  %3225 = vmatpush1.msra.mxu0 0.0
  %3226 = vmatprep.subr.mxu0 0.0
  %3227 = vmatpush1.msra.mxu0 0.0
  %3228 = vmatprep.subr.mxu0 0.0
  %3229 = vmatpush1.msra.mxu0 0.0
  %3230 = vmatprep.subr.mxu0 0.0
  %3231 = vmatpush1.msra.mxu0 0.0
  %3232 = vmatprep.subr.mxu0 0.0
  %3233 = vmatpush1.msra.mxu0 0.0
  %3234 = vmatprep.subr.mxu0 0.0
  %3235 = vmatpush1.msra.mxu0 0.0
  %3236 = vmatprep.subr.mxu0 0.0
  %3237 = vmatpush1.msra.mxu0 0.0
  %3238 = vmatprep.subr.mxu0 0.0
  %3239 = vmatpush1.msra.mxu0 0.0
  %3240 = vmatprep.subr.mxu0 0.0
  %3241 = vmatpush1.msra.mxu0 0.0
  %3242 = vmatprep.subr.mxu0 0.0
  %3243 = vmatpush1.msra.mxu0 0.0
  %3244 = vmatprep.subr.mxu0 0.0
  %3245 = vmatpush1.msra.mxu0 0.0
  %3246 = vmatprep.subr.mxu0 0.0
  %3247 = vmatpush1.msra.mxu0 0.0
  %3248 = vmatprep.subr.mxu0 0.0
  %3249 = vmatpush1.msra.mxu0 0.0
  %3250 = vmatprep.subr.mxu0 0.0
  %3251 = vmatpush1.msra.mxu0 0.0
  %3252 = vmatprep.subr.mxu0 0.0
  %3253 = vmatpush1.msra.mxu0 0.0
  %3254 = vmatprep.subr.mxu0 0.0
  %3255 = vmatpush1.msra.mxu0 0.0
  %3256 = vmatprep.subr.mxu0 0.0
  %3257 = vmatpush1.msra.mxu0 0.0
  %3258 = vmatprep.subr.mxu0 0.0
  %3259 = vmatpush1.msra.mxu0 0.0
  %3260 = vmatprep.subr.mxu0 0.0
  %3261 = vmatpush1.msra.mxu0 0.0
  %3262 = vmatprep.subr.mxu0 0.0
  %3263 = vmatpush1.msra.mxu0 0.0
  %3264 = vmatprep.subr.mxu0 0.0
  %3265 = vmatpush1.msra.mxu0 0.0
  %3266 = vmatprep.subr.mxu0 0.0
  %3267 = vmatpush1.msra.mxu0 0.0
  %3268 = vmatprep.subr.mxu0 0.0
  %3269 = vmatpush1.msra.mxu0 0.0
  %3270 = vmatprep.subr.mxu0 0.0
  %3271 = vmatpush1.msra.mxu0 0.0
  %3272 = vmatprep.mubr.f32.mxu0 0.0
  %3273 = vmatmul.mubr.f32.gmra.mrb[0].mxu0 %v3185
  %v3274 = vpop.f32.mrb[0].mxu0
  %v3275 = vadd.f32 0.0, %v3274
  %v3276 = vpop.f32.mrb[0].mxu0
  %3277 = vmatprep.mubr.f32.mxu0 0.0
  %3278 = vmatmul.mubr.f32.gmra.mrb[0].mxu0 %v3188
  %v3279 = vpop.f32.mrb[0].mxu0
  %v3280 = vadd.f32 0.0, %v3279
  %v3281 = vpop.f32.mrb[0].mxu0
  %3282 = vmatprep.mubr.f32.mxu0 0.0
  %3283 = vmatmul.mubr.f32.gmra.mrb[0].mxu0 %v3191
  %v3284 = vpop.f32.mrb[0].mxu0
  %v3285 = vadd.f32 0.0, %v3284
  %v3286 = vpop.f32.mrb[0].mxu0
  %3287 = vmatprep.mubr.f32.mxu0 0.0
  %3288 = vmatmul.mubr.f32.gmra.mrb[0].mxu0 %v3194
  %v3289 = vpop.f32.mrb[0].mxu0
  %v3290 = vadd.f32 0.0, %v3289
  %v3291 = vpop.f32.mrb[0].mxu0
  %3292 = vmatprep.mubr.f32.mxu0 0.0
  %3293 = vmatmul.mubr.f32.gmra.mrb[0].mxu0 %v3197
  %v3294 = vpop.f32.mrb[0].mxu0
  %v3295 = vadd.f32 0.0, %v3294
  %v3296 = vpop.f32.mrb[0].mxu0
  %3297 = vmatprep.mubr.f32.mxu0 0.0
  %3298 = vmatmul.mubr.f32.gmra.mrb[0].mxu0 %v3200
  %v3299 = vpop.f32.mrb[0].mxu0
  %v3300 = vadd.f32 0.0, %v3299
  %v3301 = vpop.f32.mrb[0].mxu0
  %3302 = vmatprep.mubr.f32.mxu0 0.0
  %3303 = vmatmul.mubr.f32.gmra.mrb[0].mxu0 %v3203
  %v3304 = vpop.f32.mrb[0].mxu0
  %v3305 = vadd.f32 0.0, %v3304
  %v3306 = vpop.f32.mrb[0].mxu0
  %3307 = vmatprep.mubr.f32.mxu0 0.0
  %3308 = vmatmul.mubr.f32.gmra.mrb[0].mxu0 %v3206
  %v3309 = vpop.f32.mrb[0].mxu0
  %v3310 = vadd.f32 0.0, %v3309
  %v3311 = vpop.f32.mrb[0].mxu0
  %3312 = vdwg.mxu0
  %v3313 = vadd.f32 %v3176, %v3275
  %v3314 = vadd.f32 %v3177, %v3280
  %v3315 = vadd.f32 %v3178, %v3285
  %v3316 = vadd.f32 %v3179, %v3290
  %v3317 = vadd.f32 %v3180, %v3295
  %v3318 = vadd.f32 %v3181, %v3300
  %v3319 = vadd.f32 %v3182, %v3305
  %v3320 = vadd.f32 %v3183, %v3310
  %v3321 = vmax.f32 %v3313, 0.0
  %v3322 = vmax.f32 %v3314, 0.0
  %v3323 = vmax.f32 %v3315, 0.0
  %v3324 = vmax.f32 %v3316, 0.0
  %v3325 = vmax.f32 %v3317, 0.0
  %v3326 = vmax.f32 %v3318, 0.0
  %v3327 = vmax.f32 %v3319, 0.0
  %v3328 = vmax.f32 %v3320, 0.0
  %v3329 = vld [vmem:[#allocation2 + $0x180] sm:$0xff]
  %v3330 = vld [vmem:[#allocation2 + $0x188] sm:$0xff]
  %v3331 = vld [vmem:[#allocation2 + $0x190] sm:$0xff]
  %v3332 = vld [vmem:[#allocation2 + $0x198] sm:$0xff]
  %v3333 = vld [vmem:[#allocation2 + $0x1a0] sm:$0xff]
  %v3334 = vld [vmem:[#allocation2 + $0x1a8] sm:$0xff]
  %v3335 = vld [vmem:[#allocation2 + $0x1b0] sm:$0xff]
  %v3336 = vld [vmem:[#allocation2 + $0x1b8] sm:$0xff]
  %v3338 = vsel %vm2051, %v3321, 0
  %v3341 = vsel %vm2051, %v3322, 0
  %v3344 = vsel %vm2051, %v3323, 0
  %v3347 = vsel %vm2051, %v3324, 0
  %v3350 = vsel %vm2051, %v3325, 0
  %v3353 = vsel %vm2051, %v3326, 0
  %v3356 = vsel %vm2051, %v3327, 0
  %v3359 = vsel %vm2051, %v3328, 0
  %3361 = vmatprep.subr.mxu0 0.0
  %3362 = vmatpush1.msra.mxu0 %v2428
  %3363 = vmatprep.subr.mxu0 0.0
  %3364 = vmatpush1.msra.mxu0 %v2429
  %3365 = vmatprep.subr.mxu0 0.0
  %3366 = vmatpush1.msra.mxu0 %v2430
  %3367 = vmatprep.subr.mxu0 0.0
  %3368 = vmatpush1.msra.mxu0 %v2431
  %3369 = vmatprep.subr.mxu0 0.0
  %3370 = vmatpush1.msra.mxu0 0.0
  %3371 = vmatprep.subr.mxu0 0.0
  %3372 = vmatpush1.msra.mxu0 0.0
  %3373 = vmatprep.subr.mxu0 0.0
  %3374 = vmatpush1.msra.mxu0 0.0
  %3375 = vmatprep.subr.mxu0 0.0
  %3376 = vmatpush1.msra.mxu0 0.0
  %3377 = vmatprep.subr.mxu0 0.0
  %3378 = vmatpush1.msra.mxu0 0.0
  %3379 = vmatprep.subr.mxu0 0.0
  %3380 = vmatpush1.msra.mxu0 0.0
  %3381 = vmatprep.subr.mxu0 0.0
  %3382 = vmatpush1.msra.mxu0 0.0
  %3383 = vmatprep.subr.mxu0 0.0
  %3384 = vmatpush1.msra.mxu0 0.0
  %3385 = vmatprep.subr.mxu0 0.0
  %3386 = vmatpush1.msra.mxu0 0.0
  %3387 = vmatprep.subr.mxu0 0.0
  %3388 = vmatpush1.msra.mxu0 0.0
  %3389 = vmatprep.subr.mxu0 0.0
  %3390 = vmatpush1.msra.mxu0 0.0
  %3391 = vmatprep.subr.mxu0 0.0
  %3392 = vmatpush1.msra.mxu0 0.0
  %3393 = vmatprep.subr.mxu0 0.0
  %3394 = vmatpush1.msra.mxu0 0.0
  %3395 = vmatprep.subr.mxu0 0.0
  %3396 = vmatpush1.msra.mxu0 0.0
  %3397 = vmatprep.subr.mxu0 0.0
  %3398 = vmatpush1.msra.mxu0 0.0
  %3399 = vmatprep.subr.mxu0 0.0
  %3400 = vmatpush1.msra.mxu0 0.0
  %3401 = vmatprep.subr.mxu0 0.0
  %3402 = vmatpush1.msra.mxu0 0.0
  %3403 = vmatprep.subr.mxu0 0.0
  %3404 = vmatpush1.msra.mxu0 0.0
  %3405 = vmatprep.subr.mxu0 0.0
  %3406 = vmatpush1.msra.mxu0 0.0
  %3407 = vmatprep.subr.mxu0 0.0
  %3408 = vmatpush1.msra.mxu0 0.0
  %3409 = vmatprep.subr.mxu0 0.0
  %3410 = vmatpush1.msra.mxu0 0.0
  %3411 = vmatprep.subr.mxu0 0.0
  %3412 = vmatpush1.msra.mxu0 0.0
  %3413 = vmatprep.subr.mxu0 0.0
  %3414 = vmatpush1.msra.mxu0 0.0
  %3415 = vmatprep.subr.mxu0 0.0
  %3416 = vmatpush1.msra.mxu0 0.0
  %3417 = vmatprep.subr.mxu0 0.0
  %3418 = vmatpush1.msra.mxu0 0.0
  %3419 = vmatprep.subr.mxu0 0.0
  %3420 = vmatpush1.msra.mxu0 0.0
  %3421 = vmatprep.subr.mxu0 0.0
  %3422 = vmatpush1.msra.mxu0 0.0
  %3423 = vmatprep.subr.mxu0 0.0
  %3424 = vmatpush1.msra.mxu0 0.0
  %3425 = vmatprep.mubr.f32.mxu0 0.0
  %3426 = vmatmul.mubr.f32.gmra.mrb[0].mxu0 %v3338
  %v3427 = vpop.f32.mrb[0].mxu0
  %v3428 = vadd.f32 0.0, %v3427
  %v3429 = vpop.f32.mrb[0].mxu0
  %3430 = vmatprep.mubr.f32.mxu0 0.0
  %3431 = vmatmul.mubr.f32.gmra.mrb[0].mxu0 %v3341
  %v3432 = vpop.f32.mrb[0].mxu0
  %v3433 = vadd.f32 0.0, %v3432
  %v3434 = vpop.f32.mrb[0].mxu0
  %3435 = vmatprep.mubr.f32.mxu0 0.0
  %3436 = vmatmul.mubr.f32.gmra.mrb[0].mxu0 %v3344
  %v3437 = vpop.f32.mrb[0].mxu0
  %v3438 = vadd.f32 0.0, %v3437
  %v3439 = vpop.f32.mrb[0].mxu0
  %3440 = vmatprep.mubr.f32.mxu0 0.0
  %3441 = vmatmul.mubr.f32.gmra.mrb[0].mxu0 %v3347
  %v3442 = vpop.f32.mrb[0].mxu0
  %v3443 = vadd.f32 0.0, %v3442
  %v3444 = vpop.f32.mrb[0].mxu0
  %3445 = vmatprep.mubr.f32.mxu0 0.0
  %3446 = vmatmul.mubr.f32.gmra.mrb[0].mxu0 %v3350
  %v3447 = vpop.f32.mrb[0].mxu0
  %v3448 = vadd.f32 0.0, %v3447
  %v3449 = vpop.f32.mrb[0].mxu0
  %3450 = vmatprep.mubr.f32.mxu0 0.0
  %3451 = vmatmul.mubr.f32.gmra.mrb[0].mxu0 %v3353
  %v3452 = vpop.f32.mrb[0].mxu0
  %v3453 = vadd.f32 0.0, %v3452
  %v3454 = vpop.f32.mrb[0].mxu0
  %3455 = vmatprep.mubr.f32.mxu0 0.0
  %3456 = vmatmul.mubr.f32.gmra.mrb[0].mxu0 %v3356
  %v3457 = vpop.f32.mrb[0].mxu0
  %v3458 = vadd.f32 0.0, %v3457
  %v3459 = vpop.f32.mrb[0].mxu0
  %3460 = vmatprep.mubr.f32.mxu0 0.0
  %3461 = vmatmul.mubr.f32.gmra.mrb[0].mxu0 %v3359
  %v3462 = vpop.f32.mrb[0].mxu0
  %v3463 = vadd.f32 0.0, %v3462
  %v3464 = vpop.f32.mrb[0].mxu0
  %3465 = vdwg.mxu0
  %v3466 = vadd.f32 %v3329, %v3428
  %v3467 = vadd.f32 %v3330, %v3433
  %v3468 = vadd.f32 %v3331, %v3438
  %v3469 = vadd.f32 %v3332, %v3443
  %v3470 = vadd.f32 %v3333, %v3448
  %v3471 = vadd.f32 %v3334, %v3453
  %v3472 = vadd.f32 %v3335, %v3458
  %v3473 = vadd.f32 %v3336, %v3463
  %v3474 = vmax.f32 %v3466, 0.0
  %v3475 = vmax.f32 %v3467, 0.0
  %v3476 = vmax.f32 %v3468, 0.0
  %v3477 = vmax.f32 %v3469, 0.0
  %v3478 = vmax.f32 %v3470, 0.0
  %v3479 = vmax.f32 %v3471, 0.0
  %v3480 = vmax.f32 %v3472, 0.0
  %v3481 = vmax.f32 %v3473, 0.0
  %v3482 = vld [vmem:[#allocation2 + $0x1c0] sm:$0xff]
  %v3483 = vld [vmem:[#allocation2 + $0x1c8] sm:$0xff]
  %v3484 = vld [vmem:[#allocation2 + $0x1d0] sm:$0xff]
  %v3485 = vld [vmem:[#allocation2 + $0x1d8] sm:$0xff]
  %v3486 = vld [vmem:[#allocation2 + $0x1e0] sm:$0xff]
  %v3487 = vld [vmem:[#allocation2 + $0x1e8] sm:$0xff]
  %v3488 = vld [vmem:[#allocation2 + $0x1f0] sm:$0xff]
  %v3489 = vld [vmem:[#allocation2 + $0x1f8] sm:$0xff]
  %v3491 = vsel %vm2051, %v3474, 0
  %v3494 = vsel %vm2051, %v3475, 0
  %v3497 = vsel %vm2051, %v3476, 0
  %v3500 = vsel %vm2051, %v3477, 0
  %v3503 = vsel %vm2051, %v3478, 0
  %v3506 = vsel %vm2051, %v3479, 0
  %v3509 = vsel %vm2051, %v3480, 0
  %v3512 = vsel %vm2051, %v3481, 0
  %3514 = vmatprep.subr.mxu0 0.0
  %3515 = vmatpush1.msra.mxu0 %v2428
  %3516 = vmatprep.subr.mxu0 0.0
  %3517 = vmatpush1.msra.mxu0 %v2429
  %3518 = vmatprep.subr.mxu0 0.0
  %3519 = vmatpush1.msra.mxu0 %v2430
  %3520 = vmatprep.subr.mxu0 0.0
  %3521 = vmatpush1.msra.mxu0 %v2431
  %3522 = vmatprep.subr.mxu0 0.0
  %3523 = vmatpush1.msra.mxu0 0.0
  %3524 = vmatprep.subr.mxu0 0.0
  %3525 = vmatpush1.msra.mxu0 0.0
  %3526 = vmatprep.subr.mxu0 0.0
  %3527 = vmatpush1.msra.mxu0 0.0
  %3528 = vmatprep.subr.mxu0 0.0
  %3529 = vmatpush1.msra.mxu0 0.0
  %3530 = vmatprep.subr.mxu0 0.0
  %3531 = vmatpush1.msra.mxu0 0.0
  %3532 = vmatprep.subr.mxu0 0.0
  %3533 = vmatpush1.msra.mxu0 0.0
  %3534 = vmatprep.subr.mxu0 0.0
  %3535 = vmatpush1.msra.mxu0 0.0
  %3536 = vmatprep.subr.mxu0 0.0
  %3537 = vmatpush1.msra.mxu0 0.0
  %3538 = vmatprep.subr.mxu0 0.0
  %3539 = vmatpush1.msra.mxu0 0.0
  %3540 = vmatprep.subr.mxu0 0.0
  %3541 = vmatpush1.msra.mxu0 0.0
  %3542 = vmatprep.subr.mxu0 0.0
  %3543 = vmatpush1.msra.mxu0 0.0
  %3544 = vmatprep.subr.mxu0 0.0
  %3545 = vmatpush1.msra.mxu0 0.0
  %3546 = vmatprep.subr.mxu0 0.0
  %3547 = vmatpush1.msra.mxu0 0.0
  %3548 = vmatprep.subr.mxu0 0.0
  %3549 = vmatpush1.msra.mxu0 0.0
  %3550 = vmatprep.subr.mxu0 0.0
  %3551 = vmatpush1.msra.mxu0 0.0
  %3552 = vmatprep.subr.mxu0 0.0
  %3553 = vmatpush1.msra.mxu0 0.0
  %3554 = vmatprep.subr.mxu0 0.0
  %3555 = vmatpush1.msra.mxu0 0.0
  %3556 = vmatprep.subr.mxu0 0.0
  %3557 = vmatpush1.msra.mxu0 0.0
  %3558 = vmatprep.subr.mxu0 0.0
  %3559 = vmatpush1.msra.mxu0 0.0
  %3560 = vmatprep.subr.mxu0 0.0
  %3561 = vmatpush1.msra.mxu0 0.0
  %3562 = vmatprep.subr.mxu0 0.0
  %3563 = vmatpush1.msra.mxu0 0.0
  %3564 = vmatprep.subr.mxu0 0.0
  %3565 = vmatpush1.msra.mxu0 0.0
  %3566 = vmatprep.subr.mxu0 0.0
  %3567 = vmatpush1.msra.mxu0 0.0
  %3568 = vmatprep.subr.mxu0 0.0
  %3569 = vmatpush1.msra.mxu0 0.0
  %3570 = vmatprep.subr.mxu0 0.0
  %3571 = vmatpush1.msra.mxu0 0.0
  %3572 = vmatprep.subr.mxu0 0.0
  %3573 = vmatpush1.msra.mxu0 0.0
  %3574 = vmatprep.subr.mxu0 0.0
  %3575 = vmatpush1.msra.mxu0 0.0
  %3576 = vmatprep.subr.mxu0 0.0
  %3577 = vmatpush1.msra.mxu0 0.0
  %3578 = vmatprep.mubr.f32.mxu0 0.0
  %3579 = vmatmul.mubr.f32.gmra.mrb[0].mxu0 %v3491
  %v3580 = vpop.f32.mrb[0].mxu0
  %v3581 = vadd.f32 0.0, %v3580
  %v3582 = vpop.f32.mrb[0].mxu0
  %3583 = vmatprep.mubr.f32.mxu0 0.0
  %3584 = vmatmul.mubr.f32.gmra.mrb[0].mxu0 %v3494
  %v3585 = vpop.f32.mrb[0].mxu0
  %v3586 = vadd.f32 0.0, %v3585
  %v3587 = vpop.f32.mrb[0].mxu0
  %3588 = vmatprep.mubr.f32.mxu0 0.0
  %3589 = vmatmul.mubr.f32.gmra.mrb[0].mxu0 %v3497
  %v3590 = vpop.f32.mrb[0].mxu0
  %v3591 = vadd.f32 0.0, %v3590
  %v3592 = vpop.f32.mrb[0].mxu0
  %3593 = vmatprep.mubr.f32.mxu0 0.0
  %3594 = vmatmul.mubr.f32.gmra.mrb[0].mxu0 %v3500
  %v3595 = vpop.f32.mrb[0].mxu0
  %v3596 = vadd.f32 0.0, %v3595
  %v3597 = vpop.f32.mrb[0].mxu0
  %3598 = vmatprep.mubr.f32.mxu0 0.0
  %3599 = vmatmul.mubr.f32.gmra.mrb[0].mxu0 %v3503
  %v3600 = vpop.f32.mrb[0].mxu0
  %v3601 = vadd.f32 0.0, %v3600
  %v3602 = vpop.f32.mrb[0].mxu0
  %3603 = vmatprep.mubr.f32.mxu0 0.0
  %3604 = vmatmul.mubr.f32.gmra.mrb[0].mxu0 %v3506
  %v3605 = vpop.f32.mrb[0].mxu0
  %v3606 = vadd.f32 0.0, %v3605
  %v3607 = vpop.f32.mrb[0].mxu0
  %3608 = vmatprep.mubr.f32.mxu0 0.0
  %3609 = vmatmul.mubr.f32.gmra.mrb[0].mxu0 %v3509
  %v3610 = vpop.f32.mrb[0].mxu0
  %v3611 = vadd.f32 0.0, %v3610
  %v3612 = vpop.f32.mrb[0].mxu0
  %3613 = vmatprep.mubr.f32.mxu0 0.0
  %3614 = vmatmul.mubr.f32.gmra.mrb[0].mxu0 %v3512
  %v3615 = vpop.f32.mrb[0].mxu0
  %v3616 = vadd.f32 0.0, %v3615
  %v3617 = vpop.f32.mrb[0].mxu0
  %3618 = vdwg.mxu0
  %v3619 = vadd.f32 %v3482, %v3581
  %v3620 = vadd.f32 %v3483, %v3586
  %v3621 = vadd.f32 %v3484, %v3591
  %v3622 = vadd.f32 %v3485, %v3596
  %v3623 = vadd.f32 %v3486, %v3601
  %v3624 = vadd.f32 %v3487, %v3606
  %v3625 = vadd.f32 %v3488, %v3611
  %v3626 = vadd.f32 %v3489, %v3616
  %v3627 = vmax.f32 %v3619, 0.0
  %v3628 = vmax.f32 %v3620, 0.0
  %v3629 = vmax.f32 %v3621, 0.0
  %v3630 = vmax.f32 %v3622, 0.0
  %v3631 = vmax.f32 %v3623, 0.0
  %v3632 = vmax.f32 %v3624, 0.0
  %v3633 = vmax.f32 %v3625, 0.0
  %v3634 = vmax.f32 %v3626, 0.0
  %v3635 = vld [vmem:[#allocation2 + $0x200] sm:$0xff]
  %v3636 = vld [vmem:[#allocation2 + $0x208] sm:$0xff]
  %v3637 = vld [vmem:[#allocation2 + $0x210] sm:$0xff]
  %v3638 = vld [vmem:[#allocation2 + $0x218] sm:$0xff]
  %v3639 = vld [vmem:[#allocation2 + $0x220] sm:$0xff]
  %v3640 = vld [vmem:[#allocation2 + $0x228] sm:$0xff]
  %v3641 = vld [vmem:[#allocation2 + $0x230] sm:$0xff]
  %v3642 = vld [vmem:[#allocation2 + $0x238] sm:$0xff]
  %v3644 = vsel %vm2051, %v3627, 0
  %v3647 = vsel %vm2051, %v3628, 0
  %v3650 = vsel %vm2051, %v3629, 0
  %v3653 = vsel %vm2051, %v3630, 0
  %v3656 = vsel %vm2051, %v3631, 0
  %v3659 = vsel %vm2051, %v3632, 0
  %v3662 = vsel %vm2051, %v3633, 0
  %v3665 = vsel %vm2051, %v3634, 0
  %3667 = vmatprep.subr.mxu0 0.0
  %3668 = vmatpush1.msra.mxu0 %v2428
  %3669 = vmatprep.subr.mxu0 0.0
  %3670 = vmatpush1.msra.mxu0 %v2429
  %3671 = vmatprep.subr.mxu0 0.0
  %3672 = vmatpush1.msra.mxu0 %v2430
  %3673 = vmatprep.subr.mxu0 0.0
  %3674 = vmatpush1.msra.mxu0 %v2431
  %3675 = vmatprep.subr.mxu0 0.0
  %3676 = vmatpush1.msra.mxu0 0.0
  %3677 = vmatprep.subr.mxu0 0.0
  %3678 = vmatpush1.msra.mxu0 0.0
  %3679 = vmatprep.subr.mxu0 0.0
  %3680 = vmatpush1.msra.mxu0 0.0
  %3681 = vmatprep.subr.mxu0 0.0
  %3682 = vmatpush1.msra.mxu0 0.0
  %3683 = vmatprep.subr.mxu0 0.0
  %3684 = vmatpush1.msra.mxu0 0.0
  %3685 = vmatprep.subr.mxu0 0.0
  %3686 = vmatpush1.msra.mxu0 0.0
  %3687 = vmatprep.subr.mxu0 0.0
  %3688 = vmatpush1.msra.mxu0 0.0
  %3689 = vmatprep.subr.mxu0 0.0
  %3690 = vmatpush1.msra.mxu0 0.0
  %3691 = vmatprep.subr.mxu0 0.0
  %3692 = vmatpush1.msra.mxu0 0.0
  %3693 = vmatprep.subr.mxu0 0.0
  %3694 = vmatpush1.msra.mxu0 0.0
  %3695 = vmatprep.subr.mxu0 0.0
  %3696 = vmatpush1.msra.mxu0 0.0
  %3697 = vmatprep.subr.mxu0 0.0
  %3698 = vmatpush1.msra.mxu0 0.0
  %3699 = vmatprep.subr.mxu0 0.0
  %3700 = vmatpush1.msra.mxu0 0.0
  %3701 = vmatprep.subr.mxu0 0.0
  %3702 = vmatpush1.msra.mxu0 0.0
  %3703 = vmatprep.subr.mxu0 0.0
  %3704 = vmatpush1.msra.mxu0 0.0
  %3705 = vmatprep.subr.mxu0 0.0
  %3706 = vmatpush1.msra.mxu0 0.0
  %3707 = vmatprep.subr.mxu0 0.0
  %3708 = vmatpush1.msra.mxu0 0.0
  %3709 = vmatprep.subr.mxu0 0.0
  %3710 = vmatpush1.msra.mxu0 0.0
  %3711 = vmatprep.subr.mxu0 0.0
  %3712 = vmatpush1.msra.mxu0 0.0
  %3713 = vmatprep.subr.mxu0 0.0
  %3714 = vmatpush1.msra.mxu0 0.0
  %3715 = vmatprep.subr.mxu0 0.0
  %3716 = vmatpush1.msra.mxu0 0.0
  %3717 = vmatprep.subr.mxu0 0.0
  %3718 = vmatpush1.msra.mxu0 0.0
  %3719 = vmatprep.subr.mxu0 0.0
  %3720 = vmatpush1.msra.mxu0 0.0
  %3721 = vmatprep.subr.mxu0 0.0
  %3722 = vmatpush1.msra.mxu0 0.0
  %3723 = vmatprep.subr.mxu0 0.0
  %3724 = vmatpush1.msra.mxu0 0.0
  %3725 = vmatprep.subr.mxu0 0.0
  %3726 = vmatpush1.msra.mxu0 0.0
  %3727 = vmatprep.subr.mxu0 0.0
  %3728 = vmatpush1.msra.mxu0 0.0
  %3729 = vmatprep.subr.mxu0 0.0
  %3730 = vmatpush1.msra.mxu0 0.0
  %3731 = vmatprep.mubr.f32.mxu0 0.0
  %3732 = vmatmul.mubr.f32.gmra.mrb[0].mxu0 %v3644
  %v3733 = vpop.f32.mrb[0].mxu0
  %v3734 = vadd.f32 0.0, %v3733
  %v3735 = vpop.f32.mrb[0].mxu0
  %3736 = vmatprep.mubr.f32.mxu0 0.0
  %3737 = vmatmul.mubr.f32.gmra.mrb[0].mxu0 %v3647
  %v3738 = vpop.f32.mrb[0].mxu0
  %v3739 = vadd.f32 0.0, %v3738
  %v3740 = vpop.f32.mrb[0].mxu0
  %3741 = vmatprep.mubr.f32.mxu0 0.0
  %3742 = vmatmul.mubr.f32.gmra.mrb[0].mxu0 %v3650
  %v3743 = vpop.f32.mrb[0].mxu0
  %v3744 = vadd.f32 0.0, %v3743
  %v3745 = vpop.f32.mrb[0].mxu0
  %3746 = vmatprep.mubr.f32.mxu0 0.0
  %3747 = vmatmul.mubr.f32.gmra.mrb[0].mxu0 %v3653
  %v3748 = vpop.f32.mrb[0].mxu0
  %v3749 = vadd.f32 0.0, %v3748
  %v3750 = vpop.f32.mrb[0].mxu0
  %3751 = vmatprep.mubr.f32.mxu0 0.0
  %3752 = vmatmul.mubr.f32.gmra.mrb[0].mxu0 %v3656
  %v3753 = vpop.f32.mrb[0].mxu0
  %v3754 = vadd.f32 0.0, %v3753
  %v3755 = vpop.f32.mrb[0].mxu0
  %3756 = vmatprep.mubr.f32.mxu0 0.0
  %3757 = vmatmul.mubr.f32.gmra.mrb[0].mxu0 %v3659
  %v3758 = vpop.f32.mrb[0].mxu0
  %v3759 = vadd.f32 0.0, %v3758
  %v3760 = vpop.f32.mrb[0].mxu0
  %3761 = vmatprep.mubr.f32.mxu0 0.0
  %3762 = vmatmul.mubr.f32.gmra.mrb[0].mxu0 %v3662
  %v3763 = vpop.f32.mrb[0].mxu0
  %v3764 = vadd.f32 0.0, %v3763
  %v3765 = vpop.f32.mrb[0].mxu0
  %3766 = vmatprep.mubr.f32.mxu0 0.0
  %3767 = vmatmul.mubr.f32.gmra.mrb[0].mxu0 %v3665
  %v3768 = vpop.f32.mrb[0].mxu0
  %v3769 = vadd.f32 0.0, %v3768
  %v3770 = vpop.f32.mrb[0].mxu0
  %3771 = vdwg.mxu0
  %v3772 = vadd.f32 %v3635, %v3734
  %v3773 = vadd.f32 %v3636, %v3739
  %v3774 = vadd.f32 %v3637, %v3744
  %v3775 = vadd.f32 %v3638, %v3749
  %v3776 = vadd.f32 %v3639, %v3754
  %v3777 = vadd.f32 %v3640, %v3759
  %v3778 = vadd.f32 %v3641, %v3764
  %v3779 = vadd.f32 %v3642, %v3769
  %v3780 = vmax.f32 %v3772, 0.0
  %v3781 = vmax.f32 %v3773, 0.0
  %v3782 = vmax.f32 %v3774, 0.0
  %v3783 = vmax.f32 %v3775, 0.0
  %v3784 = vmax.f32 %v3776, 0.0
  %v3785 = vmax.f32 %v3777, 0.0
  %v3786 = vmax.f32 %v3778, 0.0
  %v3787 = vmax.f32 %v3779, 0.0
  %v3788 = vld [vmem:[#allocation2 + $0x240] sm:$0xff]
  %v3789 = vld [vmem:[#allocation2 + $0x248] sm:$0xff]
  %v3790 = vld [vmem:[#allocation2 + $0x250] sm:$0xff]
  %v3791 = vld [vmem:[#allocation2 + $0x258] sm:$0xff]
  %v3792 = vld [vmem:[#allocation2 + $0x260] sm:$0xff]
  %v3793 = vld [vmem:[#allocation2 + $0x268] sm:$0xff]
  %v3794 = vld [vmem:[#allocation2 + $0x270] sm:$0xff]
  %v3795 = vld [vmem:[#allocation2 + $0x278] sm:$0xff]
  %v3797 = vsel %vm2051, %v3780, 0
  %v3800 = vsel %vm2051, %v3781, 0
  %v3803 = vsel %vm2051, %v3782, 0
  %v3806 = vsel %vm2051, %v3783, 0
  %v3809 = vsel %vm2051, %v3784, 0
  %v3812 = vsel %vm2051, %v3785, 0
  %v3815 = vsel %vm2051, %v3786, 0
  %v3818 = vsel %vm2051, %v3787, 0
  %3820 = vmatprep.subr.mxu0 0.0
  %3821 = vmatpush1.msra.mxu0 %v2428
  %3822 = vmatprep.subr.mxu0 0.0
  %3823 = vmatpush1.msra.mxu0 %v2429
  %3824 = vmatprep.subr.mxu0 0.0
  %3825 = vmatpush1.msra.mxu0 %v2430
  %3826 = vmatprep.subr.mxu0 0.0
  %3827 = vmatpush1.msra.mxu0 %v2431
  %3828 = vmatprep.subr.mxu0 0.0
  %3829 = vmatpush1.msra.mxu0 0.0
  %3830 = vmatprep.subr.mxu0 0.0
  %3831 = vmatpush1.msra.mxu0 0.0
  %3832 = vmatprep.subr.mxu0 0.0
  %3833 = vmatpush1.msra.mxu0 0.0
  %3834 = vmatprep.subr.mxu0 0.0
  %3835 = vmatpush1.msra.mxu0 0.0
  %3836 = vmatprep.subr.mxu0 0.0
  %3837 = vmatpush1.msra.mxu0 0.0
  %3838 = vmatprep.subr.mxu0 0.0
  %3839 = vmatpush1.msra.mxu0 0.0
  %3840 = vmatprep.subr.mxu0 0.0
  %3841 = vmatpush1.msra.mxu0 0.0
  %3842 = vmatprep.subr.mxu0 0.0
  %3843 = vmatpush1.msra.mxu0 0.0
  %3844 = vmatprep.subr.mxu0 0.0
  %3845 = vmatpush1.msra.mxu0 0.0
  %3846 = vmatprep.subr.mxu0 0.0
  %3847 = vmatpush1.msra.mxu0 0.0
  %3848 = vmatprep.subr.mxu0 0.0
  %3849 = vmatpush1.msra.mxu0 0.0
  %3850 = vmatprep.subr.mxu0 0.0
  %3851 = vmatpush1.msra.mxu0 0.0
  %3852 = vmatprep.subr.mxu0 0.0
  %3853 = vmatpush1.msra.mxu0 0.0
  %3854 = vmatprep.subr.mxu0 0.0
  %3855 = vmatpush1.msra.mxu0 0.0
  %3856 = vmatprep.subr.mxu0 0.0
  %3857 = vmatpush1.msra.mxu0 0.0
  %3858 = vmatprep.subr.mxu0 0.0
  %3859 = vmatpush1.msra.mxu0 0.0
  %3860 = vmatprep.subr.mxu0 0.0
  %3861 = vmatpush1.msra.mxu0 0.0
  %3862 = vmatprep.subr.mxu0 0.0
  %3863 = vmatpush1.msra.mxu0 0.0
  %3864 = vmatprep.subr.mxu0 0.0
  %3865 = vmatpush1.msra.mxu0 0.0
  %3866 = vmatprep.subr.mxu0 0.0
  %3867 = vmatpush1.msra.mxu0 0.0
  %3868 = vmatprep.subr.mxu0 0.0
  %3869 = vmatpush1.msra.mxu0 0.0
  %3870 = vmatprep.subr.mxu0 0.0
  %3871 = vmatpush1.msra.mxu0 0.0
  %3872 = vmatprep.subr.mxu0 0.0
  %3873 = vmatpush1.msra.mxu0 0.0
  %3874 = vmatprep.subr.mxu0 0.0
  %3875 = vmatpush1.msra.mxu0 0.0
  %3876 = vmatprep.subr.mxu0 0.0
  %3877 = vmatpush1.msra.mxu0 0.0
  %3878 = vmatprep.subr.mxu0 0.0
  %3879 = vmatpush1.msra.mxu0 0.0
  %3880 = vmatprep.subr.mxu0 0.0
  %3881 = vmatpush1.msra.mxu0 0.0
  %3882 = vmatprep.subr.mxu0 0.0
  %3883 = vmatpush1.msra.mxu0 0.0
  %3884 = vmatprep.mubr.f32.mxu0 0.0
  %3885 = vmatmul.mubr.f32.gmra.mrb[0].mxu0 %v3797
  %v3886 = vpop.f32.mrb[0].mxu0
  %v3887 = vadd.f32 0.0, %v3886
  %v3888 = vpop.f32.mrb[0].mxu0
  %3889 = vmatprep.mubr.f32.mxu0 0.0
  %3890 = vmatmul.mubr.f32.gmra.mrb[0].mxu0 %v3800
  %v3891 = vpop.f32.mrb[0].mxu0
  %v3892 = vadd.f32 0.0, %v3891
  %v3893 = vpop.f32.mrb[0].mxu0
  %3894 = vmatprep.mubr.f32.mxu0 0.0
  %3895 = vmatmul.mubr.f32.gmra.mrb[0].mxu0 %v3803
  %v3896 = vpop.f32.mrb[0].mxu0
  %v3897 = vadd.f32 0.0, %v3896
  %v3898 = vpop.f32.mrb[0].mxu0
  %3899 = vmatprep.mubr.f32.mxu0 0.0
  %3900 = vmatmul.mubr.f32.gmra.mrb[0].mxu0 %v3806
  %v3901 = vpop.f32.mrb[0].mxu0
  %v3902 = vadd.f32 0.0, %v3901
  %v3903 = vpop.f32.mrb[0].mxu0
  %3904 = vmatprep.mubr.f32.mxu0 0.0
  %3905 = vmatmul.mubr.f32.gmra.mrb[0].mxu0 %v3809
  %v3906 = vpop.f32.mrb[0].mxu0
  %v3907 = vadd.f32 0.0, %v3906
  %v3908 = vpop.f32.mrb[0].mxu0
  %3909 = vmatprep.mubr.f32.mxu0 0.0
  %3910 = vmatmul.mubr.f32.gmra.mrb[0].mxu0 %v3812
  %v3911 = vpop.f32.mrb[0].mxu0
  %v3912 = vadd.f32 0.0, %v3911
  %v3913 = vpop.f32.mrb[0].mxu0
  %3914 = vmatprep.mubr.f32.mxu0 0.0
  %3915 = vmatmul.mubr.f32.gmra.mrb[0].mxu0 %v3815
  %v3916 = vpop.f32.mrb[0].mxu0
  %v3917 = vadd.f32 0.0, %v3916
  %v3918 = vpop.f32.mrb[0].mxu0
  %3919 = vmatprep.mubr.f32.mxu0 0.0
  %3920 = vmatmul.mubr.f32.gmra.mrb[0].mxu0 %v3818
  %v3921 = vpop.f32.mrb[0].mxu0
  %v3922 = vadd.f32 0.0, %v3921
  %v3923 = vpop.f32.mrb[0].mxu0
  %3924 = vdwg.mxu0
  %v3925 = vadd.f32 %v3788, %v3887
  %v3926 = vadd.f32 %v3789, %v3892
  %v3927 = vadd.f32 %v3790, %v3897
  %v3928 = vadd.f32 %v3791, %v3902
  %v3929 = vadd.f32 %v3792, %v3907
  %v3930 = vadd.f32 %v3793, %v3912
  %v3931 = vadd.f32 %v3794, %v3917
  %v3932 = vadd.f32 %v3795, %v3922
  %v3933 = vmax.f32 %v3925, 0.0
  %v3934 = vmax.f32 %v3926, 0.0
  %v3935 = vmax.f32 %v3927, 0.0
  %v3936 = vmax.f32 %v3928, 0.0
  %v3937 = vmax.f32 %v3929, 0.0
  %v3938 = vmax.f32 %v3930, 0.0
  %v3939 = vmax.f32 %v3931, 0.0
  %v3940 = vmax.f32 %v3932, 0.0
  %v3941 = vld [vmem:[#allocation2 + $0x280] sm:$0xff]
  %v3942 = vld [vmem:[#allocation2 + $0x288] sm:$0xff]
  %v3943 = vld [vmem:[#allocation2 + $0x290] sm:$0xff]
  %v3944 = vld [vmem:[#allocation2 + $0x298] sm:$0xff]
  %v3945 = vld [vmem:[#allocation2 + $0x2a0] sm:$0xff]
  %v3946 = vld [vmem:[#allocation2 + $0x2a8] sm:$0xff]
  %v3947 = vld [vmem:[#allocation2 + $0x2b0] sm:$0xff]
  %v3948 = vld [vmem:[#allocation2 + $0x2b8] sm:$0xff]
  %v3950 = vsel %vm2051, %v3933, 0
  %v3953 = vsel %vm2051, %v3934, 0
  %v3956 = vsel %vm2051, %v3935, 0
  %v3959 = vsel %vm2051, %v3936, 0
  %v3962 = vsel %vm2051, %v3937, 0
  %v3965 = vsel %vm2051, %v3938, 0
  %v3968 = vsel %vm2051, %v3939, 0
  %v3971 = vsel %vm2051, %v3940, 0
  %3973 = vmatprep.subr.mxu0 0.0
  %3974 = vmatpush1.msra.mxu0 %v2428
  %3975 = vmatprep.subr.mxu0 0.0
  %3976 = vmatpush1.msra.mxu0 %v2429
  %3977 = vmatprep.subr.mxu0 0.0
  %3978 = vmatpush1.msra.mxu0 %v2430
  %3979 = vmatprep.subr.mxu0 0.0
  %3980 = vmatpush1.msra.mxu0 %v2431
  %3981 = vmatprep.subr.mxu0 0.0
  %3982 = vmatpush1.msra.mxu0 0.0
  %3983 = vmatprep.subr.mxu0 0.0
  %3984 = vmatpush1.msra.mxu0 0.0
  %3985 = vmatprep.subr.mxu0 0.0
  %3986 = vmatpush1.msra.mxu0 0.0
  %3987 = vmatprep.subr.mxu0 0.0
  %3988 = vmatpush1.msra.mxu0 0.0
  %3989 = vmatprep.subr.mxu0 0.0
  %3990 = vmatpush1.msra.mxu0 0.0
  %3991 = vmatprep.subr.mxu0 0.0
  %3992 = vmatpush1.msra.mxu0 0.0
  %3993 = vmatprep.subr.mxu0 0.0
  %3994 = vmatpush1.msra.mxu0 0.0
  %3995 = vmatprep.subr.mxu0 0.0
  %3996 = vmatpush1.msra.mxu0 0.0
  %3997 = vmatprep.subr.mxu0 0.0
  %3998 = vmatpush1.msra.mxu0 0.0
  %3999 = vmatprep.subr.mxu0 0.0
  %4000 = vmatpush1.msra.mxu0 0.0
  %4001 = vmatprep.subr.mxu0 0.0
  %4002 = vmatpush1.msra.mxu0 0.0
  %4003 = vmatprep.subr.mxu0 0.0
  %4004 = vmatpush1.msra.mxu0 0.0
  %4005 = vmatprep.subr.mxu0 0.0
  %4006 = vmatpush1.msra.mxu0 0.0
  %4007 = vmatprep.subr.mxu0 0.0
  %4008 = vmatpush1.msra.mxu0 0.0
  %4009 = vmatprep.subr.mxu0 0.0
  %4010 = vmatpush1.msra.mxu0 0.0
  %4011 = vmatprep.subr.mxu0 0.0
  %4012 = vmatpush1.msra.mxu0 0.0
  %4013 = vmatprep.subr.mxu0 0.0
  %4014 = vmatpush1.msra.mxu0 0.0
  %4015 = vmatprep.subr.mxu0 0.0
  %4016 = vmatpush1.msra.mxu0 0.0
  %4017 = vmatprep.subr.mxu0 0.0
  %4018 = vmatpush1.msra.mxu0 0.0
  %4019 = vmatprep.subr.mxu0 0.0
  %4020 = vmatpush1.msra.mxu0 0.0
  %4021 = vmatprep.subr.mxu0 0.0
  %4022 = vmatpush1.msra.mxu0 0.0
  %4023 = vmatprep.subr.mxu0 0.0
  %4024 = vmatpush1.msra.mxu0 0.0
  %4025 = vmatprep.subr.mxu0 0.0
  %4026 = vmatpush1.msra.mxu0 0.0
  %4027 = vmatprep.subr.mxu0 0.0
  %4028 = vmatpush1.msra.mxu0 0.0
  %4029 = vmatprep.subr.mxu0 0.0
  %4030 = vmatpush1.msra.mxu0 0.0
  %4031 = vmatprep.subr.mxu0 0.0
  %4032 = vmatpush1.msra.mxu0 0.0
  %4033 = vmatprep.subr.mxu0 0.0
  %4034 = vmatpush1.msra.mxu0 0.0
  %4035 = vmatprep.subr.mxu0 0.0
  %4036 = vmatpush1.msra.mxu0 0.0
  %4037 = vmatprep.mubr.f32.mxu0 0.0
  %4038 = vmatmul.mubr.f32.gmra.mrb[0].mxu0 %v3950
  %v4039 = vpop.f32.mrb[0].mxu0
  %v4040 = vadd.f32 0.0, %v4039
  %v4041 = vpop.f32.mrb[0].mxu0
  %4042 = vmatprep.mubr.f32.mxu0 0.0
  %4043 = vmatmul.mubr.f32.gmra.mrb[0].mxu0 %v3953
  %v4044 = vpop.f32.mrb[0].mxu0
  %v4045 = vadd.f32 0.0, %v4044
  %v4046 = vpop.f32.mrb[0].mxu0
  %4047 = vmatprep.mubr.f32.mxu0 0.0
  %4048 = vmatmul.mubr.f32.gmra.mrb[0].mxu0 %v3956
  %v4049 = vpop.f32.mrb[0].mxu0
  %v4050 = vadd.f32 0.0, %v4049
  %v4051 = vpop.f32.mrb[0].mxu0
  %4052 = vmatprep.mubr.f32.mxu0 0.0
  %4053 = vmatmul.mubr.f32.gmra.mrb[0].mxu0 %v3959
  %v4054 = vpop.f32.mrb[0].mxu0
  %v4055 = vadd.f32 0.0, %v4054
  %v4056 = vpop.f32.mrb[0].mxu0
  %4057 = vmatprep.mubr.f32.mxu0 0.0
  %4058 = vmatmul.mubr.f32.gmra.mrb[0].mxu0 %v3962
  %v4059 = vpop.f32.mrb[0].mxu0
  %v4060 = vadd.f32 0.0, %v4059
  %v4061 = vpop.f32.mrb[0].mxu0
  %4062 = vmatprep.mubr.f32.mxu0 0.0
  %4063 = vmatmul.mubr.f32.gmra.mrb[0].mxu0 %v3965
  %v4064 = vpop.f32.mrb[0].mxu0
  %v4065 = vadd.f32 0.0, %v4064
  %v4066 = vpop.f32.mrb[0].mxu0
  %4067 = vmatprep.mubr.f32.mxu0 0.0
  %4068 = vmatmul.mubr.f32.gmra.mrb[0].mxu0 %v3968
  %v4069 = vpop.f32.mrb[0].mxu0
  %v4070 = vadd.f32 0.0, %v4069
  %v4071 = vpop.f32.mrb[0].mxu0
  %4072 = vmatprep.mubr.f32.mxu0 0.0
  %4073 = vmatmul.mubr.f32.gmra.mrb[0].mxu0 %v3971
  %v4074 = vpop.f32.mrb[0].mxu0
  %v4075 = vadd.f32 0.0, %v4074
  %v4076 = vpop.f32.mrb[0].mxu0
  %4077 = vdwg.mxu0
  %v4078 = vadd.f32 %v3941, %v4040
  %v4079 = vadd.f32 %v3942, %v4045
  %v4080 = vadd.f32 %v3943, %v4050
  %v4081 = vadd.f32 %v3944, %v4055
  %v4082 = vadd.f32 %v3945, %v4060
  %v4083 = vadd.f32 %v3946, %v4065
  %v4084 = vadd.f32 %v3947, %v4070
  %v4085 = vadd.f32 %v3948, %v4075
  %v4086 = vmax.f32 %v4078, 0.0
  %v4087 = vmax.f32 %v4079, 0.0
  %v4088 = vmax.f32 %v4080, 0.0
  %v4089 = vmax.f32 %v4081, 0.0
  %v4090 = vmax.f32 %v4082, 0.0
  %v4091 = vmax.f32 %v4083, 0.0
  %v4092 = vmax.f32 %v4084, 0.0
  %v4093 = vmax.f32 %v4085, 0.0
  %v4094 = vld [vmem:[#allocation2 + $0x2c0] sm:$0xff]
  %v4095 = vld [vmem:[#allocation2 + $0x2c8] sm:$0xff]
  %v4096 = vld [vmem:[#allocation2 + $0x2d0] sm:$0xff]
  %v4097 = vld [vmem:[#allocation2 + $0x2d8] sm:$0xff]
  %v4098 = vld [vmem:[#allocation2 + $0x2e0] sm:$0xff]
  %v4099 = vld [vmem:[#allocation2 + $0x2e8] sm:$0xff]
  %v4100 = vld [vmem:[#allocation2 + $0x2f0] sm:$0xff]
  %v4101 = vld [vmem:[#allocation2 + $0x2f8] sm:$0xff]
  %v4103 = vsel %vm2051, %v4086, 0
  %v4106 = vsel %vm2051, %v4087, 0
  %v4109 = vsel %vm2051, %v4088, 0
  %v4112 = vsel %vm2051, %v4089, 0
  %v4115 = vsel %vm2051, %v4090, 0
  %v4118 = vsel %vm2051, %v4091, 0
  %v4121 = vsel %vm2051, %v4092, 0
  %v4124 = vsel %vm2051, %v4093, 0
  %4126 = vmatprep.subr.mxu0 0.0
  %4127 = vmatpush1.msra.mxu0 %v2428
  %4128 = vmatprep.subr.mxu0 0.0
  %4129 = vmatpush1.msra.mxu0 %v2429
  %4130 = vmatprep.subr.mxu0 0.0
  %4131 = vmatpush1.msra.mxu0 %v2430
  %4132 = vmatprep.subr.mxu0 0.0
  %4133 = vmatpush1.msra.mxu0 %v2431
  %4134 = vmatprep.subr.mxu0 0.0
  %4135 = vmatpush1.msra.mxu0 0.0
  %4136 = vmatprep.subr.mxu0 0.0
  %4137 = vmatpush1.msra.mxu0 0.0
  %4138 = vmatprep.subr.mxu0 0.0
  %4139 = vmatpush1.msra.mxu0 0.0
  %4140 = vmatprep.subr.mxu0 0.0
  %4141 = vmatpush1.msra.mxu0 0.0
  %4142 = vmatprep.subr.mxu0 0.0
  %4143 = vmatpush1.msra.mxu0 0.0
  %4144 = vmatprep.subr.mxu0 0.0
  %4145 = vmatpush1.msra.mxu0 0.0
  %4146 = vmatprep.subr.mxu0 0.0
  %4147 = vmatpush1.msra.mxu0 0.0
  %4148 = vmatprep.subr.mxu0 0.0
  %4149 = vmatpush1.msra.mxu0 0.0
  %4150 = vmatprep.subr.mxu0 0.0
  %4151 = vmatpush1.msra.mxu0 0.0
  %4152 = vmatprep.subr.mxu0 0.0
  %4153 = vmatpush1.msra.mxu0 0.0
  %4154 = vmatprep.subr.mxu0 0.0
  %4155 = vmatpush1.msra.mxu0 0.0
  %4156 = vmatprep.subr.mxu0 0.0
  %4157 = vmatpush1.msra.mxu0 0.0
  %4158 = vmatprep.subr.mxu0 0.0
  %4159 = vmatpush1.msra.mxu0 0.0
  %4160 = vmatprep.subr.mxu0 0.0
  %4161 = vmatpush1.msra.mxu0 0.0
  %4162 = vmatprep.subr.mxu0 0.0
  %4163 = vmatpush1.msra.mxu0 0.0
  %4164 = vmatprep.subr.mxu0 0.0
  %4165 = vmatpush1.msra.mxu0 0.0
  %4166 = vmatprep.subr.mxu0 0.0
  %4167 = vmatpush1.msra.mxu0 0.0
  %4168 = vmatprep.subr.mxu0 0.0
  %4169 = vmatpush1.msra.mxu0 0.0
  %4170 = vmatprep.subr.mxu0 0.0
  %4171 = vmatpush1.msra.mxu0 0.0
  %4172 = vmatprep.subr.mxu0 0.0
  %4173 = vmatpush1.msra.mxu0 0.0
  %4174 = vmatprep.subr.mxu0 0.0
  %4175 = vmatpush1.msra.mxu0 0.0
  %4176 = vmatprep.subr.mxu0 0.0
  %4177 = vmatpush1.msra.mxu0 0.0
  %4178 = vmatprep.subr.mxu0 0.0
  %4179 = vmatpush1.msra.mxu0 0.0
  %4180 = vmatprep.subr.mxu0 0.0
  %4181 = vmatpush1.msra.mxu0 0.0
  %4182 = vmatprep.subr.mxu0 0.0
  %4183 = vmatpush1.msra.mxu0 0.0
  %4184 = vmatprep.subr.mxu0 0.0
  %4185 = vmatpush1.msra.mxu0 0.0
  %4186 = vmatprep.subr.mxu0 0.0
  %4187 = vmatpush1.msra.mxu0 0.0
  %4188 = vmatprep.subr.mxu0 0.0
  %4189 = vmatpush1.msra.mxu0 0.0
  %4190 = vmatprep.mubr.f32.mxu0 0.0
  %4191 = vmatmul.mubr.f32.gmra.mrb[0].mxu0 %v4103
  %v4192 = vpop.f32.mrb[0].mxu0
  %v4193 = vadd.f32 0.0, %v4192
  %v4194 = vpop.f32.mrb[0].mxu0
  %4195 = vmatprep.mubr.f32.mxu0 0.0
  %4196 = vmatmul.mubr.f32.gmra.mrb[0].mxu0 %v4106
  %v4197 = vpop.f32.mrb[0].mxu0
  %v4198 = vadd.f32 0.0, %v4197
  %v4199 = vpop.f32.mrb[0].mxu0
  %4200 = vmatprep.mubr.f32.mxu0 0.0
  %4201 = vmatmul.mubr.f32.gmra.mrb[0].mxu0 %v4109
  %v4202 = vpop.f32.mrb[0].mxu0
  %v4203 = vadd.f32 0.0, %v4202
  %v4204 = vpop.f32.mrb[0].mxu0
  %4205 = vmatprep.mubr.f32.mxu0 0.0
  %4206 = vmatmul.mubr.f32.gmra.mrb[0].mxu0 %v4112
  %v4207 = vpop.f32.mrb[0].mxu0
  %v4208 = vadd.f32 0.0, %v4207
  %v4209 = vpop.f32.mrb[0].mxu0
  %4210 = vmatprep.mubr.f32.mxu0 0.0
  %4211 = vmatmul.mubr.f32.gmra.mrb[0].mxu0 %v4115
  %v4212 = vpop.f32.mrb[0].mxu0
  %v4213 = vadd.f32 0.0, %v4212
  %v4214 = vpop.f32.mrb[0].mxu0
  %4215 = vmatprep.mubr.f32.mxu0 0.0
  %4216 = vmatmul.mubr.f32.gmra.mrb[0].mxu0 %v4118
  %v4217 = vpop.f32.mrb[0].mxu0
  %v4218 = vadd.f32 0.0, %v4217
  %v4219 = vpop.f32.mrb[0].mxu0
  %4220 = vmatprep.mubr.f32.mxu0 0.0
  %4221 = vmatmul.mubr.f32.gmra.mrb[0].mxu0 %v4121
  %v4222 = vpop.f32.mrb[0].mxu0
  %v4223 = vadd.f32 0.0, %v4222
  %v4224 = vpop.f32.mrb[0].mxu0
  %4225 = vmatprep.mubr.f32.mxu0 0.0
  %4226 = vmatmul.mubr.f32.gmra.mrb[0].mxu0 %v4124
  %v4227 = vpop.f32.mrb[0].mxu0
  %v4228 = vadd.f32 0.0, %v4227
  %v4229 = vpop.f32.mrb[0].mxu0
  %4230 = vdwg.mxu0
  %v4231 = vadd.f32 %v4094, %v4193
  %v4232 = vadd.f32 %v4095, %v4198
  %v4233 = vadd.f32 %v4096, %v4203
  %v4234 = vadd.f32 %v4097, %v4208
  %v4235 = vadd.f32 %v4098, %v4213
  %v4236 = vadd.f32 %v4099, %v4218
  %v4237 = vadd.f32 %v4100, %v4223
  %v4238 = vadd.f32 %v4101, %v4228
  %v4239 = vmax.f32 %v4231, 0.0
  %v4240 = vmax.f32 %v4232, 0.0
  %v4241 = vmax.f32 %v4233, 0.0
  %v4242 = vmax.f32 %v4234, 0.0
  %v4243 = vmax.f32 %v4235, 0.0
  %v4244 = vmax.f32 %v4236, 0.0
  %v4245 = vmax.f32 %v4237, 0.0
  %v4246 = vmax.f32 %v4238, 0.0
  %v4247 = vld [vmem:[#allocation2 + $0x300] sm:$0xff]
  %v4248 = vld [vmem:[#allocation2 + $0x308] sm:$0xff]
  %v4249 = vld [vmem:[#allocation2 + $0x310] sm:$0xff]
  %v4250 = vld [vmem:[#allocation2 + $0x318] sm:$0xff]
  %v4251 = vld [vmem:[#allocation2 + $0x320] sm:$0xff]
  %v4252 = vld [vmem:[#allocation2 + $0x328] sm:$0xff]
  %v4253 = vld [vmem:[#allocation2 + $0x330] sm:$0xff]
  %v4254 = vld [vmem:[#allocation2 + $0x338] sm:$0xff]
  %v4256 = vsel %vm2051, %v4239, 0
  %v4259 = vsel %vm2051, %v4240, 0
  %v4262 = vsel %vm2051, %v4241, 0
  %v4265 = vsel %vm2051, %v4242, 0
  %v4268 = vsel %vm2051, %v4243, 0
  %v4271 = vsel %vm2051, %v4244, 0
  %v4274 = vsel %vm2051, %v4245, 0
  %v4277 = vsel %vm2051, %v4246, 0
  %4279 = vmatprep.subr.mxu0 0.0
  %4280 = vmatpush1.msra.mxu0 %v2428
  %4281 = vmatprep.subr.mxu0 0.0
  %4282 = vmatpush1.msra.mxu0 %v2429
  %4283 = vmatprep.subr.mxu0 0.0
  %4284 = vmatpush1.msra.mxu0 %v2430
  %4285 = vmatprep.subr.mxu0 0.0
  %4286 = vmatpush1.msra.mxu0 %v2431
  %4287 = vmatprep.subr.mxu0 0.0
  %4288 = vmatpush1.msra.mxu0 0.0
  %4289 = vmatprep.subr.mxu0 0.0
  %4290 = vmatpush1.msra.mxu0 0.0
  %4291 = vmatprep.subr.mxu0 0.0
  %4292 = vmatpush1.msra.mxu0 0.0
  %4293 = vmatprep.subr.mxu0 0.0
  %4294 = vmatpush1.msra.mxu0 0.0
  %4295 = vmatprep.subr.mxu0 0.0
  %4296 = vmatpush1.msra.mxu0 0.0
  %4297 = vmatprep.subr.mxu0 0.0
  %4298 = vmatpush1.msra.mxu0 0.0
  %4299 = vmatprep.subr.mxu0 0.0
  %4300 = vmatpush1.msra.mxu0 0.0
  %4301 = vmatprep.subr.mxu0 0.0
  %4302 = vmatpush1.msra.mxu0 0.0
  %4303 = vmatprep.subr.mxu0 0.0
  %4304 = vmatpush1.msra.mxu0 0.0
  %4305 = vmatprep.subr.mxu0 0.0
  %4306 = vmatpush1.msra.mxu0 0.0
  %4307 = vmatprep.subr.mxu0 0.0
  %4308 = vmatpush1.msra.mxu0 0.0
  %4309 = vmatprep.subr.mxu0 0.0
  %4310 = vmatpush1.msra.mxu0 0.0
  %4311 = vmatprep.subr.mxu0 0.0
  %4312 = vmatpush1.msra.mxu0 0.0
  %4313 = vmatprep.subr.mxu0 0.0
  %4314 = vmatpush1.msra.mxu0 0.0
  %4315 = vmatprep.subr.mxu0 0.0
  %4316 = vmatpush1.msra.mxu0 0.0
  %4317 = vmatprep.subr.mxu0 0.0
  %4318 = vmatpush1.msra.mxu0 0.0
  %4319 = vmatprep.subr.mxu0 0.0
  %4320 = vmatpush1.msra.mxu0 0.0
  %4321 = vmatprep.subr.mxu0 0.0
  %4322 = vmatpush1.msra.mxu0 0.0
  %4323 = vmatprep.subr.mxu0 0.0
  %4324 = vmatpush1.msra.mxu0 0.0
  %4325 = vmatprep.subr.mxu0 0.0
  %4326 = vmatpush1.msra.mxu0 0.0
  %4327 = vmatprep.subr.mxu0 0.0
  %4328 = vmatpush1.msra.mxu0 0.0
  %4329 = vmatprep.subr.mxu0 0.0
  %4330 = vmatpush1.msra.mxu0 0.0
  %4331 = vmatprep.subr.mxu0 0.0
  %4332 = vmatpush1.msra.mxu0 0.0
  %4333 = vmatprep.subr.mxu0 0.0
  %4334 = vmatpush1.msra.mxu0 0.0
  %4335 = vmatprep.subr.mxu0 0.0
  %4336 = vmatpush1.msra.mxu0 0.0
  %4337 = vmatprep.subr.mxu0 0.0
  %4338 = vmatpush1.msra.mxu0 0.0
  %4339 = vmatprep.subr.mxu0 0.0
  %4340 = vmatpush1.msra.mxu0 0.0
  %4341 = vmatprep.subr.mxu0 0.0
  %4342 = vmatpush1.msra.mxu0 0.0
  %4343 = vmatprep.mubr.f32.mxu0 0.0
  %4344 = vmatmul.mubr.f32.gmra.mrb[0].mxu0 %v4256
  %v4345 = vpop.f32.mrb[0].mxu0
  %v4346 = vadd.f32 0.0, %v4345
  %v4347 = vpop.f32.mrb[0].mxu0
  %4348 = vmatprep.mubr.f32.mxu0 0.0
  %4349 = vmatmul.mubr.f32.gmra.mrb[0].mxu0 %v4259
  %v4350 = vpop.f32.mrb[0].mxu0
  %v4351 = vadd.f32 0.0, %v4350
  %v4352 = vpop.f32.mrb[0].mxu0
  %4353 = vmatprep.mubr.f32.mxu0 0.0
  %4354 = vmatmul.mubr.f32.gmra.mrb[0].mxu0 %v4262
  %v4355 = vpop.f32.mrb[0].mxu0
  %v4356 = vadd.f32 0.0, %v4355
  %v4357 = vpop.f32.mrb[0].mxu0
  %4358 = vmatprep.mubr.f32.mxu0 0.0
  %4359 = vmatmul.mubr.f32.gmra.mrb[0].mxu0 %v4265
  %v4360 = vpop.f32.mrb[0].mxu0
  %v4361 = vadd.f32 0.0, %v4360
  %v4362 = vpop.f32.mrb[0].mxu0
  %4363 = vmatprep.mubr.f32.mxu0 0.0
  %4364 = vmatmul.mubr.f32.gmra.mrb[0].mxu0 %v4268
  %v4365 = vpop.f32.mrb[0].mxu0
  %v4366 = vadd.f32 0.0, %v4365
  %v4367 = vpop.f32.mrb[0].mxu0
  %4368 = vmatprep.mubr.f32.mxu0 0.0
  %4369 = vmatmul.mubr.f32.gmra.mrb[0].mxu0 %v4271
  %v4370 = vpop.f32.mrb[0].mxu0
  %v4371 = vadd.f32 0.0, %v4370
  %v4372 = vpop.f32.mrb[0].mxu0
  %4373 = vmatprep.mubr.f32.mxu0 0.0
  %4374 = vmatmul.mubr.f32.gmra.mrb[0].mxu0 %v4274
  %v4375 = vpop.f32.mrb[0].mxu0
  %v4376 = vadd.f32 0.0, %v4375
  %v4377 = vpop.f32.mrb[0].mxu0
  %4378 = vmatprep.mubr.f32.mxu0 0.0
  %4379 = vmatmul.mubr.f32.gmra.mrb[0].mxu0 %v4277
  %v4380 = vpop.f32.mrb[0].mxu0
  %v4381 = vadd.f32 0.0, %v4380
  %v4382 = vpop.f32.mrb[0].mxu0
  %4383 = vdwg.mxu0
  %v4384 = vadd.f32 %v4247, %v4346
  %v4385 = vadd.f32 %v4248, %v4351
  %v4386 = vadd.f32 %v4249, %v4356
  %v4387 = vadd.f32 %v4250, %v4361
  %v4388 = vadd.f32 %v4251, %v4366
  %v4389 = vadd.f32 %v4252, %v4371
  %v4390 = vadd.f32 %v4253, %v4376
  %v4391 = vadd.f32 %v4254, %v4381
  %v4392 = vmax.f32 %v4384, 0.0
  %v4393 = vmax.f32 %v4385, 0.0
  %v4394 = vmax.f32 %v4386, 0.0
  %v4395 = vmax.f32 %v4387, 0.0
  %v4396 = vmax.f32 %v4388, 0.0
  %v4397 = vmax.f32 %v4389, 0.0
  %v4398 = vmax.f32 %v4390, 0.0
  %v4399 = vmax.f32 %v4391, 0.0
  %v4400 = vld [vmem:[#allocation2 + $0x340] sm:$0xff]
  %v4401 = vld [vmem:[#allocation2 + $0x348] sm:$0xff]
  %v4402 = vld [vmem:[#allocation2 + $0x350] sm:$0xff]
  %v4403 = vld [vmem:[#allocation2 + $0x358] sm:$0xff]
  %v4404 = vld [vmem:[#allocation2 + $0x360] sm:$0xff]
  %v4405 = vld [vmem:[#allocation2 + $0x368] sm:$0xff]
  %v4406 = vld [vmem:[#allocation2 + $0x370] sm:$0xff]
  %v4407 = vld [vmem:[#allocation2 + $0x378] sm:$0xff]
  %v4409 = vsel %vm2051, %v4392, 0
  %v4412 = vsel %vm2051, %v4393, 0
  %v4415 = vsel %vm2051, %v4394, 0
  %v4418 = vsel %vm2051, %v4395, 0
  %v4421 = vsel %vm2051, %v4396, 0
  %v4424 = vsel %vm2051, %v4397, 0
  %v4427 = vsel %vm2051, %v4398, 0
  %v4430 = vsel %vm2051, %v4399, 0
  %4432 = vmatprep.subr.mxu0 0.0
  %4433 = vmatpush1.msra.mxu0 %v2428
  %4434 = vmatprep.subr.mxu0 0.0
  %4435 = vmatpush1.msra.mxu0 %v2429
  %4436 = vmatprep.subr.mxu0 0.0
  %4437 = vmatpush1.msra.mxu0 %v2430
  %4438 = vmatprep.subr.mxu0 0.0
  %4439 = vmatpush1.msra.mxu0 %v2431
  %4440 = vmatprep.subr.mxu0 0.0
  %4441 = vmatpush1.msra.mxu0 0.0
  %4442 = vmatprep.subr.mxu0 0.0
  %4443 = vmatpush1.msra.mxu0 0.0
  %4444 = vmatprep.subr.mxu0 0.0
  %4445 = vmatpush1.msra.mxu0 0.0
  %4446 = vmatprep.subr.mxu0 0.0
  %4447 = vmatpush1.msra.mxu0 0.0
  %4448 = vmatprep.subr.mxu0 0.0
  %4449 = vmatpush1.msra.mxu0 0.0
  %4450 = vmatprep.subr.mxu0 0.0
  %4451 = vmatpush1.msra.mxu0 0.0
  %4452 = vmatprep.subr.mxu0 0.0
  %4453 = vmatpush1.msra.mxu0 0.0
  %4454 = vmatprep.subr.mxu0 0.0
  %4455 = vmatpush1.msra.mxu0 0.0
  %4456 = vmatprep.subr.mxu0 0.0
  %4457 = vmatpush1.msra.mxu0 0.0
  %4458 = vmatprep.subr.mxu0 0.0
  %4459 = vmatpush1.msra.mxu0 0.0
  %4460 = vmatprep.subr.mxu0 0.0
  %4461 = vmatpush1.msra.mxu0 0.0
  %4462 = vmatprep.subr.mxu0 0.0
  %4463 = vmatpush1.msra.mxu0 0.0
  %4464 = vmatprep.subr.mxu0 0.0
  %4465 = vmatpush1.msra.mxu0 0.0
  %4466 = vmatprep.subr.mxu0 0.0
  %4467 = vmatpush1.msra.mxu0 0.0
  %4468 = vmatprep.subr.mxu0 0.0
  %4469 = vmatpush1.msra.mxu0 0.0
  %4470 = vmatprep.subr.mxu0 0.0
  %4471 = vmatpush1.msra.mxu0 0.0
  %4472 = vmatprep.subr.mxu0 0.0
  %4473 = vmatpush1.msra.mxu0 0.0
  %4474 = vmatprep.subr.mxu0 0.0
  %4475 = vmatpush1.msra.mxu0 0.0
  %4476 = vmatprep.subr.mxu0 0.0
  %4477 = vmatpush1.msra.mxu0 0.0
  %4478 = vmatprep.subr.mxu0 0.0
  %4479 = vmatpush1.msra.mxu0 0.0
  %4480 = vmatprep.subr.mxu0 0.0
  %4481 = vmatpush1.msra.mxu0 0.0
  %4482 = vmatprep.subr.mxu0 0.0
  %4483 = vmatpush1.msra.mxu0 0.0
  %4484 = vmatprep.subr.mxu0 0.0
  %4485 = vmatpush1.msra.mxu0 0.0
  %4486 = vmatprep.subr.mxu0 0.0
  %4487 = vmatpush1.msra.mxu0 0.0
  %4488 = vmatprep.subr.mxu0 0.0
  %4489 = vmatpush1.msra.mxu0 0.0
  %4490 = vmatprep.subr.mxu0 0.0
  %4491 = vmatpush1.msra.mxu0 0.0
  %4492 = vmatprep.subr.mxu0 0.0
  %4493 = vmatpush1.msra.mxu0 0.0
  %4494 = vmatprep.subr.mxu0 0.0
  %4495 = vmatpush1.msra.mxu0 0.0
  %4496 = vmatprep.mubr.f32.mxu0 0.0
  %4497 = vmatmul.mubr.f32.gmra.mrb[0].mxu0 %v4409
  %v4498 = vpop.f32.mrb[0].mxu0
  %v4499 = vadd.f32 0.0, %v4498
  %v4500 = vpop.f32.mrb[0].mxu0
  %4501 = vmatprep.mubr.f32.mxu0 0.0
  %4502 = vmatmul.mubr.f32.gmra.mrb[0].mxu0 %v4412
  %v4503 = vpop.f32.mrb[0].mxu0
  %v4504 = vadd.f32 0.0, %v4503
  %v4505 = vpop.f32.mrb[0].mxu0
  %4506 = vmatprep.mubr.f32.mxu0 0.0
  %4507 = vmatmul.mubr.f32.gmra.mrb[0].mxu0 %v4415
  %v4508 = vpop.f32.mrb[0].mxu0
  %v4509 = vadd.f32 0.0, %v4508
  %v4510 = vpop.f32.mrb[0].mxu0
  %4511 = vmatprep.mubr.f32.mxu0 0.0
  %4512 = vmatmul.mubr.f32.gmra.mrb[0].mxu0 %v4418
  %v4513 = vpop.f32.mrb[0].mxu0
  %v4514 = vadd.f32 0.0, %v4513
  %v4515 = vpop.f32.mrb[0].mxu0
  %4516 = vmatprep.mubr.f32.mxu0 0.0
  %4517 = vmatmul.mubr.f32.gmra.mrb[0].mxu0 %v4421
  %v4518 = vpop.f32.mrb[0].mxu0
  %v4519 = vadd.f32 0.0, %v4518
  %v4520 = vpop.f32.mrb[0].mxu0
  %4521 = vmatprep.mubr.f32.mxu0 0.0
  %4522 = vmatmul.mubr.f32.gmra.mrb[0].mxu0 %v4424
  %v4523 = vpop.f32.mrb[0].mxu0
  %v4524 = vadd.f32 0.0, %v4523
  %v4525 = vpop.f32.mrb[0].mxu0
  %4526 = vmatprep.mubr.f32.mxu0 0.0
  %4527 = vmatmul.mubr.f32.gmra.mrb[0].mxu0 %v4427
  %v4528 = vpop.f32.mrb[0].mxu0
  %v4529 = vadd.f32 0.0, %v4528
  %v4530 = vpop.f32.mrb[0].mxu0
  %4531 = vmatprep.mubr.f32.mxu0 0.0
  %4532 = vmatmul.mubr.f32.gmra.mrb[0].mxu0 %v4430
  %v4533 = vpop.f32.mrb[0].mxu0
  %v4534 = vadd.f32 0.0, %v4533
  %v4535 = vpop.f32.mrb[0].mxu0
  %4536 = vdwg.mxu0
  %v4537 = vadd.f32 %v4400, %v4499
  %v4538 = vadd.f32 %v4401, %v4504
  %v4539 = vadd.f32 %v4402, %v4509
  %v4540 = vadd.f32 %v4403, %v4514
  %v4541 = vadd.f32 %v4404, %v4519
  %v4542 = vadd.f32 %v4405, %v4524
  %v4543 = vadd.f32 %v4406, %v4529
  %v4544 = vadd.f32 %v4407, %v4534
  %v4545 = vmax.f32 %v4537, 0.0
  %v4546 = vmax.f32 %v4538, 0.0
  %v4547 = vmax.f32 %v4539, 0.0
  %v4548 = vmax.f32 %v4540, 0.0
  %v4549 = vmax.f32 %v4541, 0.0
  %v4550 = vmax.f32 %v4542, 0.0
  %v4551 = vmax.f32 %v4543, 0.0
  %v4552 = vmax.f32 %v4544, 0.0
  %v4553 = vld [vmem:[#allocation2 + $0x380] sm:$0xff]
  %v4554 = vld [vmem:[#allocation2 + $0x388] sm:$0xff]
  %v4555 = vld [vmem:[#allocation2 + $0x390] sm:$0xff]
  %v4556 = vld [vmem:[#allocation2 + $0x398] sm:$0xff]
  %v4557 = vld [vmem:[#allocation2 + $0x3a0] sm:$0xff]
  %v4558 = vld [vmem:[#allocation2 + $0x3a8] sm:$0xff]
  %v4559 = vld [vmem:[#allocation2 + $0x3b0] sm:$0xff]
  %v4560 = vld [vmem:[#allocation2 + $0x3b8] sm:$0xff]
  %v4562 = vsel %vm2051, %v4545, 0
  %v4565 = vsel %vm2051, %v4546, 0
  %v4568 = vsel %vm2051, %v4547, 0
  %v4571 = vsel %vm2051, %v4548, 0
  %v4574 = vsel %vm2051, %v4549, 0
  %v4577 = vsel %vm2051, %v4550, 0
  %v4580 = vsel %vm2051, %v4551, 0
  %v4583 = vsel %vm2051, %v4552, 0
  %4585 = vmatprep.subr.mxu0 0.0
  %4586 = vmatpush1.msra.mxu0 %v2428
  %4587 = vmatprep.subr.mxu0 0.0
  %4588 = vmatpush1.msra.mxu0 %v2429
  %4589 = vmatprep.subr.mxu0 0.0
  %4590 = vmatpush1.msra.mxu0 %v2430
  %4591 = vmatprep.subr.mxu0 0.0
  %4592 = vmatpush1.msra.mxu0 %v2431
  %4593 = vmatprep.subr.mxu0 0.0
  %4594 = vmatpush1.msra.mxu0 0.0
  %4595 = vmatprep.subr.mxu0 0.0
  %4596 = vmatpush1.msra.mxu0 0.0
  %4597 = vmatprep.subr.mxu0 0.0
  %4598 = vmatpush1.msra.mxu0 0.0
  %4599 = vmatprep.subr.mxu0 0.0
  %4600 = vmatpush1.msra.mxu0 0.0
  %4601 = vmatprep.subr.mxu0 0.0
  %4602 = vmatpush1.msra.mxu0 0.0
  %4603 = vmatprep.subr.mxu0 0.0
  %4604 = vmatpush1.msra.mxu0 0.0
  %4605 = vmatprep.subr.mxu0 0.0
  %4606 = vmatpush1.msra.mxu0 0.0
  %4607 = vmatprep.subr.mxu0 0.0
  %4608 = vmatpush1.msra.mxu0 0.0
  %4609 = vmatprep.subr.mxu0 0.0
  %4610 = vmatpush1.msra.mxu0 0.0
  %4611 = vmatprep.subr.mxu0 0.0
  %4612 = vmatpush1.msra.mxu0 0.0
  %4613 = vmatprep.subr.mxu0 0.0
  %4614 = vmatpush1.msra.mxu0 0.0
  %4615 = vmatprep.subr.mxu0 0.0
  %4616 = vmatpush1.msra.mxu0 0.0
  %4617 = vmatprep.subr.mxu0 0.0
  %4618 = vmatpush1.msra.mxu0 0.0
  %4619 = vmatprep.subr.mxu0 0.0
  %4620 = vmatpush1.msra.mxu0 0.0
  %4621 = vmatprep.subr.mxu0 0.0
  %4622 = vmatpush1.msra.mxu0 0.0
  %4623 = vmatprep.subr.mxu0 0.0
  %4624 = vmatpush1.msra.mxu0 0.0
  %4625 = vmatprep.subr.mxu0 0.0
  %4626 = vmatpush1.msra.mxu0 0.0
  %4627 = vmatprep.subr.mxu0 0.0
  %4628 = vmatpush1.msra.mxu0 0.0
  %4629 = vmatprep.subr.mxu0 0.0
  %4630 = vmatpush1.msra.mxu0 0.0
  %4631 = vmatprep.subr.mxu0 0.0
  %4632 = vmatpush1.msra.mxu0 0.0
  %4633 = vmatprep.subr.mxu0 0.0
  %4634 = vmatpush1.msra.mxu0 0.0
  %4635 = vmatprep.subr.mxu0 0.0
  %4636 = vmatpush1.msra.mxu0 0.0
  %4637 = vmatprep.subr.mxu0 0.0
  %4638 = vmatpush1.msra.mxu0 0.0
  %4639 = vmatprep.subr.mxu0 0.0
  %4640 = vmatpush1.msra.mxu0 0.0
  %4641 = vmatprep.subr.mxu0 0.0
  %4642 = vmatpush1.msra.mxu0 0.0
  %4643 = vmatprep.subr.mxu0 0.0
  %4644 = vmatpush1.msra.mxu0 0.0
  %4645 = vmatprep.subr.mxu0 0.0
  %4646 = vmatpush1.msra.mxu0 0.0
  %4647 = vmatprep.subr.mxu0 0.0
  %4648 = vmatpush1.msra.mxu0 0.0
  %4649 = vmatprep.mubr.f32.mxu0 0.0
  %4650 = vmatmul.mubr.f32.gmra.mrb[0].mxu0 %v4562
  %v4651 = vpop.f32.mrb[0].mxu0
  %v4652 = vadd.f32 0.0, %v4651
  %v4653 = vpop.f32.mrb[0].mxu0
  %4654 = vmatprep.mubr.f32.mxu0 0.0
  %4655 = vmatmul.mubr.f32.gmra.mrb[0].mxu0 %v4565
  %v4656 = vpop.f32.mrb[0].mxu0
  %v4657 = vadd.f32 0.0, %v4656
  %v4658 = vpop.f32.mrb[0].mxu0
  %4659 = vmatprep.mubr.f32.mxu0 0.0
  %4660 = vmatmul.mubr.f32.gmra.mrb[0].mxu0 %v4568
  %v4661 = vpop.f32.mrb[0].mxu0
  %v4662 = vadd.f32 0.0, %v4661
  %v4663 = vpop.f32.mrb[0].mxu0
  %4664 = vmatprep.mubr.f32.mxu0 0.0
  %4665 = vmatmul.mubr.f32.gmra.mrb[0].mxu0 %v4571
  %v4666 = vpop.f32.mrb[0].mxu0
  %v4667 = vadd.f32 0.0, %v4666
  %v4668 = vpop.f32.mrb[0].mxu0
  %4669 = vmatprep.mubr.f32.mxu0 0.0
  %4670 = vmatmul.mubr.f32.gmra.mrb[0].mxu0 %v4574
  %v4671 = vpop.f32.mrb[0].mxu0
  %v4672 = vadd.f32 0.0, %v4671
  %v4673 = vpop.f32.mrb[0].mxu0
  %4674 = vmatprep.mubr.f32.mxu0 0.0
  %4675 = vmatmul.mubr.f32.gmra.mrb[0].mxu0 %v4577
  %v4676 = vpop.f32.mrb[0].mxu0
  %v4677 = vadd.f32 0.0, %v4676
  %v4678 = vpop.f32.mrb[0].mxu0
  %4679 = vmatprep.mubr.f32.mxu0 0.0
  %4680 = vmatmul.mubr.f32.gmra.mrb[0].mxu0 %v4580
  %v4681 = vpop.f32.mrb[0].mxu0
  %v4682 = vadd.f32 0.0, %v4681
  %v4683 = vpop.f32.mrb[0].mxu0
  %4684 = vmatprep.mubr.f32.mxu0 0.0
  %4685 = vmatmul.mubr.f32.gmra.mrb[0].mxu0 %v4583
  %v4686 = vpop.f32.mrb[0].mxu0
  %v4687 = vadd.f32 0.0, %v4686
  %v4688 = vpop.f32.mrb[0].mxu0
  %4689 = vdwg.mxu0
  %v4690 = vadd.f32 %v4553, %v4652
  %v4691 = vadd.f32 %v4554, %v4657
  %v4692 = vadd.f32 %v4555, %v4662
  %v4693 = vadd.f32 %v4556, %v4667
  %v4694 = vadd.f32 %v4557, %v4672
  %v4695 = vadd.f32 %v4558, %v4677
  %v4696 = vadd.f32 %v4559, %v4682
  %v4697 = vadd.f32 %v4560, %v4687
  %v4698 = vmax.f32 %v4690, 0.0
  %v4699 = vmax.f32 %v4691, 0.0
  %v4700 = vmax.f32 %v4692, 0.0
  %v4701 = vmax.f32 %v4693, 0.0
  %v4702 = vmax.f32 %v4694, 0.0
  %v4703 = vmax.f32 %v4695, 0.0
  %v4704 = vmax.f32 %v4696, 0.0
  %v4705 = vmax.f32 %v4697, 0.0
  %v4706 = vld [vmem:[#allocation2 + $0x3c0] sm:$0xff]
  %v4707 = vld [vmem:[#allocation2 + $0x3c8] sm:$0xff]
  %v4708 = vld [vmem:[#allocation2 + $0x3d0] sm:$0xff]
  %v4709 = vld [vmem:[#allocation2 + $0x3d8] sm:$0xff]
  %v4710 = vld [vmem:[#allocation2 + $0x3e0] sm:$0xff]
  %v4711 = vld [vmem:[#allocation2 + $0x3e8] sm:$0xff]
  %v4712 = vld [vmem:[#allocation2 + $0x3f0] sm:$0xff]
  %v4713 = vld [vmem:[#allocation2 + $0x3f8] sm:$0xff]
  %v4715 = vsel %vm2051, %v4698, 0
  %v4718 = vsel %vm2051, %v4699, 0
  %v4721 = vsel %vm2051, %v4700, 0
  %v4724 = vsel %vm2051, %v4701, 0
  %v4727 = vsel %vm2051, %v4702, 0
  %v4730 = vsel %vm2051, %v4703, 0
  %v4733 = vsel %vm2051, %v4704, 0
  %v4736 = vsel %vm2051, %v4705, 0
  %4738 = vmatprep.subr.mxu0 0.0
  %4739 = vmatpush1.msra.mxu0 %v2428
  %4740 = vmatprep.subr.mxu0 0.0
  %4741 = vmatpush1.msra.mxu0 %v2429
  %4742 = vmatprep.subr.mxu0 0.0
  %4743 = vmatpush1.msra.mxu0 %v2430
  %4744 = vmatprep.subr.mxu0 0.0
  %4745 = vmatpush1.msra.mxu0 %v2431
  %4746 = vmatprep.subr.mxu0 0.0
  %4747 = vmatpush1.msra.mxu0 0.0
  %4748 = vmatprep.subr.mxu0 0.0
  %4749 = vmatpush1.msra.mxu0 0.0
  %4750 = vmatprep.subr.mxu0 0.0
  %4751 = vmatpush1.msra.mxu0 0.0
  %4752 = vmatprep.subr.mxu0 0.0
  %4753 = vmatpush1.msra.mxu0 0.0
  %4754 = vmatprep.subr.mxu0 0.0
  %4755 = vmatpush1.msra.mxu0 0.0
  %4756 = vmatprep.subr.mxu0 0.0
  %4757 = vmatpush1.msra.mxu0 0.0
  %4758 = vmatprep.subr.mxu0 0.0
  %4759 = vmatpush1.msra.mxu0 0.0
  %4760 = vmatprep.subr.mxu0 0.0
  %4761 = vmatpush1.msra.mxu0 0.0
  %4762 = vmatprep.subr.mxu0 0.0
  %4763 = vmatpush1.msra.mxu0 0.0
  %4764 = vmatprep.subr.mxu0 0.0
  %4765 = vmatpush1.msra.mxu0 0.0
  %4766 = vmatprep.subr.mxu0 0.0
  %4767 = vmatpush1.msra.mxu0 0.0
  %4768 = vmatprep.subr.mxu0 0.0
  %4769 = vmatpush1.msra.mxu0 0.0
  %4770 = vmatprep.subr.mxu0 0.0
  %4771 = vmatpush1.msra.mxu0 0.0
  %4772 = vmatprep.subr.mxu0 0.0
  %4773 = vmatpush1.msra.mxu0 0.0
  %4774 = vmatprep.subr.mxu0 0.0
  %4775 = vmatpush1.msra.mxu0 0.0
  %4776 = vmatprep.subr.mxu0 0.0
  %4777 = vmatpush1.msra.mxu0 0.0
  %4778 = vmatprep.subr.mxu0 0.0
  %4779 = vmatpush1.msra.mxu0 0.0
  %4780 = vmatprep.subr.mxu0 0.0
  %4781 = vmatpush1.msra.mxu0 0.0
  %4782 = vmatprep.subr.mxu0 0.0
  %4783 = vmatpush1.msra.mxu0 0.0
  %4784 = vmatprep.subr.mxu0 0.0
  %4785 = vmatpush1.msra.mxu0 0.0
  %4786 = vmatprep.subr.mxu0 0.0
  %4787 = vmatpush1.msra.mxu0 0.0
  %4788 = vmatprep.subr.mxu0 0.0
  %4789 = vmatpush1.msra.mxu0 0.0
  %4790 = vmatprep.subr.mxu0 0.0
  %4791 = vmatpush1.msra.mxu0 0.0
  %4792 = vmatprep.subr.mxu0 0.0
  %4793 = vmatpush1.msra.mxu0 0.0
  %4794 = vmatprep.subr.mxu0 0.0
  %4795 = vmatpush1.msra.mxu0 0.0
  %4796 = vmatprep.subr.mxu0 0.0
  %4797 = vmatpush1.msra.mxu0 0.0
  %4798 = vmatprep.subr.mxu0 0.0
  %4799 = vmatpush1.msra.mxu0 0.0
  %4800 = vmatprep.subr.mxu0 0.0
  %4801 = vmatpush1.msra.mxu0 0.0
  %4802 = vmatprep.mubr.f32.mxu0 0.0
  %4803 = vmatmul.mubr.f32.gmra.mrb[0].mxu0 %v4715
  %v4804 = vpop.f32.mrb[0].mxu0
  %v4805 = vadd.f32 0.0, %v4804
  %v4806 = vpop.f32.mrb[0].mxu0
  %4807 = vmatprep.mubr.f32.mxu0 0.0
  %4808 = vmatmul.mubr.f32.gmra.mrb[0].mxu0 %v4718
  %v4809 = vpop.f32.mrb[0].mxu0
  %v4810 = vadd.f32 0.0, %v4809
  %v4811 = vpop.f32.mrb[0].mxu0
  %4812 = vmatprep.mubr.f32.mxu0 0.0
  %4813 = vmatmul.mubr.f32.gmra.mrb[0].mxu0 %v4721
  %v4814 = vpop.f32.mrb[0].mxu0
  %v4815 = vadd.f32 0.0, %v4814
  %v4816 = vpop.f32.mrb[0].mxu0
  %4817 = vmatprep.mubr.f32.mxu0 0.0
  %4818 = vmatmul.mubr.f32.gmra.mrb[0].mxu0 %v4724
  %v4819 = vpop.f32.mrb[0].mxu0
  %v4820 = vadd.f32 0.0, %v4819
  %v4821 = vpop.f32.mrb[0].mxu0
  %4822 = vmatprep.mubr.f32.mxu0 0.0
  %4823 = vmatmul.mubr.f32.gmra.mrb[0].mxu0 %v4727
  %v4824 = vpop.f32.mrb[0].mxu0
  %v4825 = vadd.f32 0.0, %v4824
  %v4826 = vpop.f32.mrb[0].mxu0
  %4827 = vmatprep.mubr.f32.mxu0 0.0
  %4828 = vmatmul.mubr.f32.gmra.mrb[0].mxu0 %v4730
  %v4829 = vpop.f32.mrb[0].mxu0
  %v4830 = vadd.f32 0.0, %v4829
  %v4831 = vpop.f32.mrb[0].mxu0
  %4832 = vmatprep.mubr.f32.mxu0 0.0
  %4833 = vmatmul.mubr.f32.gmra.mrb[0].mxu0 %v4733
  %v4834 = vpop.f32.mrb[0].mxu0
  %v4835 = vadd.f32 0.0, %v4834
  %v4836 = vpop.f32.mrb[0].mxu0
  %4837 = vmatprep.mubr.f32.mxu0 0.0
  %4838 = vmatmul.mubr.f32.gmra.mrb[0].mxu0 %v4736
  %v4839 = vpop.f32.mrb[0].mxu0
  %v4840 = vadd.f32 0.0, %v4839
  %v4841 = vpop.f32.mrb[0].mxu0
  %4842 = vdwg.mxu0
  %v4843 = vadd.f32 %v4706, %v4805
  %v4844 = vadd.f32 %v4707, %v4810
  %v4845 = vadd.f32 %v4708, %v4815
  %v4846 = vadd.f32 %v4709, %v4820
  %v4847 = vadd.f32 %v4710, %v4825
  %v4848 = vadd.f32 %v4711, %v4830
  %v4849 = vadd.f32 %v4712, %v4835
  %v4850 = vadd.f32 %v4713, %v4840
  %v4851 = vmax.f32 %v4843, 0.0
  %v4852 = vmax.f32 %v4844, 0.0
  %v4853 = vmax.f32 %v4845, 0.0
  %v4854 = vmax.f32 %v4846, 0.0
  %v4855 = vmax.f32 %v4847, 0.0
  %v4856 = vmax.f32 %v4848, 0.0
  %v4857 = vmax.f32 %v4849, 0.0
  %v4858 = vmax.f32 %v4850, 0.0
  %v4859 = vld [vmem:[#allocation2 + $0x400] sm:$0xff]
  %v4860 = vld [vmem:[#allocation2 + $0x408] sm:$0xff]
  %v4861 = vld [vmem:[#allocation2 + $0x410] sm:$0xff]
  %v4862 = vld [vmem:[#allocation2 + $0x418] sm:$0xff]
  %v4863 = vld [vmem:[#allocation2 + $0x420] sm:$0xff]
  %v4864 = vld [vmem:[#allocation2 + $0x428] sm:$0xff]
  %v4865 = vld [vmem:[#allocation2 + $0x430] sm:$0xff]
  %v4866 = vld [vmem:[#allocation2 + $0x438] sm:$0xff]
  %v4868 = vsel %vm2051, %v4851, 0
  %v4871 = vsel %vm2051, %v4852, 0
  %v4874 = vsel %vm2051, %v4853, 0
  %v4877 = vsel %vm2051, %v4854, 0
  %v4880 = vsel %vm2051, %v4855, 0
  %v4883 = vsel %vm2051, %v4856, 0
  %v4886 = vsel %vm2051, %v4857, 0
  %v4889 = vsel %vm2051, %v4858, 0
  %4891 = vmatprep.subr.mxu0 0.0
  %4892 = vmatpush1.msra.mxu0 %v2428
  %4893 = vmatprep.subr.mxu0 0.0
  %4894 = vmatpush1.msra.mxu0 %v2429
  %4895 = vmatprep.subr.mxu0 0.0
  %4896 = vmatpush1.msra.mxu0 %v2430
  %4897 = vmatprep.subr.mxu0 0.0
  %4898 = vmatpush1.msra.mxu0 %v2431
  %4899 = vmatprep.subr.mxu0 0.0
  %4900 = vmatpush1.msra.mxu0 0.0
  %4901 = vmatprep.subr.mxu0 0.0
  %4902 = vmatpush1.msra.mxu0 0.0
  %4903 = vmatprep.subr.mxu0 0.0
  %4904 = vmatpush1.msra.mxu0 0.0
  %4905 = vmatprep.subr.mxu0 0.0
  %4906 = vmatpush1.msra.mxu0 0.0
  %4907 = vmatprep.subr.mxu0 0.0
  %4908 = vmatpush1.msra.mxu0 0.0
  %4909 = vmatprep.subr.mxu0 0.0
  %4910 = vmatpush1.msra.mxu0 0.0
  %4911 = vmatprep.subr.mxu0 0.0
  %4912 = vmatpush1.msra.mxu0 0.0
  %4913 = vmatprep.subr.mxu0 0.0
  %4914 = vmatpush1.msra.mxu0 0.0
  %4915 = vmatprep.subr.mxu0 0.0
  %4916 = vmatpush1.msra.mxu0 0.0
  %4917 = vmatprep.subr.mxu0 0.0
  %4918 = vmatpush1.msra.mxu0 0.0
  %4919 = vmatprep.subr.mxu0 0.0
  %4920 = vmatpush1.msra.mxu0 0.0
  %4921 = vmatprep.subr.mxu0 0.0
  %4922 = vmatpush1.msra.mxu0 0.0
  %4923 = vmatprep.subr.mxu0 0.0
  %4924 = vmatpush1.msra.mxu0 0.0
  %4925 = vmatprep.subr.mxu0 0.0
  %4926 = vmatpush1.msra.mxu0 0.0
  %4927 = vmatprep.subr.mxu0 0.0
  %4928 = vmatpush1.msra.mxu0 0.0
  %4929 = vmatprep.subr.mxu0 0.0
  %4930 = vmatpush1.msra.mxu0 0.0
  %4931 = vmatprep.subr.mxu0 0.0
  %4932 = vmatpush1.msra.mxu0 0.0
  %4933 = vmatprep.subr.mxu0 0.0
  %4934 = vmatpush1.msra.mxu0 0.0
  %4935 = vmatprep.subr.mxu0 0.0
  %4936 = vmatpush1.msra.mxu0 0.0
  %4937 = vmatprep.subr.mxu0 0.0
  %4938 = vmatpush1.msra.mxu0 0.0
  %4939 = vmatprep.subr.mxu0 0.0
  %4940 = vmatpush1.msra.mxu0 0.0
  %4941 = vmatprep.subr.mxu0 0.0
  %4942 = vmatpush1.msra.mxu0 0.0
  %4943 = vmatprep.subr.mxu0 0.0
  %4944 = vmatpush1.msra.mxu0 0.0
  %4945 = vmatprep.subr.mxu0 0.0
  %4946 = vmatpush1.msra.mxu0 0.0
  %4947 = vmatprep.subr.mxu0 0.0
  %4948 = vmatpush1.msra.mxu0 0.0
  %4949 = vmatprep.subr.mxu0 0.0
  %4950 = vmatpush1.msra.mxu0 0.0
  %4951 = vmatprep.subr.mxu0 0.0
  %4952 = vmatpush1.msra.mxu0 0.0
  %4953 = vmatprep.subr.mxu0 0.0
  %4954 = vmatpush1.msra.mxu0 0.0
  %4955 = vmatprep.mubr.f32.mxu0 0.0
  %4956 = vmatmul.mubr.f32.gmra.mrb[0].mxu0 %v4868
  %v4957 = vpop.f32.mrb[0].mxu0
  %v4958 = vadd.f32 0.0, %v4957
  %v4959 = vpop.f32.mrb[0].mxu0
  %4960 = vmatprep.mubr.f32.mxu0 0.0
  %4961 = vmatmul.mubr.f32.gmra.mrb[0].mxu0 %v4871
  %v4962 = vpop.f32.mrb[0].mxu0
  %v4963 = vadd.f32 0.0, %v4962
  %v4964 = vpop.f32.mrb[0].mxu0
  %4965 = vmatprep.mubr.f32.mxu0 0.0
  %4966 = vmatmul.mubr.f32.gmra.mrb[0].mxu0 %v4874
  %v4967 = vpop.f32.mrb[0].mxu0
  %v4968 = vadd.f32 0.0, %v4967
  %v4969 = vpop.f32.mrb[0].mxu0
  %4970 = vmatprep.mubr.f32.mxu0 0.0
  %4971 = vmatmul.mubr.f32.gmra.mrb[0].mxu0 %v4877
  %v4972 = vpop.f32.mrb[0].mxu0
  %v4973 = vadd.f32 0.0, %v4972
  %v4974 = vpop.f32.mrb[0].mxu0
  %4975 = vmatprep.mubr.f32.mxu0 0.0
  %4976 = vmatmul.mubr.f32.gmra.mrb[0].mxu0 %v4880
  %v4977 = vpop.f32.mrb[0].mxu0
  %v4978 = vadd.f32 0.0, %v4977
  %v4979 = vpop.f32.mrb[0].mxu0
  %4980 = vmatprep.mubr.f32.mxu0 0.0
  %4981 = vmatmul.mubr.f32.gmra.mrb[0].mxu0 %v4883
  %v4982 = vpop.f32.mrb[0].mxu0
  %v4983 = vadd.f32 0.0, %v4982
  %v4984 = vpop.f32.mrb[0].mxu0
  %4985 = vmatprep.mubr.f32.mxu0 0.0
  %4986 = vmatmul.mubr.f32.gmra.mrb[0].mxu0 %v4886
  %v4987 = vpop.f32.mrb[0].mxu0
  %v4988 = vadd.f32 0.0, %v4987
  %v4989 = vpop.f32.mrb[0].mxu0
  %4990 = vmatprep.mubr.f32.mxu0 0.0
  %4991 = vmatmul.mubr.f32.gmra.mrb[0].mxu0 %v4889
  %v4992 = vpop.f32.mrb[0].mxu0
  %v4993 = vadd.f32 0.0, %v4992
  %v4994 = vpop.f32.mrb[0].mxu0
  %4995 = vdwg.mxu0
  %v4996 = vadd.f32 %v4859, %v4958
  %v4997 = vadd.f32 %v4860, %v4963
  %v4998 = vadd.f32 %v4861, %v4968
  %v4999 = vadd.f32 %v4862, %v4973
  %v5000 = vadd.f32 %v4863, %v4978
  %v5001 = vadd.f32 %v4864, %v4983
  %v5002 = vadd.f32 %v4865, %v4988
  %v5003 = vadd.f32 %v4866, %v4993
  %v5004 = vmax.f32 %v4996, 0.0
  %v5005 = vmax.f32 %v4997, 0.0
  %v5006 = vmax.f32 %v4998, 0.0
  %v5007 = vmax.f32 %v4999, 0.0
  %v5008 = vmax.f32 %v5000, 0.0
  %v5009 = vmax.f32 %v5001, 0.0
  %v5010 = vmax.f32 %v5002, 0.0
  %v5011 = vmax.f32 %v5003, 0.0
  %v5012 = vld [vmem:[#allocation2 + $0x440] sm:$0xff]
  %v5013 = vld [vmem:[#allocation2 + $0x448] sm:$0xff]
  %v5014 = vld [vmem:[#allocation2 + $0x450] sm:$0xff]
  %v5015 = vld [vmem:[#allocation2 + $0x458] sm:$0xff]
  %v5016 = vld [vmem:[#allocation2 + $0x460] sm:$0xff]
  %v5017 = vld [vmem:[#allocation2 + $0x468] sm:$0xff]
  %v5018 = vld [vmem:[#allocation2 + $0x470] sm:$0xff]
  %v5019 = vld [vmem:[#allocation2 + $0x478] sm:$0xff]
  %v5021 = vsel %vm2051, %v5004, 0
  %v5024 = vsel %vm2051, %v5005, 0
  %v5027 = vsel %vm2051, %v5006, 0
  %v5030 = vsel %vm2051, %v5007, 0
  %v5033 = vsel %vm2051, %v5008, 0
  %v5036 = vsel %vm2051, %v5009, 0
  %v5039 = vsel %vm2051, %v5010, 0
  %v5042 = vsel %vm2051, %v5011, 0
  %5044 = vmatprep.subr.mxu0 0.0
  %5045 = vmatpush1.msra.mxu0 %v2428
  %5046 = vmatprep.subr.mxu0 0.0
  %5047 = vmatpush1.msra.mxu0 %v2429
  %5048 = vmatprep.subr.mxu0 0.0
  %5049 = vmatpush1.msra.mxu0 %v2430
  %5050 = vmatprep.subr.mxu0 0.0
  %5051 = vmatpush1.msra.mxu0 %v2431
  %5052 = vmatprep.subr.mxu0 0.0
  %5053 = vmatpush1.msra.mxu0 0.0
  %5054 = vmatprep.subr.mxu0 0.0
  %5055 = vmatpush1.msra.mxu0 0.0
  %5056 = vmatprep.subr.mxu0 0.0
  %5057 = vmatpush1.msra.mxu0 0.0
  %5058 = vmatprep.subr.mxu0 0.0
  %5059 = vmatpush1.msra.mxu0 0.0
  %5060 = vmatprep.subr.mxu0 0.0
  %5061 = vmatpush1.msra.mxu0 0.0
  %5062 = vmatprep.subr.mxu0 0.0
  %5063 = vmatpush1.msra.mxu0 0.0
  %5064 = vmatprep.subr.mxu0 0.0
  %5065 = vmatpush1.msra.mxu0 0.0
  %5066 = vmatprep.subr.mxu0 0.0
  %5067 = vmatpush1.msra.mxu0 0.0
  %5068 = vmatprep.subr.mxu0 0.0
  %5069 = vmatpush1.msra.mxu0 0.0
  %5070 = vmatprep.subr.mxu0 0.0
  %5071 = vmatpush1.msra.mxu0 0.0
  %5072 = vmatprep.subr.mxu0 0.0
  %5073 = vmatpush1.msra.mxu0 0.0
  %5074 = vmatprep.subr.mxu0 0.0
  %5075 = vmatpush1.msra.mxu0 0.0
  %5076 = vmatprep.subr.mxu0 0.0
  %5077 = vmatpush1.msra.mxu0 0.0
  %5078 = vmatprep.subr.mxu0 0.0
  %5079 = vmatpush1.msra.mxu0 0.0
  %5080 = vmatprep.subr.mxu0 0.0
  %5081 = vmatpush1.msra.mxu0 0.0
  %5082 = vmatprep.subr.mxu0 0.0
  %5083 = vmatpush1.msra.mxu0 0.0
  %5084 = vmatprep.subr.mxu0 0.0
  %5085 = vmatpush1.msra.mxu0 0.0
  %5086 = vmatprep.subr.mxu0 0.0
  %5087 = vmatpush1.msra.mxu0 0.0
  %5088 = vmatprep.subr.mxu0 0.0
  %5089 = vmatpush1.msra.mxu0 0.0
  %5090 = vmatprep.subr.mxu0 0.0
  %5091 = vmatpush1.msra.mxu0 0.0
  %5092 = vmatprep.subr.mxu0 0.0
  %5093 = vmatpush1.msra.mxu0 0.0
  %5094 = vmatprep.subr.mxu0 0.0
  %5095 = vmatpush1.msra.mxu0 0.0
  %5096 = vmatprep.subr.mxu0 0.0
  %5097 = vmatpush1.msra.mxu0 0.0
  %5098 = vmatprep.subr.mxu0 0.0
  %5099 = vmatpush1.msra.mxu0 0.0
  %5100 = vmatprep.subr.mxu0 0.0
  %5101 = vmatpush1.msra.mxu0 0.0
  %5102 = vmatprep.subr.mxu0 0.0
  %5103 = vmatpush1.msra.mxu0 0.0
  %5104 = vmatprep.subr.mxu0 0.0
  %5105 = vmatpush1.msra.mxu0 0.0
  %5106 = vmatprep.subr.mxu0 0.0
  %5107 = vmatpush1.msra.mxu0 0.0
  %5108 = vmatprep.mubr.f32.mxu0 0.0
  %5109 = vmatmul.mubr.f32.gmra.mrb[0].mxu0 %v5021
  %v5110 = vpop.f32.mrb[0].mxu0
  %v5111 = vadd.f32 0.0, %v5110
  %v5112 = vpop.f32.mrb[0].mxu0
  %5113 = vmatprep.mubr.f32.mxu0 0.0
  %5114 = vmatmul.mubr.f32.gmra.mrb[0].mxu0 %v5024
  %v5115 = vpop.f32.mrb[0].mxu0
  %v5116 = vadd.f32 0.0, %v5115
  %v5117 = vpop.f32.mrb[0].mxu0
  %5118 = vmatprep.mubr.f32.mxu0 0.0
  %5119 = vmatmul.mubr.f32.gmra.mrb[0].mxu0 %v5027
  %v5120 = vpop.f32.mrb[0].mxu0
  %v5121 = vadd.f32 0.0, %v5120
  %v5122 = vpop.f32.mrb[0].mxu0
  %5123 = vmatprep.mubr.f32.mxu0 0.0
  %5124 = vmatmul.mubr.f32.gmra.mrb[0].mxu0 %v5030
  %v5125 = vpop.f32.mrb[0].mxu0
  %v5126 = vadd.f32 0.0, %v5125
  %v5127 = vpop.f32.mrb[0].mxu0
  %5128 = vmatprep.mubr.f32.mxu0 0.0
  %5129 = vmatmul.mubr.f32.gmra.mrb[0].mxu0 %v5033
  %v5130 = vpop.f32.mrb[0].mxu0
  %v5131 = vadd.f32 0.0, %v5130
  %v5132 = vpop.f32.mrb[0].mxu0
  %5133 = vmatprep.mubr.f32.mxu0 0.0
  %5134 = vmatmul.mubr.f32.gmra.mrb[0].mxu0 %v5036
  %v5135 = vpop.f32.mrb[0].mxu0
  %v5136 = vadd.f32 0.0, %v5135
  %v5137 = vpop.f32.mrb[0].mxu0
  %5138 = vmatprep.mubr.f32.mxu0 0.0
  %5139 = vmatmul.mubr.f32.gmra.mrb[0].mxu0 %v5039
  %v5140 = vpop.f32.mrb[0].mxu0
  %v5141 = vadd.f32 0.0, %v5140
  %v5142 = vpop.f32.mrb[0].mxu0
  %5143 = vmatprep.mubr.f32.mxu0 0.0
  %5144 = vmatmul.mubr.f32.gmra.mrb[0].mxu0 %v5042
  %v5145 = vpop.f32.mrb[0].mxu0
  %v5146 = vadd.f32 0.0, %v5145
  %v5147 = vpop.f32.mrb[0].mxu0
  %5148 = vdwg.mxu0
  %v5149 = vadd.f32 %v5012, %v5111
  %v5150 = vadd.f32 %v5013, %v5116
  %v5151 = vadd.f32 %v5014, %v5121
  %v5152 = vadd.f32 %v5015, %v5126
  %v5153 = vadd.f32 %v5016, %v5131
  %v5154 = vadd.f32 %v5017, %v5136
  %v5155 = vadd.f32 %v5018, %v5141
  %v5156 = vadd.f32 %v5019, %v5146
  %v5157 = vmax.f32 %v5149, 0.0
  %v5158 = vmax.f32 %v5150, 0.0
  %v5159 = vmax.f32 %v5151, 0.0
  %v5160 = vmax.f32 %v5152, 0.0
  %v5161 = vmax.f32 %v5153, 0.0
  %v5162 = vmax.f32 %v5154, 0.0
  %v5163 = vmax.f32 %v5155, 0.0
  %v5164 = vmax.f32 %v5156, 0.0
  %v5165 = vld [vmem:[#allocation2 + $0x480] sm:$0xff]
  %v5166 = vld [vmem:[#allocation2 + $0x488] sm:$0xff]
  %v5167 = vld [vmem:[#allocation2 + $0x490] sm:$0xff]
  %v5168 = vld [vmem:[#allocation2 + $0x498] sm:$0xff]
  %v5169 = vld [vmem:[#allocation2 + $0x4a0] sm:$0xff]
  %v5170 = vld [vmem:[#allocation2 + $0x4a8] sm:$0xff]
  %v5171 = vld [vmem:[#allocation2 + $0x4b0] sm:$0xff]
  %v5172 = vld [vmem:[#allocation2 + $0x4b8] sm:$0xff]
  %v5174 = vsel %vm2051, %v5157, 0
  %v5177 = vsel %vm2051, %v5158, 0
  %v5180 = vsel %vm2051, %v5159, 0
  %v5183 = vsel %vm2051, %v5160, 0
  %v5186 = vsel %vm2051, %v5161, 0
  %v5189 = vsel %vm2051, %v5162, 0
  %v5192 = vsel %vm2051, %v5163, 0
  %v5195 = vsel %vm2051, %v5164, 0
  %5197 = vmatprep.subr.mxu0 0.0
  %5198 = vmatpush1.msra.mxu0 %v2428
  %5199 = vmatprep.subr.mxu0 0.0
  %5200 = vmatpush1.msra.mxu0 %v2429
  %5201 = vmatprep.subr.mxu0 0.0
  %5202 = vmatpush1.msra.mxu0 %v2430
  %5203 = vmatprep.subr.mxu0 0.0
  %5204 = vmatpush1.msra.mxu0 %v2431
  %5205 = vmatprep.subr.mxu0 0.0
  %5206 = vmatpush1.msra.mxu0 0.0
  %5207 = vmatprep.subr.mxu0 0.0
  %5208 = vmatpush1.msra.mxu0 0.0
  %5209 = vmatprep.subr.mxu0 0.0
  %5210 = vmatpush1.msra.mxu0 0.0
  %5211 = vmatprep.subr.mxu0 0.0
  %5212 = vmatpush1.msra.mxu0 0.0
  %5213 = vmatprep.subr.mxu0 0.0
  %5214 = vmatpush1.msra.mxu0 0.0
  %5215 = vmatprep.subr.mxu0 0.0
  %5216 = vmatpush1.msra.mxu0 0.0
  %5217 = vmatprep.subr.mxu0 0.0
  %5218 = vmatpush1.msra.mxu0 0.0
  %5219 = vmatprep.subr.mxu0 0.0
  %5220 = vmatpush1.msra.mxu0 0.0
  %5221 = vmatprep.subr.mxu0 0.0
  %5222 = vmatpush1.msra.mxu0 0.0
  %5223 = vmatprep.subr.mxu0 0.0
  %5224 = vmatpush1.msra.mxu0 0.0
  %5225 = vmatprep.subr.mxu0 0.0
  %5226 = vmatpush1.msra.mxu0 0.0
  %5227 = vmatprep.subr.mxu0 0.0
  %5228 = vmatpush1.msra.mxu0 0.0
  %5229 = vmatprep.subr.mxu0 0.0
  %5230 = vmatpush1.msra.mxu0 0.0
  %5231 = vmatprep.subr.mxu0 0.0
  %5232 = vmatpush1.msra.mxu0 0.0
  %5233 = vmatprep.subr.mxu0 0.0
  %5234 = vmatpush1.msra.mxu0 0.0
  %5235 = vmatprep.subr.mxu0 0.0
  %5236 = vmatpush1.msra.mxu0 0.0
  %5237 = vmatprep.subr.mxu0 0.0
  %5238 = vmatpush1.msra.mxu0 0.0
  %5239 = vmatprep.subr.mxu0 0.0
  %5240 = vmatpush1.msra.mxu0 0.0
  %5241 = vmatprep.subr.mxu0 0.0
  %5242 = vmatpush1.msra.mxu0 0.0
  %5243 = vmatprep.subr.mxu0 0.0
  %5244 = vmatpush1.msra.mxu0 0.0
  %5245 = vmatprep.subr.mxu0 0.0
  %5246 = vmatpush1.msra.mxu0 0.0
  %5247 = vmatprep.subr.mxu0 0.0
  %5248 = vmatpush1.msra.mxu0 0.0
  %5249 = vmatprep.subr.mxu0 0.0
  %5250 = vmatpush1.msra.mxu0 0.0
  %5251 = vmatprep.subr.mxu0 0.0
  %5252 = vmatpush1.msra.mxu0 0.0
  %5253 = vmatprep.subr.mxu0 0.0
  %5254 = vmatpush1.msra.mxu0 0.0
  %5255 = vmatprep.subr.mxu0 0.0
  %5256 = vmatpush1.msra.mxu0 0.0
  %5257 = vmatprep.subr.mxu0 0.0
  %5258 = vmatpush1.msra.mxu0 0.0
  %5259 = vmatprep.subr.mxu0 0.0
  %5260 = vmatpush1.msra.mxu0 0.0
  %5261 = vmatprep.mubr.f32.mxu0 0.0
  %5262 = vmatmul.mubr.f32.gmra.mrb[0].mxu0 %v5174
  %v5263 = vpop.f32.mrb[0].mxu0
  %v5264 = vadd.f32 0.0, %v5263
  %v5265 = vpop.f32.mrb[0].mxu0
  %5266 = vmatprep.mubr.f32.mxu0 0.0
  %5267 = vmatmul.mubr.f32.gmra.mrb[0].mxu0 %v5177
  %v5268 = vpop.f32.mrb[0].mxu0
  %v5269 = vadd.f32 0.0, %v5268
  %v5270 = vpop.f32.mrb[0].mxu0
  %5271 = vmatprep.mubr.f32.mxu0 0.0
  %5272 = vmatmul.mubr.f32.gmra.mrb[0].mxu0 %v5180
  %v5273 = vpop.f32.mrb[0].mxu0
  %v5274 = vadd.f32 0.0, %v5273
  %v5275 = vpop.f32.mrb[0].mxu0
  %5276 = vmatprep.mubr.f32.mxu0 0.0
  %5277 = vmatmul.mubr.f32.gmra.mrb[0].mxu0 %v5183
  %v5278 = vpop.f32.mrb[0].mxu0
  %v5279 = vadd.f32 0.0, %v5278
  %v5280 = vpop.f32.mrb[0].mxu0
  %5281 = vmatprep.mubr.f32.mxu0 0.0
  %5282 = vmatmul.mubr.f32.gmra.mrb[0].mxu0 %v5186
  %v5283 = vpop.f32.mrb[0].mxu0
  %v5284 = vadd.f32 0.0, %v5283
  %v5285 = vpop.f32.mrb[0].mxu0
  %5286 = vmatprep.mubr.f32.mxu0 0.0
  %5287 = vmatmul.mubr.f32.gmra.mrb[0].mxu0 %v5189
  %v5288 = vpop.f32.mrb[0].mxu0
  %v5289 = vadd.f32 0.0, %v5288
  %v5290 = vpop.f32.mrb[0].mxu0
  %5291 = vmatprep.mubr.f32.mxu0 0.0
  %5292 = vmatmul.mubr.f32.gmra.mrb[0].mxu0 %v5192
  %v5293 = vpop.f32.mrb[0].mxu0
  %v5294 = vadd.f32 0.0, %v5293
  %v5295 = vpop.f32.mrb[0].mxu0
  %5296 = vmatprep.mubr.f32.mxu0 0.0
  %5297 = vmatmul.mubr.f32.gmra.mrb[0].mxu0 %v5195
  %v5298 = vpop.f32.mrb[0].mxu0
  %v5299 = vadd.f32 0.0, %v5298
  %v5300 = vpop.f32.mrb[0].mxu0
  %5301 = vdwg.mxu0
  %v5302 = vadd.f32 %v5165, %v5264
  %v5303 = vadd.f32 %v5166, %v5269
  %v5304 = vadd.f32 %v5167, %v5274
  %v5305 = vadd.f32 %v5168, %v5279
  %v5306 = vadd.f32 %v5169, %v5284
  %v5307 = vadd.f32 %v5170, %v5289
  %v5308 = vadd.f32 %v5171, %v5294
  %v5309 = vadd.f32 %v5172, %v5299
  %v5310 = vmax.f32 %v5302, 0.0
  %v5311 = vmax.f32 %v5303, 0.0
  %v5312 = vmax.f32 %v5304, 0.0
  %v5313 = vmax.f32 %v5305, 0.0
  %v5314 = vmax.f32 %v5306, 0.0
  %v5315 = vmax.f32 %v5307, 0.0
  %v5316 = vmax.f32 %v5308, 0.0
  %v5317 = vmax.f32 %v5309, 0.0
  %v5318 = vld [vmem:[#allocation2 + $0x4c0] sm:$0xff]
  %v5319 = vld [vmem:[#allocation2 + $0x4c8] sm:$0xff]
  %v5320 = vld [vmem:[#allocation2 + $0x4d0] sm:$0xff]
  %v5321 = vld [vmem:[#allocation2 + $0x4d8] sm:$0xff]
  %v5322 = vld [vmem:[#allocation2 + $0x4e0] sm:$0xff]
  %v5323 = vld [vmem:[#allocation2 + $0x4e8] sm:$0xff]
  %v5324 = vld [vmem:[#allocation2 + $0x4f0] sm:$0xff]
  %v5325 = vld [vmem:[#allocation2 + $0x4f8] sm:$0xff]
  %v5327 = vsel %vm2051, %v5310, 0
  %v5330 = vsel %vm2051, %v5311, 0
  %v5333 = vsel %vm2051, %v5312, 0
  %v5336 = vsel %vm2051, %v5313, 0
  %v5339 = vsel %vm2051, %v5314, 0
  %v5342 = vsel %vm2051, %v5315, 0
  %v5345 = vsel %vm2051, %v5316, 0
  %v5348 = vsel %vm2051, %v5317, 0
  %5350 = vmatprep.subr.mxu0 0.0
  %5351 = vmatpush1.msra.mxu0 %v2428
  %5352 = vmatprep.subr.mxu0 0.0
  %5353 = vmatpush1.msra.mxu0 %v2429
  %5354 = vmatprep.subr.mxu0 0.0
  %5355 = vmatpush1.msra.mxu0 %v2430
  %5356 = vmatprep.subr.mxu0 0.0
  %5357 = vmatpush1.msra.mxu0 %v2431
  %5358 = vmatprep.subr.mxu0 0.0
  %5359 = vmatpush1.msra.mxu0 0.0
  %5360 = vmatprep.subr.mxu0 0.0
  %5361 = vmatpush1.msra.mxu0 0.0
  %5362 = vmatprep.subr.mxu0 0.0
  %5363 = vmatpush1.msra.mxu0 0.0
  %5364 = vmatprep.subr.mxu0 0.0
  %5365 = vmatpush1.msra.mxu0 0.0
  %5366 = vmatprep.subr.mxu0 0.0
  %5367 = vmatpush1.msra.mxu0 0.0
  %5368 = vmatprep.subr.mxu0 0.0
  %5369 = vmatpush1.msra.mxu0 0.0
  %5370 = vmatprep.subr.mxu0 0.0
  %5371 = vmatpush1.msra.mxu0 0.0
  %5372 = vmatprep.subr.mxu0 0.0
  %5373 = vmatpush1.msra.mxu0 0.0
  %5374 = vmatprep.subr.mxu0 0.0
  %5375 = vmatpush1.msra.mxu0 0.0
  %5376 = vmatprep.subr.mxu0 0.0
  %5377 = vmatpush1.msra.mxu0 0.0
  %5378 = vmatprep.subr.mxu0 0.0
  %5379 = vmatpush1.msra.mxu0 0.0
  %5380 = vmatprep.subr.mxu0 0.0
  %5381 = vmatpush1.msra.mxu0 0.0
  %5382 = vmatprep.subr.mxu0 0.0
  %5383 = vmatpush1.msra.mxu0 0.0
  %5384 = vmatprep.subr.mxu0 0.0
  %5385 = vmatpush1.msra.mxu0 0.0
  %5386 = vmatprep.subr.mxu0 0.0
  %5387 = vmatpush1.msra.mxu0 0.0
  %5388 = vmatprep.subr.mxu0 0.0
  %5389 = vmatpush1.msra.mxu0 0.0
  %5390 = vmatprep.subr.mxu0 0.0
  %5391 = vmatpush1.msra.mxu0 0.0
  %5392 = vmatprep.subr.mxu0 0.0
  %5393 = vmatpush1.msra.mxu0 0.0
  %5394 = vmatprep.subr.mxu0 0.0
  %5395 = vmatpush1.msra.mxu0 0.0
  %5396 = vmatprep.subr.mxu0 0.0
  %5397 = vmatpush1.msra.mxu0 0.0
  %5398 = vmatprep.subr.mxu0 0.0
  %5399 = vmatpush1.msra.mxu0 0.0
  %5400 = vmatprep.subr.mxu0 0.0
  %5401 = vmatpush1.msra.mxu0 0.0
  %5402 = vmatprep.subr.mxu0 0.0
  %5403 = vmatpush1.msra.mxu0 0.0
  %5404 = vmatprep.subr.mxu0 0.0
  %5405 = vmatpush1.msra.mxu0 0.0
  %5406 = vmatprep.subr.mxu0 0.0
  %5407 = vmatpush1.msra.mxu0 0.0
  %5408 = vmatprep.subr.mxu0 0.0
  %5409 = vmatpush1.msra.mxu0 0.0
  %5410 = vmatprep.subr.mxu0 0.0
  %5411 = vmatpush1.msra.mxu0 0.0
  %5412 = vmatprep.subr.mxu0 0.0
  %5413 = vmatpush1.msra.mxu0 0.0
  %5414 = vmatprep.mubr.f32.mxu0 0.0
  %5415 = vmatmul.mubr.f32.gmra.mrb[0].mxu0 %v5327
  %v5416 = vpop.f32.mrb[0].mxu0
  %v5417 = vadd.f32 0.0, %v5416
  %v5418 = vpop.f32.mrb[0].mxu0
  %5419 = vmatprep.mubr.f32.mxu0 0.0
  %5420 = vmatmul.mubr.f32.gmra.mrb[0].mxu0 %v5330
  %v5421 = vpop.f32.mrb[0].mxu0
  %v5422 = vadd.f32 0.0, %v5421
  %v5423 = vpop.f32.mrb[0].mxu0
  %5424 = vmatprep.mubr.f32.mxu0 0.0
  %5425 = vmatmul.mubr.f32.gmra.mrb[0].mxu0 %v5333
  %v5426 = vpop.f32.mrb[0].mxu0
  %v5427 = vadd.f32 0.0, %v5426
  %v5428 = vpop.f32.mrb[0].mxu0
  %5429 = vmatprep.mubr.f32.mxu0 0.0
  %5430 = vmatmul.mubr.f32.gmra.mrb[0].mxu0 %v5336
  %v5431 = vpop.f32.mrb[0].mxu0
  %v5432 = vadd.f32 0.0, %v5431
  %v5433 = vpop.f32.mrb[0].mxu0
  %5434 = vmatprep.mubr.f32.mxu0 0.0
  %5435 = vmatmul.mubr.f32.gmra.mrb[0].mxu0 %v5339
  %v5436 = vpop.f32.mrb[0].mxu0
  %v5437 = vadd.f32 0.0, %v5436
  %v5438 = vpop.f32.mrb[0].mxu0
  %5439 = vmatprep.mubr.f32.mxu0 0.0
  %5440 = vmatmul.mubr.f32.gmra.mrb[0].mxu0 %v5342
  %v5441 = vpop.f32.mrb[0].mxu0
  %v5442 = vadd.f32 0.0, %v5441
  %v5443 = vpop.f32.mrb[0].mxu0
  %5444 = vmatprep.mubr.f32.mxu0 0.0
  %5445 = vmatmul.mubr.f32.gmra.mrb[0].mxu0 %v5345
  %v5446 = vpop.f32.mrb[0].mxu0
  %v5447 = vadd.f32 0.0, %v5446
  %v5448 = vpop.f32.mrb[0].mxu0
  %5449 = vmatprep.mubr.f32.mxu0 0.0
  %5450 = vmatmul.mubr.f32.gmra.mrb[0].mxu0 %v5348
  %v5451 = vpop.f32.mrb[0].mxu0
  %v5452 = vadd.f32 0.0, %v5451
  %v5453 = vpop.f32.mrb[0].mxu0
  %5454 = vdwg.mxu0
  %v5455 = vadd.f32 %v5318, %v5417
  %v5456 = vadd.f32 %v5319, %v5422
  %v5457 = vadd.f32 %v5320, %v5427
  %v5458 = vadd.f32 %v5321, %v5432
  %v5459 = vadd.f32 %v5322, %v5437
  %v5460 = vadd.f32 %v5323, %v5442
  %v5461 = vadd.f32 %v5324, %v5447
  %v5462 = vadd.f32 %v5325, %v5452
  %v5463 = vmax.f32 %v5455, 0.0
  %v5464 = vmax.f32 %v5456, 0.0
  %v5465 = vmax.f32 %v5457, 0.0
  %v5466 = vmax.f32 %v5458, 0.0
  %v5467 = vmax.f32 %v5459, 0.0
  %v5468 = vmax.f32 %v5460, 0.0
  %v5469 = vmax.f32 %v5461, 0.0
  %v5470 = vmax.f32 %v5462, 0.0
  %v5471 = vld [vmem:[#allocation2 + $0x500] sm:$0xff]
  %v5472 = vld [vmem:[#allocation2 + $0x508] sm:$0xff]
  %v5473 = vld [vmem:[#allocation2 + $0x510] sm:$0xff]
  %v5474 = vld [vmem:[#allocation2 + $0x518] sm:$0xff]
  %v5475 = vld [vmem:[#allocation2 + $0x520] sm:$0xff]
  %v5476 = vld [vmem:[#allocation2 + $0x528] sm:$0xff]
  %v5477 = vld [vmem:[#allocation2 + $0x530] sm:$0xff]
  %v5478 = vld [vmem:[#allocation2 + $0x538] sm:$0xff]
  %v5480 = vsel %vm2051, %v5463, 0
  %v5483 = vsel %vm2051, %v5464, 0
  %v5486 = vsel %vm2051, %v5465, 0
  %v5489 = vsel %vm2051, %v5466, 0
  %v5492 = vsel %vm2051, %v5467, 0
  %v5495 = vsel %vm2051, %v5468, 0
  %v5498 = vsel %vm2051, %v5469, 0
  %v5501 = vsel %vm2051, %v5470, 0
  %5503 = vmatprep.subr.mxu0 0.0
  %5504 = vmatpush1.msra.mxu0 %v2428
  %5505 = vmatprep.subr.mxu0 0.0
  %5506 = vmatpush1.msra.mxu0 %v2429
  %5507 = vmatprep.subr.mxu0 0.0
  %5508 = vmatpush1.msra.mxu0 %v2430
  %5509 = vmatprep.subr.mxu0 0.0
  %5510 = vmatpush1.msra.mxu0 %v2431
  %5511 = vmatprep.subr.mxu0 0.0
  %5512 = vmatpush1.msra.mxu0 0.0
  %5513 = vmatprep.subr.mxu0 0.0
  %5514 = vmatpush1.msra.mxu0 0.0
  %5515 = vmatprep.subr.mxu0 0.0
  %5516 = vmatpush1.msra.mxu0 0.0
  %5517 = vmatprep.subr.mxu0 0.0
  %5518 = vmatpush1.msra.mxu0 0.0
  %5519 = vmatprep.subr.mxu0 0.0
  %5520 = vmatpush1.msra.mxu0 0.0
  %5521 = vmatprep.subr.mxu0 0.0
  %5522 = vmatpush1.msra.mxu0 0.0
  %5523 = vmatprep.subr.mxu0 0.0
  %5524 = vmatpush1.msra.mxu0 0.0
  %5525 = vmatprep.subr.mxu0 0.0
  %5526 = vmatpush1.msra.mxu0 0.0
  %5527 = vmatprep.subr.mxu0 0.0
  %5528 = vmatpush1.msra.mxu0 0.0
  %5529 = vmatprep.subr.mxu0 0.0
  %5530 = vmatpush1.msra.mxu0 0.0
  %5531 = vmatprep.subr.mxu0 0.0
  %5532 = vmatpush1.msra.mxu0 0.0
  %5533 = vmatprep.subr.mxu0 0.0
  %5534 = vmatpush1.msra.mxu0 0.0
  %5535 = vmatprep.subr.mxu0 0.0
  %5536 = vmatpush1.msra.mxu0 0.0
  %5537 = vmatprep.subr.mxu0 0.0
  %5538 = vmatpush1.msra.mxu0 0.0
  %5539 = vmatprep.subr.mxu0 0.0
  %5540 = vmatpush1.msra.mxu0 0.0
  %5541 = vmatprep.subr.mxu0 0.0
  %5542 = vmatpush1.msra.mxu0 0.0
  %5543 = vmatprep.subr.mxu0 0.0
  %5544 = vmatpush1.msra.mxu0 0.0
  %5545 = vmatprep.subr.mxu0 0.0
  %5546 = vmatpush1.msra.mxu0 0.0
  %5547 = vmatprep.subr.mxu0 0.0
  %5548 = vmatpush1.msra.mxu0 0.0
  %5549 = vmatprep.subr.mxu0 0.0
  %5550 = vmatpush1.msra.mxu0 0.0
  %5551 = vmatprep.subr.mxu0 0.0
  %5552 = vmatpush1.msra.mxu0 0.0
  %5553 = vmatprep.subr.mxu0 0.0
  %5554 = vmatpush1.msra.mxu0 0.0
  %5555 = vmatprep.subr.mxu0 0.0
  %5556 = vmatpush1.msra.mxu0 0.0
  %5557 = vmatprep.subr.mxu0 0.0
  %5558 = vmatpush1.msra.mxu0 0.0
  %5559 = vmatprep.subr.mxu0 0.0
  %5560 = vmatpush1.msra.mxu0 0.0
  %5561 = vmatprep.subr.mxu0 0.0
  %5562 = vmatpush1.msra.mxu0 0.0
  %5563 = vmatprep.subr.mxu0 0.0
  %5564 = vmatpush1.msra.mxu0 0.0
  %5565 = vmatprep.subr.mxu0 0.0
  %5566 = vmatpush1.msra.mxu0 0.0
  %5567 = vmatprep.mubr.f32.mxu0 0.0
  %5568 = vmatmul.mubr.f32.gmra.mrb[0].mxu0 %v5480
  %v5569 = vpop.f32.mrb[0].mxu0
  %v5570 = vadd.f32 0.0, %v5569
  %v5571 = vpop.f32.mrb[0].mxu0
  %5572 = vmatprep.mubr.f32.mxu0 0.0
  %5573 = vmatmul.mubr.f32.gmra.mrb[0].mxu0 %v5483
  %v5574 = vpop.f32.mrb[0].mxu0
  %v5575 = vadd.f32 0.0, %v5574
  %v5576 = vpop.f32.mrb[0].mxu0
  %5577 = vmatprep.mubr.f32.mxu0 0.0
  %5578 = vmatmul.mubr.f32.gmra.mrb[0].mxu0 %v5486
  %v5579 = vpop.f32.mrb[0].mxu0
  %v5580 = vadd.f32 0.0, %v5579
  %v5581 = vpop.f32.mrb[0].mxu0
  %5582 = vmatprep.mubr.f32.mxu0 0.0
  %5583 = vmatmul.mubr.f32.gmra.mrb[0].mxu0 %v5489
  %v5584 = vpop.f32.mrb[0].mxu0
  %v5585 = vadd.f32 0.0, %v5584
  %v5586 = vpop.f32.mrb[0].mxu0
  %5587 = vmatprep.mubr.f32.mxu0 0.0
  %5588 = vmatmul.mubr.f32.gmra.mrb[0].mxu0 %v5492
  %v5589 = vpop.f32.mrb[0].mxu0
  %v5590 = vadd.f32 0.0, %v5589
  %v5591 = vpop.f32.mrb[0].mxu0
  %5592 = vmatprep.mubr.f32.mxu0 0.0
  %5593 = vmatmul.mubr.f32.gmra.mrb[0].mxu0 %v5495
  %v5594 = vpop.f32.mrb[0].mxu0
  %v5595 = vadd.f32 0.0, %v5594
  %v5596 = vpop.f32.mrb[0].mxu0
  %5597 = vmatprep.mubr.f32.mxu0 0.0
  %5598 = vmatmul.mubr.f32.gmra.mrb[0].mxu0 %v5498
  %v5599 = vpop.f32.mrb[0].mxu0
  %v5600 = vadd.f32 0.0, %v5599
  %v5601 = vpop.f32.mrb[0].mxu0
  %5602 = vmatprep.mubr.f32.mxu0 0.0
  %5603 = vmatmul.mubr.f32.gmra.mrb[0].mxu0 %v5501
  %v5604 = vpop.f32.mrb[0].mxu0
  %v5605 = vadd.f32 0.0, %v5604
  %v5606 = vpop.f32.mrb[0].mxu0
  %5607 = vdwg.mxu0
  %v5608 = vadd.f32 %v5471, %v5570
  %v5609 = vadd.f32 %v5472, %v5575
  %v5610 = vadd.f32 %v5473, %v5580
  %v5611 = vadd.f32 %v5474, %v5585
  %v5612 = vadd.f32 %v5475, %v5590
  %v5613 = vadd.f32 %v5476, %v5595
  %v5614 = vadd.f32 %v5477, %v5600
  %v5615 = vadd.f32 %v5478, %v5605
  %v5616 = vmax.f32 %v5608, 0.0
  %v5617 = vmax.f32 %v5609, 0.0
  %v5618 = vmax.f32 %v5610, 0.0
  %v5619 = vmax.f32 %v5611, 0.0
  %v5620 = vmax.f32 %v5612, 0.0
  %v5621 = vmax.f32 %v5613, 0.0
  %v5622 = vmax.f32 %v5614, 0.0
  %v5623 = vmax.f32 %v5615, 0.0
  %v5624 = vld [vmem:[#allocation2 + $0x540] sm:$0xff]
  %v5625 = vld [vmem:[#allocation2 + $0x548] sm:$0xff]
  %v5626 = vld [vmem:[#allocation2 + $0x550] sm:$0xff]
  %v5627 = vld [vmem:[#allocation2 + $0x558] sm:$0xff]
  %v5628 = vld [vmem:[#allocation2 + $0x560] sm:$0xff]
  %v5629 = vld [vmem:[#allocation2 + $0x568] sm:$0xff]
  %v5630 = vld [vmem:[#allocation2 + $0x570] sm:$0xff]
  %v5631 = vld [vmem:[#allocation2 + $0x578] sm:$0xff]
  %v5633 = vsel %vm2051, %v5616, 0
  %v5636 = vsel %vm2051, %v5617, 0
  %v5639 = vsel %vm2051, %v5618, 0
  %v5642 = vsel %vm2051, %v5619, 0
  %v5645 = vsel %vm2051, %v5620, 0
  %v5648 = vsel %vm2051, %v5621, 0
  %v5651 = vsel %vm2051, %v5622, 0
  %v5654 = vsel %vm2051, %v5623, 0
  %5656 = vmatprep.subr.mxu0 0.0
  %5657 = vmatpush1.msra.mxu0 %v2428
  %5658 = vmatprep.subr.mxu0 0.0
  %5659 = vmatpush1.msra.mxu0 %v2429
  %5660 = vmatprep.subr.mxu0 0.0
  %5661 = vmatpush1.msra.mxu0 %v2430
  %5662 = vmatprep.subr.mxu0 0.0
  %5663 = vmatpush1.msra.mxu0 %v2431
  %5664 = vmatprep.subr.mxu0 0.0
  %5665 = vmatpush1.msra.mxu0 0.0
  %5666 = vmatprep.subr.mxu0 0.0
  %5667 = vmatpush1.msra.mxu0 0.0
  %5668 = vmatprep.subr.mxu0 0.0
  %5669 = vmatpush1.msra.mxu0 0.0
  %5670 = vmatprep.subr.mxu0 0.0
  %5671 = vmatpush1.msra.mxu0 0.0
  %5672 = vmatprep.subr.mxu0 0.0
  %5673 = vmatpush1.msra.mxu0 0.0
  %5674 = vmatprep.subr.mxu0 0.0
  %5675 = vmatpush1.msra.mxu0 0.0
  %5676 = vmatprep.subr.mxu0 0.0
  %5677 = vmatpush1.msra.mxu0 0.0
  %5678 = vmatprep.subr.mxu0 0.0
  %5679 = vmatpush1.msra.mxu0 0.0
  %5680 = vmatprep.subr.mxu0 0.0
  %5681 = vmatpush1.msra.mxu0 0.0
  %5682 = vmatprep.subr.mxu0 0.0
  %5683 = vmatpush1.msra.mxu0 0.0
  %5684 = vmatprep.subr.mxu0 0.0
  %5685 = vmatpush1.msra.mxu0 0.0
  %5686 = vmatprep.subr.mxu0 0.0
  %5687 = vmatpush1.msra.mxu0 0.0
  %5688 = vmatprep.subr.mxu0 0.0
  %5689 = vmatpush1.msra.mxu0 0.0
  %5690 = vmatprep.subr.mxu0 0.0
  %5691 = vmatpush1.msra.mxu0 0.0
  %5692 = vmatprep.subr.mxu0 0.0
  %5693 = vmatpush1.msra.mxu0 0.0
  %5694 = vmatprep.subr.mxu0 0.0
  %5695 = vmatpush1.msra.mxu0 0.0
  %5696 = vmatprep.subr.mxu0 0.0
  %5697 = vmatpush1.msra.mxu0 0.0
  %5698 = vmatprep.subr.mxu0 0.0
  %5699 = vmatpush1.msra.mxu0 0.0
  %5700 = vmatprep.subr.mxu0 0.0
  %5701 = vmatpush1.msra.mxu0 0.0
  %5702 = vmatprep.subr.mxu0 0.0
  %5703 = vmatpush1.msra.mxu0 0.0
  %5704 = vmatprep.subr.mxu0 0.0
  %5705 = vmatpush1.msra.mxu0 0.0
  %5706 = vmatprep.subr.mxu0 0.0
  %5707 = vmatpush1.msra.mxu0 0.0
  %5708 = vmatprep.subr.mxu0 0.0
  %5709 = vmatpush1.msra.mxu0 0.0
  %5710 = vmatprep.subr.mxu0 0.0
  %5711 = vmatpush1.msra.mxu0 0.0
  %5712 = vmatprep.subr.mxu0 0.0
  %5713 = vmatpush1.msra.mxu0 0.0
  %5714 = vmatprep.subr.mxu0 0.0
  %5715 = vmatpush1.msra.mxu0 0.0
  %5716 = vmatprep.subr.mxu0 0.0
  %5717 = vmatpush1.msra.mxu0 0.0
  %5718 = vmatprep.subr.mxu0 0.0
  %5719 = vmatpush1.msra.mxu0 0.0
  %5720 = vmatprep.mubr.f32.mxu0 0.0
  %5721 = vmatmul.mubr.f32.gmra.mrb[0].mxu0 %v5633
  %v5722 = vpop.f32.mrb[0].mxu0
  %v5723 = vadd.f32 0.0, %v5722
  %v5724 = vpop.f32.mrb[0].mxu0
  %5725 = vmatprep.mubr.f32.mxu0 0.0
  %5726 = vmatmul.mubr.f32.gmra.mrb[0].mxu0 %v5636
  %v5727 = vpop.f32.mrb[0].mxu0
  %v5728 = vadd.f32 0.0, %v5727
  %v5729 = vpop.f32.mrb[0].mxu0
  %5730 = vmatprep.mubr.f32.mxu0 0.0
  %5731 = vmatmul.mubr.f32.gmra.mrb[0].mxu0 %v5639
  %v5732 = vpop.f32.mrb[0].mxu0
  %v5733 = vadd.f32 0.0, %v5732
  %v5734 = vpop.f32.mrb[0].mxu0
  %5735 = vmatprep.mubr.f32.mxu0 0.0
  %5736 = vmatmul.mubr.f32.gmra.mrb[0].mxu0 %v5642
  %v5737 = vpop.f32.mrb[0].mxu0
  %v5738 = vadd.f32 0.0, %v5737
  %v5739 = vpop.f32.mrb[0].mxu0
  %5740 = vmatprep.mubr.f32.mxu0 0.0
  %5741 = vmatmul.mubr.f32.gmra.mrb[0].mxu0 %v5645
  %v5742 = vpop.f32.mrb[0].mxu0
  %v5743 = vadd.f32 0.0, %v5742
  %v5744 = vpop.f32.mrb[0].mxu0
  %5745 = vmatprep.mubr.f32.mxu0 0.0
  %5746 = vmatmul.mubr.f32.gmra.mrb[0].mxu0 %v5648
  %v5747 = vpop.f32.mrb[0].mxu0
  %v5748 = vadd.f32 0.0, %v5747
  %v5749 = vpop.f32.mrb[0].mxu0
  %5750 = vmatprep.mubr.f32.mxu0 0.0
  %5751 = vmatmul.mubr.f32.gmra.mrb[0].mxu0 %v5651
  %v5752 = vpop.f32.mrb[0].mxu0
  %v5753 = vadd.f32 0.0, %v5752
  %v5754 = vpop.f32.mrb[0].mxu0
  %5755 = vmatprep.mubr.f32.mxu0 0.0
  %5756 = vmatmul.mubr.f32.gmra.mrb[0].mxu0 %v5654
  %v5757 = vpop.f32.mrb[0].mxu0
  %v5758 = vadd.f32 0.0, %v5757
  %v5759 = vpop.f32.mrb[0].mxu0
  %5760 = vdwg.mxu0
  %v5761 = vadd.f32 %v5624, %v5723
  %v5762 = vadd.f32 %v5625, %v5728
  %v5763 = vadd.f32 %v5626, %v5733
  %v5764 = vadd.f32 %v5627, %v5738
  %v5765 = vadd.f32 %v5628, %v5743
  %v5766 = vadd.f32 %v5629, %v5748
  %v5767 = vadd.f32 %v5630, %v5753
  %v5768 = vadd.f32 %v5631, %v5758
  %v5769 = vmax.f32 %v5761, 0.0
  %v5770 = vmax.f32 %v5762, 0.0
  %v5771 = vmax.f32 %v5763, 0.0
  %v5772 = vmax.f32 %v5764, 0.0
  %v5773 = vmax.f32 %v5765, 0.0
  %v5774 = vmax.f32 %v5766, 0.0
  %v5775 = vmax.f32 %v5767, 0.0
  %v5776 = vmax.f32 %v5768, 0.0
  %v5777 = vld [vmem:[#allocation2 + $0x580] sm:$0xff]
  %v5778 = vld [vmem:[#allocation2 + $0x588] sm:$0xff]
  %v5779 = vld [vmem:[#allocation2 + $0x590] sm:$0xff]
  %v5780 = vld [vmem:[#allocation2 + $0x598] sm:$0xff]
  %v5781 = vld [vmem:[#allocation2 + $0x5a0] sm:$0xff]
  %v5782 = vld [vmem:[#allocation2 + $0x5a8] sm:$0xff]
  %v5783 = vld [vmem:[#allocation2 + $0x5b0] sm:$0xff]
  %v5784 = vld [vmem:[#allocation2 + $0x5b8] sm:$0xff]
  %v5786 = vsel %vm2051, %v5769, 0
  %v5789 = vsel %vm2051, %v5770, 0
  %v5792 = vsel %vm2051, %v5771, 0
  %v5795 = vsel %vm2051, %v5772, 0
  %v5798 = vsel %vm2051, %v5773, 0
  %v5801 = vsel %vm2051, %v5774, 0
  %v5804 = vsel %vm2051, %v5775, 0
  %v5807 = vsel %vm2051, %v5776, 0
  %5809 = vmatprep.subr.mxu0 0.0
  %5810 = vmatpush1.msra.mxu0 %v2428
  %5811 = vmatprep.subr.mxu0 0.0
  %5812 = vmatpush1.msra.mxu0 %v2429
  %5813 = vmatprep.subr.mxu0 0.0
  %5814 = vmatpush1.msra.mxu0 %v2430
  %5815 = vmatprep.subr.mxu0 0.0
  %5816 = vmatpush1.msra.mxu0 %v2431
  %5817 = vmatprep.subr.mxu0 0.0
  %5818 = vmatpush1.msra.mxu0 0.0
  %5819 = vmatprep.subr.mxu0 0.0
  %5820 = vmatpush1.msra.mxu0 0.0
  %5821 = vmatprep.subr.mxu0 0.0
  %5822 = vmatpush1.msra.mxu0 0.0
  %5823 = vmatprep.subr.mxu0 0.0
  %5824 = vmatpush1.msra.mxu0 0.0
  %5825 = vmatprep.subr.mxu0 0.0
  %5826 = vmatpush1.msra.mxu0 0.0
  %5827 = vmatprep.subr.mxu0 0.0
  %5828 = vmatpush1.msra.mxu0 0.0
  %5829 = vmatprep.subr.mxu0 0.0
  %5830 = vmatpush1.msra.mxu0 0.0
  %5831 = vmatprep.subr.mxu0 0.0
  %5832 = vmatpush1.msra.mxu0 0.0
  %5833 = vmatprep.subr.mxu0 0.0
  %5834 = vmatpush1.msra.mxu0 0.0
  %5835 = vmatprep.subr.mxu0 0.0
  %5836 = vmatpush1.msra.mxu0 0.0
  %5837 = vmatprep.subr.mxu0 0.0
  %5838 = vmatpush1.msra.mxu0 0.0
  %5839 = vmatprep.subr.mxu0 0.0
  %5840 = vmatpush1.msra.mxu0 0.0
  %5841 = vmatprep.subr.mxu0 0.0
  %5842 = vmatpush1.msra.mxu0 0.0
  %5843 = vmatprep.subr.mxu0 0.0
  %5844 = vmatpush1.msra.mxu0 0.0
  %5845 = vmatprep.subr.mxu0 0.0
  %5846 = vmatpush1.msra.mxu0 0.0
  %5847 = vmatprep.subr.mxu0 0.0
  %5848 = vmatpush1.msra.mxu0 0.0
  %5849 = vmatprep.subr.mxu0 0.0
  %5850 = vmatpush1.msra.mxu0 0.0
  %5851 = vmatprep.subr.mxu0 0.0
  %5852 = vmatpush1.msra.mxu0 0.0
  %5853 = vmatprep.subr.mxu0 0.0
  %5854 = vmatpush1.msra.mxu0 0.0
  %5855 = vmatprep.subr.mxu0 0.0
  %5856 = vmatpush1.msra.mxu0 0.0
  %5857 = vmatprep.subr.mxu0 0.0
  %5858 = vmatpush1.msra.mxu0 0.0
  %5859 = vmatprep.subr.mxu0 0.0
  %5860 = vmatpush1.msra.mxu0 0.0
  %5861 = vmatprep.subr.mxu0 0.0
  %5862 = vmatpush1.msra.mxu0 0.0
  %5863 = vmatprep.subr.mxu0 0.0
  %5864 = vmatpush1.msra.mxu0 0.0
  %5865 = vmatprep.subr.mxu0 0.0
  %5866 = vmatpush1.msra.mxu0 0.0
  %5867 = vmatprep.subr.mxu0 0.0
  %5868 = vmatpush1.msra.mxu0 0.0
  %5869 = vmatprep.subr.mxu0 0.0
  %5870 = vmatpush1.msra.mxu0 0.0
  %5871 = vmatprep.subr.mxu0 0.0
  %5872 = vmatpush1.msra.mxu0 0.0
  %5873 = vmatprep.mubr.f32.mxu0 0.0
  %5874 = vmatmul.mubr.f32.gmra.mrb[0].mxu0 %v5786
  %v5875 = vpop.f32.mrb[0].mxu0
  %v5876 = vadd.f32 0.0, %v5875
  %v5877 = vpop.f32.mrb[0].mxu0
  %5878 = vmatprep.mubr.f32.mxu0 0.0
  %5879 = vmatmul.mubr.f32.gmra.mrb[0].mxu0 %v5789
  %v5880 = vpop.f32.mrb[0].mxu0
  %v5881 = vadd.f32 0.0, %v5880
  %v5882 = vpop.f32.mrb[0].mxu0
  %5883 = vmatprep.mubr.f32.mxu0 0.0
  %5884 = vmatmul.mubr.f32.gmra.mrb[0].mxu0 %v5792
  %v5885 = vpop.f32.mrb[0].mxu0
  %v5886 = vadd.f32 0.0, %v5885
  %v5887 = vpop.f32.mrb[0].mxu0
  %5888 = vmatprep.mubr.f32.mxu0 0.0
  %5889 = vmatmul.mubr.f32.gmra.mrb[0].mxu0 %v5795
  %v5890 = vpop.f32.mrb[0].mxu0
  %v5891 = vadd.f32 0.0, %v5890
  %v5892 = vpop.f32.mrb[0].mxu0
  %5893 = vmatprep.mubr.f32.mxu0 0.0
  %5894 = vmatmul.mubr.f32.gmra.mrb[0].mxu0 %v5798
  %v5895 = vpop.f32.mrb[0].mxu0
  %v5896 = vadd.f32 0.0, %v5895
  %v5897 = vpop.f32.mrb[0].mxu0
  %5898 = vmatprep.mubr.f32.mxu0 0.0
  %5899 = vmatmul.mubr.f32.gmra.mrb[0].mxu0 %v5801
  %v5900 = vpop.f32.mrb[0].mxu0
  %v5901 = vadd.f32 0.0, %v5900
  %v5902 = vpop.f32.mrb[0].mxu0
  %5903 = vmatprep.mubr.f32.mxu0 0.0
  %5904 = vmatmul.mubr.f32.gmra.mrb[0].mxu0 %v5804
  %v5905 = vpop.f32.mrb[0].mxu0
  %v5906 = vadd.f32 0.0, %v5905
  %v5907 = vpop.f32.mrb[0].mxu0
  %5908 = vmatprep.mubr.f32.mxu0 0.0
  %5909 = vmatmul.mubr.f32.gmra.mrb[0].mxu0 %v5807
  %v5910 = vpop.f32.mrb[0].mxu0
  %v5911 = vadd.f32 0.0, %v5910
  %v5912 = vpop.f32.mrb[0].mxu0
  %5913 = vdwg.mxu0
  %v5914 = vadd.f32 %v5777, %v5876
  %v5915 = vadd.f32 %v5778, %v5881
  %v5916 = vadd.f32 %v5779, %v5886
  %v5917 = vadd.f32 %v5780, %v5891
  %v5918 = vadd.f32 %v5781, %v5896
  %v5919 = vadd.f32 %v5782, %v5901
  %v5920 = vadd.f32 %v5783, %v5906
  %v5921 = vadd.f32 %v5784, %v5911
  %v5922 = vmax.f32 %v5914, 0.0
  %v5923 = vmax.f32 %v5915, 0.0
  %v5924 = vmax.f32 %v5916, 0.0
  %v5925 = vmax.f32 %v5917, 0.0
  %v5926 = vmax.f32 %v5918, 0.0
  %v5927 = vmax.f32 %v5919, 0.0
  %v5928 = vmax.f32 %v5920, 0.0
  %v5929 = vmax.f32 %v5921, 0.0
  %v5930 = vld [vmem:[#allocation2 + $0x5c0] sm:$0xff]
  %v5931 = vld [vmem:[#allocation2 + $0x5c8] sm:$0xff]
  %v5932 = vld [vmem:[#allocation2 + $0x5d0] sm:$0xff]
  %v5933 = vld [vmem:[#allocation2 + $0x5d8] sm:$0xff]
  %v5934 = vld [vmem:[#allocation2 + $0x5e0] sm:$0xff]
  %v5935 = vld [vmem:[#allocation2 + $0x5e8] sm:$0xff]
  %v5936 = vld [vmem:[#allocation2 + $0x5f0] sm:$0xff]
  %v5937 = vld [vmem:[#allocation2 + $0x5f8] sm:$0xff]
  %v5939 = vsel %vm2051, %v5922, 0
  %v5942 = vsel %vm2051, %v5923, 0
  %v5945 = vsel %vm2051, %v5924, 0
  %v5948 = vsel %vm2051, %v5925, 0
  %v5951 = vsel %vm2051, %v5926, 0
  %v5954 = vsel %vm2051, %v5927, 0
  %v5957 = vsel %vm2051, %v5928, 0
  %v5960 = vsel %vm2051, %v5929, 0
  %5962 = vmatprep.subr.mxu0 0.0
  %5963 = vmatpush1.msra.mxu0 %v2428
  %5964 = vmatprep.subr.mxu0 0.0
  %5965 = vmatpush1.msra.mxu0 %v2429
  %5966 = vmatprep.subr.mxu0 0.0
  %5967 = vmatpush1.msra.mxu0 %v2430
  %5968 = vmatprep.subr.mxu0 0.0
  %5969 = vmatpush1.msra.mxu0 %v2431
  %5970 = vmatprep.subr.mxu0 0.0
  %5971 = vmatpush1.msra.mxu0 0.0
  %5972 = vmatprep.subr.mxu0 0.0
  %5973 = vmatpush1.msra.mxu0 0.0
  %5974 = vmatprep.subr.mxu0 0.0
  %5975 = vmatpush1.msra.mxu0 0.0
  %5976 = vmatprep.subr.mxu0 0.0
  %5977 = vmatpush1.msra.mxu0 0.0
  %5978 = vmatprep.subr.mxu0 0.0
  %5979 = vmatpush1.msra.mxu0 0.0
  %5980 = vmatprep.subr.mxu0 0.0
  %5981 = vmatpush1.msra.mxu0 0.0
  %5982 = vmatprep.subr.mxu0 0.0
  %5983 = vmatpush1.msra.mxu0 0.0
  %5984 = vmatprep.subr.mxu0 0.0
  %5985 = vmatpush1.msra.mxu0 0.0
  %5986 = vmatprep.subr.mxu0 0.0
  %5987 = vmatpush1.msra.mxu0 0.0
  %5988 = vmatprep.subr.mxu0 0.0
  %5989 = vmatpush1.msra.mxu0 0.0
  %5990 = vmatprep.subr.mxu0 0.0
  %5991 = vmatpush1.msra.mxu0 0.0
  %5992 = vmatprep.subr.mxu0 0.0
  %5993 = vmatpush1.msra.mxu0 0.0
  %5994 = vmatprep.subr.mxu0 0.0
  %5995 = vmatpush1.msra.mxu0 0.0
  %5996 = vmatprep.subr.mxu0 0.0
  %5997 = vmatpush1.msra.mxu0 0.0
  %5998 = vmatprep.subr.mxu0 0.0
  %5999 = vmatpush1.msra.mxu0 0.0
  %6000 = vmatprep.subr.mxu0 0.0
  %6001 = vmatpush1.msra.mxu0 0.0
  %6002 = vmatprep.subr.mxu0 0.0
  %6003 = vmatpush1.msra.mxu0 0.0
  %6004 = vmatprep.subr.mxu0 0.0
  %6005 = vmatpush1.msra.mxu0 0.0
  %6006 = vmatprep.subr.mxu0 0.0
  %6007 = vmatpush1.msra.mxu0 0.0
  %6008 = vmatprep.subr.mxu0 0.0
  %6009 = vmatpush1.msra.mxu0 0.0
  %6010 = vmatprep.subr.mxu0 0.0
  %6011 = vmatpush1.msra.mxu0 0.0
  %6012 = vmatprep.subr.mxu0 0.0
  %6013 = vmatpush1.msra.mxu0 0.0
  %6014 = vmatprep.subr.mxu0 0.0
  %6015 = vmatpush1.msra.mxu0 0.0
  %6016 = vmatprep.subr.mxu0 0.0
  %6017 = vmatpush1.msra.mxu0 0.0
  %6018 = vmatprep.subr.mxu0 0.0
  %6019 = vmatpush1.msra.mxu0 0.0
  %6020 = vmatprep.subr.mxu0 0.0
  %6021 = vmatpush1.msra.mxu0 0.0
  %6022 = vmatprep.subr.mxu0 0.0
  %6023 = vmatpush1.msra.mxu0 0.0
  %6024 = vmatprep.subr.mxu0 0.0
  %6025 = vmatpush1.msra.mxu0 0.0
  %6026 = vmatprep.mubr.f32.mxu0 0.0
  %6027 = vmatmul.mubr.f32.gmra.mrb[0].mxu0 %v5939
  %v6028 = vpop.f32.mrb[0].mxu0
  %v6029 = vadd.f32 0.0, %v6028
  %v6030 = vpop.f32.mrb[0].mxu0
  %6031 = vmatprep.mubr.f32.mxu0 0.0
  %6032 = vmatmul.mubr.f32.gmra.mrb[0].mxu0 %v5942
  %v6033 = vpop.f32.mrb[0].mxu0
  %v6034 = vadd.f32 0.0, %v6033
  %v6035 = vpop.f32.mrb[0].mxu0
  %6036 = vmatprep.mubr.f32.mxu0 0.0
  %6037 = vmatmul.mubr.f32.gmra.mrb[0].mxu0 %v5945
  %v6038 = vpop.f32.mrb[0].mxu0
  %v6039 = vadd.f32 0.0, %v6038
  %v6040 = vpop.f32.mrb[0].mxu0
  %6041 = vmatprep.mubr.f32.mxu0 0.0
  %6042 = vmatmul.mubr.f32.gmra.mrb[0].mxu0 %v5948
  %v6043 = vpop.f32.mrb[0].mxu0
  %v6044 = vadd.f32 0.0, %v6043
  %v6045 = vpop.f32.mrb[0].mxu0
  %6046 = vmatprep.mubr.f32.mxu0 0.0
  %6047 = vmatmul.mubr.f32.gmra.mrb[0].mxu0 %v5951
  %v6048 = vpop.f32.mrb[0].mxu0
  %v6049 = vadd.f32 0.0, %v6048
  %v6050 = vpop.f32.mrb[0].mxu0
  %6051 = vmatprep.mubr.f32.mxu0 0.0
  %6052 = vmatmul.mubr.f32.gmra.mrb[0].mxu0 %v5954
  %v6053 = vpop.f32.mrb[0].mxu0
  %v6054 = vadd.f32 0.0, %v6053
  %v6055 = vpop.f32.mrb[0].mxu0
  %6056 = vmatprep.mubr.f32.mxu0 0.0
  %6057 = vmatmul.mubr.f32.gmra.mrb[0].mxu0 %v5957
  %v6058 = vpop.f32.mrb[0].mxu0
  %v6059 = vadd.f32 0.0, %v6058
  %v6060 = vpop.f32.mrb[0].mxu0
  %6061 = vmatprep.mubr.f32.mxu0 0.0
  %6062 = vmatmul.mubr.f32.gmra.mrb[0].mxu0 %v5960
  %v6063 = vpop.f32.mrb[0].mxu0
  %v6064 = vadd.f32 0.0, %v6063
  %v6065 = vpop.f32.mrb[0].mxu0
  %6066 = vdwg.mxu0
  %v6067 = vadd.f32 %v5930, %v6029
  %v6068 = vadd.f32 %v5931, %v6034
  %v6069 = vadd.f32 %v5932, %v6039
  %v6070 = vadd.f32 %v5933, %v6044
  %v6071 = vadd.f32 %v5934, %v6049
  %v6072 = vadd.f32 %v5935, %v6054
  %v6073 = vadd.f32 %v5936, %v6059
  %v6074 = vadd.f32 %v5937, %v6064
  %v6075 = vmax.f32 %v6067, 0.0
  %v6076 = vmax.f32 %v6068, 0.0
  %v6077 = vmax.f32 %v6069, 0.0
  %v6078 = vmax.f32 %v6070, 0.0
  %v6079 = vmax.f32 %v6071, 0.0
  %v6080 = vmax.f32 %v6072, 0.0
  %v6081 = vmax.f32 %v6073, 0.0
  %v6082 = vmax.f32 %v6074, 0.0
  %v6083 = vld [vmem:[#allocation2 + $0x600] sm:$0xff]
  %v6084 = vld [vmem:[#allocation2 + $0x608] sm:$0xff]
  %v6085 = vld [vmem:[#allocation2 + $0x610] sm:$0xff]
  %v6086 = vld [vmem:[#allocation2 + $0x618] sm:$0xff]
  %v6087 = vld [vmem:[#allocation2 + $0x620] sm:$0xff]
  %v6088 = vld [vmem:[#allocation2 + $0x628] sm:$0xff]
  %v6089 = vld [vmem:[#allocation2 + $0x630] sm:$0xff]
  %v6090 = vld [vmem:[#allocation2 + $0x638] sm:$0xff]
  %v6092 = vsel %vm2051, %v6075, 0
  %v6095 = vsel %vm2051, %v6076, 0
  %v6098 = vsel %vm2051, %v6077, 0
  %v6101 = vsel %vm2051, %v6078, 0
  %v6104 = vsel %vm2051, %v6079, 0
  %v6107 = vsel %vm2051, %v6080, 0
  %v6110 = vsel %vm2051, %v6081, 0
  %v6113 = vsel %vm2051, %v6082, 0
  %6115 = vmatprep.subr.mxu0 0.0
  %6116 = vmatpush1.msra.mxu0 %v2428
  %6117 = vmatprep.subr.mxu0 0.0
  %6118 = vmatpush1.msra.mxu0 %v2429
  %6119 = vmatprep.subr.mxu0 0.0
  %6120 = vmatpush1.msra.mxu0 %v2430
  %6121 = vmatprep.subr.mxu0 0.0
  %6122 = vmatpush1.msra.mxu0 %v2431
  %6123 = vmatprep.subr.mxu0 0.0
  %6124 = vmatpush1.msra.mxu0 0.0
  %6125 = vmatprep.subr.mxu0 0.0
  %6126 = vmatpush1.msra.mxu0 0.0
  %6127 = vmatprep.subr.mxu0 0.0
  %6128 = vmatpush1.msra.mxu0 0.0
  %6129 = vmatprep.subr.mxu0 0.0
  %6130 = vmatpush1.msra.mxu0 0.0
  %6131 = vmatprep.subr.mxu0 0.0
  %6132 = vmatpush1.msra.mxu0 0.0
  %6133 = vmatprep.subr.mxu0 0.0
  %6134 = vmatpush1.msra.mxu0 0.0
  %6135 = vmatprep.subr.mxu0 0.0
  %6136 = vmatpush1.msra.mxu0 0.0
  %6137 = vmatprep.subr.mxu0 0.0
  %6138 = vmatpush1.msra.mxu0 0.0
  %6139 = vmatprep.subr.mxu0 0.0
  %6140 = vmatpush1.msra.mxu0 0.0
  %6141 = vmatprep.subr.mxu0 0.0
  %6142 = vmatpush1.msra.mxu0 0.0
  %6143 = vmatprep.subr.mxu0 0.0
  %6144 = vmatpush1.msra.mxu0 0.0
  %6145 = vmatprep.subr.mxu0 0.0
  %6146 = vmatpush1.msra.mxu0 0.0
  %6147 = vmatprep.subr.mxu0 0.0
  %6148 = vmatpush1.msra.mxu0 0.0
  %6149 = vmatprep.subr.mxu0 0.0
  %6150 = vmatpush1.msra.mxu0 0.0
  %6151 = vmatprep.subr.mxu0 0.0
  %6152 = vmatpush1.msra.mxu0 0.0
  %6153 = vmatprep.subr.mxu0 0.0
  %6154 = vmatpush1.msra.mxu0 0.0
  %6155 = vmatprep.subr.mxu0 0.0
  %6156 = vmatpush1.msra.mxu0 0.0
  %6157 = vmatprep.subr.mxu0 0.0
  %6158 = vmatpush1.msra.mxu0 0.0
  %6159 = vmatprep.subr.mxu0 0.0
  %6160 = vmatpush1.msra.mxu0 0.0
  %6161 = vmatprep.subr.mxu0 0.0
  %6162 = vmatpush1.msra.mxu0 0.0
  %6163 = vmatprep.subr.mxu0 0.0
  %6164 = vmatpush1.msra.mxu0 0.0
  %6165 = vmatprep.subr.mxu0 0.0
  %6166 = vmatpush1.msra.mxu0 0.0
  %6167 = vmatprep.subr.mxu0 0.0
  %6168 = vmatpush1.msra.mxu0 0.0
  %6169 = vmatprep.subr.mxu0 0.0
  %6170 = vmatpush1.msra.mxu0 0.0
  %6171 = vmatprep.subr.mxu0 0.0
  %6172 = vmatpush1.msra.mxu0 0.0
  %6173 = vmatprep.subr.mxu0 0.0
  %6174 = vmatpush1.msra.mxu0 0.0
  %6175 = vmatprep.subr.mxu0 0.0
  %6176 = vmatpush1.msra.mxu0 0.0
  %6177 = vmatprep.subr.mxu0 0.0
  %6178 = vmatpush1.msra.mxu0 0.0
  %6179 = vmatprep.mubr.f32.mxu0 0.0
  %6180 = vmatmul.mubr.f32.gmra.mrb[0].mxu0 %v6092
  %v6181 = vpop.f32.mrb[0].mxu0
  %v6182 = vadd.f32 0.0, %v6181
  %v6183 = vpop.f32.mrb[0].mxu0
  %6184 = vmatprep.mubr.f32.mxu0 0.0
  %6185 = vmatmul.mubr.f32.gmra.mrb[0].mxu0 %v6095
  %v6186 = vpop.f32.mrb[0].mxu0
  %v6187 = vadd.f32 0.0, %v6186
  %v6188 = vpop.f32.mrb[0].mxu0
  %6189 = vmatprep.mubr.f32.mxu0 0.0
  %6190 = vmatmul.mubr.f32.gmra.mrb[0].mxu0 %v6098
  %v6191 = vpop.f32.mrb[0].mxu0
  %v6192 = vadd.f32 0.0, %v6191
  %v6193 = vpop.f32.mrb[0].mxu0
  %6194 = vmatprep.mubr.f32.mxu0 0.0
  %6195 = vmatmul.mubr.f32.gmra.mrb[0].mxu0 %v6101
  %v6196 = vpop.f32.mrb[0].mxu0
  %v6197 = vadd.f32 0.0, %v6196
  %v6198 = vpop.f32.mrb[0].mxu0
  %6199 = vmatprep.mubr.f32.mxu0 0.0
  %6200 = vmatmul.mubr.f32.gmra.mrb[0].mxu0 %v6104
  %v6201 = vpop.f32.mrb[0].mxu0
  %v6202 = vadd.f32 0.0, %v6201
  %v6203 = vpop.f32.mrb[0].mxu0
  %6204 = vmatprep.mubr.f32.mxu0 0.0
  %6205 = vmatmul.mubr.f32.gmra.mrb[0].mxu0 %v6107
  %v6206 = vpop.f32.mrb[0].mxu0
  %v6207 = vadd.f32 0.0, %v6206
  %v6208 = vpop.f32.mrb[0].mxu0
  %6209 = vmatprep.mubr.f32.mxu0 0.0
  %6210 = vmatmul.mubr.f32.gmra.mrb[0].mxu0 %v6110
  %v6211 = vpop.f32.mrb[0].mxu0
  %v6212 = vadd.f32 0.0, %v6211
  %v6213 = vpop.f32.mrb[0].mxu0
  %6214 = vmatprep.mubr.f32.mxu0 0.0
  %6215 = vmatmul.mubr.f32.gmra.mrb[0].mxu0 %v6113
  %v6216 = vpop.f32.mrb[0].mxu0
  %v6217 = vadd.f32 0.0, %v6216
  %v6218 = vpop.f32.mrb[0].mxu0
  %6219 = vdwg.mxu0
  %v6220 = vadd.f32 %v6083, %v6182
  %v6221 = vadd.f32 %v6084, %v6187
  %v6222 = vadd.f32 %v6085, %v6192
  %v6223 = vadd.f32 %v6086, %v6197
  %v6224 = vadd.f32 %v6087, %v6202
  %v6225 = vadd.f32 %v6088, %v6207
  %v6226 = vadd.f32 %v6089, %v6212
  %v6227 = vadd.f32 %v6090, %v6217
  %v6228 = vmax.f32 %v6220, 0.0
  %v6229 = vmax.f32 %v6221, 0.0
  %v6230 = vmax.f32 %v6222, 0.0
  %v6231 = vmax.f32 %v6223, 0.0
  %v6232 = vmax.f32 %v6224, 0.0
  %v6233 = vmax.f32 %v6225, 0.0
  %v6234 = vmax.f32 %v6226, 0.0
  %v6235 = vmax.f32 %v6227, 0.0
  %v6236 = vld [vmem:[#allocation2 + $0x640] sm:$0xff]
  %v6237 = vld [vmem:[#allocation2 + $0x648] sm:$0xff]
  %v6238 = vld [vmem:[#allocation2 + $0x650] sm:$0xff]
  %v6239 = vld [vmem:[#allocation2 + $0x658] sm:$0xff]
  %v6240 = vld [vmem:[#allocation2 + $0x660] sm:$0xff]
  %v6241 = vld [vmem:[#allocation2 + $0x668] sm:$0xff]
  %v6242 = vld [vmem:[#allocation2 + $0x670] sm:$0xff]
  %v6243 = vld [vmem:[#allocation2 + $0x678] sm:$0xff]
  %v6245 = vsel %vm2051, %v6228, 0
  %v6248 = vsel %vm2051, %v6229, 0
  %v6251 = vsel %vm2051, %v6230, 0
  %v6254 = vsel %vm2051, %v6231, 0
  %v6257 = vsel %vm2051, %v6232, 0
  %v6260 = vsel %vm2051, %v6233, 0
  %v6263 = vsel %vm2051, %v6234, 0
  %v6266 = vsel %vm2051, %v6235, 0
  %6268 = vmatprep.subr.mxu0 0.0
  %6269 = vmatpush1.msra.mxu0 %v2428
  %6270 = vmatprep.subr.mxu0 0.0
  %6271 = vmatpush1.msra.mxu0 %v2429
  %6272 = vmatprep.subr.mxu0 0.0
  %6273 = vmatpush1.msra.mxu0 %v2430
  %6274 = vmatprep.subr.mxu0 0.0
  %6275 = vmatpush1.msra.mxu0 %v2431
  %6276 = vmatprep.subr.mxu0 0.0
  %6277 = vmatpush1.msra.mxu0 0.0
  %6278 = vmatprep.subr.mxu0 0.0
  %6279 = vmatpush1.msra.mxu0 0.0
  %6280 = vmatprep.subr.mxu0 0.0
  %6281 = vmatpush1.msra.mxu0 0.0
  %6282 = vmatprep.subr.mxu0 0.0
  %6283 = vmatpush1.msra.mxu0 0.0
  %6284 = vmatprep.subr.mxu0 0.0
  %6285 = vmatpush1.msra.mxu0 0.0
  %6286 = vmatprep.subr.mxu0 0.0
  %6287 = vmatpush1.msra.mxu0 0.0
  %6288 = vmatprep.subr.mxu0 0.0
  %6289 = vmatpush1.msra.mxu0 0.0
  %6290 = vmatprep.subr.mxu0 0.0
  %6291 = vmatpush1.msra.mxu0 0.0
  %6292 = vmatprep.subr.mxu0 0.0
  %6293 = vmatpush1.msra.mxu0 0.0
  %6294 = vmatprep.subr.mxu0 0.0
  %6295 = vmatpush1.msra.mxu0 0.0
  %6296 = vmatprep.subr.mxu0 0.0
  %6297 = vmatpush1.msra.mxu0 0.0
  %6298 = vmatprep.subr.mxu0 0.0
  %6299 = vmatpush1.msra.mxu0 0.0
  %6300 = vmatprep.subr.mxu0 0.0
  %6301 = vmatpush1.msra.mxu0 0.0
  %6302 = vmatprep.subr.mxu0 0.0
  %6303 = vmatpush1.msra.mxu0 0.0
  %6304 = vmatprep.subr.mxu0 0.0
  %6305 = vmatpush1.msra.mxu0 0.0
  %6306 = vmatprep.subr.mxu0 0.0
  %6307 = vmatpush1.msra.mxu0 0.0
  %6308 = vmatprep.subr.mxu0 0.0
  %6309 = vmatpush1.msra.mxu0 0.0
  %6310 = vmatprep.subr.mxu0 0.0
  %6311 = vmatpush1.msra.mxu0 0.0
  %6312 = vmatprep.subr.mxu0 0.0
  %6313 = vmatpush1.msra.mxu0 0.0
  %6314 = vmatprep.subr.mxu0 0.0
  %6315 = vmatpush1.msra.mxu0 0.0
  %6316 = vmatprep.subr.mxu0 0.0
  %6317 = vmatpush1.msra.mxu0 0.0
  %6318 = vmatprep.subr.mxu0 0.0
  %6319 = vmatpush1.msra.mxu0 0.0
  %6320 = vmatprep.subr.mxu0 0.0
  %6321 = vmatpush1.msra.mxu0 0.0
  %6322 = vmatprep.subr.mxu0 0.0
  %6323 = vmatpush1.msra.mxu0 0.0
  %6324 = vmatprep.subr.mxu0 0.0
  %6325 = vmatpush1.msra.mxu0 0.0
  %6326 = vmatprep.subr.mxu0 0.0
  %6327 = vmatpush1.msra.mxu0 0.0
  %6328 = vmatprep.subr.mxu0 0.0
  %6329 = vmatpush1.msra.mxu0 0.0
  %6330 = vmatprep.subr.mxu0 0.0
  %6331 = vmatpush1.msra.mxu0 0.0
  %6332 = vmatprep.mubr.f32.mxu0 0.0
  %6333 = vmatmul.mubr.f32.gmra.mrb[0].mxu0 %v6245
  %v6334 = vpop.f32.mrb[0].mxu0
  %v6335 = vadd.f32 0.0, %v6334
  %v6336 = vpop.f32.mrb[0].mxu0
  %6337 = vmatprep.mubr.f32.mxu0 0.0
  %6338 = vmatmul.mubr.f32.gmra.mrb[0].mxu0 %v6248
  %v6339 = vpop.f32.mrb[0].mxu0
  %v6340 = vadd.f32 0.0, %v6339
  %v6341 = vpop.f32.mrb[0].mxu0
  %6342 = vmatprep.mubr.f32.mxu0 0.0
  %6343 = vmatmul.mubr.f32.gmra.mrb[0].mxu0 %v6251
  %v6344 = vpop.f32.mrb[0].mxu0
  %v6345 = vadd.f32 0.0, %v6344
  %v6346 = vpop.f32.mrb[0].mxu0
  %6347 = vmatprep.mubr.f32.mxu0 0.0
  %6348 = vmatmul.mubr.f32.gmra.mrb[0].mxu0 %v6254
  %v6349 = vpop.f32.mrb[0].mxu0
  %v6350 = vadd.f32 0.0, %v6349
  %v6351 = vpop.f32.mrb[0].mxu0
  %6352 = vmatprep.mubr.f32.mxu0 0.0
  %6353 = vmatmul.mubr.f32.gmra.mrb[0].mxu0 %v6257
  %v6354 = vpop.f32.mrb[0].mxu0
  %v6355 = vadd.f32 0.0, %v6354
  %v6356 = vpop.f32.mrb[0].mxu0
  %6357 = vmatprep.mubr.f32.mxu0 0.0
  %6358 = vmatmul.mubr.f32.gmra.mrb[0].mxu0 %v6260
  %v6359 = vpop.f32.mrb[0].mxu0
  %v6360 = vadd.f32 0.0, %v6359
  %v6361 = vpop.f32.mrb[0].mxu0
  %6362 = vmatprep.mubr.f32.mxu0 0.0
  %6363 = vmatmul.mubr.f32.gmra.mrb[0].mxu0 %v6263
  %v6364 = vpop.f32.mrb[0].mxu0
  %v6365 = vadd.f32 0.0, %v6364
  %v6366 = vpop.f32.mrb[0].mxu0
  %6367 = vmatprep.mubr.f32.mxu0 0.0
  %6368 = vmatmul.mubr.f32.gmra.mrb[0].mxu0 %v6266
  %v6369 = vpop.f32.mrb[0].mxu0
  %v6370 = vadd.f32 0.0, %v6369
  %v6371 = vpop.f32.mrb[0].mxu0
  %6372 = vdwg.mxu0
  %v6373 = vadd.f32 %v6236, %v6335
  %v6374 = vadd.f32 %v6237, %v6340
  %v6375 = vadd.f32 %v6238, %v6345
  %v6376 = vadd.f32 %v6239, %v6350
  %v6377 = vadd.f32 %v6240, %v6355
  %v6378 = vadd.f32 %v6241, %v6360
  %v6379 = vadd.f32 %v6242, %v6365
  %v6380 = vadd.f32 %v6243, %v6370
  %v6381 = vmax.f32 %v6373, 0.0
  %v6382 = vmax.f32 %v6374, 0.0
  %v6383 = vmax.f32 %v6375, 0.0
  %v6384 = vmax.f32 %v6376, 0.0
  %v6385 = vmax.f32 %v6377, 0.0
  %v6386 = vmax.f32 %v6378, 0.0
  %v6387 = vmax.f32 %v6379, 0.0
  %v6388 = vmax.f32 %v6380, 0.0
  %v6389 = vld [vmem:[#allocation2 + $0x680] sm:$0xff]
  %v6390 = vld [vmem:[#allocation2 + $0x688] sm:$0xff]
  %v6391 = vld [vmem:[#allocation2 + $0x690] sm:$0xff]
  %v6392 = vld [vmem:[#allocation2 + $0x698] sm:$0xff]
  %v6393 = vld [vmem:[#allocation2 + $0x6a0] sm:$0xff]
  %v6394 = vld [vmem:[#allocation2 + $0x6a8] sm:$0xff]
  %v6395 = vld [vmem:[#allocation2 + $0x6b0] sm:$0xff]
  %v6396 = vld [vmem:[#allocation2 + $0x6b8] sm:$0xff]
  %v6398 = vsel %vm2051, %v6381, 0
  %v6401 = vsel %vm2051, %v6382, 0
  %v6404 = vsel %vm2051, %v6383, 0
  %v6407 = vsel %vm2051, %v6384, 0
  %v6410 = vsel %vm2051, %v6385, 0
  %v6413 = vsel %vm2051, %v6386, 0
  %v6416 = vsel %vm2051, %v6387, 0
  %v6419 = vsel %vm2051, %v6388, 0
  %6421 = vmatprep.subr.mxu0 0.0
  %6422 = vmatpush1.msra.mxu0 %v2428
  %6423 = vmatprep.subr.mxu0 0.0
  %6424 = vmatpush1.msra.mxu0 %v2429
  %6425 = vmatprep.subr.mxu0 0.0
  %6426 = vmatpush1.msra.mxu0 %v2430
  %6427 = vmatprep.subr.mxu0 0.0
  %6428 = vmatpush1.msra.mxu0 %v2431
  %6429 = vmatprep.subr.mxu0 0.0
  %6430 = vmatpush1.msra.mxu0 0.0
  %6431 = vmatprep.subr.mxu0 0.0
  %6432 = vmatpush1.msra.mxu0 0.0
  %6433 = vmatprep.subr.mxu0 0.0
  %6434 = vmatpush1.msra.mxu0 0.0
  %6435 = vmatprep.subr.mxu0 0.0
  %6436 = vmatpush1.msra.mxu0 0.0
  %6437 = vmatprep.subr.mxu0 0.0
  %6438 = vmatpush1.msra.mxu0 0.0
  %6439 = vmatprep.subr.mxu0 0.0
  %6440 = vmatpush1.msra.mxu0 0.0
  %6441 = vmatprep.subr.mxu0 0.0
  %6442 = vmatpush1.msra.mxu0 0.0
  %6443 = vmatprep.subr.mxu0 0.0
  %6444 = vmatpush1.msra.mxu0 0.0
  %6445 = vmatprep.subr.mxu0 0.0
  %6446 = vmatpush1.msra.mxu0 0.0
  %6447 = vmatprep.subr.mxu0 0.0
  %6448 = vmatpush1.msra.mxu0 0.0
  %6449 = vmatprep.subr.mxu0 0.0
  %6450 = vmatpush1.msra.mxu0 0.0
  %6451 = vmatprep.subr.mxu0 0.0
  %6452 = vmatpush1.msra.mxu0 0.0
  %6453 = vmatprep.subr.mxu0 0.0
  %6454 = vmatpush1.msra.mxu0 0.0
  %6455 = vmatprep.subr.mxu0 0.0
  %6456 = vmatpush1.msra.mxu0 0.0
  %6457 = vmatprep.subr.mxu0 0.0
  %6458 = vmatpush1.msra.mxu0 0.0
  %6459 = vmatprep.subr.mxu0 0.0
  %6460 = vmatpush1.msra.mxu0 0.0
  %6461 = vmatprep.subr.mxu0 0.0
  %6462 = vmatpush1.msra.mxu0 0.0
  %6463 = vmatprep.subr.mxu0 0.0
  %6464 = vmatpush1.msra.mxu0 0.0
  %6465 = vmatprep.subr.mxu0 0.0
  %6466 = vmatpush1.msra.mxu0 0.0
  %6467 = vmatprep.subr.mxu0 0.0
  %6468 = vmatpush1.msra.mxu0 0.0
  %6469 = vmatprep.subr.mxu0 0.0
  %6470 = vmatpush1.msra.mxu0 0.0
  %6471 = vmatprep.subr.mxu0 0.0
  %6472 = vmatpush1.msra.mxu0 0.0
  %6473 = vmatprep.subr.mxu0 0.0
  %6474 = vmatpush1.msra.mxu0 0.0
  %6475 = vmatprep.subr.mxu0 0.0
  %6476 = vmatpush1.msra.mxu0 0.0
  %6477 = vmatprep.subr.mxu0 0.0
  %6478 = vmatpush1.msra.mxu0 0.0
  %6479 = vmatprep.subr.mxu0 0.0
  %6480 = vmatpush1.msra.mxu0 0.0
  %6481 = vmatprep.subr.mxu0 0.0
  %6482 = vmatpush1.msra.mxu0 0.0
  %6483 = vmatprep.subr.mxu0 0.0
  %6484 = vmatpush1.msra.mxu0 0.0
  %6485 = vmatprep.mubr.f32.mxu0 0.0
  %6486 = vmatmul.mubr.f32.gmra.mrb[0].mxu0 %v6398
  %v6487 = vpop.f32.mrb[0].mxu0
  %v6488 = vadd.f32 0.0, %v6487
  %v6489 = vpop.f32.mrb[0].mxu0
  %6490 = vmatprep.mubr.f32.mxu0 0.0
  %6491 = vmatmul.mubr.f32.gmra.mrb[0].mxu0 %v6401
  %v6492 = vpop.f32.mrb[0].mxu0
  %v6493 = vadd.f32 0.0, %v6492
  %v6494 = vpop.f32.mrb[0].mxu0
  %6495 = vmatprep.mubr.f32.mxu0 0.0
  %6496 = vmatmul.mubr.f32.gmra.mrb[0].mxu0 %v6404
  %v6497 = vpop.f32.mrb[0].mxu0
  %v6498 = vadd.f32 0.0, %v6497
  %v6499 = vpop.f32.mrb[0].mxu0
  %6500 = vmatprep.mubr.f32.mxu0 0.0
  %6501 = vmatmul.mubr.f32.gmra.mrb[0].mxu0 %v6407
  %v6502 = vpop.f32.mrb[0].mxu0
  %v6503 = vadd.f32 0.0, %v6502
  %v6504 = vpop.f32.mrb[0].mxu0
  %6505 = vmatprep.mubr.f32.mxu0 0.0
  %6506 = vmatmul.mubr.f32.gmra.mrb[0].mxu0 %v6410
  %v6507 = vpop.f32.mrb[0].mxu0
  %v6508 = vadd.f32 0.0, %v6507
  %v6509 = vpop.f32.mrb[0].mxu0
  %6510 = vmatprep.mubr.f32.mxu0 0.0
  %6511 = vmatmul.mubr.f32.gmra.mrb[0].mxu0 %v6413
  %v6512 = vpop.f32.mrb[0].mxu0
  %v6513 = vadd.f32 0.0, %v6512
  %v6514 = vpop.f32.mrb[0].mxu0
  %6515 = vmatprep.mubr.f32.mxu0 0.0
  %6516 = vmatmul.mubr.f32.gmra.mrb[0].mxu0 %v6416
  %v6517 = vpop.f32.mrb[0].mxu0
  %v6518 = vadd.f32 0.0, %v6517
  %v6519 = vpop.f32.mrb[0].mxu0
  %6520 = vmatprep.mubr.f32.mxu0 0.0
  %6521 = vmatmul.mubr.f32.gmra.mrb[0].mxu0 %v6419
  %v6522 = vpop.f32.mrb[0].mxu0
  %v6523 = vadd.f32 0.0, %v6522
  %v6524 = vpop.f32.mrb[0].mxu0
  %6525 = vdwg.mxu0
  %v6526 = vadd.f32 %v6389, %v6488
  %v6527 = vadd.f32 %v6390, %v6493
  %v6528 = vadd.f32 %v6391, %v6498
  %v6529 = vadd.f32 %v6392, %v6503
  %v6530 = vadd.f32 %v6393, %v6508
  %v6531 = vadd.f32 %v6394, %v6513
  %v6532 = vadd.f32 %v6395, %v6518
  %v6533 = vadd.f32 %v6396, %v6523
  %v6534 = vmax.f32 %v6526, 0.0
  %v6535 = vmax.f32 %v6527, 0.0
  %v6536 = vmax.f32 %v6528, 0.0
  %v6537 = vmax.f32 %v6529, 0.0
  %v6538 = vmax.f32 %v6530, 0.0
  %v6539 = vmax.f32 %v6531, 0.0
  %v6540 = vmax.f32 %v6532, 0.0
  %v6541 = vmax.f32 %v6533, 0.0
  %v6542 = vld [vmem:[%s7] sm:$0xff]
  %v6543 = vld [vmem:[%s7 + $0x8] sm:$0xff]
  %v6544 = vld [vmem:[%s7 + $0x10] sm:$0xff]
  %v6545 = vld [vmem:[%s7 + $0x18] sm:$0xff]
  %v6546 = vld [vmem:[%s7 + $0x20] sm:$0xff]
  %v6547 = vld [vmem:[%s7 + $0x28] sm:$0xff]
  %v6548 = vld [vmem:[%s7 + $0x30] sm:$0xff]
  %v6549 = vld [vmem:[%s7 + $0x38] sm:$0xff]
  %v6550 = vld [vmem:[%s5] sm:$0xff]
  %v6551 = vld [vmem:[%s5 + $0x8] sm:$0xff]
  %v6552 = vld [vmem:[%s5 + $0x10] sm:$0xff]
  %v6553 = vld [vmem:[%s5 + $0x18] sm:$0xff]
  %v6555 = vsel %vm2051, %v6534, 0
  %v6558 = vsel %vm2051, %v6535, 0
  %v6561 = vsel %vm2051, %v6536, 0
  %v6564 = vsel %vm2051, %v6537, 0
  %v6567 = vsel %vm2051, %v6538, 0
  %v6570 = vsel %vm2051, %v6539, 0
  %v6573 = vsel %vm2051, %v6540, 0
  %v6576 = vsel %vm2051, %v6541, 0
  %6578 = vmatprep.subr.mxu0 0.0
  %6579 = vmatpush1.msra.mxu0 %v6550
  %6580 = vmatprep.subr.mxu0 0.0
  %6581 = vmatpush1.msra.mxu0 %v6551
  %6582 = vmatprep.subr.mxu0 0.0
  %6583 = vmatpush1.msra.mxu0 %v6552
  %6584 = vmatprep.subr.mxu0 0.0
  %6585 = vmatpush1.msra.mxu0 %v6553
  %6586 = vmatprep.subr.mxu0 0.0
  %6587 = vmatpush1.msra.mxu0 0.0
  %6588 = vmatprep.subr.mxu0 0.0
  %6589 = vmatpush1.msra.mxu0 0.0
  %6590 = vmatprep.subr.mxu0 0.0
  %6591 = vmatpush1.msra.mxu0 0.0
  %6592 = vmatprep.subr.mxu0 0.0
  %6593 = vmatpush1.msra.mxu0 0.0
  %6594 = vmatprep.subr.mxu0 0.0
  %6595 = vmatpush1.msra.mxu0 0.0
  %6596 = vmatprep.subr.mxu0 0.0
  %6597 = vmatpush1.msra.mxu0 0.0
  %6598 = vmatprep.subr.mxu0 0.0
  %6599 = vmatpush1.msra.mxu0 0.0
  %6600 = vmatprep.subr.mxu0 0.0
  %6601 = vmatpush1.msra.mxu0 0.0
  %6602 = vmatprep.subr.mxu0 0.0
  %6603 = vmatpush1.msra.mxu0 0.0
  %6604 = vmatprep.subr.mxu0 0.0
  %6605 = vmatpush1.msra.mxu0 0.0
  %6606 = vmatprep.subr.mxu0 0.0
  %6607 = vmatpush1.msra.mxu0 0.0
  %6608 = vmatprep.subr.mxu0 0.0
  %6609 = vmatpush1.msra.mxu0 0.0
  %6610 = vmatprep.subr.mxu0 0.0
  %6611 = vmatpush1.msra.mxu0 0.0
  %6612 = vmatprep.subr.mxu0 0.0
  %6613 = vmatpush1.msra.mxu0 0.0
  %6614 = vmatprep.subr.mxu0 0.0
  %6615 = vmatpush1.msra.mxu0 0.0
  %6616 = vmatprep.subr.mxu0 0.0
  %6617 = vmatpush1.msra.mxu0 0.0
  %6618 = vmatprep.subr.mxu0 0.0
  %6619 = vmatpush1.msra.mxu0 0.0
  %6620 = vmatprep.subr.mxu0 0.0
  %6621 = vmatpush1.msra.mxu0 0.0
  %6622 = vmatprep.subr.mxu0 0.0
  %6623 = vmatpush1.msra.mxu0 0.0
  %6624 = vmatprep.subr.mxu0 0.0
  %6625 = vmatpush1.msra.mxu0 0.0
  %6626 = vmatprep.subr.mxu0 0.0
  %6627 = vmatpush1.msra.mxu0 0.0
  %6628 = vmatprep.subr.mxu0 0.0
  %6629 = vmatpush1.msra.mxu0 0.0
  %6630 = vmatprep.subr.mxu0 0.0
  %6631 = vmatpush1.msra.mxu0 0.0
  %6632 = vmatprep.subr.mxu0 0.0
  %6633 = vmatpush1.msra.mxu0 0.0
  %6634 = vmatprep.subr.mxu0 0.0
  %6635 = vmatpush1.msra.mxu0 0.0
  %6636 = vmatprep.subr.mxu0 0.0
  %6637 = vmatpush1.msra.mxu0 0.0
  %6638 = vmatprep.subr.mxu0 0.0
  %6639 = vmatpush1.msra.mxu0 0.0
  %6640 = vmatprep.subr.mxu0 0.0
  %6641 = vmatpush1.msra.mxu0 0.0
  %6642 = vmatprep.mubr.f32.mxu0 0.0
  %6643 = vmatmul.mubr.f32.gmra.mrb[0].mxu0 %v6555
  %v6644 = vpop.f32.mrb[0].mxu0
  %v6645 = vadd.f32 0.0, %v6644
  %v6646 = vpop.f32.mrb[0].mxu0
  %6647 = vmatprep.mubr.f32.mxu0 0.0
  %6648 = vmatmul.mubr.f32.gmra.mrb[0].mxu0 %v6558
  %v6649 = vpop.f32.mrb[0].mxu0
  %v6650 = vadd.f32 0.0, %v6649
  %v6651 = vpop.f32.mrb[0].mxu0
  %6652 = vmatprep.mubr.f32.mxu0 0.0
  %6653 = vmatmul.mubr.f32.gmra.mrb[0].mxu0 %v6561
  %v6654 = vpop.f32.mrb[0].mxu0
  %v6655 = vadd.f32 0.0, %v6654
  %v6656 = vpop.f32.mrb[0].mxu0
  %6657 = vmatprep.mubr.f32.mxu0 0.0
  %6658 = vmatmul.mubr.f32.gmra.mrb[0].mxu0 %v6564
  %v6659 = vpop.f32.mrb[0].mxu0
  %v6660 = vadd.f32 0.0, %v6659
  %v6661 = vpop.f32.mrb[0].mxu0
  %6662 = vmatprep.mubr.f32.mxu0 0.0
  %6663 = vmatmul.mubr.f32.gmra.mrb[0].mxu0 %v6567
  %v6664 = vpop.f32.mrb[0].mxu0
  %v6665 = vadd.f32 0.0, %v6664
  %v6666 = vpop.f32.mrb[0].mxu0
  %6667 = vmatprep.mubr.f32.mxu0 0.0
  %6668 = vmatmul.mubr.f32.gmra.mrb[0].mxu0 %v6570
  %v6669 = vpop.f32.mrb[0].mxu0
  %v6670 = vadd.f32 0.0, %v6669
  %v6671 = vpop.f32.mrb[0].mxu0
  %6672 = vmatprep.mubr.f32.mxu0 0.0
  %6673 = vmatmul.mubr.f32.gmra.mrb[0].mxu0 %v6573
  %v6674 = vpop.f32.mrb[0].mxu0
  %v6675 = vadd.f32 0.0, %v6674
  %v6676 = vpop.f32.mrb[0].mxu0
  %6677 = vmatprep.mubr.f32.mxu0 0.0
  %6678 = vmatmul.mubr.f32.gmra.mrb[0].mxu0 %v6576
  %v6679 = vpop.f32.mrb[0].mxu0
  %v6680 = vadd.f32 0.0, %v6679
  %v6681 = vpop.f32.mrb[0].mxu0
  %6682 = vdwg.mxu0
  %v6683 = vadd.f32 %v6542, %v6645
  %v6684 = vadd.f32 %v6543, %v6650
  %v6685 = vadd.f32 %v6544, %v6655
  %v6686 = vadd.f32 %v6545, %v6660
  %v6687 = vadd.f32 %v6546, %v6665
  %v6688 = vadd.f32 %v6547, %v6670
  %v6689 = vadd.f32 %v6548, %v6675
  %v6690 = vadd.f32 %v6549, %v6680
  %6691 = vst.msk [vmem:[%s7] sm:$0xff] %vm2419, %v6683
  %6692 = vst.msk [vmem:[%s7 + $0x8] sm:$0xff] %vm2419, %v6684
  %6693 = vst.msk [vmem:[%s7 + $0x10] sm:$0xff] %vm2419, %v6685
  %6694 = vst.msk [vmem:[%s7 + $0x18] sm:$0xff] %vm2419, %v6686
  %6695 = vst.msk [vmem:[%s7 + $0x20] sm:$0xff] %vm2419, %v6687
  %6696 = vst.msk [vmem:[%s7 + $0x28] sm:$0xff] %vm2419, %v6688
  %6697 = vst.msk [vmem:[%s7 + $0x30] sm:$0xff] %vm2419, %v6689
  %6698 = vst.msk [vmem:[%s7 + $0x38] sm:$0xff] %vm2419, %v6690
  // Predicated region
  $region30: #{rnn_forward.1} parent=0 // pred_check
    _
  $region31: #{rnn_forward.1} parent=0 // pred_check_branch
    %6700 = sbr.rel (0) target = $region33
  $region32: #{rnn_forward.1} parent=0 // pred_region
    _
  $region33: #{rnn_forward.1} parent=0 // pred_fallthru
    _
  // Predicated region
  $region34: #{rnn_forward.1} parent=0 // pred_check
    _
  $region35: #{rnn_forward.1} parent=0 // pred_check_branch
    %6702 = sbr.rel (0) target = $region37
  $region36: #{rnn_forward.1} parent=0 // pred_region
    _
  $region37: #{rnn_forward.1} parent=0 // pred_fallthru
    _

</llo_original>
